<compile_context>
chip_gen: v5e
topology: v5e:2x2
jax: 0.10.0
libtpu: 0.0.40
codegen_flags: <defaults>
</compile_context>

<pallas_src>
import jax
import jax.numpy as jnp
from jax.experimental import pallas as pl
from jax.experimental.pallas import tpu as pltpu

BN_EPS = 1e-5

# bf16 storage for intermediate activations (HBM-traffic lever); all stats /
# accumulation / BN math stays f32.
ACT_DTYPE = jnp.bfloat16

# Rows of the flattened N*H*W axis targeted per grid step (review: 512-1024
# reaches ~85% of the HBM roofline on v6e and amortizes per-step overhead).
_TARGET_ROWS = 1024


# ----------------------------------------------------------------------------
# Block-size / compiler-param helpers
# ----------------------------------------------------------------------------
def _vmem_limit_bytes():
    """Raise the scoped-VMEM budget, derived from physical VMEM when known."""
    try:
        phys = pltpu.get_tpu_info().vmem_capacity_bytes
    except Exception:
        phys = 64 * 1024 * 1024          # conservative (v7x physical)
    return int(min(96 * 1024 * 1024, phys * 3 // 4))


_VMEM_LIMIT = _vmem_limit_bytes()


def _cparams():
    return pltpu.CompilerParams(
        dimension_semantics=("parallel",),
        vmem_limit_bytes=_VMEM_LIMIT,
    )


def _row_block(m):
    """Largest multiple-of-8 divisor of m <= _TARGET_ROWS, preferring >=2 steps."""
    cap = min(_TARGET_ROWS, m)
    if m >= 16:
        cap = min(cap, m // 2)           # >=2 grid steps for v7x megacore
    cap -= cap % 8
    t = cap
    while t >= 8:
        if m % t == 0:
            return t
        t -= 8
    return m


def _batch_block(n, rows_per_image):
    """Images per grid step targeting ~_TARGET_ROWS rows, preferring >=2 steps."""
    nb = max(1, _TARGET_ROWS // max(rows_per_image, 1))
    if n >= 2:
        nb = min(nb, n // 2)
    nb = max(1, min(nb, n))
    while n % nb:
        nb -= 1
    return nb


# ----------------------------------------------------------------------------
# Pallas kernels
# ----------------------------------------------------------------------------
def _stem_conv1x1_kernel(x_ref, w_ref, y1_ref, y2_ref, y3_ref, s_ref):
    # One wide matmul for the three input-side 1x1 convs; per-branch outputs
    # are static lane slices; partial BN stats cover all Cstem channels.
    y = jnp.dot(x_ref[...], w_ref[...], preferred_element_type=jnp.float32)
    c1 = y1_ref.shape[-1]
    c2 = y2_ref.shape[-1]
    y1_ref[...] = y[:, :c1].astype(y1_ref.dtype)
    y2_ref[...] = y[:, c1:c1 + c2].astype(y2_ref.dtype)
    y3_ref[...] = y[:, c1 + c2:].astype(y3_ref.dtype)
    s_ref[:, 0:1, :] = jnp.sum(y, axis=0, keepdims=True).reshape(1, 1, -1)
    s_ref[:, 1:2, :] = jnp.sum(y * y, axis=0, keepdims=True).reshape(1, 1, -1)


def _bn_relu_conv3x3_kernel(y_ref, scale_ref, shift_ref, w_ref,
                            o_ref, s_ref, xpad_ref):
    # Fused: input-side BN(train)+ReLU  ->  3x3 conv (pad=1)  ->  partial stats.
    nb, h, w, cin = y_ref.shape
    cout = o_ref.shape[-1]

    act = jnp.maximum(
        y_ref[...].astype(jnp.float32) * scale_ref[...].reshape(1, 1, 1, cin)
        + shift_ref[...].reshape(1, 1, 1, cin), 0.0)

    # 1-pixel zero halo lives in VMEM scratch (no XLA pad / HBM round trip).
    xpad_ref[...] = jnp.zeros(xpad_ref.shape, xpad_ref.dtype)
    xpad_ref[:, 1:1 + h, 1:1 + w, :] = act

    # 9 accumulating MXU matmuls (no tap-stack lane concat).
    acc = jnp.dot(xpad_ref[:, 0:h, 0:w, :].reshape(nb * h * w, cin),
                  w_ref[0], preferred_element_type=jnp.float32)
    for k in range(1, 9):
        ky, kx = k // 3, k % 3
        tap = xpad_ref[:, ky:ky + h, kx:kx + w, :].reshape(nb * h * w, cin)
        acc = acc + jnp.dot(tap, w_ref[k], preferred_element_type=jnp.float32)

    o_ref[...] = acc.astype(o_ref.dtype)
    s_ref[:, 0:1, :] = jnp.sum(acc, axis=0, keepdims=True).reshape(1, 1, cout)
    s_ref[:, 1:2, :] = jnp.sum(acc * acc, axis=0, keepdims=True).reshape(1, 1, cout)


def _maxpool_conv1x1_kernel(x_ref, w_ref, o_ref, s_ref, xpad_ref):
    # Fused: maxpool3x3(stride 1, pad 1) -> 1x1 conv -> partial stats.
    nb, h, w, cin = x_ref.shape
    cout = o_ref.shape[-1]

    xpad_ref[...] = jnp.full(xpad_ref.shape, -jnp.inf, xpad_ref.dtype)
    xpad_ref[:, 1:1 + h, 1:1 + w, :] = x_ref[...].astype(jnp.float32)

    pooled = xpad_ref[:, 1:1 + h, 1:1 + w, :]          # center tap (finite)
    for k in range(9):
        if k == 4:
            continue
        ky, kx = k // 3, k % 3
        pooled = jnp.maximum(pooled, xpad_ref[:, ky:ky + h, kx:kx + w, :])

    y = jnp.dot(pooled.reshape(nb * h * w, cin), w_ref[...],
                preferred_element_type=jnp.float32)
    o_ref[...] = y.astype(o_ref.dtype)
    s_ref[:, 0:1, :] = jnp.sum(y, axis=0, keepdims=True).reshape(1, 1, cout)
    s_ref[:, 1:2, :] = jnp.sum(y * y, axis=0, keepdims=True).reshape(1, 1, cout)


def _bn_relu_concat_kernel(y1_ref, y2_ref, y3_ref, y4_ref,
                           scale_ref, shift_ref, o_ref):
    # Per-branch BN affine + ReLU, stored straight into the concat output slab.
    off = 0
    for y_ref in (y1_ref, y2_ref, y3_ref, y4_ref):
        c = y_ref.shape[-1]
        sc = scale_ref[:, off:off + c]
        sh = shift_ref[:, off:off + c]
        o_ref[:, off:off + c] = jnp.maximum(
            y_ref[...].astype(jnp.float32) * sc + sh, 0.0)
        off += c


# ----------------------------------------------------------------------------
# pallas_call wrappers
# ----------------------------------------------------------------------------
def stem_conv1x1(xf, w_cat, c1, c2, c3):
    m, cin = xf.shape
    cstem = w_cat.shape[-1]
    tm = _row_block(m)
    nblk = m // tm
    return pl.pallas_call(
        _stem_conv1x1_kernel,
        out_shape=(jax.ShapeDtypeStruct((m, c1), ACT_DTYPE),
                   jax.ShapeDtypeStruct((m, c2), ACT_DTYPE),
                   jax.ShapeDtypeStruct((m, c3), ACT_DTYPE),
                   jax.ShapeDtypeStruct((nblk, 2, cstem), jnp.float32)),
        grid=(nblk,),
        in_specs=[pl.BlockSpec((tm, cin), lambda i: (i, 0)),
                  pl.BlockSpec((cin, cstem), lambda i: (0, 0))],
        out_specs=(pl.BlockSpec((tm, c1), lambda i: (i, 0)),
                   pl.BlockSpec((tm, c2), lambda i: (i, 0)),
                   pl.BlockSpec((tm, c3), lambda i: (i, 0)),
                   pl.BlockSpec((1, 2, cstem), lambda i: (i, 0, 0))),
        compiler_params=_cparams(),
    )(xf, w_cat)


def bn_relu_conv3x3(y_prev_flat, scale, shift, w9, n, h, wd):
    cin = y_prev_flat.shape[-1]
    cout = w9.shape[-1]
    a = y_prev_flat.reshape(n, h, wd, cin)             # free metadata reshape
    nb = _batch_block(n, h * wd)
    nblk = n // nb
    mblk = nb * h * wd
    return pl.pallas_call(
        _bn_relu_conv3x3_kernel,
        out_shape=(jax.ShapeDtypeStruct((n * h * wd, cout), ACT_DTYPE),
                   jax.ShapeDtypeStruct((nblk, 2, cout), jnp.float32)),
        grid=(nblk,),
        in_specs=[pl.BlockSpec((nb, h, wd, cin), lambda i: (i, 0, 0, 0)),
                  pl.BlockSpec((1, cin), lambda i: (0, 0)),
                  pl.BlockSpec((1, cin), lambda i: (0, 0)),
                  pl.BlockSpec((9, cin, cout), lambda i: (0, 0, 0))],
        out_specs=(pl.BlockSpec((mblk, cout), lambda i: (i, 0)),
                   pl.BlockSpec((1, 2, cout), lambda i: (i, 0, 0))),
        scratch_shapes=[pltpu.VMEM((nb, h + 2, wd + 2, cin), jnp.float32)],
        compiler_params=_cparams(),
    )(a, scale.reshape(1, cin), shift.reshape(1, cin), w9)


def maxpool_conv1x1(x_nhwc, w):
    n, h, wd, cin = x_nhwc.shape
    cout = w.shape[-1]
    nb = _batch_block(n, h * wd)
    nblk = n // nb
    mblk = nb * h * wd
    return pl.pallas_call(
        _maxpool_conv1x1_kernel,
        out_shape=(jax.ShapeDtypeStruct((n * h * wd, cout), ACT_DTYPE),
                   jax.ShapeDtypeStruct((nblk, 2, cout), jnp.float32)),
        grid=(nblk,),
        in_specs=[pl.BlockSpec((nb, h, wd, cin), lambda i: (i, 0, 0, 0)),
                  pl.BlockSpec((cin, cout), lambda i: (0, 0))],
        out_specs=(pl.BlockSpec((mblk, cout), lambda i: (i, 0)),
                   pl.BlockSpec((1, 2, cout), lambda i: (i, 0, 0))),
        scratch_shapes=[pltpu.VMEM((nb, h + 2, wd + 2, cin), jnp.float32)],
        compiler_params=_cparams(),
    )(x_nhwc, w)


def bn_relu_concat(y1, y2, y3, y4, scale_cat, shift_cat):
    m = y1.shape[0]
    ctot = scale_cat.shape[-1]
    tm = _row_block(m)
    in_specs = [pl.BlockSpec((tm, yb.shape[-1]), lambda i: (i, 0))
                for yb in (y1, y2, y3, y4)]
    in_specs += [pl.BlockSpec((1, ctot), lambda i: (0, 0)),
                 pl.BlockSpec((1, ctot), lambda i: (0, 0))]
    return pl.pallas_call(
        _bn_relu_concat_kernel,
        out_shape=jax.ShapeDtypeStruct((m, ctot), jnp.float32),
        grid=(m // tm,),
        in_specs=in_specs,
        out_specs=pl.BlockSpec((tm, ctot), lambda i: (i, 0)),
        compiler_params=_cparams(),
    )(y1, y2, y3, y4, scale_cat, shift_cat)


# ----------------------------------------------------------------------------
# BatchNorm finalize (tiny O(C) glue in plain JAX)
# ----------------------------------------------------------------------------
def _finalize_bn(stats_sum, gamma, beta, m):
    # stats_sum: (2, C) = [sum(y), sum(y^2)] over all M rows, f32.
    mean = stats_sum[0] / m
    var = jnp.maximum(stats_sum[1] / m - mean * mean, 0.0)   # biased batch var
    scale = gamma * jax.lax.rsqrt(var + BN_EPS)
    shift = beta - mean * scale
    return scale, shift


# ----------------------------------------------------------------------------
# Parameter construction (deterministic, PyTorch-default-style init).
# Conv bias omitted on purpose: training-mode BN subtracts the batch mean right
# after the conv, so the bias cancels exactly.
# ----------------------------------------------------------------------------
def _conv_bn_params(key, cin, cout, ksize):
    kw, kg, kb = jax.random.split(key, 3)
    fan_in = cin * ksize * ksize
    bound = 1.0 / float(fan_in) ** 0.5
    w = jax.random.uniform(kw, (cout, cin, ksize, ksize), jnp.float32,
                           -bound, bound)                    # PyTorch OIHW
    if ksize == 1:
        w_mat = w.reshape(cout, cin).T                       # (Cin, Cout)
    else:
        # OIHW -> (ky, kx, Cin, Cout) -> (9, Cin, Cout), ky-major / kx-minor.
        w_mat = jnp.transpose(w, (2, 3, 1, 0)).reshape(ksize * ksize, cin, cout)
    gamma = jax.random.uniform(kg, (cout,), jnp.float32, 0.5, 1.5)
    beta = jax.random.uniform(kb, (cout,), jnp.float32, -0.5, 0.5)
    return dict(w=w_mat, gamma=gamma, beta=beta)


def init_inception_params(key, in_planes, n1x1, n3x3red, n3x3, n5x5red, n5x5,
                          pool_planes):
    keys = jax.random.split(key, 7)
    return dict(
        b1=_conv_bn_params(keys[0], in_planes, n1x1, 1),
        b2_1=_conv_bn_params(keys[1], in_planes, n3x3red, 1),
        b2_2=_conv_bn_params(keys[2], n3x3red, n3x3, 3),
        b3_1=_conv_bn_params(keys[3], in_planes, n5x5red, 1),
        b3_2=_conv_bn_params(keys[4], n5x5red, n5x5, 3),
        b3_3=_conv_bn_params(keys[5], n5x5, n5x5, 3),
        b4=_conv_bn_params(keys[6], in_planes, pool_planes, 1),
    )


# ----------------------------------------------------------------------------
# Inception forward (NCHW in / NCHW out, like the PyTorch module)
# ----------------------------------------------------------------------------
def inception_forward(x_nchw, params):
    x = jnp.transpose(x_nchw, (0, 2, 3, 1))                  # NCHW -> NHWC
    n, h, wd, cin = x.shape
    m = n * h * wd
    xf = x.reshape(m, cin)

    p1, p21, p22 = params["b1"], params["b2_1"], params["b2_2"]
    p31, p32, p33, p4 = params["b3_1"], params["b3_2"], params["b3_3"], params["b4"]

    # ---- fused stem: branch1 / branch2-reduce / branch3-reduce 1x1 convs ----
    c1, c2r, c3r = p1["w"].shape[-1], p21["w"].shape[-1], p31["w"].shape[-1]
    w_stem = jnp.concatenate([p1["w"], p21["w"], p31["w"]], axis=-1)
    y1, y2r, y3r, s_stem = stem_conv1x1(xf, w_stem, c1, c2r, c3r)
    s_stem = jnp.sum(s_stem, axis=0)                         # (2, Cstem)
    sc1, sh1 = _finalize_bn(s_stem[:, :c1], p1["gamma"], p1["beta"], m)
    sc2r, sh2r = _finalize_bn(s_stem[:, c1:c1 + c2r], p21["gamma"], p21["beta"], m)
    sc3r, sh3r = _finalize_bn(s_stem[:, c1 + c2r:], p31["gamma"], p31["beta"], m)

    # ---- branch 2: fused BN+ReLU -> 3x3 conv --------------------------------
    y2, s2 = bn_relu_conv3x3(y2r, sc2r, sh2r, p22["w"], n, h, wd)
    sc2, sh2 = _finalize_bn(jnp.sum(s2, axis=0), p22["gamma"], p22["beta"], m)

    # ---- branch 3: fused BN+ReLU -> 3x3 -> fused BN+ReLU -> 3x3 -------------
    ya, sa = bn_relu_conv3x3(y3r, sc3r, sh3r, p32["w"], n, h, wd)
    sca, sha = _finalize_bn(jnp.sum(sa, axis=0), p32["gamma"], p32["beta"], m)
    y3, s3 = bn_relu_conv3x3(ya, sca, sha, p33["w"], n, h, wd)
    sc3, sh3 = _finalize_bn(jnp.sum(s3, axis=0), p33["gamma"], p33["beta"], m)

    # ---- branch 4: fused maxpool3x3 + 1x1 conv -------------------------------
    y4, s4 = maxpool_conv1x1(x, p4["w"])
    sc4, sh4 = _finalize_bn(jnp.sum(s4, axis=0), p4["gamma"], p4["beta"], m)

    # ---- fused BN+ReLU+concat output -----------------------------------------
    scale_cat = jnp.concatenate([sc1, sc2, sc3, sc4]).reshape(1, -1)
    shift_cat = jnp.concatenate([sh1, sh2, sh3, sh4]).reshape(1, -1)
    out_flat = bn_relu_concat(y1, y2, y3, y4, scale_cat, shift_cat)

    out = out_flat.reshape(n, h, wd, -1)
    return jnp.transpose(out, (0, 3, 1, 2))                  # NHWC -> NCHW


# ----------------------------------------------------------------------------
# Pure-JAX reference (verification only)
# ----------------------------------------------------------------------------
def reference_forward(x_nchw, params):
    hi = jax.lax.Precision.HIGHEST
    x = jnp.transpose(x_nchw, (0, 2, 3, 1))

    def conv1(a, w):
        return jnp.einsum("nhwc,cd->nhwd", a, w, precision=hi)

    def conv3(a, w9):
        cin, cout = a.shape[-1], w9.shape[-1]
        w_hwio = w9.reshape(3, 3, cin, cout)
        return jax.lax.conv_general_dilated(
            a, w_hwio, window_strides=(1, 1), padding="SAME",
            dimension_numbers=("NHWC", "HWIO", "NHWC"), precision=hi)

    def bn_relu_ref(y, gamma, beta):
        mean = jnp.mean(y, axis=(0, 1, 2))
        var = jnp.mean((y - mean) ** 2, axis=(0, 1, 2))
        z = (y - mean) * jax.lax.rsqrt(var + BN_EPS) * gamma + beta
        return jnp.maximum(z, 0.0)

    def block(a, p, conv):
        return bn_relu_ref(conv(a, p["w"]), p["gamma"], p["beta"])

    out1 = block(x, params["b1"], conv1)
    out2 = block(block(x, params["b2_1"], conv1), params["b2_2"], conv3)
    a = block(x, params["b3_1"], conv1)
    a = block(a, params["b3_2"], conv3)
    out3 = block(a, params["b3_3"], conv3)
    pooled = jax.lax.reduce_window(x, -jnp.inf, jax.lax.max,
                                   (1, 3, 3, 1), (1, 1, 1, 1), "SAME")
    out4 = block(pooled, params["b4"], conv1)
    out = jnp.concatenate([out1, out2, out3, out4], axis=-1)
    return jnp.transpose(out, (0, 3, 1, 2))


# ----------------------------------------------------------------------------
if __name__ == "__main__":
    key = jax.random.PRNGKey(0)
    k_x, k_p = jax.random.split(key)

    # in_planes=4, n1x1=8, n3x3red=4, n3x3=8, n5x5red=4, n5x5=8, pool_planes=8
    N, C, H, W = 2, 4, 16, 16
    x = jax.random.normal(k_x, (N, C, H, W), dtype=jnp.float32)
    params = init_inception_params(k_p, in_planes=4, n1x1=8, n3x3red=4,
                                   n3x3=8, n5x5red=4, n5x5=8, pool_planes=8)

    fwd = jax.jit(inception_forward)
    out = jax.block_until_ready(fwd(x, params))

    expected = (N, 8 + 8 + 8 + 8, H, W)
    assert out.shape == expected, (out.shape, expected)
    assert bool(jnp.all(jnp.isfinite(out)))

    ref = reference_forward(x, params)
    max_err = float(jnp.max(jnp.abs(out - ref)))
    # bf16 storage of intermediate activations adds ~1e-2-scale rounding across
    # the 3-conv branch relative to the pure-f32 reference.
    assert max_err < 1e-1, f"max abs error vs reference: {max_err}"

    print("KERNEL_OK")
</pallas_src>

<mosaic_0001>
module attributes {stable_mosaic.version = 11 : i64} {
  func.func @_stem_conv1x1_kernel(%arg0: i32, %arg1: memref<256x4xf32, #tpu.memory_space<vmem>>, %arg2: memref<4x16xf32, #tpu.memory_space<vmem>>, %arg3: memref<256x8xbf16, #tpu.memory_space<vmem>>, %arg4: memref<256x4xbf16, #tpu.memory_space<vmem>>, %arg5: memref<256x4xbf16, #tpu.memory_space<vmem>>, %arg6: memref<1x2x16xf32, #tpu.memory_space<vmem>>) attributes {dimension_semantics = [#tpu.dimension_semantics<parallel>], iteration_bounds = array<i64: 2>, scalar_prefetch = 0 : i64, scratch_operands = 0 : i64, tpu.core_type = #tpu.core_type<tc>, window_params = [{transform_indices = @transform_0, window_bounds = array<i64: 256, 4>}, {pipeline_mode = #tpu.pipeline_mode<synchronous>, transform_indices = @transform_1, window_bounds = array<i64: 4, 16>}, {transform_indices = @transform_2, window_bounds = array<i64: 256, 8>}, {transform_indices = @transform_3, window_bounds = array<i64: 256, 4>}, {transform_indices = @transform_4, window_bounds = array<i64: 256, 4>}, {transform_indices = @transform_5, window_bounds = array<i64: 1, 2, 16>}]} {
    %c0 = arith.constant 0 : index
    %c0_0 = arith.constant 0 : index
    %0 = vector.load %arg1[%c0, %c0_0] : memref<256x4xf32, #tpu.memory_space<vmem>>, vector<256x4xf32>
    %c0_1 = arith.constant 0 : index
    %c0_2 = arith.constant 0 : index
    %1 = vector.load %arg2[%c0_1, %c0_2] : memref<4x16xf32, #tpu.memory_space<vmem>>, vector<4x16xf32>
    %cst = arith.constant dense<0.000000e+00> : vector<256x16xf32>
    %2 = tpu.matmul %0, %1, %cst {dimension_numbers = #tpu.dot_dimension_numbers<[1], [0], [0], [1], [0, 0, 1, 1], [], []>} : vector<256x4xf32>, vector<4x16xf32>, vector<256x16xf32> -> vector<256x16xf32>
    %3 = vector.extract_strided_slice %2 {offsets = [0, 0], sizes = [256, 8], strides = [1, 1]} : vector<256x16xf32> to vector<256x8xf32>
    %4 = arith.truncf %3 : vector<256x8xf32> to vector<256x8xbf16>
    %c0_3 = arith.constant 0 : index
    %c0_4 = arith.constant 0 : index
    %5 = vector.load %arg3[%c0_3, %c0_4] : memref<256x8xbf16, #tpu.memory_space<vmem>>, vector<256x8xbf16>
    tpu.vector_store %arg3[%c0_3, %c0_4], %4 {strides = array<i32>} : memref<256x8xbf16, #tpu.memory_space<vmem>>, vector<256x8xbf16>,
    %6 = vector.extract_strided_slice %2 {offsets = [0, 8], sizes = [256, 4], strides = [1, 1]} : vector<256x16xf32> to vector<256x4xf32>
    %7 = arith.truncf %6 : vector<256x4xf32> to vector<256x4xbf16>
    %c0_5 = arith.constant 0 : index
    %c0_6 = arith.constant 0 : index
    %8 = vector.load %arg4[%c0_5, %c0_6] : memref<256x4xbf16, #tpu.memory_space<vmem>>, vector<256x4xbf16>
    tpu.vector_store %arg4[%c0_5, %c0_6], %7 {strides = array<i32>} : memref<256x4xbf16, #tpu.memory_space<vmem>>, vector<256x4xbf16>,
    %9 = vector.extract_strided_slice %2 {offsets = [0, 12], sizes = [256, 4], strides = [1, 1]} : vector<256x16xf32> to vector<256x4xf32>
    %10 = arith.truncf %9 : vector<256x4xf32> to vector<256x4xbf16>
    %c0_7 = arith.constant 0 : index
    %c0_8 = arith.constant 0 : index
    %11 = vector.load %arg5[%c0_7, %c0_8] : memref<256x4xbf16, #tpu.memory_space<vmem>>, vector<256x4xbf16>
    tpu.vector_store %arg5[%c0_7, %c0_8], %10 {strides = array<i32>} : memref<256x4xbf16, #tpu.memory_space<vmem>>, vector<256x4xbf16>,
    %cst_9 = arith.constant dense<0.000000e+00> : vector<16xf32>
    %12 = vector.multi_reduction <add>, %2, %cst_9 [0] : vector<256x16xf32> to vector<16xf32>
    %13 = vector.shape_cast %12 : vector<16xf32> to vector<1x16xf32>
    %14 = vector.shape_cast %13 : vector<1x16xf32> to vector<1x1x16xf32>
    %c0_10 = arith.constant 0 : index
    %c0_11 = arith.constant 0 : index
    %c0_12 = arith.constant 0 : index
    %15 = vector.load %arg6[%c0_10, %c0_11, %c0_12] : memref<1x2x16xf32, #tpu.memory_space<vmem>>, vector<1x1x16xf32>
    tpu.vector_store %arg6[%c0_10, %c0_11, %c0_12], %14 {strides = array<i32>} : memref<1x2x16xf32, #tpu.memory_space<vmem>>, vector<1x1x16xf32>,
    %16 = arith.mulf %2, %2 : vector<256x16xf32>
    %cst_13 = arith.constant dense<0.000000e+00> : vector<16xf32>
    %17 = vector.multi_reduction <add>, %16, %cst_13 [0] : vector<256x16xf32> to vector<16xf32>
    %18 = vector.shape_cast %17 : vector<16xf32> to vector<1x16xf32>
    %19 = vector.shape_cast %18 : vector<1x16xf32> to vector<1x1x16xf32>
    %c0_14 = arith.constant 0 : index
    %c1 = arith.constant 1 : index
    %c0_15 = arith.constant 0 : index
    %20 = vector.load %arg6[%c0_14, %c1, %c0_15] : memref<1x2x16xf32, #tpu.memory_space<vmem>>, vector<1x1x16xf32>
    tpu.vector_store %arg6[%c0_14, %c1, %c0_15], %19 {strides = array<i32>} : memref<1x2x16xf32, #tpu.memory_space<vmem>>, vector<1x1x16xf32>,
    return
  }
  func.func @transform_0(%arg0: i32) -> (i32, i32) {
    %c0_i32 = arith.constant 0 : i32
    %c0_i32_0 = arith.constant 0 : i32
    return %arg0, %c0_i32 : i32, i32
  }
  func.func @transform_1(%arg0: i32) -> (i32, i32) {
    %c0_i32 = arith.constant 0 : i32
    %c0_i32_0 = arith.constant 0 : i32
    %c0_i32_1 = arith.constant 0 : i32
    return %c0_i32, %c0_i32_0 : i32, i32
  }
  func.func @transform_2(%arg0: i32) -> (i32, i32) {
    %c0_i32 = arith.constant 0 : i32
    %c0_i32_0 = arith.constant 0 : i32
    return %arg0, %c0_i32 : i32, i32
  }
  func.func @transform_3(%arg0: i32) -> (i32, i32) {
    %c0_i32 = arith.constant 0 : i32
    %c0_i32_0 = arith.constant 0 : i32
    return %arg0, %c0_i32 : i32, i32
  }
  func.func @transform_4(%arg0: i32) -> (i32, i32) {
    %c0_i32 = arith.constant 0 : i32
    %c0_i32_0 = arith.constant 0 : i32
    return %arg0, %c0_i32 : i32, i32
  }
  func.func @transform_5(%arg0: i32) -> (i32, i32, i32) {
    %c0_i32 = arith.constant 0 : i32
    %c0_i32_0 = arith.constant 0 : i32
    %c0_i32_1 = arith.constant 0 : i32
    return %arg0, %c0_i32, %c0_i32_0 : i32, i32, i32
  }
}

module attributes {stable_mosaic.version = 11 : i64} {
  func.func @_bn_relu_conv3x3_kernel(%arg0: i32, %arg1: memref<1x16x16x4xbf16, #tpu.memory_space<vmem>>, %arg2: memref<1x4xf32, #tpu.memory_space<vmem>>, %arg3: memref<1x4xf32, #tpu.memory_space<vmem>>, %arg4: memref<9x4x8xf32, #tpu.memory_space<vmem>>, %arg5: memref<256x8xbf16, #tpu.memory_space<vmem>>, %arg6: memref<1x2x8xf32, #tpu.memory_space<vmem>>, %arg7: memref<1x18x18x4xf32, #tpu.memory_space<vmem>>) attributes {dimension_semantics = [#tpu.dimension_semantics<parallel>], iteration_bounds = array<i64: 2>, scalar_prefetch = 0 : i64, scratch_operands = 1 : i64, tpu.core_type = #tpu.core_type<tc>, window_params = [{transform_indices = @transform_0, window_bounds = array<i64: 1, 16, 16, 4>}, {pipeline_mode = #tpu.pipeline_mode<synchronous>, transform_indices = @transform_1, window_bounds = array<i64: 1, 4>}, {pipeline_mode = #tpu.pipeline_mode<synchronous>, transform_indices = @transform_2, window_bounds = array<i64: 1, 4>}, {pipeline_mode = #tpu.pipeline_mode<synchronous>, transform_indices = @transform_3, window_bounds = array<i64: 9, 4, 8>}, {transform_indices = @transform_4, window_bounds = array<i64: 256, 8>}, {transform_indices = @transform_5, window_bounds = array<i64: 1, 2, 8>}]} {
    %c0 = arith.constant 0 : index
    %c0_0 = arith.constant 0 : index
    %c0_1 = arith.constant 0 : index
    %c0_2 = arith.constant 0 : index
    %0 = vector.load %arg1[%c0, %c0_0, %c0_1, %c0_2] : memref<1x16x16x4xbf16, #tpu.memory_space<vmem>>, vector<1x16x16x4xbf16>
    %1 = arith.extf %0 : vector<1x16x16x4xbf16> to vector<1x16x16x4xf32>
    %c0_3 = arith.constant 0 : index
    %c0_4 = arith.constant 0 : index
    %2 = vector.load %arg2[%c0_3, %c0_4] : memref<1x4xf32, #tpu.memory_space<vmem>>, vector<1x4xf32>
    %3 = vector.shape_cast %2 : vector<1x4xf32> to vector<1x1x1x4xf32>
    %4 = vector.broadcast %3 : vector<1x1x1x4xf32> to vector<1x16x16x4xf32>
    %5 = arith.mulf %1, %4 : vector<1x16x16x4xf32>
    %c0_5 = arith.constant 0 : index
    %c0_6 = arith.constant 0 : index
    %6 = vector.load %arg3[%c0_5, %c0_6] : memref<1x4xf32, #tpu.memory_space<vmem>>, vector<1x4xf32>
    %7 = vector.shape_cast %6 : vector<1x4xf32> to vector<1x1x1x4xf32>
    %8 = vector.broadcast %7 : vector<1x1x1x4xf32> to vector<1x16x16x4xf32>
    %9 = arith.addf %5, %8 : vector<1x16x16x4xf32>
    %cst = arith.constant 0.000000e+00 : f32
    %10 = vector.broadcast %cst : f32 to vector<1x16x16x4xf32>
    %11 = arith.maximumf %9, %10 : vector<1x16x16x4xf32>
    %cst_7 = arith.constant 0.000000e+00 : f32
    %12 = vector.broadcast %cst_7 : f32 to vector<1x18x18x4xf32>
    %c0_8 = arith.constant 0 : index
    %c0_9 = arith.constant 0 : index
    %c0_10 = arith.constant 0 : index
    %c0_11 = arith.constant 0 : index
    %13 = vector.load %arg7[%c0_8, %c0_9, %c0_10, %c0_11] : memref<1x18x18x4xf32, #tpu.memory_space<vmem>>, vector<1x18x18x4xf32>
    tpu.vector_store %arg7[%c0_8, %c0_9, %c0_10, %c0_11], %12 {strides = array<i32>} : memref<1x18x18x4xf32, #tpu.memory_space<vmem>>, vector<1x18x18x4xf32>,
    %c0_12 = arith.constant 0 : index
    %c1 = arith.constant 1 : index
    %c1_13 = arith.constant 1 : index
    %c0_14 = arith.constant 0 : index
    %14 = vector.load %arg7[%c0_12, %c1, %c1_13, %c0_14] : memref<1x18x18x4xf32, #tpu.memory_space<vmem>>, vector<1x16x16x4xf32>
    tpu.vector_store %arg7[%c0_12, %c1, %c1_13, %c0_14], %11 {strides = array<i32>} : memref<1x18x18x4xf32, #tpu.memory_space<vmem>>, vector<1x16x16x4xf32>,
    %c0_15 = arith.constant 0 : index
    %c0_16 = arith.constant 0 : index
    %c0_17 = arith.constant 0 : index
    %c0_18 = arith.constant 0 : index
    %15 = vector.load %arg7[%c0_15, %c0_16, %c0_17, %c0_18] : memref<1x18x18x4xf32, #tpu.memory_space<vmem>>, vector<1x16x16x4xf32>
    %16 = vector.shape_cast %15 : vector<1x16x16x4xf32> to vector<256x4xf32>
    %c0_19 = arith.constant 0 : index
    %c0_20 = arith.constant 0 : index
    %c0_21 = arith.constant 0 : index
    %17 = vector.load %arg4[%c0_19, %c0_20, %c0_21] : memref<9x4x8xf32, #tpu.memory_space<vmem>>, vector<1x4x8xf32>
    %18 = vector.shape_cast %17 : vector<1x4x8xf32> to vector<4x8xf32>
    %cst_22 = arith.constant dense<0.000000e+00> : vector<256x8xf32>
    %19 = tpu.matmul %16, %18, %cst_22 {dimension_numbers = #tpu.dot_dimension_numbers<[1], [0], [0], [1], [0, 0, 1, 1], [], []>} : vector<256x4xf32>, vector<4x8xf32>, vector<256x8xf32> -> vector<256x8xf32>
    %c0_23 = arith.constant 0 : index
    %c0_24 = arith.constant 0 : index
    %c1_25 = arith.constant 1 : index
    %c0_26 = arith.constant 0 : index
    %20 = vector.load %arg7[%c0_23, %c0_24, %c1_25, %c0_26] : memref<1x18x18x4xf32, #tpu.memory_space<vmem>>, vector<1x16x16x4xf32>
    %21 = vector.shape_cast %20 : vector<1x16x16x4xf32> to vector<256x4xf32>
    %c1_27 = arith.constant 1 : index
    %c0_28 = arith.constant 0 : index
    %c0_29 = arith.constant 0 : index
    %22 = vector.load %arg4[%c1_27, %c0_28, %c0_29] : memref<9x4x8xf32, #tpu.memory_space<vmem>>, vector<1x4x8xf32>
    %23 = vector.shape_cast %22 : vector<1x4x8xf32> to vector<4x8xf32>
    %cst_30 = arith.constant dense<0.000000e+00> : vector<256x8xf32>
    %24 = tpu.matmul %21, %23, %cst_30 {dimension_numbers = #tpu.dot_dimension_numbers<[1], [0], [0], [1], [0, 0, 1, 1], [], []>} : vector<256x4xf32>, vector<4x8xf32>, vector<256x8xf32> -> vector<256x8xf32>
    %25 = arith.addf %19, %24 : vector<256x8xf32>
    %c0_31 = arith.constant 0 : index
    %c0_32 = arith.constant 0 : index
    %c2 = arith.constant 2 : index
    %c0_33 = arith.constant 0 : index
    %26 = vector.load %arg7[%c0_31, %c0_32, %c2, %c0_33] : memref<1x18x18x4xf32, #tpu.memory_space<vmem>>, vector<1x16x16x4xf32>
    %27 = vector.shape_cast %26 : vector<1x16x16x4xf32> to vector<256x4xf32>
    %c2_34 = arith.constant 2 : index
    %c0_35 = arith.constant 0 : index
    %c0_36 = arith.constant 0 : index
    %28 = vector.load %arg4[%c2_34, %c0_35, %c0_36] : memref<9x4x8xf32, #tpu.memory_space<vmem>>, vector<1x4x8xf32>
    %29 = vector.shape_cast %28 : vector<1x4x8xf32> to vector<4x8xf32>
    %cst_37 = arith.constant dense<0.000000e+00> : vector<256x8xf32>
    %30 = tpu.matmul %27, %29, %cst_37 {dimension_numbers = #tpu.dot_dimension_numbers<[1], [0], [0], [1], [0, 0, 1, 1], [], []>} : vector<256x4xf32>, vector<4x8xf32>, vector<256x8xf32> -> vector<256x8xf32>
    %31 = arith.addf %25, %30 : vector<256x8xf32>
    %c0_38 = arith.constant 0 : index
    %c1_39 = arith.constant 1 : index
    %c0_40 = arith.constant 0 : index
    %c0_41 = arith.constant 0 : index
    %32 = vector.load %arg7[%c0_38, %c1_39, %c0_40, %c0_41] : memref<1x18x18x4xf32, #tpu.memory_space<vmem>>, vector<1x16x16x4xf32>
    %33 = vector.shape_cast %32 : vector<1x16x16x4xf32> to vector<256x4xf32>
    %c3 = arith.constant 3 : index
    %c0_42 = arith.constant 0 : index
    %c0_43 = arith.constant 0 : index
    %34 = vector.load %arg4[%c3, %c0_42, %c0_43] : memref<9x4x8xf32, #tpu.memory_space<vmem>>, vector<1x4x8xf32>
    %35 = vector.shape_cast %34 : vector<1x4x8xf32> to vector<4x8xf32>
    %cst_44 = arith.constant dense<0.000000e+00> : vector<256x8xf32>
    %36 = tpu.matmul %33, %35, %cst_44 {dimension_numbers = #tpu.dot_dimension_numbers<[1], [0], [0], [1], [0, 0, 1, 1], [], []>} : vector<256x4xf32>, vector<4x8xf32>, vector<256x8xf32> -> vector<256x8xf32>
    %37 = arith.addf %31, %36 : vector<256x8xf32>
    %c0_45 = arith.constant 0 : index
    %c1_46 = arith.constant 1 : index
    %c1_47 = arith.constant 1 : index
    %c0_48 = arith.constant 0 : index
    %38 = vector.load %arg7[%c0_45, %c1_46, %c1_47, %c0_48] : memref<1x18x18x4xf32, #tpu.memory_space<vmem>>, vector<1x16x16x4xf32>
    %39 = vector.shape_cast %38 : vector<1x16x16x4xf32> to vector<256x4xf32>
    %c4 = arith.constant 4 : index
    %c0_49 = arith.constant 0 : index
    %c0_50 = arith.constant 0 : index
    %40 = vector.load %arg4[%c4, %c0_49, %c0_50] : memref<9x4x8xf32, #tpu.memory_space<vmem>>, vector<1x4x8xf32>
    %41 = vector.shape_cast %40 : vector<1x4x8xf32> to vector<4x8xf32>
    %cst_51 = arith.constant dense<0.000000e+00> : vector<256x8xf32>
    %42 = tpu.matmul %39, %41, %cst_51 {dimension_numbers = #tpu.dot_dimension_numbers<[1], [0], [0], [1], [0, 0, 1, 1], [], []>} : vector<256x4xf32>, vector<4x8xf32>, vector<256x8xf32> -> vector<256x8xf32>
    %43 = arith.addf %37, %42 : vector<256x8xf32>
    %c0_52 = arith.constant 0 : index
    %c1_53 = arith.constant 1 : index
    %c2_54 = arith.constant 2 : index
    %c0_55 = arith.constant 0 : index
    %44 = vector.load %arg7[%c0_52, %c1_53, %c2_54, %c0_55] : memref<1x18x18x4xf32, #tpu.memory_space<vmem>>, vector<1x16x16x4xf32>
    %45 = vector.shape_cast %44 : vector<1x16x16x4xf32> to vector<256x4xf32>
    %c5 = arith.constant 5 : index
    %c0_56 = arith.constant 0 : index
    %c0_57 = arith.constant 0 : index
    %46 = vector.load %arg4[%c5, %c0_56, %c0_57] : memref<9x4x8xf32, #tpu.memory_space<vmem>>, vector<1x4x8xf32>
    %47 = vector.shape_cast %46 : vector<1x4x8xf32> to vector<4x8xf32>
    %cst_58 = arith.constant dense<0.000000e+00> : vector<256x8xf32>
    %48 = tpu.matmul %45, %47, %cst_58 {dimension_numbers = #tpu.dot_dimension_numbers<[1], [0], [0], [1], [0, 0, 1, 1], [], []>} : vector<256x4xf32>, vector<4x8xf32>, vector<256x8xf32> -> vector<256x8xf32>
    %49 = arith.addf %43, %48 : vector<256x8xf32>
    %c0_59 = arith.constant 0 : index
    %c2_60 = arith.constant 2 : index
    %c0_61 = arith.constant 0 : index
    %c0_62 = arith.constant 0 : index
    %50 = vector.load %arg7[%c0_59, %c2_60, %c0_61, %c0_62] : memref<1x18x18x4xf32, #tpu.memory_space<vmem>>, vector<1x16x16x4xf32>
    %51 = vector.shape_cast %50 : vector<1x16x16x4xf32> to vector<256x4xf32>
    %c6 = arith.constant 6 : index
    %c0_63 = arith.constant 0 : index
    %c0_64 = arith.constant 0 : index
    %52 = vector.load %arg4[%c6, %c0_63, %c0_64] : memref<9x4x8xf32, #tpu.memory_space<vmem>>, vector<1x4x8xf32>
    %53 = vector.shape_cast %52 : vector<1x4x8xf32> to vector<4x8xf32>
    %cst_65 = arith.constant dense<0.000000e+00> : vector<256x8xf32>
    %54 = tpu.matmul %51, %53, %cst_65 {dimension_numbers = #tpu.dot_dimension_numbers<[1], [0], [0], [1], [0, 0, 1, 1], [], []>} : vector<256x4xf32>, vector<4x8xf32>, vector<256x8xf32> -> vector<256x8xf32>
    %55 = arith.addf %49, %54 : vector<256x8xf32>
    %c0_66 = arith.constant 0 : index
    %c2_67 = arith.constant 2 : index
    %c1_68 = arith.constant 1 : index
    %c0_69 = arith.constant 0 : index
    %56 = vector.load %arg7[%c0_66, %c2_67, %c1_68, %c0_69] : memref<1x18x18x4xf32, #tpu.memory_space<vmem>>, vector<1x16x16x4xf32>
    %57 = vector.shape_cast %56 : vector<1x16x16x4xf32> to vector<256x4xf32>
    %c7 = arith.constant 7 : index
    %c0_70 = arith.constant 0 : index
    %c0_71 = arith.constant 0 : index
    %58 = vector.load %arg4[%c7, %c0_70, %c0_71] : memref<9x4x8xf32, #tpu.memory_space<vmem>>, vector<1x4x8xf32>
    %59 = vector.shape_cast %58 : vector<1x4x8xf32> to vector<4x8xf32>
    %cst_72 = arith.constant dense<0.000000e+00> : vector<256x8xf32>
    %60 = tpu.matmul %57, %59, %cst_72 {dimension_numbers = #tpu.dot_dimension_numbers<[1], [0], [0], [1], [0, 0, 1, 1], [], []>} : vector<256x4xf32>, vector<4x8xf32>, vector<256x8xf32> -> vector<256x8xf32>
    %61 = arith.addf %55, %60 : vector<256x8xf32>
    %c0_73 = arith.constant 0 : index
    %c2_74 = arith.constant 2 : index
    %c2_75 = arith.constant 2 : index
    %c0_76 = arith.constant 0 : index
    %62 = vector.load %arg7[%c0_73, %c2_74, %c2_75, %c0_76] : memref<1x18x18x4xf32, #tpu.memory_space<vmem>>, vector<1x16x16x4xf32>
    %63 = vector.shape_cast %62 : vector<1x16x16x4xf32> to vector<256x4xf32>
    %c8 = arith.constant 8 : index
    %c0_77 = arith.constant 0 : index
    %c0_78 = arith.constant 0 : index
    %64 = vector.load %arg4[%c8, %c0_77, %c0_78] : memref<9x4x8xf32, #tpu.memory_space<vmem>>, vector<1x4x8xf32>
    %65 = vector.shape_cast %64 : vector<1x4x8xf32> to vector<4x8xf32>
    %cst_79 = arith.constant dense<0.000000e+00> : vector<256x8xf32>
    %66 = tpu.matmul %63, %65, %cst_79 {dimension_numbers = #tpu.dot_dimension_numbers<[1], [0], [0], [1], [0, 0, 1, 1], [], []>} : vector<256x4xf32>, vector<4x8xf32>, vector<256x8xf32> -> vector<256x8xf32>
    %67 = arith.addf %61, %66 : vector<256x8xf32>
    %68 = arith.truncf %67 : vector<256x8xf32> to vector<256x8xbf16>
    %c0_80 = arith.constant 0 : index
    %c0_81 = arith.constant 0 : index
    %69 = vector.load %arg5[%c0_80, %c0_81] : memref<256x8xbf16, #tpu.memory_space<vmem>>, vector<256x8xbf16>
    tpu.vector_store %arg5[%c0_80, %c0_81], %68 {strides = array<i32>} : memref<256x8xbf16, #tpu.memory_space<vmem>>, vector<256x8xbf16>,
    %cst_82 = arith.constant dense<0.000000e+00> : vector<8xf32>
    %70 = vector.multi_reduction <add>, %67, %cst_82 [0] : vector<256x8xf32> to vector<8xf32>
    %71 = vector.shape_cast %70 : vector<8xf32> to vector<1x8xf32>
    %72 = vector.shape_cast %71 : vector<1x8xf32> to vector<1x1x8xf32>
    %c0_83 = arith.constant 0 : index
    %c0_84 = arith.constant 0 : index
    %c0_85 = arith.constant 0 : index
    %73 = vector.load %arg6[%c0_83, %c0_84, %c0_85] : memref<1x2x8xf32, #tpu.memory_space<vmem>>, vector<1x1x8xf32>
    tpu.vector_store %arg6[%c0_83, %c0_84, %c0_85], %72 {strides = array<i32>} : memref<1x2x8xf32, #tpu.memory_space<vmem>>, vector<1x1x8xf32>,
    %74 = arith.mulf %67, %67 : vector<256x8xf32>
    %cst_86 = arith.constant dense<0.000000e+00> : vector<8xf32>
    %75 = vector.multi_reduction <add>, %74, %cst_86 [0] : vector<256x8xf32> to vector<8xf32>
    %76 = vector.shape_cast %75 : vector<8xf32> to vector<1x8xf32>
    %77 = vector.shape_cast %76 : vector<1x8xf32> to vector<1x1x8xf32>
    %c0_87 = arith.constant 0 : index
    %c1_88 = arith.constant 1 : index
    %c0_89 = arith.constant 0 : index
    %78 = vector.load %arg6[%c0_87, %c1_88, %c0_89] : memref<1x2x8xf32, #tpu.memory_space<vmem>>, vector<1x1x8xf32>
    tpu.vector_store %arg6[%c0_87, %c1_88, %c0_89], %77 {strides = array<i32>} : memref<1x2x8xf32, #tpu.memory_space<vmem>>, vector<1x1x8xf32>,
    return
  }
  func.func @transform_0(%arg0: i32) -> (i32, i32, i32, i32) {
    %c0_i32 = arith.constant 0 : i32
    %c0_i32_0 = arith.constant 0 : i32
    %c0_i32_1 = arith.constant 0 : i32
    %c0_i32_2 = arith.constant 0 : i32
    return %arg0, %c0_i32, %c0_i32_0, %c0_i32_1 : i32, i32, i32, i32
  }
  func.func @transform_1(%arg0: i32) -> (i32, i32) {
    %c0_i32 = arith.constant 0 : i32
    %c0_i32_0 = arith.constant 0 : i32
    %c0_i32_1 = arith.constant 0 : i32
    return %c0_i32, %c0_i32_0 : i32, i32
  }
  func.func @transform_2(%arg0: i32) -> (i32, i32) {
    %c0_i32 = arith.constant 0 : i32
    %c0_i32_0 = arith.constant 0 : i32
    %c0_i32_1 = arith.constant 0 : i32
    return %c0_i32, %c0_i32_0 : i32, i32
  }
  func.func @transform_3(%arg0: i32) -> (i32, i32, i32) {
    %c0_i32 = arith.constant 0 : i32
    %c0_i32_0 = arith.constant 0 : i32
    %c0_i32_1 = arith.constant 0 : i32
    %c0_i32_2 = arith.constant 0 : i32
    return %c0_i32, %c0_i32_0, %c0_i32_1 : i32, i32, i32
  }
  func.func @transform_4(%arg0: i32) -> (i32, i32) {
    %c0_i32 = arith.constant 0 : i32
    %c0_i32_0 = arith.constant 0 : i32
    return %arg0, %c0_i32 : i32, i32
  }
  func.func @transform_5(%arg0: i32) -> (i32, i32, i32) {
    %c0_i32 = arith.constant 0 : i32
    %c0_i32_0 = arith.constant 0 : i32
    %c0_i32_1 = arith.constant 0 : i32
    return %arg0, %c0_i32, %c0_i32_0 : i32, i32, i32
  }
}

module attributes {stable_mosaic.version = 11 : i64} {
  func.func @_bn_relu_conv3x3_kernel(%arg0: i32, %arg1: memref<1x16x16x8xbf16, #tpu.memory_space<vmem>>, %arg2: memref<1x8xf32, #tpu.memory_space<vmem>>, %arg3: memref<1x8xf32, #tpu.memory_space<vmem>>, %arg4: memref<9x8x8xf32, #tpu.memory_space<vmem>>, %arg5: memref<256x8xbf16, #tpu.memory_space<vmem>>, %arg6: memref<1x2x8xf32, #tpu.memory_space<vmem>>, %arg7: memref<1x18x18x8xf32, #tpu.memory_space<vmem>>) attributes {dimension_semantics = [#tpu.dimension_semantics<parallel>], iteration_bounds = array<i64: 2>, scalar_prefetch = 0 : i64, scratch_operands = 1 : i64, tpu.core_type = #tpu.core_type<tc>, window_params = [{transform_indices = @transform_0, window_bounds = array<i64: 1, 16, 16, 8>}, {pipeline_mode = #tpu.pipeline_mode<synchronous>, transform_indices = @transform_1, window_bounds = array<i64: 1, 8>}, {pipeline_mode = #tpu.pipeline_mode<synchronous>, transform_indices = @transform_2, window_bounds = array<i64: 1, 8>}, {pipeline_mode = #tpu.pipeline_mode<synchronous>, transform_indices = @transform_3, window_bounds = array<i64: 9, 8, 8>}, {transform_indices = @transform_4, window_bounds = array<i64: 256, 8>}, {transform_indices = @transform_5, window_bounds = array<i64: 1, 2, 8>}]} {
    %c0 = arith.constant 0 : index
    %c0_0 = arith.constant 0 : index
    %c0_1 = arith.constant 0 : index
    %c0_2 = arith.constant 0 : index
    %0 = vector.load %arg1[%c0, %c0_0, %c0_1, %c0_2] : memref<1x16x16x8xbf16, #tpu.memory_space<vmem>>, vector<1x16x16x8xbf16>
    %1 = arith.extf %0 : vector<1x16x16x8xbf16> to vector<1x16x16x8xf32>
    %c0_3 = arith.constant 0 : index
    %c0_4 = arith.constant 0 : index
    %2 = vector.load %arg2[%c0_3, %c0_4] : memref<1x8xf32, #tpu.memory_space<vmem>>, vector<1x8xf32>
    %3 = vector.shape_cast %2 : vector<1x8xf32> to vector<1x1x1x8xf32>
    %4 = vector.broadcast %3 : vector<1x1x1x8xf32> to vector<1x16x16x8xf32>
    %5 = arith.mulf %1, %4 : vector<1x16x16x8xf32>
    %c0_5 = arith.constant 0 : index
    %c0_6 = arith.constant 0 : index
    %6 = vector.load %arg3[%c0_5, %c0_6] : memref<1x8xf32, #tpu.memory_space<vmem>>, vector<1x8xf32>
    %7 = vector.shape_cast %6 : vector<1x8xf32> to vector<1x1x1x8xf32>
    %8 = vector.broadcast %7 : vector<1x1x1x8xf32> to vector<1x16x16x8xf32>
    %9 = arith.addf %5, %8 : vector<1x16x16x8xf32>
    %cst = arith.constant 0.000000e+00 : f32
    %10 = vector.broadcast %cst : f32 to vector<1x16x16x8xf32>
    %11 = arith.maximumf %9, %10 : vector<1x16x16x8xf32>
    %cst_7 = arith.constant 0.000000e+00 : f32
    %12 = vector.broadcast %cst_7 : f32 to vector<1x18x18x8xf32>
    %c0_8 = arith.constant 0 : index
    %c0_9 = arith.constant 0 : index
    %c0_10 = arith.constant 0 : index
    %c0_11 = arith.constant 0 : index
    %13 = vector.load %arg7[%c0_8, %c0_9, %c0_10, %c0_11] : memref<1x18x18x8xf32, #tpu.memory_space<vmem>>, vector<1x18x18x8xf32>
    tpu.vector_store %arg7[%c0_8, %c0_9, %c0_10, %c0_11], %12 {strides = array<i32>} : memref<1x18x18x8xf32, #tpu.memory_space<vmem>>, vector<1x18x18x8xf32>,
    %c0_12 = arith.constant 0 : index
    %c1 = arith.constant 1 : index
    %c1_13 = arith.constant 1 : index
    %c0_14 = arith.constant 0 : index
    %14 = vector.load %arg7[%c0_12, %c1, %c1_13, %c0_14] : memref<1x18x18x8xf32, #tpu.memory_space<vmem>>, vector<1x16x16x8xf32>
    tpu.vector_store %arg7[%c0_12, %c1, %c1_13, %c0_14], %11 {strides = array<i32>} : memref<1x18x18x8xf32, #tpu.memory_space<vmem>>, vector<1x16x16x8xf32>,
    %c0_15 = arith.constant 0 : index
    %c0_16 = arith.constant 0 : index
    %c0_17 = arith.constant 0 : index
    %c0_18 = arith.constant 0 : index
    %15 = vector.load %arg7[%c0_15, %c0_16, %c0_17, %c0_18] : memref<1x18x18x8xf32, #tpu.memory_space<vmem>>, vector<1x16x16x8xf32>
    %16 = vector.shape_cast %15 : vector<1x16x16x8xf32> to vector<256x8xf32>
    %c0_19 = arith.constant 0 : index
    %c0_20 = arith.constant 0 : index
    %c0_21 = arith.constant 0 : index
    %17 = vector.load %arg4[%c0_19, %c0_20, %c0_21] : memref<9x8x8xf32, #tpu.memory_space<vmem>>, vector<1x8x8xf32>
    %18 = vector.shape_cast %17 : vector<1x8x8xf32> to vector<8x8xf32>
    %cst_22 = arith.constant dense<0.000000e+00> : vector<256x8xf32>
    %19 = tpu.matmul %16, %18, %cst_22 {dimension_numbers = #tpu.dot_dimension_numbers<[1], [0], [0], [1], [0, 0, 1, 1], [], []>} : vector<256x8xf32>, vector<8x8xf32>, vector<256x8xf32> -> vector<256x8xf32>
    %c0_23 = arith.constant 0 : index
    %c0_24 = arith.constant 0 : index
    %c1_25 = arith.constant 1 : index
    %c0_26 = arith.constant 0 : index
    %20 = vector.load %arg7[%c0_23, %c0_24, %c1_25, %c0_26] : memref<1x18x18x8xf32, #tpu.memory_space<vmem>>, vector<1x16x16x8xf32>
    %21 = vector.shape_cast %20 : vector<1x16x16x8xf32> to vector<256x8xf32>
    %c1_27 = arith.constant 1 : index
    %c0_28 = arith.constant 0 : index
    %c0_29 = arith.constant 0 : index
    %22 = vector.load %arg4[%c1_27, %c0_28, %c0_29] : memref<9x8x8xf32, #tpu.memory_space<vmem>>, vector<1x8x8xf32>
    %23 = vector.shape_cast %22 : vector<1x8x8xf32> to vector<8x8xf32>
    %cst_30 = arith.constant dense<0.000000e+00> : vector<256x8xf32>
    %24 = tpu.matmul %21, %23, %cst_30 {dimension_numbers = #tpu.dot_dimension_numbers<[1], [0], [0], [1], [0, 0, 1, 1], [], []>} : vector<256x8xf32>, vector<8x8xf32>, vector<256x8xf32> -> vector<256x8xf32>
    %25 = arith.addf %19, %24 : vector<256x8xf32>
    %c0_31 = arith.constant 0 : index
    %c0_32 = arith.constant 0 : index
    %c2 = arith.constant 2 : index
    %c0_33 = arith.constant 0 : index
    %26 = vector.load %arg7[%c0_31, %c0_32, %c2, %c0_33] : memref<1x18x18x8xf32, #tpu.memory_space<vmem>>, vector<1x16x16x8xf32>
    %27 = vector.shape_cast %26 : vector<1x16x16x8xf32> to vector<256x8xf32>
    %c2_34 = arith.constant 2 : index
    %c0_35 = arith.constant 0 : index
    %c0_36 = arith.constant 0 : index
    %28 = vector.load %arg4[%c2_34, %c0_35, %c0_36] : memref<9x8x8xf32, #tpu.memory_space<vmem>>, vector<1x8x8xf32>
    %29 = vector.shape_cast %28 : vector<1x8x8xf32> to vector<8x8xf32>
    %cst_37 = arith.constant dense<0.000000e+00> : vector<256x8xf32>
    %30 = tpu.matmul %27, %29, %cst_37 {dimension_numbers = #tpu.dot_dimension_numbers<[1], [0], [0], [1], [0, 0, 1, 1], [], []>} : vector<256x8xf32>, vector<8x8xf32>, vector<256x8xf32> -> vector<256x8xf32>
    %31 = arith.addf %25, %30 : vector<256x8xf32>
    %c0_38 = arith.constant 0 : index
    %c1_39 = arith.constant 1 : index
    %c0_40 = arith.constant 0 : index
    %c0_41 = arith.constant 0 : index
    %32 = vector.load %arg7[%c0_38, %c1_39, %c0_40, %c0_41] : memref<1x18x18x8xf32, #tpu.memory_space<vmem>>, vector<1x16x16x8xf32>
    %33 = vector.shape_cast %32 : vector<1x16x16x8xf32> to vector<256x8xf32>
    %c3 = arith.constant 3 : index
    %c0_42 = arith.constant 0 : index
    %c0_43 = arith.constant 0 : index
    %34 = vector.load %arg4[%c3, %c0_42, %c0_43] : memref<9x8x8xf32, #tpu.memory_space<vmem>>, vector<1x8x8xf32>
    %35 = vector.shape_cast %34 : vector<1x8x8xf32> to vector<8x8xf32>
    %cst_44 = arith.constant dense<0.000000e+00> : vector<256x8xf32>
    %36 = tpu.matmul %33, %35, %cst_44 {dimension_numbers = #tpu.dot_dimension_numbers<[1], [0], [0], [1], [0, 0, 1, 1], [], []>} : vector<256x8xf32>, vector<8x8xf32>, vector<256x8xf32> -> vector<256x8xf32>
    %37 = arith.addf %31, %36 : vector<256x8xf32>
    %c0_45 = arith.constant 0 : index
    %c1_46 = arith.constant 1 : index
    %c1_47 = arith.constant 1 : index
    %c0_48 = arith.constant 0 : index
    %38 = vector.load %arg7[%c0_45, %c1_46, %c1_47, %c0_48] : memref<1x18x18x8xf32, #tpu.memory_space<vmem>>, vector<1x16x16x8xf32>
    %39 = vector.shape_cast %38 : vector<1x16x16x8xf32> to vector<256x8xf32>
    %c4 = arith.constant 4 : index
    %c0_49 = arith.constant 0 : index
    %c0_50 = arith.constant 0 : index
    %40 = vector.load %arg4[%c4, %c0_49, %c0_50] : memref<9x8x8xf32, #tpu.memory_space<vmem>>, vector<1x8x8xf32>
    %41 = vector.shape_cast %40 : vector<1x8x8xf32> to vector<8x8xf32>
    %cst_51 = arith.constant dense<0.000000e+00> : vector<256x8xf32>
    %42 = tpu.matmul %39, %41, %cst_51 {dimension_numbers = #tpu.dot_dimension_numbers<[1], [0], [0], [1], [0, 0, 1, 1], [], []>} : vector<256x8xf32>, vector<8x8xf32>, vector<256x8xf32> -> vector<256x8xf32>
    %43 = arith.addf %37, %42 : vector<256x8xf32>
    %c0_52 = arith.constant 0 : index
    %c1_53 = arith.constant 1 : index
    %c2_54 = arith.constant 2 : index
    %c0_55 = arith.constant 0 : index
    %44 = vector.load %arg7[%c0_52, %c1_53, %c2_54, %c0_55] : memref<1x18x18x8xf32, #tpu.memory_space<vmem>>, vector<1x16x16x8xf32>
    %45 = vector.shape_cast %44 : vector<1x16x16x8xf32> to vector<256x8xf32>
    %c5 = arith.constant 5 : index
    %c0_56 = arith.constant 0 : index
    %c0_57 = arith.constant 0 : index
    %46 = vector.load %arg4[%c5, %c0_56, %c0_57] : memref<9x8x8xf32, #tpu.memory_space<vmem>>, vector<1x8x8xf32>
    %47 = vector.shape_cast %46 : vector<1x8x8xf32> to vector<8x8xf32>
    %cst_58 = arith.constant dense<0.000000e+00> : vector<256x8xf32>
    %48 = tpu.matmul %45, %47, %cst_58 {dimension_numbers = #tpu.dot_dimension_numbers<[1], [0], [0], [1], [0, 0, 1, 1], [], []>} : vector<256x8xf32>, vector<8x8xf32>, vector<256x8xf32> -> vector<256x8xf32>
    %49 = arith.addf %43, %48 : vector<256x8xf32>
    %c0_59 = arith.constant 0 : index
    %c2_60 = arith.constant 2 : index
    %c0_61 = arith.constant 0 : index
    %c0_62 = arith.constant 0 : index
    %50 = vector.load %arg7[%c0_59, %c2_60, %c0_61, %c0_62] : memref<1x18x18x8xf32, #tpu.memory_space<vmem>>, vector<1x16x16x8xf32>
    %51 = vector.shape_cast %50 : vector<1x16x16x8xf32> to vector<256x8xf32>
    %c6 = arith.constant 6 : index
    %c0_63 = arith.constant 0 : index
    %c0_64 = arith.constant 0 : index
    %52 = vector.load %arg4[%c6, %c0_63, %c0_64] : memref<9x8x8xf32, #tpu.memory_space<vmem>>, vector<1x8x8xf32>
    %53 = vector.shape_cast %52 : vector<1x8x8xf32> to vector<8x8xf32>
    %cst_65 = arith.constant dense<0.000000e+00> : vector<256x8xf32>
    %54 = tpu.matmul %51, %53, %cst_65 {dimension_numbers = #tpu.dot_dimension_numbers<[1], [0], [0], [1], [0, 0, 1, 1], [], []>} : vector<256x8xf32>, vector<8x8xf32>, vector<256x8xf32> -> vector<256x8xf32>
    %55 = arith.addf %49, %54 : vector<256x8xf32>
    %c0_66 = arith.constant 0 : index
    %c2_67 = arith.constant 2 : index
    %c1_68 = arith.constant 1 : index
    %c0_69 = arith.constant 0 : index
    %56 = vector.load %arg7[%c0_66, %c2_67, %c1_68, %c0_69] : memref<1x18x18x8xf32, #tpu.memory_space<vmem>>, vector<1x16x16x8xf32>
    %57 = vector.shape_cast %56 : vector<1x16x16x8xf32> to vector<256x8xf32>
    %c7 = arith.constant 7 : index
    %c0_70 = arith.constant 0 : index
    %c0_71 = arith.constant 0 : index
    %58 = vector.load %arg4[%c7, %c0_70, %c0_71] : memref<9x8x8xf32, #tpu.memory_space<vmem>>, vector<1x8x8xf32>
    %59 = vector.shape_cast %58 : vector<1x8x8xf32> to vector<8x8xf32>
    %cst_72 = arith.constant dense<0.000000e+00> : vector<256x8xf32>
    %60 = tpu.matmul %57, %59, %cst_72 {dimension_numbers = #tpu.dot_dimension_numbers<[1], [0], [0], [1], [0, 0, 1, 1], [], []>} : vector<256x8xf32>, vector<8x8xf32>, vector<256x8xf32> -> vector<256x8xf32>
    %61 = arith.addf %55, %60 : vector<256x8xf32>
    %c0_73 = arith.constant 0 : index
    %c2_74 = arith.constant 2 : index
    %c2_75 = arith.constant 2 : index
    %c0_76 = arith.constant 0 : index
    %62 = vector.load %arg7[%c0_73, %c2_74, %c2_75, %c0_76] : memref<1x18x18x8xf32, #tpu.memory_space<vmem>>, vector<1x16x16x8xf32>
    %63 = vector.shape_cast %62 : vector<1x16x16x8xf32> to vector<256x8xf32>
    %c8 = arith.constant 8 : index
    %c0_77 = arith.constant 0 : index
    %c0_78 = arith.constant 0 : index
    %64 = vector.load %arg4[%c8, %c0_77, %c0_78] : memref<9x8x8xf32, #tpu.memory_space<vmem>>, vector<1x8x8xf32>
    %65 = vector.shape_cast %64 : vector<1x8x8xf32> to vector<8x8xf32>
    %cst_79 = arith.constant dense<0.000000e+00> : vector<256x8xf32>
    %66 = tpu.matmul %63, %65, %cst_79 {dimension_numbers = #tpu.dot_dimension_numbers<[1], [0], [0], [1], [0, 0, 1, 1], [], []>} : vector<256x8xf32>, vector<8x8xf32>, vector<256x8xf32> -> vector<256x8xf32>
    %67 = arith.addf %61, %66 : vector<256x8xf32>
    %68 = arith.truncf %67 : vector<256x8xf32> to vector<256x8xbf16>
    %c0_80 = arith.constant 0 : index
    %c0_81 = arith.constant 0 : index
    %69 = vector.load %arg5[%c0_80, %c0_81] : memref<256x8xbf16, #tpu.memory_space<vmem>>, vector<256x8xbf16>
    tpu.vector_store %arg5[%c0_80, %c0_81], %68 {strides = array<i32>} : memref<256x8xbf16, #tpu.memory_space<vmem>>, vector<256x8xbf16>,
    %cst_82 = arith.constant dense<0.000000e+00> : vector<8xf32>
    %70 = vector.multi_reduction <add>, %67, %cst_82 [0] : vector<256x8xf32> to vector<8xf32>
    %71 = vector.shape_cast %70 : vector<8xf32> to vector<1x8xf32>
    %72 = vector.shape_cast %71 : vector<1x8xf32> to vector<1x1x8xf32>
    %c0_83 = arith.constant 0 : index
    %c0_84 = arith.constant 0 : index
    %c0_85 = arith.constant 0 : index
    %73 = vector.load %arg6[%c0_83, %c0_84, %c0_85] : memref<1x2x8xf32, #tpu.memory_space<vmem>>, vector<1x1x8xf32>
    tpu.vector_store %arg6[%c0_83, %c0_84, %c0_85], %72 {strides = array<i32>} : memref<1x2x8xf32, #tpu.memory_space<vmem>>, vector<1x1x8xf32>,
    %74 = arith.mulf %67, %67 : vector<256x8xf32>
    %cst_86 = arith.constant dense<0.000000e+00> : vector<8xf32>
    %75 = vector.multi_reduction <add>, %74, %cst_86 [0] : vector<256x8xf32> to vector<8xf32>
    %76 = vector.shape_cast %75 : vector<8xf32> to vector<1x8xf32>
    %77 = vector.shape_cast %76 : vector<1x8xf32> to vector<1x1x8xf32>
    %c0_87 = arith.constant 0 : index
    %c1_88 = arith.constant 1 : index
    %c0_89 = arith.constant 0 : index
    %78 = vector.load %arg6[%c0_87, %c1_88, %c0_89] : memref<1x2x8xf32, #tpu.memory_space<vmem>>, vector<1x1x8xf32>
    tpu.vector_store %arg6[%c0_87, %c1_88, %c0_89], %77 {strides = array<i32>} : memref<1x2x8xf32, #tpu.memory_space<vmem>>, vector<1x1x8xf32>,
    return
  }
  func.func @transform_0(%arg0: i32) -> (i32, i32, i32, i32) {
    %c0_i32 = arith.constant 0 : i32
    %c0_i32_0 = arith.constant 0 : i32
    %c0_i32_1 = arith.constant 0 : i32
    %c0_i32_2 = arith.constant 0 : i32
    return %arg0, %c0_i32, %c0_i32_0, %c0_i32_1 : i32, i32, i32, i32
  }
  func.func @transform_1(%arg0: i32) -> (i32, i32) {
    %c0_i32 = arith.constant 0 : i32
    %c0_i32_0 = arith.constant 0 : i32
    %c0_i32_1 = arith.constant 0 : i32
    return %c0_i32, %c0_i32_0 : i32, i32
  }
  func.func @transform_2(%arg0: i32) -> (i32, i32) {
    %c0_i32 = arith.constant 0 : i32
    %c0_i32_0 = arith.constant 0 : i32
    %c0_i32_1 = arith.constant 0 : i32
    return %c0_i32, %c0_i32_0 : i32, i32
  }
  func.func @transform_3(%arg0: i32) -> (i32, i32, i32) {
    %c0_i32 = arith.constant 0 : i32
    %c0_i32_0 = arith.constant 0 : i32
    %c0_i32_1 = arith.constant 0 : i32
    %c0_i32_2 = arith.constant 0 : i32
    return %c0_i32, %c0_i32_0, %c0_i32_1 : i32, i32, i32
  }
  func.func @transform_4(%arg0: i32) -> (i32, i32) {
    %c0_i32 = arith.constant 0 : i32
    %c0_i32_0 = arith.constant 0 : i32
    return %arg0, %c0_i32 : i32, i32
  }
  func.func @transform_5(%arg0: i32) -> (i32, i32, i32) {
    %c0_i32 = arith.constant 0 : i32
    %c0_i32_0 = arith.constant 0 : i32
    %c0_i32_1 = arith.constant 0 : i32
    return %arg0, %c0_i32, %c0_i32_0 : i32, i32, i32
  }
}

module attributes {stable_mosaic.version = 11 : i64} {
  func.func @_maxpool_conv1x1_kernel(%arg0: i32, %arg1: memref<1x16x16x4xf32, #tpu.memory_space<vmem>>, %arg2: memref<4x8xf32, #tpu.memory_space<vmem>>, %arg3: memref<256x8xbf16, #tpu.memory_space<vmem>>, %arg4: memref<1x2x8xf32, #tpu.memory_space<vmem>>, %arg5: memref<1x18x18x4xf32, #tpu.memory_space<vmem>>) attributes {dimension_semantics = [#tpu.dimension_semantics<parallel>], iteration_bounds = array<i64: 2>, scalar_prefetch = 0 : i64, scratch_operands = 1 : i64, tpu.core_type = #tpu.core_type<tc>, window_params = [{transform_indices = @transform_0, window_bounds = array<i64: 1, 16, 16, 4>}, {pipeline_mode = #tpu.pipeline_mode<synchronous>, transform_indices = @transform_1, window_bounds = array<i64: 4, 8>}, {transform_indices = @transform_2, window_bounds = array<i64: 256, 8>}, {transform_indices = @transform_3, window_bounds = array<i64: 1, 2, 8>}]} {
    %cst = arith.constant 0xFF800000 : f32
    %0 = vector.broadcast %cst : f32 to vector<1x18x18x4xf32>
    %c0 = arith.constant 0 : index
    %c0_0 = arith.constant 0 : index
    %c0_1 = arith.constant 0 : index
    %c0_2 = arith.constant 0 : index
    %1 = vector.load %arg5[%c0, %c0_0, %c0_1, %c0_2] : memref<1x18x18x4xf32, #tpu.memory_space<vmem>>, vector<1x18x18x4xf32>
    tpu.vector_store %arg5[%c0, %c0_0, %c0_1, %c0_2], %0 {strides = array<i32>} : memref<1x18x18x4xf32, #tpu.memory_space<vmem>>, vector<1x18x18x4xf32>,
    %c0_3 = arith.constant 0 : index
    %c0_4 = arith.constant 0 : index
    %c0_5 = arith.constant 0 : index
    %c0_6 = arith.constant 0 : index
    %2 = vector.load %arg1[%c0_3, %c0_4, %c0_5, %c0_6] : memref<1x16x16x4xf32, #tpu.memory_space<vmem>>, vector<1x16x16x4xf32>
    %c0_7 = arith.constant 0 : index
    %c1 = arith.constant 1 : index
    %c1_8 = arith.constant 1 : index
    %c0_9 = arith.constant 0 : index
    %3 = vector.load %arg5[%c0_7, %c1, %c1_8, %c0_9] : memref<1x18x18x4xf32, #tpu.memory_space<vmem>>, vector<1x16x16x4xf32>
    tpu.vector_store %arg5[%c0_7, %c1, %c1_8, %c0_9], %2 {strides = array<i32>} : memref<1x18x18x4xf32, #tpu.memory_space<vmem>>, vector<1x16x16x4xf32>,
    %c0_10 = arith.constant 0 : index
    %c1_11 = arith.constant 1 : index
    %c1_12 = arith.constant 1 : index
    %c0_13 = arith.constant 0 : index
    %4 = vector.load %arg5[%c0_10, %c1_11, %c1_12, %c0_13] : memref<1x18x18x4xf32, #tpu.memory_space<vmem>>, vector<1x16x16x4xf32>
    %c0_14 = arith.constant 0 : index
    %c0_15 = arith.constant 0 : index
    %c0_16 = arith.constant 0 : index
    %c0_17 = arith.constant 0 : index
    %5 = vector.load %arg5[%c0_14, %c0_15, %c0_16, %c0_17] : memref<1x18x18x4xf32, #tpu.memory_space<vmem>>, vector<1x16x16x4xf32>
    %6 = arith.maximumf %4, %5 : vector<1x16x16x4xf32>
    %c0_18 = arith.constant 0 : index
    %c0_19 = arith.constant 0 : index
    %c1_20 = arith.constant 1 : index
    %c0_21 = arith.constant 0 : index
    %7 = vector.load %arg5[%c0_18, %c0_19, %c1_20, %c0_21] : memref<1x18x18x4xf32, #tpu.memory_space<vmem>>, vector<1x16x16x4xf32>
    %8 = arith.maximumf %6, %7 : vector<1x16x16x4xf32>
    %c0_22 = arith.constant 0 : index
    %c0_23 = arith.constant 0 : index
    %c2 = arith.constant 2 : index
    %c0_24 = arith.constant 0 : index
    %9 = vector.load %arg5[%c0_22, %c0_23, %c2, %c0_24] : memref<1x18x18x4xf32, #tpu.memory_space<vmem>>, vector<1x16x16x4xf32>
    %10 = arith.maximumf %8, %9 : vector<1x16x16x4xf32>
    %c0_25 = arith.constant 0 : index
    %c1_26 = arith.constant 1 : index
    %c0_27 = arith.constant 0 : index
    %c0_28 = arith.constant 0 : index
    %11 = vector.load %arg5[%c0_25, %c1_26, %c0_27, %c0_28] : memref<1x18x18x4xf32, #tpu.memory_space<vmem>>, vector<1x16x16x4xf32>
    %12 = arith.maximumf %10, %11 : vector<1x16x16x4xf32>
    %c0_29 = arith.constant 0 : index
    %c1_30 = arith.constant 1 : index
    %c2_31 = arith.constant 2 : index
    %c0_32 = arith.constant 0 : index
    %13 = vector.load %arg5[%c0_29, %c1_30, %c2_31, %c0_32] : memref<1x18x18x4xf32, #tpu.memory_space<vmem>>, vector<1x16x16x4xf32>
    %14 = arith.maximumf %12, %13 : vector<1x16x16x4xf32>
    %c0_33 = arith.constant 0 : index
    %c2_34 = arith.constant 2 : index
    %c0_35 = arith.constant 0 : index
    %c0_36 = arith.constant 0 : index
    %15 = vector.load %arg5[%c0_33, %c2_34, %c0_35, %c0_36] : memref<1x18x18x4xf32, #tpu.memory_space<vmem>>, vector<1x16x16x4xf32>
    %16 = arith.maximumf %14, %15 : vector<1x16x16x4xf32>
    %c0_37 = arith.constant 0 : index
    %c2_38 = arith.constant 2 : index
    %c1_39 = arith.constant 1 : index
    %c0_40 = arith.constant 0 : index
    %17 = vector.load %arg5[%c0_37, %c2_38, %c1_39, %c0_40] : memref<1x18x18x4xf32, #tpu.memory_space<vmem>>, vector<1x16x16x4xf32>
    %18 = arith.maximumf %16, %17 : vector<1x16x16x4xf32>
    %c0_41 = arith.constant 0 : index
    %c2_42 = arith.constant 2 : index
    %c2_43 = arith.constant 2 : index
    %c0_44 = arith.constant 0 : index
    %19 = vector.load %arg5[%c0_41, %c2_42, %c2_43, %c0_44] : memref<1x18x18x4xf32, #tpu.memory_space<vmem>>, vector<1x16x16x4xf32>
    %20 = arith.maximumf %18, %19 : vector<1x16x16x4xf32>
    %21 = vector.shape_cast %20 : vector<1x16x16x4xf32> to vector<256x4xf32>
    %c0_45 = arith.constant 0 : index
    %c0_46 = arith.constant 0 : index
    %22 = vector.load %arg2[%c0_45, %c0_46] : memref<4x8xf32, #tpu.memory_space<vmem>>, vector<4x8xf32>
    %cst_47 = arith.constant dense<0.000000e+00> : vector<256x8xf32>
    %23 = tpu.matmul %21, %22, %cst_47 {dimension_numbers = #tpu.dot_dimension_numbers<[1], [0], [0], [1], [0, 0, 1, 1], [], []>} : vector<256x4xf32>, vector<4x8xf32>, vector<256x8xf32> -> vector<256x8xf32>
    %24 = arith.truncf %23 : vector<256x8xf32> to vector<256x8xbf16>
    %c0_48 = arith.constant 0 : index
    %c0_49 = arith.constant 0 : index
    %25 = vector.load %arg3[%c0_48, %c0_49] : memref<256x8xbf16, #tpu.memory_space<vmem>>, vector<256x8xbf16>
    tpu.vector_store %arg3[%c0_48, %c0_49], %24 {strides = array<i32>} : memref<256x8xbf16, #tpu.memory_space<vmem>>, vector<256x8xbf16>,
    %cst_50 = arith.constant dense<0.000000e+00> : vector<8xf32>
    %26 = vector.multi_reduction <add>, %23, %cst_50 [0] : vector<256x8xf32> to vector<8xf32>
    %27 = vector.shape_cast %26 : vector<8xf32> to vector<1x8xf32>
    %28 = vector.shape_cast %27 : vector<1x8xf32> to vector<1x1x8xf32>
    %c0_51 = arith.constant 0 : index
    %c0_52 = arith.constant 0 : index
    %c0_53 = arith.constant 0 : index
    %29 = vector.load %arg4[%c0_51, %c0_52, %c0_53] : memref<1x2x8xf32, #tpu.memory_space<vmem>>, vector<1x1x8xf32>
    tpu.vector_store %arg4[%c0_51, %c0_52, %c0_53], %28 {strides = array<i32>} : memref<1x2x8xf32, #tpu.memory_space<vmem>>, vector<1x1x8xf32>,
    %30 = arith.mulf %23, %23 : vector<256x8xf32>
    %cst_54 = arith.constant dense<0.000000e+00> : vector<8xf32>
    %31 = vector.multi_reduction <add>, %30, %cst_54 [0] : vector<256x8xf32> to vector<8xf32>
    %32 = vector.shape_cast %31 : vector<8xf32> to vector<1x8xf32>
    %33 = vector.shape_cast %32 : vector<1x8xf32> to vector<1x1x8xf32>
    %c0_55 = arith.constant 0 : index
    %c1_56 = arith.constant 1 : index
    %c0_57 = arith.constant 0 : index
    %34 = vector.load %arg4[%c0_55, %c1_56, %c0_57] : memref<1x2x8xf32, #tpu.memory_space<vmem>>, vector<1x1x8xf32>
    tpu.vector_store %arg4[%c0_55, %c1_56, %c0_57], %33 {strides = array<i32>} : memref<1x2x8xf32, #tpu.memory_space<vmem>>, vector<1x1x8xf32>,
    return
  }
  func.func @transform_0(%arg0: i32) -> (i32, i32, i32, i32) {
    %c0_i32 = arith.constant 0 : i32
    %c0_i32_0 = arith.constant 0 : i32
    %c0_i32_1 = arith.constant 0 : i32
    %c0_i32_2 = arith.constant 0 : i32
    return %arg0, %c0_i32, %c0_i32_0, %c0_i32_1 : i32, i32, i32, i32
  }
  func.func @transform_1(%arg0: i32) -> (i32, i32) {
    %c0_i32 = arith.constant 0 : i32
    %c0_i32_0 = arith.constant 0 : i32
    %c0_i32_1 = arith.constant 0 : i32
    return %c0_i32, %c0_i32_0 : i32, i32
  }
  func.func @transform_2(%arg0: i32) -> (i32, i32) {
    %c0_i32 = arith.constant 0 : i32
    %c0_i32_0 = arith.constant 0 : i32
    return %arg0, %c0_i32 : i32, i32
  }
  func.func @transform_3(%arg0: i32) -> (i32, i32, i32) {
    %c0_i32 = arith.constant 0 : i32
    %c0_i32_0 = arith.constant 0 : i32
    %c0_i32_1 = arith.constant 0 : i32
    return %arg0, %c0_i32, %c0_i32_0 : i32, i32, i32
  }
}

module attributes {stable_mosaic.version = 11 : i64} {
  func.func @_bn_relu_concat_kernel(%arg0: i32, %arg1: memref<256x8xbf16, #tpu.memory_space<vmem>>, %arg2: memref<256x8xbf16, #tpu.memory_space<vmem>>, %arg3: memref<256x8xbf16, #tpu.memory_space<vmem>>, %arg4: memref<256x8xbf16, #tpu.memory_space<vmem>>, %arg5: memref<1x32xf32, #tpu.memory_space<vmem>>, %arg6: memref<1x32xf32, #tpu.memory_space<vmem>>, %arg7: memref<256x32xf32, #tpu.memory_space<vmem>>) attributes {dimension_semantics = [#tpu.dimension_semantics<parallel>], iteration_bounds = array<i64: 2>, scalar_prefetch = 0 : i64, scratch_operands = 0 : i64, tpu.core_type = #tpu.core_type<tc>, window_params = [{transform_indices = @transform_0, window_bounds = array<i64: 256, 8>}, {transform_indices = @transform_1, window_bounds = array<i64: 256, 8>}, {transform_indices = @transform_2, window_bounds = array<i64: 256, 8>}, {transform_indices = @transform_3, window_bounds = array<i64: 256, 8>}, {pipeline_mode = #tpu.pipeline_mode<synchronous>, transform_indices = @transform_4, window_bounds = array<i64: 1, 32>}, {pipeline_mode = #tpu.pipeline_mode<synchronous>, transform_indices = @transform_5, window_bounds = array<i64: 1, 32>}, {transform_indices = @transform_6, window_bounds = array<i64: 256, 32>}]} {
    %c0 = arith.constant 0 : index
    %c0_0 = arith.constant 0 : index
    %0 = vector.load %arg5[%c0, %c0_0] : memref<1x32xf32, #tpu.memory_space<vmem>>, vector<1x8xf32>
    %c0_1 = arith.constant 0 : index
    %c0_2 = arith.constant 0 : index
    %1 = vector.load %arg6[%c0_1, %c0_2] : memref<1x32xf32, #tpu.memory_space<vmem>>, vector<1x8xf32>
    %c0_3 = arith.constant 0 : index
    %c0_4 = arith.constant 0 : index
    %2 = vector.load %arg1[%c0_3, %c0_4] : memref<256x8xbf16, #tpu.memory_space<vmem>>, vector<256x8xbf16>
    %3 = arith.extf %2 : vector<256x8xbf16> to vector<256x8xf32>
    %4 = vector.broadcast %0 : vector<1x8xf32> to vector<256x8xf32>
    %5 = arith.mulf %3, %4 : vector<256x8xf32>
    %6 = vector.broadcast %1 : vector<1x8xf32> to vector<256x8xf32>
    %7 = arith.addf %5, %6 : vector<256x8xf32>
    %cst = arith.constant 0.000000e+00 : f32
    %8 = vector.broadcast %cst : f32 to vector<256x8xf32>
    %9 = arith.maximumf %7, %8 : vector<256x8xf32>
    %c0_5 = arith.constant 0 : index
    %c0_6 = arith.constant 0 : index
    %10 = vector.load %arg7[%c0_5, %c0_6] : memref<256x32xf32, #tpu.memory_space<vmem>>, vector<256x8xf32>
    tpu.vector_store %arg7[%c0_5, %c0_6], %9 {strides = array<i32>} : memref<256x32xf32, #tpu.memory_space<vmem>>, vector<256x8xf32>,
    %c0_7 = arith.constant 0 : index
    %c8 = arith.constant 8 : index
    %11 = vector.load %arg5[%c0_7, %c8] : memref<1x32xf32, #tpu.memory_space<vmem>>, vector<1x8xf32>
    %c0_8 = arith.constant 0 : index
    %c8_9 = arith.constant 8 : index
    %12 = vector.load %arg6[%c0_8, %c8_9] : memref<1x32xf32, #tpu.memory_space<vmem>>, vector<1x8xf32>
    %c0_10 = arith.constant 0 : index
    %c0_11 = arith.constant 0 : index
    %13 = vector.load %arg2[%c0_10, %c0_11] : memref<256x8xbf16, #tpu.memory_space<vmem>>, vector<256x8xbf16>
    %14 = arith.extf %13 : vector<256x8xbf16> to vector<256x8xf32>
    %15 = vector.broadcast %11 : vector<1x8xf32> to vector<256x8xf32>
    %16 = arith.mulf %14, %15 : vector<256x8xf32>
    %17 = vector.broadcast %12 : vector<1x8xf32> to vector<256x8xf32>
    %18 = arith.addf %16, %17 : vector<256x8xf32>
    %cst_12 = arith.constant 0.000000e+00 : f32
    %19 = vector.broadcast %cst_12 : f32 to vector<256x8xf32>
    %20 = arith.maximumf %18, %19 : vector<256x8xf32>
    %c0_13 = arith.constant 0 : index
    %c8_14 = arith.constant 8 : index
    %21 = vector.load %arg7[%c0_13, %c8_14] : memref<256x32xf32, #tpu.memory_space<vmem>>, vector<256x8xf32>
    tpu.vector_store %arg7[%c0_13, %c8_14], %20 {strides = array<i32>} : memref<256x32xf32, #tpu.memory_space<vmem>>, vector<256x8xf32>,
    %c0_15 = arith.constant 0 : index
    %c16 = arith.constant 16 : index
    %22 = vector.load %arg5[%c0_15, %c16] : memref<1x32xf32, #tpu.memory_space<vmem>>, vector<1x8xf32>
    %c0_16 = arith.constant 0 : index
    %c16_17 = arith.constant 16 : index
    %23 = vector.load %arg6[%c0_16, %c16_17] : memref<1x32xf32, #tpu.memory_space<vmem>>, vector<1x8xf32>
    %c0_18 = arith.constant 0 : index
    %c0_19 = arith.constant 0 : index
    %24 = vector.load %arg3[%c0_18, %c0_19] : memref<256x8xbf16, #tpu.memory_space<vmem>>, vector<256x8xbf16>
    %25 = arith.extf %24 : vector<256x8xbf16> to vector<256x8xf32>
    %26 = vector.broadcast %22 : vector<1x8xf32> to vector<256x8xf32>
    %27 = arith.mulf %25, %26 : vector<256x8xf32>
    %28 = vector.broadcast %23 : vector<1x8xf32> to vector<256x8xf32>
    %29 = arith.addf %27, %28 : vector<256x8xf32>
    %cst_20 = arith.constant 0.000000e+00 : f32
    %30 = vector.broadcast %cst_20 : f32 to vector<256x8xf32>
    %31 = arith.maximumf %29, %30 : vector<256x8xf32>
    %c0_21 = arith.constant 0 : index
    %c16_22 = arith.constant 16 : index
    %32 = vector.load %arg7[%c0_21, %c16_22] : memref<256x32xf32, #tpu.memory_space<vmem>>, vector<256x8xf32>
    tpu.vector_store %arg7[%c0_21, %c16_22], %31 {strides = array<i32>} : memref<256x32xf32, #tpu.memory_space<vmem>>, vector<256x8xf32>,
    %c0_23 = arith.constant 0 : index
    %c24 = arith.constant 24 : index
    %33 = vector.load %arg5[%c0_23, %c24] : memref<1x32xf32, #tpu.memory_space<vmem>>, vector<1x8xf32>
    %c0_24 = arith.constant 0 : index
    %c24_25 = arith.constant 24 : index
    %34 = vector.load %arg6[%c0_24, %c24_25] : memref<1x32xf32, #tpu.memory_space<vmem>>, vector<1x8xf32>
    %c0_26 = arith.constant 0 : index
    %c0_27 = arith.constant 0 : index
    %35 = vector.load %arg4[%c0_26, %c0_27] : memref<256x8xbf16, #tpu.memory_space<vmem>>, vector<256x8xbf16>
    %36 = arith.extf %35 : vector<256x8xbf16> to vector<256x8xf32>
    %37 = vector.broadcast %33 : vector<1x8xf32> to vector<256x8xf32>
    %38 = arith.mulf %36, %37 : vector<256x8xf32>
    %39 = vector.broadcast %34 : vector<1x8xf32> to vector<256x8xf32>
    %40 = arith.addf %38, %39 : vector<256x8xf32>
    %cst_28 = arith.constant 0.000000e+00 : f32
    %41 = vector.broadcast %cst_28 : f32 to vector<256x8xf32>
    %42 = arith.maximumf %40, %41 : vector<256x8xf32>
    %c0_29 = arith.constant 0 : index
    %c24_30 = arith.constant 24 : index
    %43 = vector.load %arg7[%c0_29, %c24_30] : memref<256x32xf32, #tpu.memory_space<vmem>>, vector<256x8xf32>
    tpu.vector_store %arg7[%c0_29, %c24_30], %42 {strides = array<i32>} : memref<256x32xf32, #tpu.memory_space<vmem>>, vector<256x8xf32>,
    return
  }
  func.func @transform_0(%arg0: i32) -> (i32, i32) {
    %c0_i32 = arith.constant 0 : i32
    %c0_i32_0 = arith.constant 0 : i32
    return %arg0, %c0_i32 : i32, i32
  }
  func.func @transform_1(%arg0: i32) -> (i32, i32) {
    %c0_i32 = arith.constant 0 : i32
    %c0_i32_0 = arith.constant 0 : i32
    return %arg0, %c0_i32 : i32, i32
  }
  func.func @transform_2(%arg0: i32) -> (i32, i32) {
    %c0_i32 = arith.constant 0 : i32
    %c0_i32_0 = arith.constant 0 : i32
    return %arg0, %c0_i32 : i32, i32
  }
  func.func @transform_3(%arg0: i32) -> (i32, i32) {
    %c0_i32 = arith.constant 0 : i32
    %c0_i32_0 = arith.constant 0 : i32
    return %arg0, %c0_i32 : i32, i32
  }
  func.func @transform_4(%arg0: i32) -> (i32, i32) {
    %c0_i32 = arith.constant 0 : i32
    %c0_i32_0 = arith.constant 0 : i32
    %c0_i32_1 = arith.constant 0 : i32
    return %c0_i32, %c0_i32_0 : i32, i32
  }
  func.func @transform_5(%arg0: i32) -> (i32, i32) {
    %c0_i32 = arith.constant 0 : i32
    %c0_i32_0 = arith.constant 0 : i32
    %c0_i32_1 = arith.constant 0 : i32
    return %c0_i32, %c0_i32_0 : i32, i32
  }
  func.func @transform_6(%arg0: i32) -> (i32, i32) {
    %c0_i32 = arith.constant 0 : i32
    %c0_i32_0 = arith.constant 0 : i32
    return %arg0, %c0_i32 : i32, i32
  }
}

</mosaic_0001>

<llo_original>
// kernel: inception_forward.6
$region0: #{inception_forward.6}
  #allocation0 [shape = 'u32[]', space=smem, size = 0x4, offset = 0x4, fixed_abs, tag = 'smem constant byte address 0x4 - core index']
  #allocation1 [shape = 'u32[72,128]{1,0:T(1,128)}', space=vmem, size = 0x9000, scoped, tag = 'internal scratch']
  %s0 = inlined_call_operand.vmem [shape: f32[512,4], index: 0, kind: input, shape index: {}]
  %s1 = inlined_call_operand.vmem [shape: f32[4,16], index: 1, kind: input, shape index: {}]
  %s2 = inlined_call_operand.vmem [shape: bf16[512,8], index: 2, kind: output, shape index: {0}]
  %s3 = inlined_call_operand.vmem [shape: bf16[512,4], index: 3, kind: output, shape index: {1}]
  %s4 = inlined_call_operand.vmem [shape: bf16[512,4], index: 4, kind: output, shape index: {2}]
  %s5 = inlined_call_operand.vmem [shape: f32[2,2,16], index: 5, kind: output, shape index: {3}]
  %6 = xla_tuple %s2, %s3, %s4, %s5
  %s7 = sld [smem:[#allocation0]]
  $region65: #{inception_forward.6} parent=0
    _
  %s9 = ssub.s32 1, %s7
  %s10 = scalar_select 0, %s9, %s7
  loop: start=0, step=1, limit=4
  $region2: #{inception_forward.6} parent=0 // loop_pre_header
    _
  $region3: #{inception_forward.6} parent=0 // loop_header
    %s12 = sphi 0, %s16
    %p13 = scmp.ge.s32.totalorder %s12, 4
    %s22 = sphi 0, %s24
    %s25 = sphi 0, %s22
    %s26 = sphi 0, %s25
    %s42 = sphi 0, %s26
    %s46 = sphi 0, %s46
    %s48 = sphi 0, %s46
    %s49 = sphi 0, %s48
    %s63 = sphi 0, %s49
    %s69 = sphi 0, %s71
    %s72 = sphi 0, %s69
    %s73 = sphi 0, %s72
    %s89 = sphi 0, %s73
    %s95 = sphi 0, %s97
    %s98 = sphi 0, %s95
    %s99 = sphi 0, %s98
    %s115 = sphi 0, %s99
    %s121 = sphi 0, %s123
    %s124 = sphi 0, %s121
    %s125 = sphi 0, %s124
    %s141 = sphi 0, %s125
    %s147 = sphi 0, %s149
    %s150 = sphi 0, %s147
    %s151 = sphi 0, %s150
    %s167 = sphi 0, %s151
  $region4: #{inception_forward.6} parent=0 // loop_header_branch
    %15 = sbr.rel (%p13) target = $region8
  $region5: #{inception_forward.6} parent=0 // loop_body
    %s17 = ssub.s32 %s12, 1
    %s18 = ssub.s32 %s12, 2
    %s19 = sadd.s32 %s12, 1
    %s20 = ssub.s32 %s12, %s19
    %p21 = scmp.eq.s32.totalorder %s20, 0
    %s23 = sadd.s32 %s22, 1
    %s24 = scalar_select %p21, %s22, %s23
    %p27 = pneg %p21
    %p28 = scmp.eq.s32.totalorder %s12, 1
    %p29 = por %p27, %p28
    %p30 = scmp.ne.s32.totalorder %s22, %s25
    %p31 = scmp.eq.s32.totalorder %s12, 0
    %p32 = por %p30, %p31
    %p33 = scmp.ne.s32.totalorder %s22, %s25
    %p34 = scmp.eq.s32.totalorder %s17, 1
    %p35 = por %p33, %p34
    %p36 = scmp.ne.s32.totalorder %s25, %s26
    %p37 = scmp.eq.s32.totalorder %s17, 0
    %p38 = por %p36, %p37
    %p39 = scmp.ne.s32.totalorder %s25, %s26
    %p40 = scmp.eq.s32.totalorder %s18, 1
    %p41 = por %p39, %p40
    %p43 = scmp.ne.s32.totalorder %s26, %s42
    %p44 = scmp.eq.s32.totalorder %s18, 0
    %p45 = por %p43, %p44
    %s47 = sadd.s32 %s46, 1
    %p50 = scmp.eq.s32.totalorder %s12, 1
    %p51 = scmp.ne.s32.totalorder %s46, %s48
    %p52 = scmp.eq.s32.totalorder %s12, 0
    %p53 = por %p51, %p52
    %p54 = scmp.ne.s32.totalorder %s46, %s48
    %p55 = scmp.eq.s32.totalorder %s17, 1
    %p56 = por %p54, %p55
    %p57 = scmp.ne.s32.totalorder %s48, %s49
    %p58 = scmp.eq.s32.totalorder %s17, 0
    %p59 = por %p57, %p58
    %p60 = scmp.ne.s32.totalorder %s48, %s49
    %p61 = scmp.eq.s32.totalorder %s18, 1
    %p62 = por %p60, %p61
    %p64 = scmp.ne.s32.totalorder %s49, %s63
    %p65 = scmp.eq.s32.totalorder %s18, 0
    %p66 = por %p64, %p65
    %s67 = ssub.s32 %s12, %s19
    %p68 = scmp.eq.s32.totalorder %s67, 0
    %s70 = sadd.s32 %s69, 1
    %s71 = scalar_select %p68, %s69, %s70
    %p74 = pneg %p68
    %p75 = scmp.eq.s32.totalorder %s12, 1
    %p76 = por %p74, %p75
    %p77 = scmp.ne.s32.totalorder %s69, %s72
    %p78 = scmp.eq.s32.totalorder %s12, 0
    %p79 = por %p77, %p78
    %p80 = scmp.ne.s32.totalorder %s69, %s72
    %p81 = scmp.eq.s32.totalorder %s17, 1
    %p82 = por %p80, %p81
    %p83 = scmp.ne.s32.totalorder %s72, %s73
    %p84 = scmp.eq.s32.totalorder %s17, 0
    %p85 = por %p83, %p84
    %p86 = scmp.ne.s32.totalorder %s72, %s73
    %p87 = scmp.eq.s32.totalorder %s18, 1
    %p88 = por %p86, %p87
    %p90 = scmp.ne.s32.totalorder %s73, %s89
    %p91 = scmp.eq.s32.totalorder %s18, 0
    %p92 = por %p90, %p91
    %s93 = ssub.s32 %s12, %s19
    %p94 = scmp.eq.s32.totalorder %s93, 0
    %s96 = sadd.s32 %s95, 1
    %s97 = scalar_select %p94, %s95, %s96
    %p100 = pneg %p94
    %p101 = scmp.eq.s32.totalorder %s12, 1
    %p102 = por %p100, %p101
    %p103 = scmp.ne.s32.totalorder %s95, %s98
    %p104 = scmp.eq.s32.totalorder %s12, 0
    %p105 = por %p103, %p104
    %p106 = scmp.ne.s32.totalorder %s95, %s98
    %p107 = scmp.eq.s32.totalorder %s17, 1
    %p108 = por %p106, %p107
    %p109 = scmp.ne.s32.totalorder %s98, %s99
    %p110 = scmp.eq.s32.totalorder %s17, 0
    %p111 = por %p109, %p110
    %p112 = scmp.ne.s32.totalorder %s98, %s99
    %p113 = scmp.eq.s32.totalorder %s18, 1
    %p114 = por %p112, %p113
    %p116 = scmp.ne.s32.totalorder %s99, %s115
    %p117 = scmp.eq.s32.totalorder %s18, 0
    %p118 = por %p116, %p117
    %s119 = ssub.s32 %s12, %s19
    %p120 = scmp.eq.s32.totalorder %s119, 0
    %s122 = sadd.s32 %s121, 1
    %s123 = scalar_select %p120, %s121, %s122
    %p126 = pneg %p120
    %p127 = scmp.eq.s32.totalorder %s12, 1
    %p128 = por %p126, %p127
    %p129 = scmp.ne.s32.totalorder %s121, %s124
    %p130 = scmp.eq.s32.totalorder %s12, 0
    %p131 = por %p129, %p130
    %p132 = scmp.ne.s32.totalorder %s121, %s124
    %p133 = scmp.eq.s32.totalorder %s17, 1
    %p134 = por %p132, %p133
    %p135 = scmp.ne.s32.totalorder %s124, %s125
    %p136 = scmp.eq.s32.totalorder %s17, 0
    %p137 = por %p135, %p136
    %p138 = scmp.ne.s32.totalorder %s124, %s125
    %p139 = scmp.eq.s32.totalorder %s18, 1
    %p140 = por %p138, %p139
    %p142 = scmp.ne.s32.totalorder %s125, %s141
    %p143 = scmp.eq.s32.totalorder %s18, 0
    %p144 = por %p142, %p143
    %s145 = ssub.s32 %s12, %s19
    %p146 = scmp.eq.s32.totalorder %s145, 0
    %s148 = sadd.s32 %s147, 1
    %s149 = scalar_select %p146, %s147, %s148
    %p152 = pneg %p146
    %p153 = scmp.eq.s32.totalorder %s12, 1
    %p154 = por %p152, %p153
    %p155 = scmp.ne.s32.totalorder %s147, %s150
    %p156 = scmp.eq.s32.totalorder %s12, 0
    %p157 = por %p155, %p156
    %p158 = scmp.ne.s32.totalorder %s147, %s150
    %p159 = scmp.eq.s32.totalorder %s17, 1
    %p160 = por %p158, %p159
    %p161 = scmp.ne.s32.totalorder %s150, %s151
    %p162 = scmp.eq.s32.totalorder %s17, 0
    %p163 = por %p161, %p162
    %p164 = scmp.ne.s32.totalorder %s150, %s151
    %p165 = scmp.eq.s32.totalorder %s18, 1
    %p166 = por %p164, %p165
    %p168 = scmp.ne.s32.totalorder %s151, %s167
    %p169 = scmp.eq.s32.totalorder %s18, 0
    %p170 = por %p168, %p169
    %p171 = scmp.le.s32.totalorder 1, %s12
    %p172 = scmp.lt.s32.totalorder %s12, 3
    %p173 = pnand %p171, %p172
    %p174 = pneg %p173
    // Predicated region
    $region9: #{inception_forward.6} parent=5 // pred_check
      _
    $region10: #{inception_forward.6} parent=5 // pred_check_branch
      %176 = sbr.rel (%p173) target = $region12
    $region11: #{inception_forward.6} parent=5 // pred_region
      %s177 = ssub.s32 %s12, 1
      // Predicated region
      $region13: #{inception_forward.6} parent=11 // pred_check
        %p178 = pneg %p59
      $region14: #{inception_forward.6} parent=11 // pred_check_branch
        %180 = sbr.rel (%p178) target = $region16
      $region15: #{inception_forward.6} parent=11 // pred_region
        _
      $region16: #{inception_forward.6} parent=11 // pred_fallthru
        _
    $region12: #{inception_forward.6} parent=5 // pred_fallthru
      _
    %p181 = scmp.lt.s32.totalorder %s12, 2
    // Predicated region
    $region17: #{inception_forward.6} parent=5 // pred_check
      %p182 = pneg %p181
    $region18: #{inception_forward.6} parent=5 // pred_check_branch
      %184 = sbr.rel (%p182) target = $region20
    $region19: #{inception_forward.6} parent=5 // pred_region
      // Predicated region
      $region21: #{inception_forward.6} parent=19 // pred_check
        %p185 = pneg %p32
      $region22: #{inception_forward.6} parent=19 // pred_check_branch
        %187 = sbr.rel (%p185) target = $region24
      $region23: #{inception_forward.6} parent=19 // pred_region
        %s188 = smul.u32 32, %s12
        %p189 = scmp.lt.s32.totalorder %s188, 63
        %s190 = scalar_select %p189, %s188, 63
        %s191 = smul.addr %s190, 8
        %s192 = scalar_lea.vmem %s0, %s191
        %s193 = smul.u32 32, %s12
      $region24: #{inception_forward.6} parent=19 // pred_fallthru
        _
    $region20: #{inception_forward.6} parent=5 // pred_fallthru
      _
    %p194 = scmp.le.s32.totalorder 1, %s12
    %p195 = scmp.lt.s32.totalorder %s12, 3
    %p196 = pnand %p194, %p195
    %p197 = pneg %p196
    // Predicated region
    $region25: #{inception_forward.6} parent=5 // pred_check
      _
    $region26: #{inception_forward.6} parent=5 // pred_check_branch
      %199 = sbr.rel (%p196) target = $region28
    $region27: #{inception_forward.6} parent=5 // pred_region
      %s200 = ssub.s32 %s12, 1
      %s201 = smul.u32 32, %s17
      %p202 = scmp.lt.s32.totalorder %s201, 63
      %s203 = scalar_select %p202, %s201, 63
      %s204 = smul.addr %s203, 8
      %s205 = scalar_lea.vmem %s0, %s204
      %p206 = pneg %p38
      %p207 = pneg %p35
      %p208 = pneg %p59
      %p209 = pneg %p56
      %p210 = pneg %p85
      %p211 = pneg %p82
      %s212 = smul.u32 32, %s17
      %p213 = scmp.lt.s32.totalorder %s212, 63
      %s214 = scalar_select %p213, %s212, 63
      %s215 = smul.addr %s214, 4
      %s216 = scalar_lea.vmem %s2, %s215
      %p217 = pneg %p111
      %p218 = pneg %p108
      %s219 = smul.u32 32, %s17
      %p220 = scmp.lt.s32.totalorder %s219, 63
      %s221 = scalar_select %p220, %s219, 63
      %s222 = smul.addr %s221, 4
      %s223 = scalar_lea.vmem %s3, %s222
      %p224 = pneg %p137
      %p225 = pneg %p134
      %s226 = smul.u32 32, %s17
      %p227 = scmp.lt.s32.totalorder %s226, 63
      %s228 = scalar_select %p227, %s226, 63
      %s229 = smul.addr %s228, 4
      %s230 = scalar_lea.vmem %s4, %s229
      %p231 = pneg %p163
      %p232 = pneg %p160
      %p233 = scmp.lt.s32.totalorder %s17, 1
      %s234 = scalar_select %p233, %s17, 1
      %s235 = smul.addr %s234, 2
      %s236 = scalar_lea.vmem %s5, %s235
      %s237 = smul.u32 32, %s17
      %p238 = scmp.lt.s32.totalorder %s237, 63
      %s239 = scalar_select %p238, %s237, 63
      %s240 = smul.addr %s239, 8
      %s241 = scalar_lea.vmem %s0, %s240
      %s242 = smul.u32 32, %s17
      %s243 = smul.u32 32, %s17
      %p244 = scmp.lt.s32.totalorder %s243, 63
      %s245 = scalar_select %p244, %s243, 63
      %s246 = smul.addr %s245, 4
      %s247 = scalar_lea.vmem %s2, %s246
      %s248 = smul.u32 32, %s17
      %s249 = smul.u32 32, %s17
      %p250 = scmp.lt.s32.totalorder %s249, 63
      %s251 = scalar_select %p250, %s249, 63
      %s252 = smul.addr %s251, 4
      %s253 = scalar_lea.vmem %s3, %s252
      %s254 = smul.u32 32, %s17
      %s255 = smul.u32 32, %s17
      %p256 = scmp.lt.s32.totalorder %s255, 63
      %s257 = scalar_select %p256, %s255, 63
      %s258 = smul.addr %s257, 4
      %s259 = scalar_lea.vmem %s4, %s258
      %s260 = smul.u32 32, %s17
      %p261 = scmp.lt.s32.totalorder %s17, 1
      %s262 = scalar_select %p261, %s17, 1
      %s263 = smul.addr %s262, 2
      %s264 = scalar_lea.vmem %s5, %s263
      %v265 = vld [vmem:[%s241] sm:$0xff]
      %v266 = vld [vmem:[%s241 + $0x8] sm:$0xff]
      %v267 = vld [vmem:[%s241 + $0x10] sm:$0xff]
      %v268 = vld [vmem:[%s241 + $0x18] sm:$0xff]
      %v269 = vld [vmem:[%s241 + $0x20] sm:$0xff]
      %v270 = vld [vmem:[%s241 + $0x28] sm:$0xff]
      %v271 = vld [vmem:[%s241 + $0x30] sm:$0xff]
      %v272 = vld [vmem:[%s241 + $0x38] sm:$0xff]
      %v273 = vld [vmem:[%s241 + $0x40] sm:$0xff]
      %v274 = vld [vmem:[%s241 + $0x48] sm:$0xff]
      %v275 = vld [vmem:[%s241 + $0x50] sm:$0xff]
      %v276 = vld [vmem:[%s241 + $0x58] sm:$0xff]
      %v277 = vld [vmem:[%s241 + $0x60] sm:$0xff]
      %v278 = vld [vmem:[%s241 + $0x68] sm:$0xff]
      %v279 = vld [vmem:[%s241 + $0x70] sm:$0xff]
      %v280 = vld [vmem:[%s241 + $0x78] sm:$0xff]
      %v281 = vld [vmem:[%s241 + $0x80] sm:$0xff]
      %v282 = vld [vmem:[%s241 + $0x88] sm:$0xff]
      %v283 = vld [vmem:[%s241 + $0x90] sm:$0xff]
      %v284 = vld [vmem:[%s241 + $0x98] sm:$0xff]
      %v285 = vld [vmem:[%s241 + $0xa0] sm:$0xff]
      %v286 = vld [vmem:[%s241 + $0xa8] sm:$0xff]
      %v287 = vld [vmem:[%s241 + $0xb0] sm:$0xff]
      %v288 = vld [vmem:[%s241 + $0xb8] sm:$0xff]
      %v289 = vld [vmem:[%s241 + $0xc0] sm:$0xff]
      %v290 = vld [vmem:[%s241 + $0xc8] sm:$0xff]
      %v291 = vld [vmem:[%s241 + $0xd0] sm:$0xff]
      %v292 = vld [vmem:[%s241 + $0xd8] sm:$0xff]
      %v293 = vld [vmem:[%s241 + $0xe0] sm:$0xff]
      %v294 = vld [vmem:[%s241 + $0xe8] sm:$0xff]
      %v295 = vld [vmem:[%s241 + $0xf0] sm:$0xff]
      %v296 = vld [vmem:[%s241 + $0xf8] sm:$0xff]
      %v297 = vld [vmem:[%s1] sm:$0xf]
      %vm298 = vcmask 31744
      %v300 = vsel %vm298, %v265, 0
      %v303 = vsel %vm298, %v266, 0
      %v306 = vsel %vm298, %v267, 0
      %v309 = vsel %vm298, %v268, 0
      %v312 = vsel %vm298, %v269, 0
      %v315 = vsel %vm298, %v270, 0
      %v318 = vsel %vm298, %v271, 0
      %v321 = vsel %vm298, %v272, 0
      %v324 = vsel %vm298, %v273, 0
      %v327 = vsel %vm298, %v274, 0
      %v330 = vsel %vm298, %v275, 0
      %v333 = vsel %vm298, %v276, 0
      %v336 = vsel %vm298, %v277, 0
      %v339 = vsel %vm298, %v278, 0
      %v342 = vsel %vm298, %v279, 0
      %v345 = vsel %vm298, %v280, 0
      %v348 = vsel %vm298, %v281, 0
      %v351 = vsel %vm298, %v282, 0
      %v354 = vsel %vm298, %v283, 0
      %v357 = vsel %vm298, %v284, 0
      %v360 = vsel %vm298, %v285, 0
      %v363 = vsel %vm298, %v286, 0
      %v366 = vsel %vm298, %v287, 0
      %v369 = vsel %vm298, %v288, 0
      %v372 = vsel %vm298, %v289, 0
      %v375 = vsel %vm298, %v290, 0
      %v378 = vsel %vm298, %v291, 0
      %v381 = vsel %vm298, %v292, 0
      %v384 = vsel %vm298, %v293, 0
      %v387 = vsel %vm298, %v294, 0
      %v390 = vsel %vm298, %v295, 0
      %v393 = vsel %vm298, %v296, 0
      %vm395 = vcmask 1043456
      %v397 = vsel %vm395, %v297, 0
      %399 = vmatpush.msra.mxu0 0.0
      %400 = vmatpush.msra.mxu0 0.0
      %401 = vmatpush.msra.mxu0 0.0
      %402 = vmatpush.msra.mxu0 0.0
      %403 = vmatpush.msra.mxu0 0.0
      %404 = vmatpush.msra.mxu0 0.0
      %405 = vmatpush.msra.mxu0 0.0
      %406 = vmatpush.msra.mxu0 0.0
      %407 = vmatpush.msra.mxu0 0.0
      %408 = vmatpush.msra.mxu0 0.0
      %409 = vmatpush.msra.mxu0 0.0
      %410 = vmatpush.msra.mxu0 0.0
      %411 = vmatpush.msra.mxu0 0.0
      %412 = vmatpush.msra.mxu0 0.0
      %413 = vmatpush.msra.mxu0 0.0
      %414 = vmatpush.msra.mxu0 %v397
      %415 = vmatmul.f32.gmra.mxu0 %v300
      %v416 = vpop.f32.mrf.mxu0
      %v417 = vadd.f32 0.0, %v416
      %418 = vmatmul.f32.gmra.mxu0 %v303
      %v419 = vpop.f32.mrf.mxu0
      %v420 = vadd.f32 0.0, %v419
      %421 = vmatmul.f32.gmra.mxu0 %v306
      %v422 = vpop.f32.mrf.mxu0
      %v423 = vadd.f32 0.0, %v422
      %424 = vmatmul.f32.gmra.mxu0 %v309
      %v425 = vpop.f32.mrf.mxu0
      %v426 = vadd.f32 0.0, %v425
      %427 = vmatmul.f32.gmra.mxu0 %v312
      %v428 = vpop.f32.mrf.mxu0
      %v429 = vadd.f32 0.0, %v428
      %430 = vmatmul.f32.gmra.mxu0 %v315
      %v431 = vpop.f32.mrf.mxu0
      %v432 = vadd.f32 0.0, %v431
      %433 = vmatmul.f32.gmra.mxu0 %v318
      %v434 = vpop.f32.mrf.mxu0
      %v435 = vadd.f32 0.0, %v434
      %436 = vmatmul.f32.gmra.mxu0 %v321
      %v437 = vpop.f32.mrf.mxu0
      %v438 = vadd.f32 0.0, %v437
      %439 = vmatmul.f32.gmra.mxu0 %v324
      %v440 = vpop.f32.mrf.mxu0
      %v441 = vadd.f32 0.0, %v440
      %442 = vmatmul.f32.gmra.mxu0 %v327
      %v443 = vpop.f32.mrf.mxu0
      %v444 = vadd.f32 0.0, %v443
      %445 = vmatmul.f32.gmra.mxu0 %v330
      %v446 = vpop.f32.mrf.mxu0
      %v447 = vadd.f32 0.0, %v446
      %448 = vmatmul.f32.gmra.mxu0 %v333
      %v449 = vpop.f32.mrf.mxu0
      %v450 = vadd.f32 0.0, %v449
      %451 = vmatmul.f32.gmra.mxu0 %v336
      %v452 = vpop.f32.mrf.mxu0
      %v453 = vadd.f32 0.0, %v452
      %454 = vmatmul.f32.gmra.mxu0 %v339
      %v455 = vpop.f32.mrf.mxu0
      %v456 = vadd.f32 0.0, %v455
      %457 = vmatmul.f32.gmra.mxu0 %v342
      %v458 = vpop.f32.mrf.mxu0
      %v459 = vadd.f32 0.0, %v458
      %460 = vmatmul.f32.gmra.mxu0 %v345
      %v461 = vpop.f32.mrf.mxu0
      %v462 = vadd.f32 0.0, %v461
      %463 = vmatmul.f32.gmra.mxu0 %v348
      %v464 = vpop.f32.mrf.mxu0
      %v465 = vadd.f32 0.0, %v464
      %466 = vmatmul.f32.gmra.mxu0 %v351
      %v467 = vpop.f32.mrf.mxu0
      %v468 = vadd.f32 0.0, %v467
      %469 = vmatmul.f32.gmra.mxu0 %v354
      %v470 = vpop.f32.mrf.mxu0
      %v471 = vadd.f32 0.0, %v470
      %472 = vmatmul.f32.gmra.mxu0 %v357
      %v473 = vpop.f32.mrf.mxu0
      %v474 = vadd.f32 0.0, %v473
      %475 = vmatmul.f32.gmra.mxu0 %v360
      %v476 = vpop.f32.mrf.mxu0
      %v477 = vadd.f32 0.0, %v476
      %478 = vmatmul.f32.gmra.mxu0 %v363
      %v479 = vpop.f32.mrf.mxu0
      %v480 = vadd.f32 0.0, %v479
      %481 = vmatmul.f32.gmra.mxu0 %v366
      %v482 = vpop.f32.mrf.mxu0
      %v483 = vadd.f32 0.0, %v482
      %484 = vmatmul.f32.gmra.mxu0 %v369
      %v485 = vpop.f32.mrf.mxu0
      %v486 = vadd.f32 0.0, %v485
      %487 = vmatmul.f32.gmra.mxu0 %v372
      %v488 = vpop.f32.mrf.mxu0
      %v489 = vadd.f32 0.0, %v488
      %490 = vmatmul.f32.gmra.mxu0 %v375
      %v491 = vpop.f32.mrf.mxu0
      %v492 = vadd.f32 0.0, %v491
      %493 = vmatmul.f32.gmra.mxu0 %v378
      %v494 = vpop.f32.mrf.mxu0
      %v495 = vadd.f32 0.0, %v494
      %496 = vmatmul.f32.gmra.mxu0 %v381
      %v497 = vpop.f32.mrf.mxu0
      %v498 = vadd.f32 0.0, %v497
      %499 = vmatmul.f32.gmra.mxu0 %v384
      %v500 = vpop.f32.mrf.mxu0
      %v501 = vadd.f32 0.0, %v500
      %502 = vmatmul.f32.gmra.mxu0 %v387
      %v503 = vpop.f32.mrf.mxu0
      %v504 = vadd.f32 0.0, %v503
      %505 = vmatmul.f32.gmra.mxu0 %v390
      %v506 = vpop.f32.mrf.mxu0
      %v507 = vadd.f32 0.0, %v506
      %508 = vmatmul.f32.gmra.mxu0 %v393
      %v509 = vpop.f32.mrf.mxu0
      %v510 = vadd.f32 0.0, %v509
      %511 = vdwg.mxu0
      %v512 = vpack.c.bf16 %v417, %v417
      %v513 = vpack.c.bf16 %v420, %v420
      %v514 = vpack.c.bf16 %v423, %v423
      %v515 = vpack.c.bf16 %v426, %v426
      %v516 = vpack.c.bf16 %v429, %v429
      %v517 = vpack.c.bf16 %v432, %v432
      %v518 = vpack.c.bf16 %v435, %v435
      %v519 = vpack.c.bf16 %v438, %v438
      %v520 = vpack.c.bf16 %v441, %v441
      %v521 = vpack.c.bf16 %v444, %v444
      %v522 = vpack.c.bf16 %v447, %v447
      %v523 = vpack.c.bf16 %v450, %v450
      %v524 = vpack.c.bf16 %v453, %v453
      %v525 = vpack.c.bf16 %v456, %v456
      %v526 = vpack.c.bf16 %v459, %v459
      %v527 = vpack.c.bf16 %v462, %v462
      %v528 = vpack.c.bf16 %v465, %v465
      %v529 = vpack.c.bf16 %v468, %v468
      %v530 = vpack.c.bf16 %v471, %v471
      %v531 = vpack.c.bf16 %v474, %v474
      %v532 = vpack.c.bf16 %v477, %v477
      %v533 = vpack.c.bf16 %v480, %v480
      %v534 = vpack.c.bf16 %v483, %v483
      %v535 = vpack.c.bf16 %v486, %v486
      %v536 = vpack.c.bf16 %v489, %v489
      %v537 = vpack.c.bf16 %v492, %v492
      %v538 = vpack.c.bf16 %v495, %v495
      %v539 = vpack.c.bf16 %v498, %v498
      %v540 = vpack.c.bf16 %v501, %v501
      %v541 = vpack.c.bf16 %v504, %v504
      %v542 = vpack.c.bf16 %v507, %v507
      %v543 = vpack.c.bf16 %v510, %v510
      %vm544 = vcmask 60416
      %545 = vst.msk [vmem:[%s247] sm:$0xf] %vm544, %v512
      %546 = vst.msk [vmem:[%s247 + $0x4] sm:$0xf] %vm544, %v513
      %547 = vst.msk [vmem:[%s247 + $0x8] sm:$0xf] %vm544, %v514
      %548 = vst.msk [vmem:[%s247 + $0xc] sm:$0xf] %vm544, %v515
      %549 = vst.msk [vmem:[%s247 + $0x10] sm:$0xf] %vm544, %v516
      %550 = vst.msk [vmem:[%s247 + $0x14] sm:$0xf] %vm544, %v517
      %551 = vst.msk [vmem:[%s247 + $0x18] sm:$0xf] %vm544, %v518
      %552 = vst.msk [vmem:[%s247 + $0x1c] sm:$0xf] %vm544, %v519
      %553 = vst.msk [vmem:[%s247 + $0x20] sm:$0xf] %vm544, %v520
      %554 = vst.msk [vmem:[%s247 + $0x24] sm:$0xf] %vm544, %v521
      %555 = vst.msk [vmem:[%s247 + $0x28] sm:$0xf] %vm544, %v522
      %556 = vst.msk [vmem:[%s247 + $0x2c] sm:$0xf] %vm544, %v523
      %557 = vst.msk [vmem:[%s247 + $0x30] sm:$0xf] %vm544, %v524
      %558 = vst.msk [vmem:[%s247 + $0x34] sm:$0xf] %vm544, %v525
      %559 = vst.msk [vmem:[%s247 + $0x38] sm:$0xf] %vm544, %v526
      %560 = vst.msk [vmem:[%s247 + $0x3c] sm:$0xf] %vm544, %v527
      %561 = vst.msk [vmem:[%s247 + $0x40] sm:$0xf] %vm544, %v528
      %562 = vst.msk [vmem:[%s247 + $0x44] sm:$0xf] %vm544, %v529
      %563 = vst.msk [vmem:[%s247 + $0x48] sm:$0xf] %vm544, %v530
      %564 = vst.msk [vmem:[%s247 + $0x4c] sm:$0xf] %vm544, %v531
      %565 = vst.msk [vmem:[%s247 + $0x50] sm:$0xf] %vm544, %v532
      %566 = vst.msk [vmem:[%s247 + $0x54] sm:$0xf] %vm544, %v533
      %567 = vst.msk [vmem:[%s247 + $0x58] sm:$0xf] %vm544, %v534
      %568 = vst.msk [vmem:[%s247 + $0x5c] sm:$0xf] %vm544, %v535
      %569 = vst.msk [vmem:[%s247 + $0x60] sm:$0xf] %vm544, %v536
      %570 = vst.msk [vmem:[%s247 + $0x64] sm:$0xf] %vm544, %v537
      %571 = vst.msk [vmem:[%s247 + $0x68] sm:$0xf] %vm544, %v538
      %572 = vst.msk [vmem:[%s247 + $0x6c] sm:$0xf] %vm544, %v539
      %573 = vst.msk [vmem:[%s247 + $0x70] sm:$0xf] %vm544, %v540
      %574 = vst.msk [vmem:[%s247 + $0x74] sm:$0xf] %vm544, %v541
      %575 = vst.msk [vmem:[%s247 + $0x78] sm:$0xf] %vm544, %v542
      %576 = vst.msk [vmem:[%s247 + $0x7c] sm:$0xf] %vm544, %v543
      %609 = vrot.lane.b32.xlu0 %v512, 120
      %v610 = vpop.permute.xlu0 %609
      %611 = vrot.lane.b32.xlu0 %v513, 120
      %v612 = vpop.permute.xlu0 %611
      %613 = vrot.lane.b32.xlu0 %v514, 120
      %v614 = vpop.permute.xlu0 %613
      %615 = vrot.lane.b32.xlu0 %v515, 120
      %v616 = vpop.permute.xlu0 %615
      %617 = vrot.lane.b32.xlu0 %v516, 120
      %v618 = vpop.permute.xlu0 %617
      %619 = vrot.lane.b32.xlu0 %v517, 120
      %v620 = vpop.permute.xlu0 %619
      %621 = vrot.lane.b32.xlu0 %v518, 120
      %v622 = vpop.permute.xlu0 %621
      %623 = vrot.lane.b32.xlu0 %v519, 120
      %v624 = vpop.permute.xlu0 %623
      %625 = vrot.lane.b32.xlu0 %v520, 120
      %v626 = vpop.permute.xlu0 %625
      %627 = vrot.lane.b32.xlu0 %v521, 120
      %v628 = vpop.permute.xlu0 %627
      %629 = vrot.lane.b32.xlu0 %v522, 120
      %v630 = vpop.permute.xlu0 %629
      %631 = vrot.lane.b32.xlu0 %v523, 120
      %v632 = vpop.permute.xlu0 %631
      %633 = vrot.lane.b32.xlu0 %v524, 120
      %v634 = vpop.permute.xlu0 %633
      %635 = vrot.lane.b32.xlu0 %v525, 120
      %v636 = vpop.permute.xlu0 %635
      %637 = vrot.lane.b32.xlu0 %v526, 120
      %v638 = vpop.permute.xlu0 %637
      %639 = vrot.lane.b32.xlu0 %v527, 120
      %v640 = vpop.permute.xlu0 %639
      %641 = vrot.lane.b32.xlu0 %v528, 120
      %v642 = vpop.permute.xlu0 %641
      %643 = vrot.lane.b32.xlu0 %v529, 120
      %v644 = vpop.permute.xlu0 %643
      %645 = vrot.lane.b32.xlu0 %v530, 120
      %v646 = vpop.permute.xlu0 %645
      %647 = vrot.lane.b32.xlu0 %v531, 120
      %v648 = vpop.permute.xlu0 %647
      %649 = vrot.lane.b32.xlu0 %v532, 120
      %v650 = vpop.permute.xlu0 %649
      %651 = vrot.lane.b32.xlu0 %v533, 120
      %v652 = vpop.permute.xlu0 %651
      %653 = vrot.lane.b32.xlu0 %v534, 120
      %v654 = vpop.permute.xlu0 %653
      %655 = vrot.lane.b32.xlu0 %v535, 120
      %v656 = vpop.permute.xlu0 %655
      %657 = vrot.lane.b32.xlu0 %v536, 120
      %v658 = vpop.permute.xlu0 %657
      %659 = vrot.lane.b32.xlu0 %v537, 120
      %v660 = vpop.permute.xlu0 %659
      %661 = vrot.lane.b32.xlu0 %v538, 120
      %v662 = vpop.permute.xlu0 %661
      %663 = vrot.lane.b32.xlu0 %v539, 120
      %v664 = vpop.permute.xlu0 %663
      %665 = vrot.lane.b32.xlu0 %v540, 120
      %v666 = vpop.permute.xlu0 %665
      %667 = vrot.lane.b32.xlu0 %v541, 120
      %v668 = vpop.permute.xlu0 %667
      %669 = vrot.lane.b32.xlu0 %v542, 120
      %v670 = vpop.permute.xlu0 %669
      %671 = vrot.lane.b32.xlu0 %v543, 120
      %v672 = vpop.permute.xlu0 %671
      %vm705 = vcmask 27648
      %706 = vst.msk [vmem:[%s253] sm:$0xf] %vm705, %v610
      %707 = vst.msk [vmem:[%s253 + $0x4] sm:$0xf] %vm705, %v612
      %708 = vst.msk [vmem:[%s253 + $0x8] sm:$0xf] %vm705, %v614
      %709 = vst.msk [vmem:[%s253 + $0xc] sm:$0xf] %vm705, %v616
      %710 = vst.msk [vmem:[%s253 + $0x10] sm:$0xf] %vm705, %v618
      %711 = vst.msk [vmem:[%s253 + $0x14] sm:$0xf] %vm705, %v620
      %712 = vst.msk [vmem:[%s253 + $0x18] sm:$0xf] %vm705, %v622
      %713 = vst.msk [vmem:[%s253 + $0x1c] sm:$0xf] %vm705, %v624
      %714 = vst.msk [vmem:[%s253 + $0x20] sm:$0xf] %vm705, %v626
      %715 = vst.msk [vmem:[%s253 + $0x24] sm:$0xf] %vm705, %v628
      %716 = vst.msk [vmem:[%s253 + $0x28] sm:$0xf] %vm705, %v630
      %717 = vst.msk [vmem:[%s253 + $0x2c] sm:$0xf] %vm705, %v632
      %718 = vst.msk [vmem:[%s253 + $0x30] sm:$0xf] %vm705, %v634
      %719 = vst.msk [vmem:[%s253 + $0x34] sm:$0xf] %vm705, %v636
      %720 = vst.msk [vmem:[%s253 + $0x38] sm:$0xf] %vm705, %v638
      %721 = vst.msk [vmem:[%s253 + $0x3c] sm:$0xf] %vm705, %v640
      %722 = vst.msk [vmem:[%s253 + $0x40] sm:$0xf] %vm705, %v642
      %723 = vst.msk [vmem:[%s253 + $0x44] sm:$0xf] %vm705, %v644
      %724 = vst.msk [vmem:[%s253 + $0x48] sm:$0xf] %vm705, %v646
      %725 = vst.msk [vmem:[%s253 + $0x4c] sm:$0xf] %vm705, %v648
      %726 = vst.msk [vmem:[%s253 + $0x50] sm:$0xf] %vm705, %v650
      %727 = vst.msk [vmem:[%s253 + $0x54] sm:$0xf] %vm705, %v652
      %728 = vst.msk [vmem:[%s253 + $0x58] sm:$0xf] %vm705, %v654
      %729 = vst.msk [vmem:[%s253 + $0x5c] sm:$0xf] %vm705, %v656
      %730 = vst.msk [vmem:[%s253 + $0x60] sm:$0xf] %vm705, %v658
      %731 = vst.msk [vmem:[%s253 + $0x64] sm:$0xf] %vm705, %v660
      %732 = vst.msk [vmem:[%s253 + $0x68] sm:$0xf] %vm705, %v662
      %733 = vst.msk [vmem:[%s253 + $0x6c] sm:$0xf] %vm705, %v664
      %734 = vst.msk [vmem:[%s253 + $0x70] sm:$0xf] %vm705, %v666
      %735 = vst.msk [vmem:[%s253 + $0x74] sm:$0xf] %vm705, %v668
      %736 = vst.msk [vmem:[%s253 + $0x78] sm:$0xf] %vm705, %v670
      %737 = vst.msk [vmem:[%s253 + $0x7c] sm:$0xf] %vm705, %v672
      %738 = vrot.lane.b32.xlu0 %v512, 116
      %v739 = vpop.permute.xlu0 %738
      %740 = vrot.lane.b32.xlu0 %v513, 116
      %v741 = vpop.permute.xlu0 %740
      %742 = vrot.lane.b32.xlu0 %v514, 116
      %v743 = vpop.permute.xlu0 %742
      %744 = vrot.lane.b32.xlu0 %v515, 116
      %v745 = vpop.permute.xlu0 %744
      %746 = vrot.lane.b32.xlu0 %v516, 116
      %v747 = vpop.permute.xlu0 %746
      %748 = vrot.lane.b32.xlu0 %v517, 116
      %v749 = vpop.permute.xlu0 %748
      %750 = vrot.lane.b32.xlu0 %v518, 116
      %v751 = vpop.permute.xlu0 %750
      %752 = vrot.lane.b32.xlu0 %v519, 116
      %v753 = vpop.permute.xlu0 %752
      %754 = vrot.lane.b32.xlu0 %v520, 116
      %v755 = vpop.permute.xlu0 %754
      %756 = vrot.lane.b32.xlu0 %v521, 116
      %v757 = vpop.permute.xlu0 %756
      %758 = vrot.lane.b32.xlu0 %v522, 116
      %v759 = vpop.permute.xlu0 %758
      %760 = vrot.lane.b32.xlu0 %v523, 116
      %v761 = vpop.permute.xlu0 %760
      %762 = vrot.lane.b32.xlu0 %v524, 116
      %v763 = vpop.permute.xlu0 %762
      %764 = vrot.lane.b32.xlu0 %v525, 116
      %v765 = vpop.permute.xlu0 %764
      %766 = vrot.lane.b32.xlu0 %v526, 116
      %v767 = vpop.permute.xlu0 %766
      %768 = vrot.lane.b32.xlu0 %v527, 116
      %v769 = vpop.permute.xlu0 %768
      %770 = vrot.lane.b32.xlu0 %v528, 116
      %v771 = vpop.permute.xlu0 %770
      %772 = vrot.lane.b32.xlu0 %v529, 116
      %v773 = vpop.permute.xlu0 %772
      %774 = vrot.lane.b32.xlu0 %v530, 116
      %v775 = vpop.permute.xlu0 %774
      %776 = vrot.lane.b32.xlu0 %v531, 116
      %v777 = vpop.permute.xlu0 %776
      %778 = vrot.lane.b32.xlu0 %v532, 116
      %v779 = vpop.permute.xlu0 %778
      %780 = vrot.lane.b32.xlu0 %v533, 116
      %v781 = vpop.permute.xlu0 %780
      %782 = vrot.lane.b32.xlu0 %v534, 116
      %v783 = vpop.permute.xlu0 %782
      %784 = vrot.lane.b32.xlu0 %v535, 116
      %v785 = vpop.permute.xlu0 %784
      %786 = vrot.lane.b32.xlu0 %v536, 116
      %v787 = vpop.permute.xlu0 %786
      %788 = vrot.lane.b32.xlu0 %v537, 116
      %v789 = vpop.permute.xlu0 %788
      %790 = vrot.lane.b32.xlu0 %v538, 116
      %v791 = vpop.permute.xlu0 %790
      %792 = vrot.lane.b32.xlu0 %v539, 116
      %v793 = vpop.permute.xlu0 %792
      %794 = vrot.lane.b32.xlu0 %v540, 116
      %v795 = vpop.permute.xlu0 %794
      %796 = vrot.lane.b32.xlu0 %v541, 116
      %v797 = vpop.permute.xlu0 %796
      %798 = vrot.lane.b32.xlu0 %v542, 116
      %v799 = vpop.permute.xlu0 %798
      %800 = vrot.lane.b32.xlu0 %v543, 116
      %v801 = vpop.permute.xlu0 %800
      %834 = vst.msk [vmem:[%s259] sm:$0xf] %vm705, %v739
      %835 = vst.msk [vmem:[%s259 + $0x4] sm:$0xf] %vm705, %v741
      %836 = vst.msk [vmem:[%s259 + $0x8] sm:$0xf] %vm705, %v743
      %837 = vst.msk [vmem:[%s259 + $0xc] sm:$0xf] %vm705, %v745
      %838 = vst.msk [vmem:[%s259 + $0x10] sm:$0xf] %vm705, %v747
      %839 = vst.msk [vmem:[%s259 + $0x14] sm:$0xf] %vm705, %v749
      %840 = vst.msk [vmem:[%s259 + $0x18] sm:$0xf] %vm705, %v751
      %841 = vst.msk [vmem:[%s259 + $0x1c] sm:$0xf] %vm705, %v753
      %842 = vst.msk [vmem:[%s259 + $0x20] sm:$0xf] %vm705, %v755
      %843 = vst.msk [vmem:[%s259 + $0x24] sm:$0xf] %vm705, %v757
      %844 = vst.msk [vmem:[%s259 + $0x28] sm:$0xf] %vm705, %v759
      %845 = vst.msk [vmem:[%s259 + $0x2c] sm:$0xf] %vm705, %v761
      %846 = vst.msk [vmem:[%s259 + $0x30] sm:$0xf] %vm705, %v763
      %847 = vst.msk [vmem:[%s259 + $0x34] sm:$0xf] %vm705, %v765
      %848 = vst.msk [vmem:[%s259 + $0x38] sm:$0xf] %vm705, %v767
      %849 = vst.msk [vmem:[%s259 + $0x3c] sm:$0xf] %vm705, %v769
      %850 = vst.msk [vmem:[%s259 + $0x40] sm:$0xf] %vm705, %v771
      %851 = vst.msk [vmem:[%s259 + $0x44] sm:$0xf] %vm705, %v773
      %852 = vst.msk [vmem:[%s259 + $0x48] sm:$0xf] %vm705, %v775
      %853 = vst.msk [vmem:[%s259 + $0x4c] sm:$0xf] %vm705, %v777
      %854 = vst.msk [vmem:[%s259 + $0x50] sm:$0xf] %vm705, %v779
      %855 = vst.msk [vmem:[%s259 + $0x54] sm:$0xf] %vm705, %v781
      %856 = vst.msk [vmem:[%s259 + $0x58] sm:$0xf] %vm705, %v783
      %857 = vst.msk [vmem:[%s259 + $0x5c] sm:$0xf] %vm705, %v785
      %858 = vst.msk [vmem:[%s259 + $0x60] sm:$0xf] %vm705, %v787
      %859 = vst.msk [vmem:[%s259 + $0x64] sm:$0xf] %vm705, %v789
      %860 = vst.msk [vmem:[%s259 + $0x68] sm:$0xf] %vm705, %v791
      %861 = vst.msk [vmem:[%s259 + $0x6c] sm:$0xf] %vm705, %v793
      %862 = vst.msk [vmem:[%s259 + $0x70] sm:$0xf] %vm705, %v795
      %863 = vst.msk [vmem:[%s259 + $0x74] sm:$0xf] %vm705, %v797
      %864 = vst.msk [vmem:[%s259 + $0x78] sm:$0xf] %vm705, %v799
      %865 = vst.msk [vmem:[%s259 + $0x7c] sm:$0xf] %vm705, %v801
      %vm866 = vcmask 130048
      %v867 = vsel %vm866, %v417, 0.0
      %v868 = vsel %vm866, %v420, 0.0
      %v869 = vadd.f32 %v867, %v868
      %v870 = vsel %vm866, %v423, 0.0
      %v871 = vadd.f32 %v869, %v870
      %v872 = vsel %vm866, %v426, 0.0
      %v873 = vadd.f32 %v871, %v872
      %v874 = vsel %vm866, %v429, 0.0
      %v875 = vadd.f32 %v873, %v874
      %v876 = vsel %vm866, %v432, 0.0
      %v877 = vadd.f32 %v875, %v876
      %v878 = vsel %vm866, %v435, 0.0
      %v879 = vadd.f32 %v877, %v878
      %v880 = vsel %vm866, %v438, 0.0
      %v881 = vadd.f32 %v879, %v880
      %v882 = vsel %vm866, %v441, 0.0
      %v883 = vadd.f32 %v881, %v882
      %v884 = vsel %vm866, %v444, 0.0
      %v885 = vadd.f32 %v883, %v884
      %v886 = vsel %vm866, %v447, 0.0
      %v887 = vadd.f32 %v885, %v886
      %v888 = vsel %vm866, %v450, 0.0
      %v889 = vadd.f32 %v887, %v888
      %v890 = vsel %vm866, %v453, 0.0
      %v891 = vadd.f32 %v889, %v890
      %v892 = vsel %vm866, %v456, 0.0
      %v893 = vadd.f32 %v891, %v892
      %v894 = vsel %vm866, %v459, 0.0
      %v895 = vadd.f32 %v893, %v894
      %v896 = vsel %vm866, %v462, 0.0
      %v897 = vadd.f32 %v895, %v896
      %v898 = vsel %vm866, %v465, 0.0
      %v899 = vadd.f32 %v897, %v898
      %v900 = vsel %vm866, %v468, 0.0
      %v901 = vadd.f32 %v899, %v900
      %v902 = vsel %vm866, %v471, 0.0
      %v903 = vadd.f32 %v901, %v902
      %v904 = vsel %vm866, %v474, 0.0
      %v905 = vadd.f32 %v903, %v904
      %v906 = vsel %vm866, %v477, 0.0
      %v907 = vadd.f32 %v905, %v906
      %v908 = vsel %vm866, %v480, 0.0
      %v909 = vadd.f32 %v907, %v908
      %v910 = vsel %vm866, %v483, 0.0
      %v911 = vadd.f32 %v909, %v910
      %v912 = vsel %vm866, %v486, 0.0
      %v913 = vadd.f32 %v911, %v912
      %v914 = vsel %vm866, %v489, 0.0
      %v915 = vadd.f32 %v913, %v914
      %v916 = vsel %vm866, %v492, 0.0
      %v917 = vadd.f32 %v915, %v916
      %v918 = vsel %vm866, %v495, 0.0
      %v919 = vadd.f32 %v917, %v918
      %v920 = vsel %vm866, %v498, 0.0
      %v921 = vadd.f32 %v919, %v920
      %v922 = vsel %vm866, %v501, 0.0
      %v923 = vadd.f32 %v921, %v922
      %v924 = vsel %vm866, %v504, 0.0
      %v925 = vadd.f32 %v923, %v924
      %v926 = vsel %vm866, %v507, 0.0
      %v927 = vadd.f32 %v925, %v926
      %v928 = vsel %vm866, %v510, 0.0
      %v929 = vadd.f32 %v927, %v928
      %v930 = vrot.slane %v929, 4
      %v931 = vadd.f32 %v929, %v930
      %v932 = vrot.slane %v931, 2
      %v933 = vadd.f32 %v931, %v932
      %v934 = vrot.slane %v933, 1
      %v935 = vadd.f32 %v933, %v934
      %vm936 = vcmask 122880
      %937 = vst.msk [vmem:[%s264] sm:$0x1] %vm936, %v935
      %v938 = vmul.f32 %v417, %v417
      %v939 = vmul.f32 %v420, %v420
      %v940 = vmul.f32 %v423, %v423
      %v941 = vmul.f32 %v426, %v426
      %v942 = vmul.f32 %v429, %v429
      %v943 = vmul.f32 %v432, %v432
      %v944 = vmul.f32 %v435, %v435
      %v945 = vmul.f32 %v438, %v438
      %v946 = vmul.f32 %v441, %v441
      %v947 = vmul.f32 %v444, %v444
      %v948 = vmul.f32 %v447, %v447
      %v949 = vmul.f32 %v450, %v450
      %v950 = vmul.f32 %v453, %v453
      %v951 = vmul.f32 %v456, %v456
      %v952 = vmul.f32 %v459, %v459
      %v953 = vmul.f32 %v462, %v462
      %v954 = vmul.f32 %v465, %v465
      %v955 = vmul.f32 %v468, %v468
      %v956 = vmul.f32 %v471, %v471
      %v957 = vmul.f32 %v474, %v474
      %v958 = vmul.f32 %v477, %v477
      %v959 = vmul.f32 %v480, %v480
      %v960 = vmul.f32 %v483, %v483
      %v961 = vmul.f32 %v486, %v486
      %v962 = vmul.f32 %v489, %v489
      %v963 = vmul.f32 %v492, %v492
      %v964 = vmul.f32 %v495, %v495
      %v965 = vmul.f32 %v498, %v498
      %v966 = vmul.f32 %v501, %v501
      %v967 = vmul.f32 %v504, %v504
      %v968 = vmul.f32 %v507, %v507
      %v969 = vmul.f32 %v510, %v510
      %v970 = vsel %vm866, %v938, 0.0
      %v971 = vsel %vm866, %v939, 0.0
      %v972 = vadd.f32 %v970, %v971
      %v973 = vsel %vm866, %v940, 0.0
      %v974 = vadd.f32 %v972, %v973
      %v975 = vsel %vm866, %v941, 0.0
      %v976 = vadd.f32 %v974, %v975
      %v977 = vsel %vm866, %v942, 0.0
      %v978 = vadd.f32 %v976, %v977
      %v979 = vsel %vm866, %v943, 0.0
      %v980 = vadd.f32 %v978, %v979
      %v981 = vsel %vm866, %v944, 0.0
      %v982 = vadd.f32 %v980, %v981
      %v983 = vsel %vm866, %v945, 0.0
      %v984 = vadd.f32 %v982, %v983
      %v985 = vsel %vm866, %v946, 0.0
      %v986 = vadd.f32 %v984, %v985
      %v987 = vsel %vm866, %v947, 0.0
      %v988 = vadd.f32 %v986, %v987
      %v989 = vsel %vm866, %v948, 0.0
      %v990 = vadd.f32 %v988, %v989
      %v991 = vsel %vm866, %v949, 0.0
      %v992 = vadd.f32 %v990, %v991
      %v993 = vsel %vm866, %v950, 0.0
      %v994 = vadd.f32 %v992, %v993
      %v995 = vsel %vm866, %v951, 0.0
      %v996 = vadd.f32 %v994, %v995
      %v997 = vsel %vm866, %v952, 0.0
      %v998 = vadd.f32 %v996, %v997
      %v999 = vsel %vm866, %v953, 0.0
      %v1000 = vadd.f32 %v998, %v999
      %v1001 = vsel %vm866, %v954, 0.0
      %v1002 = vadd.f32 %v1000, %v1001
      %v1003 = vsel %vm866, %v955, 0.0
      %v1004 = vadd.f32 %v1002, %v1003
      %v1005 = vsel %vm866, %v956, 0.0
      %v1006 = vadd.f32 %v1004, %v1005
      %v1007 = vsel %vm866, %v957, 0.0
      %v1008 = vadd.f32 %v1006, %v1007
      %v1009 = vsel %vm866, %v958, 0.0
      %v1010 = vadd.f32 %v1008, %v1009
      %v1011 = vsel %vm866, %v959, 0.0
      %v1012 = vadd.f32 %v1010, %v1011
      %v1013 = vsel %vm866, %v960, 0.0
      %v1014 = vadd.f32 %v1012, %v1013
      %v1015 = vsel %vm866, %v961, 0.0
      %v1016 = vadd.f32 %v1014, %v1015
      %v1017 = vsel %vm866, %v962, 0.0
      %v1018 = vadd.f32 %v1016, %v1017
      %v1019 = vsel %vm866, %v963, 0.0
      %v1020 = vadd.f32 %v1018, %v1019
      %v1021 = vsel %vm866, %v964, 0.0
      %v1022 = vadd.f32 %v1020, %v1021
      %v1023 = vsel %vm866, %v965, 0.0
      %v1024 = vadd.f32 %v1022, %v1023
      %v1025 = vsel %vm866, %v966, 0.0
      %v1026 = vadd.f32 %v1024, %v1025
      %v1027 = vsel %vm866, %v967, 0.0
      %v1028 = vadd.f32 %v1026, %v1027
      %v1029 = vsel %vm866, %v968, 0.0
      %v1030 = vadd.f32 %v1028, %v1029
      %v1031 = vsel %vm866, %v969, 0.0
      %v1032 = vadd.f32 %v1030, %v1031
      %v1033 = vrot.slane %v1032, 4
      %v1034 = vadd.f32 %v1032, %v1033
      %v1035 = vrot.slane %v1034, 2
      %v1036 = vadd.f32 %v1034, %v1035
      %v1037 = vrot.slane %v1036, 1
      %v1038 = vadd.f32 %v1036, %v1037
      %1039 = vst.msk [vmem:[%s264 + $0x1] sm:$0x1] %vm936, %v1038
      %s1040 = smul.u32 32, %s17
      %p1041 = scmp.lt.s32.totalorder %s1040, 63
      %s1042 = scalar_select %p1041, %s1040, 63
      %s1043 = smul.addr %s1042, 4
      %s1044 = scalar_lea.vmem %s2, %s1043
      %s1045 = smul.u32 32, %s17
      %p1046 = scmp.lt.s32.totalorder %s1045, 63
      %s1047 = scalar_select %p1046, %s1045, 63
      %s1048 = smul.addr %s1047, 4
      %s1049 = scalar_lea.vmem %s3, %s1048
      %s1050 = smul.u32 32, %s17
      %p1051 = scmp.lt.s32.totalorder %s1050, 63
      %s1052 = scalar_select %p1051, %s1050, 63
      %s1053 = smul.addr %s1052, 4
      %s1054 = scalar_lea.vmem %s4, %s1053
      %p1055 = scmp.lt.s32.totalorder %s17, 1
      %s1056 = scalar_select %p1055, %s17, 1
      %s1057 = smul.addr %s1056, 2
      %s1058 = scalar_lea.vmem %s5, %s1057
      // Predicated region
      $region29: #{inception_forward.6} parent=27 // pred_check
        %p1059 = pneg %p82
      $region30: #{inception_forward.6} parent=27 // pred_check_branch
        %1061 = sbr.rel (%p1059) target = $region32
      $region31: #{inception_forward.6} parent=27 // pred_region
        %s1062 = smul.u32 32, %s17
      $region32: #{inception_forward.6} parent=27 // pred_fallthru
        _
      // Predicated region
      $region33: #{inception_forward.6} parent=27 // pred_check
        %p1063 = pneg %p108
      $region34: #{inception_forward.6} parent=27 // pred_check_branch
        %1065 = sbr.rel (%p1063) target = $region36
      $region35: #{inception_forward.6} parent=27 // pred_region
        %s1066 = smul.u32 32, %s17
      $region36: #{inception_forward.6} parent=27 // pred_fallthru
        _
      // Predicated region
      $region37: #{inception_forward.6} parent=27 // pred_check
        %p1067 = pneg %p134
      $region38: #{inception_forward.6} parent=27 // pred_check_branch
        %1069 = sbr.rel (%p1067) target = $region40
      $region39: #{inception_forward.6} parent=27 // pred_region
        %s1070 = smul.u32 32, %s17
      $region40: #{inception_forward.6} parent=27 // pred_fallthru
        _
      // Predicated region
      $region41: #{inception_forward.6} parent=27 // pred_check
        %p1071 = pneg %p160
      $region42: #{inception_forward.6} parent=27 // pred_check_branch
        %1073 = sbr.rel (%p1071) target = $region44
      $region43: #{inception_forward.6} parent=27 // pred_region
        _
      $region44: #{inception_forward.6} parent=27 // pred_fallthru
        _
    $region28: #{inception_forward.6} parent=5 // pred_fallthru
      _
    %p1074 = scmp.le.s32.totalorder 2, %s12
    // Predicated region
    $region45: #{inception_forward.6} parent=5 // pred_check
      %p1075 = pneg %p1074
    $region46: #{inception_forward.6} parent=5 // pred_check_branch
      %1077 = sbr.rel (%p1075) target = $region48
    $region47: #{inception_forward.6} parent=5 // pred_region
      %s1078 = ssub.s32 %s12, 2
      // Predicated region
      $region49: #{inception_forward.6} parent=47 // pred_check
        %p1079 = pneg %p88
      $region50: #{inception_forward.6} parent=47 // pred_check_branch
        %1081 = sbr.rel (%p1079) target = $region52
      $region51: #{inception_forward.6} parent=47 // pred_region
        %s1082 = smul.u32 32, %s18
        %p1083 = scmp.lt.s32.totalorder %s1082, 63
        %s1084 = scalar_select %p1083, %s1082, 63
        %s1085 = smul.addr %s1084, 4
        %s1086 = scalar_lea.vmem %s2, %s1085
      $region52: #{inception_forward.6} parent=47 // pred_fallthru
        _
      // Predicated region
      $region53: #{inception_forward.6} parent=47 // pred_check
        %p1087 = pneg %p114
      $region54: #{inception_forward.6} parent=47 // pred_check_branch
        %1089 = sbr.rel (%p1087) target = $region56
      $region55: #{inception_forward.6} parent=47 // pred_region
        %s1090 = smul.u32 32, %s18
        %p1091 = scmp.lt.s32.totalorder %s1090, 63
        %s1092 = scalar_select %p1091, %s1090, 63
        %s1093 = smul.addr %s1092, 4
        %s1094 = scalar_lea.vmem %s3, %s1093
      $region56: #{inception_forward.6} parent=47 // pred_fallthru
        _
      // Predicated region
      $region57: #{inception_forward.6} parent=47 // pred_check
        %p1095 = pneg %p140
      $region58: #{inception_forward.6} parent=47 // pred_check_branch
        %1097 = sbr.rel (%p1095) target = $region60
      $region59: #{inception_forward.6} parent=47 // pred_region
        %s1098 = smul.u32 32, %s18
        %p1099 = scmp.lt.s32.totalorder %s1098, 63
        %s1100 = scalar_select %p1099, %s1098, 63
        %s1101 = smul.addr %s1100, 4
        %s1102 = scalar_lea.vmem %s4, %s1101
      $region60: #{inception_forward.6} parent=47 // pred_fallthru
        _
      // Predicated region
      $region61: #{inception_forward.6} parent=47 // pred_check
        %p1103 = pneg %p166
      $region62: #{inception_forward.6} parent=47 // pred_check_branch
        %1105 = sbr.rel (%p1103) target = $region64
      $region63: #{inception_forward.6} parent=47 // pred_region
        %p1106 = scmp.lt.s32.totalorder %s18, 1
        %s1107 = scalar_select %p1106, %s18, 1
        %s1108 = smul.addr %s1107, 2
        %s1109 = scalar_lea.vmem %s5, %s1108
      $region64: #{inception_forward.6} parent=47 // pred_fallthru
        _
    $region48: #{inception_forward.6} parent=5 // pred_fallthru
      _
  $region6: #{inception_forward.6} parent=0 // loop_footer
    %s16 = sadd.s32 1, %s12
  $region7: #{inception_forward.6} parent=0 // loop_footer_branch
    %11 = sbr.rel target = $region3
  $region8: #{inception_forward.6} parent=0 // loop_exit
    _

// kernel: inception_forward.10
$region0: #{inception_forward.10}
  #allocation0 [shape = 'u32[]', space=smem, size = 0x4, offset = 0x4, fixed_abs, tag = 'smem constant byte address 0x4 - core index']
  #allocation1 [shape = 'u32[72,128]{1,0:T(1,128)}', space=vmem, size = 0x9000, scoped, tag = 'internal scratch']
  #allocation2 [shape = 'f32[1,18,18,4]{3,2,1,0:T(8,128)}', space=vmem, size = 0x36000, scoped, tag = 'scratch operand']
  %s0 = inlined_call_operand.vmem [shape: f32[2,16,16,4], index: 0, kind: input, shape index: {}]
  %s1 = inlined_call_operand.vmem [shape: f32[4,8], index: 1, kind: input, shape index: {}]
  %s2 = inlined_call_operand.vmem [shape: bf16[512,8], index: 2, kind: output, shape index: {0}]
  %s3 = inlined_call_operand.vmem [shape: f32[2,2,8], index: 3, kind: output, shape index: {1}]
  %4 = xla_tuple %s2, %s3
  %s5 = sld [smem:[#allocation0]]
  $region49: #{inception_forward.10} parent=0
    _
  %s7 = ssub.s32 1, %s5
  %s8 = scalar_select 0, %s7, %s5
  loop: start=0, step=1, limit=4
  $region2: #{inception_forward.10} parent=0 // loop_pre_header
    _
  $region3: #{inception_forward.10} parent=0 // loop_header
    %s10 = sphi 0, %s14
    %p11 = scmp.ge.s32.totalorder %s10, 4
    %s20 = sphi 0, %s22
    %s23 = sphi 0, %s20
    %s24 = sphi 0, %s23
    %s40 = sphi 0, %s24
    %s44 = sphi 0, %s44
    %s46 = sphi 0, %s44
    %s47 = sphi 0, %s46
    %s61 = sphi 0, %s47
    %s67 = sphi 0, %s69
    %s70 = sphi 0, %s67
    %s71 = sphi 0, %s70
    %s87 = sphi 0, %s71
    %s93 = sphi 0, %s95
    %s96 = sphi 0, %s93
    %s97 = sphi 0, %s96
    %s113 = sphi 0, %s97
  $region4: #{inception_forward.10} parent=0 // loop_header_branch
    %13 = sbr.rel (%p11) target = $region8
  $region5: #{inception_forward.10} parent=0 // loop_body
    %s15 = ssub.s32 %s10, 1
    %s16 = ssub.s32 %s10, 2
    %s17 = sadd.s32 %s10, 1
    %s18 = ssub.s32 %s10, %s17
    %p19 = scmp.eq.s32.totalorder %s18, 0
    %s21 = sadd.s32 %s20, 1
    %s22 = scalar_select %p19, %s20, %s21
    %p25 = pneg %p19
    %p26 = scmp.eq.s32.totalorder %s10, 1
    %p27 = por %p25, %p26
    %p28 = scmp.ne.s32.totalorder %s20, %s23
    %p29 = scmp.eq.s32.totalorder %s10, 0
    %p30 = por %p28, %p29
    %p31 = scmp.ne.s32.totalorder %s20, %s23
    %p32 = scmp.eq.s32.totalorder %s15, 1
    %p33 = por %p31, %p32
    %p34 = scmp.ne.s32.totalorder %s23, %s24
    %p35 = scmp.eq.s32.totalorder %s15, 0
    %p36 = por %p34, %p35
    %p37 = scmp.ne.s32.totalorder %s23, %s24
    %p38 = scmp.eq.s32.totalorder %s16, 1
    %p39 = por %p37, %p38
    %p41 = scmp.ne.s32.totalorder %s24, %s40
    %p42 = scmp.eq.s32.totalorder %s16, 0
    %p43 = por %p41, %p42
    %s45 = sadd.s32 %s44, 1
    %p48 = scmp.eq.s32.totalorder %s10, 1
    %p49 = scmp.ne.s32.totalorder %s44, %s46
    %p50 = scmp.eq.s32.totalorder %s10, 0
    %p51 = por %p49, %p50
    %p52 = scmp.ne.s32.totalorder %s44, %s46
    %p53 = scmp.eq.s32.totalorder %s15, 1
    %p54 = por %p52, %p53
    %p55 = scmp.ne.s32.totalorder %s46, %s47
    %p56 = scmp.eq.s32.totalorder %s15, 0
    %p57 = por %p55, %p56
    %p58 = scmp.ne.s32.totalorder %s46, %s47
    %p59 = scmp.eq.s32.totalorder %s16, 1
    %p60 = por %p58, %p59
    %p62 = scmp.ne.s32.totalorder %s47, %s61
    %p63 = scmp.eq.s32.totalorder %s16, 0
    %p64 = por %p62, %p63
    %s65 = ssub.s32 %s10, %s17
    %p66 = scmp.eq.s32.totalorder %s65, 0
    %s68 = sadd.s32 %s67, 1
    %s69 = scalar_select %p66, %s67, %s68
    %p72 = pneg %p66
    %p73 = scmp.eq.s32.totalorder %s10, 1
    %p74 = por %p72, %p73
    %p75 = scmp.ne.s32.totalorder %s67, %s70
    %p76 = scmp.eq.s32.totalorder %s10, 0
    %p77 = por %p75, %p76
    %p78 = scmp.ne.s32.totalorder %s67, %s70
    %p79 = scmp.eq.s32.totalorder %s15, 1
    %p80 = por %p78, %p79
    %p81 = scmp.ne.s32.totalorder %s70, %s71
    %p82 = scmp.eq.s32.totalorder %s15, 0
    %p83 = por %p81, %p82
    %p84 = scmp.ne.s32.totalorder %s70, %s71
    %p85 = scmp.eq.s32.totalorder %s16, 1
    %p86 = por %p84, %p85
    %p88 = scmp.ne.s32.totalorder %s71, %s87
    %p89 = scmp.eq.s32.totalorder %s16, 0
    %p90 = por %p88, %p89
    %s91 = ssub.s32 %s10, %s17
    %p92 = scmp.eq.s32.totalorder %s91, 0
    %s94 = sadd.s32 %s93, 1
    %s95 = scalar_select %p92, %s93, %s94
    %p98 = pneg %p92
    %p99 = scmp.eq.s32.totalorder %s10, 1
    %p100 = por %p98, %p99
    %p101 = scmp.ne.s32.totalorder %s93, %s96
    %p102 = scmp.eq.s32.totalorder %s10, 0
    %p103 = por %p101, %p102
    %p104 = scmp.ne.s32.totalorder %s93, %s96
    %p105 = scmp.eq.s32.totalorder %s15, 1
    %p106 = por %p104, %p105
    %p107 = scmp.ne.s32.totalorder %s96, %s97
    %p108 = scmp.eq.s32.totalorder %s15, 0
    %p109 = por %p107, %p108
    %p110 = scmp.ne.s32.totalorder %s96, %s97
    %p111 = scmp.eq.s32.totalorder %s16, 1
    %p112 = por %p110, %p111
    %p114 = scmp.ne.s32.totalorder %s97, %s113
    %p115 = scmp.eq.s32.totalorder %s16, 0
    %p116 = por %p114, %p115
    %p117 = scmp.le.s32.totalorder 1, %s10
    %p118 = scmp.lt.s32.totalorder %s10, 3
    %p119 = pnand %p117, %p118
    %p120 = pneg %p119
    // Predicated region
    $region9: #{inception_forward.10} parent=5 // pred_check
      _
    $region10: #{inception_forward.10} parent=5 // pred_check_branch
      %122 = sbr.rel (%p119) target = $region12
    $region11: #{inception_forward.10} parent=5 // pred_region
      %s123 = ssub.s32 %s10, 1
      // Predicated region
      $region13: #{inception_forward.10} parent=11 // pred_check
        %p124 = pneg %p57
      $region14: #{inception_forward.10} parent=11 // pred_check_branch
        %126 = sbr.rel (%p124) target = $region16
      $region15: #{inception_forward.10} parent=11 // pred_region
        _
      $region16: #{inception_forward.10} parent=11 // pred_fallthru
        _
    $region12: #{inception_forward.10} parent=5 // pred_fallthru
      _
    %p127 = scmp.lt.s32.totalorder %s10, 2
    // Predicated region
    $region17: #{inception_forward.10} parent=5 // pred_check
      %p128 = pneg %p127
    $region18: #{inception_forward.10} parent=5 // pred_check_branch
      %130 = sbr.rel (%p128) target = $region20
    $region19: #{inception_forward.10} parent=5 // pred_region
      // Predicated region
      $region21: #{inception_forward.10} parent=19 // pred_check
        %p131 = pneg %p30
      $region22: #{inception_forward.10} parent=19 // pred_check_branch
        %133 = sbr.rel (%p131) target = $region24
      $region23: #{inception_forward.10} parent=19 // pred_region
        %p134 = scmp.lt.s32.totalorder %s10, 1
        %s135 = scalar_select %p134, %s10, 1
        %s136 = smul.addr %s135, 32
        %s137 = smul.addr %s136, 8
        %s138 = scalar_lea.vmem %s0, %s137
      $region24: #{inception_forward.10} parent=19 // pred_fallthru
        _
    $region20: #{inception_forward.10} parent=5 // pred_fallthru
      _
    %p139 = scmp.le.s32.totalorder 1, %s10
    %p140 = scmp.lt.s32.totalorder %s10, 3
    %p141 = pnand %p139, %p140
    %p142 = pneg %p141
    // Predicated region
    $region25: #{inception_forward.10} parent=5 // pred_check
      _
    $region26: #{inception_forward.10} parent=5 // pred_check_branch
      %144 = sbr.rel (%p141) target = $region28
    $region27: #{inception_forward.10} parent=5 // pred_region
      %s145 = ssub.s32 %s10, 1
      %p146 = scmp.lt.s32.totalorder %s15, 1
      %s147 = scalar_select %p146, %s15, 1
      %s148 = smul.addr %s147, 32
      %s149 = smul.addr %s148, 8
      %s150 = scalar_lea.vmem %s0, %s149
      %p151 = pneg %p36
      %p152 = pneg %p33
      %p153 = pneg %p57
      %p154 = pneg %p54
      %p155 = pneg %p83
      %p156 = pneg %p80
      %s157 = smul.u32 32, %s15
      %p158 = scmp.lt.s32.totalorder %s157, 63
      %s159 = scalar_select %p158, %s157, 63
      %s160 = smul.addr %s159, 4
      %s161 = scalar_lea.vmem %s2, %s160
      %p162 = pneg %p109
      %p163 = pneg %p106
      %p164 = scmp.lt.s32.totalorder %s15, 1
      %s165 = scalar_select %p164, %s15, 1
      %s166 = smul.addr %s165, 2
      %s167 = scalar_lea.vmem %s3, %s166
      %p168 = scmp.lt.s32.totalorder %s15, 1
      %s169 = scalar_select %p168, %s15, 1
      %s170 = smul.addr %s169, 32
      %s171 = smul.addr %s170, 8
      %s172 = scalar_lea.vmem %s0, %s171
      %s173 = smul.u32 32, %s15
      %p174 = scmp.lt.s32.totalorder %s173, 63
      %s175 = scalar_select %p174, %s173, 63
      %s176 = smul.addr %s175, 4
      %s177 = scalar_lea.vmem %s2, %s176
      %s178 = smul.u32 32, %s15
      %p179 = scmp.lt.s32.totalorder %s15, 1
      %s180 = scalar_select %p179, %s15, 1
      %s181 = smul.addr %s180, 2
      %s182 = scalar_lea.vmem %s3, %s181
      %vm183 = vcmask 31744
      %184 = vst.msk [vmem:[#allocation2] sm:$0xff] %vm183, -inf
      %185 = vst.msk [vmem:[#allocation2 + $0x8] sm:$0xff] %vm183, -inf
      %vm186 = vcmask 25600
      %187 = vst.msk [vmem:[#allocation2 + $0x10] sm:$0x3] %vm186, -inf
      %188 = vst.msk [vmem:[#allocation2 + $0x18] sm:$0xff] %vm183, -inf
      %189 = vst.msk [vmem:[#allocation2 + $0x20] sm:$0xff] %vm183, -inf
      %190 = vst.msk [vmem:[#allocation2 + $0x28] sm:$0x3] %vm186, -inf
      %191 = vst.msk [vmem:[#allocation2 + $0x30] sm:$0xff] %vm183, -inf
      %192 = vst.msk [vmem:[#allocation2 + $0x38] sm:$0xff] %vm183, -inf
      %193 = vst.msk [vmem:[#allocation2 + $0x40] sm:$0x3] %vm186, -inf
      %194 = vst.msk [vmem:[#allocation2 + $0x48] sm:$0xff] %vm183, -inf
      %195 = vst.msk [vmem:[#allocation2 + $0x50] sm:$0xff] %vm183, -inf
      %196 = vst.msk [vmem:[#allocation2 + $0x58] sm:$0x3] %vm186, -inf
      %197 = vst.msk [vmem:[#allocation2 + $0x60] sm:$0xff] %vm183, -inf
      %198 = vst.msk [vmem:[#allocation2 + $0x68] sm:$0xff] %vm183, -inf
      %199 = vst.msk [vmem:[#allocation2 + $0x70] sm:$0x3] %vm186, -inf
      %200 = vst.msk [vmem:[#allocation2 + $0x78] sm:$0xff] %vm183, -inf
      %201 = vst.msk [vmem:[#allocation2 + $0x80] sm:$0xff] %vm183, -inf
      %202 = vst.msk [vmem:[#allocation2 + $0x88] sm:$0x3] %vm186, -inf
      %203 = vst.msk [vmem:[#allocation2 + $0x90] sm:$0xff] %vm183, -inf
      %204 = vst.msk [vmem:[#allocation2 + $0x98] sm:$0xff] %vm183, -inf
      %205 = vst.msk [vmem:[#allocation2 + $0xa0] sm:$0x3] %vm186, -inf
      %206 = vst.msk [vmem:[#allocation2 + $0xa8] sm:$0xff] %vm183, -inf
      %207 = vst.msk [vmem:[#allocation2 + $0xb0] sm:$0xff] %vm183, -inf
      %208 = vst.msk [vmem:[#allocation2 + $0xb8] sm:$0x3] %vm186, -inf
      %209 = vst.msk [vmem:[#allocation2 + $0xc0] sm:$0xff] %vm183, -inf
      %210 = vst.msk [vmem:[#allocation2 + $0xc8] sm:$0xff] %vm183, -inf
      %211 = vst.msk [vmem:[#allocation2 + $0xd0] sm:$0x3] %vm186, -inf
      %212 = vst.msk [vmem:[#allocation2 + $0xd8] sm:$0xff] %vm183, -inf
      %213 = vst.msk [vmem:[#allocation2 + $0xe0] sm:$0xff] %vm183, -inf
      %214 = vst.msk [vmem:[#allocation2 + $0xe8] sm:$0x3] %vm186, -inf
      %215 = vst.msk [vmem:[#allocation2 + $0xf0] sm:$0xff] %vm183, -inf
      %216 = vst.msk [vmem:[#allocation2 + $0xf8] sm:$0xff] %vm183, -inf
      %217 = vst.msk [vmem:[#allocation2 + $0x100] sm:$0x3] %vm186, -inf
      %218 = vst.msk [vmem:[#allocation2 + $0x108] sm:$0xff] %vm183, -inf
      %219 = vst.msk [vmem:[#allocation2 + $0x110] sm:$0xff] %vm183, -inf
      %220 = vst.msk [vmem:[#allocation2 + $0x118] sm:$0x3] %vm186, -inf
      %221 = vst.msk [vmem:[#allocation2 + $0x120] sm:$0xff] %vm183, -inf
      %222 = vst.msk [vmem:[#allocation2 + $0x128] sm:$0xff] %vm183, -inf
      %223 = vst.msk [vmem:[#allocation2 + $0x130] sm:$0x3] %vm186, -inf
      %224 = vst.msk [vmem:[#allocation2 + $0x138] sm:$0xff] %vm183, -inf
      %225 = vst.msk [vmem:[#allocation2 + $0x140] sm:$0xff] %vm183, -inf
      %226 = vst.msk [vmem:[#allocation2 + $0x148] sm:$0x3] %vm186, -inf
      %227 = vst.msk [vmem:[#allocation2 + $0x150] sm:$0xff] %vm183, -inf
      %228 = vst.msk [vmem:[#allocation2 + $0x158] sm:$0xff] %vm183, -inf
      %229 = vst.msk [vmem:[#allocation2 + $0x160] sm:$0x3] %vm186, -inf
      %230 = vst.msk [vmem:[#allocation2 + $0x168] sm:$0xff] %vm183, -inf
      %231 = vst.msk [vmem:[#allocation2 + $0x170] sm:$0xff] %vm183, -inf
      %232 = vst.msk [vmem:[#allocation2 + $0x178] sm:$0x3] %vm186, -inf
      %233 = vst.msk [vmem:[#allocation2 + $0x180] sm:$0xff] %vm183, -inf
      %234 = vst.msk [vmem:[#allocation2 + $0x188] sm:$0xff] %vm183, -inf
      %235 = vst.msk [vmem:[#allocation2 + $0x190] sm:$0x3] %vm186, -inf
      %236 = vst.msk [vmem:[#allocation2 + $0x198] sm:$0xff] %vm183, -inf
      %237 = vst.msk [vmem:[#allocation2 + $0x1a0] sm:$0xff] %vm183, -inf
      %238 = vst.msk [vmem:[#allocation2 + $0x1a8] sm:$0x3] %vm186, -inf
      %v239 = vld [vmem:[%s172] sm:$0xff]
      %v240 = vld [vmem:[%s172 + $0x8] sm:$0xff]
      %v241 = vld [vmem:[%s172 + $0x10] sm:$0xff]
      %v242 = vld [vmem:[%s172 + $0x18] sm:$0xff]
      %v243 = vld [vmem:[%s172 + $0x20] sm:$0xff]
      %v244 = vld [vmem:[%s172 + $0x28] sm:$0xff]
      %v245 = vld [vmem:[%s172 + $0x30] sm:$0xff]
      %v246 = vld [vmem:[%s172 + $0x38] sm:$0xff]
      %v247 = vld [vmem:[%s172 + $0x40] sm:$0xff]
      %v248 = vld [vmem:[%s172 + $0x48] sm:$0xff]
      %v249 = vld [vmem:[%s172 + $0x50] sm:$0xff]
      %v250 = vld [vmem:[%s172 + $0x58] sm:$0xff]
      %v251 = vld [vmem:[%s172 + $0x60] sm:$0xff]
      %v252 = vld [vmem:[%s172 + $0x68] sm:$0xff]
      %v253 = vld [vmem:[%s172 + $0x70] sm:$0xff]
      %v254 = vld [vmem:[%s172 + $0x78] sm:$0xff]
      %v255 = vld [vmem:[%s172 + $0x80] sm:$0xff]
      %v256 = vld [vmem:[%s172 + $0x88] sm:$0xff]
      %v257 = vld [vmem:[%s172 + $0x90] sm:$0xff]
      %v258 = vld [vmem:[%s172 + $0x98] sm:$0xff]
      %v259 = vld [vmem:[%s172 + $0xa0] sm:$0xff]
      %v260 = vld [vmem:[%s172 + $0xa8] sm:$0xff]
      %v261 = vld [vmem:[%s172 + $0xb0] sm:$0xff]
      %v262 = vld [vmem:[%s172 + $0xb8] sm:$0xff]
      %v263 = vld [vmem:[%s172 + $0xc0] sm:$0xff]
      %v264 = vld [vmem:[%s172 + $0xc8] sm:$0xff]
      %v265 = vld [vmem:[%s172 + $0xd0] sm:$0xff]
      %v266 = vld [vmem:[%s172 + $0xd8] sm:$0xff]
      %v267 = vld [vmem:[%s172 + $0xe0] sm:$0xff]
      %v268 = vld [vmem:[%s172 + $0xe8] sm:$0xff]
      %v269 = vld [vmem:[%s172 + $0xf0] sm:$0xff]
      %v270 = vld [vmem:[%s172 + $0xf8] sm:$0xff]
      %s271 = scalar_lea.vmem [#allocation2], 24
      %272 = vst.msk [vmem:[%s271 + $0x1] sm:$0xff] %vm183, %v239
      %273 = vst.msk [vmem:[%s271 + $0x9] sm:$0xff] %vm183, %v240
      %274 = vst.msk [vmem:[%s271 + $0x19] sm:$0xff] %vm183, %v241
      %275 = vst.msk [vmem:[%s271 + $0x21] sm:$0xff] %vm183, %v242
      %276 = vst.msk [vmem:[%s271 + $0x31] sm:$0xff] %vm183, %v243
      %277 = vst.msk [vmem:[%s271 + $0x39] sm:$0xff] %vm183, %v244
      %278 = vst.msk [vmem:[%s271 + $0x49] sm:$0xff] %vm183, %v245
      %279 = vst.msk [vmem:[%s271 + $0x51] sm:$0xff] %vm183, %v246
      %280 = vst.msk [vmem:[%s271 + $0x61] sm:$0xff] %vm183, %v247
      %281 = vst.msk [vmem:[%s271 + $0x69] sm:$0xff] %vm183, %v248
      %282 = vst.msk [vmem:[%s271 + $0x79] sm:$0xff] %vm183, %v249
      %283 = vst.msk [vmem:[%s271 + $0x81] sm:$0xff] %vm183, %v250
      %284 = vst.msk [vmem:[%s271 + $0x91] sm:$0xff] %vm183, %v251
      %285 = vst.msk [vmem:[%s271 + $0x99] sm:$0xff] %vm183, %v252
      %286 = vst.msk [vmem:[%s271 + $0xa9] sm:$0xff] %vm183, %v253
      %287 = vst.msk [vmem:[%s271 + $0xb1] sm:$0xff] %vm183, %v254
      %288 = vst.msk [vmem:[%s271 + $0xc1] sm:$0xff] %vm183, %v255
      %289 = vst.msk [vmem:[%s271 + $0xc9] sm:$0xff] %vm183, %v256
      %290 = vst.msk [vmem:[%s271 + $0xd9] sm:$0xff] %vm183, %v257
      %291 = vst.msk [vmem:[%s271 + $0xe1] sm:$0xff] %vm183, %v258
      %292 = vst.msk [vmem:[%s271 + $0xf1] sm:$0xff] %vm183, %v259
      %293 = vst.msk [vmem:[%s271 + $0xf9] sm:$0xff] %vm183, %v260
      %294 = vst.msk [vmem:[%s271 + $0x109] sm:$0xff] %vm183, %v261
      %295 = vst.msk [vmem:[%s271 + $0x111] sm:$0xff] %vm183, %v262
      %296 = vst.msk [vmem:[%s271 + $0x121] sm:$0xff] %vm183, %v263
      %297 = vst.msk [vmem:[%s271 + $0x129] sm:$0xff] %vm183, %v264
      %298 = vst.msk [vmem:[%s271 + $0x139] sm:$0xff] %vm183, %v265
      %299 = vst.msk [vmem:[%s271 + $0x141] sm:$0xff] %vm183, %v266
      %300 = vst.msk [vmem:[%s271 + $0x151] sm:$0xff] %vm183, %v267
      %301 = vst.msk [vmem:[%s271 + $0x159] sm:$0xff] %vm183, %v268
      %302 = vst.msk [vmem:[%s271 + $0x169] sm:$0xff] %vm183, %v269
      %303 = vst.msk [vmem:[%s271 + $0x171] sm:$0xff] %vm183, %v270
      %v304 = vld [vmem:[%s271 + $0x1] sm:$0xff]
      %v305 = vld [vmem:[%s271 + $0x9] sm:$0xff]
      %v306 = vld [vmem:[%s271 + $0x19] sm:$0xff]
      %v307 = vld [vmem:[%s271 + $0x21] sm:$0xff]
      %v308 = vld [vmem:[%s271 + $0x31] sm:$0xff]
      %v309 = vld [vmem:[%s271 + $0x39] sm:$0xff]
      %v310 = vld [vmem:[%s271 + $0x49] sm:$0xff]
      %v311 = vld [vmem:[%s271 + $0x51] sm:$0xff]
      %v312 = vld [vmem:[%s271 + $0x61] sm:$0xff]
      %v313 = vld [vmem:[%s271 + $0x69] sm:$0xff]
      %v314 = vld [vmem:[%s271 + $0x79] sm:$0xff]
      %v315 = vld [vmem:[%s271 + $0x81] sm:$0xff]
      %v316 = vld [vmem:[%s271 + $0x91] sm:$0xff]
      %v317 = vld [vmem:[%s271 + $0x99] sm:$0xff]
      %v318 = vld [vmem:[%s271 + $0xa9] sm:$0xff]
      %v319 = vld [vmem:[%s271 + $0xb1] sm:$0xff]
      %v320 = vld [vmem:[%s271 + $0xc1] sm:$0xff]
      %v321 = vld [vmem:[%s271 + $0xc9] sm:$0xff]
      %v322 = vld [vmem:[%s271 + $0xd9] sm:$0xff]
      %v323 = vld [vmem:[%s271 + $0xe1] sm:$0xff]
      %v324 = vld [vmem:[%s271 + $0xf1] sm:$0xff]
      %v325 = vld [vmem:[%s271 + $0xf9] sm:$0xff]
      %v326 = vld [vmem:[%s271 + $0x109] sm:$0xff]
      %v327 = vld [vmem:[%s271 + $0x111] sm:$0xff]
      %v328 = vld [vmem:[%s271 + $0x121] sm:$0xff]
      %v329 = vld [vmem:[%s271 + $0x129] sm:$0xff]
      %v330 = vld [vmem:[%s271 + $0x139] sm:$0xff]
      %v331 = vld [vmem:[%s271 + $0x141] sm:$0xff]
      %v332 = vld [vmem:[%s271 + $0x151] sm:$0xff]
      %v333 = vld [vmem:[%s271 + $0x159] sm:$0xff]
      %v334 = vld [vmem:[%s271 + $0x169] sm:$0xff]
      %v335 = vld [vmem:[%s271 + $0x171] sm:$0xff]
      %v336 = vld [vmem:[#allocation2] sm:$0xff]
      %v337 = vld [vmem:[#allocation2 + $0x8] sm:$0xff]
      %v338 = vld [vmem:[#allocation2 + $0x18] sm:$0xff]
      %v339 = vld [vmem:[#allocation2 + $0x20] sm:$0xff]
      %v340 = vld [vmem:[#allocation2 + $0x30] sm:$0xff]
      %v341 = vld [vmem:[#allocation2 + $0x38] sm:$0xff]
      %v342 = vld [vmem:[#allocation2 + $0x48] sm:$0xff]
      %v343 = vld [vmem:[#allocation2 + $0x50] sm:$0xff]
      %v344 = vld [vmem:[#allocation2 + $0x60] sm:$0xff]
      %v345 = vld [vmem:[#allocation2 + $0x68] sm:$0xff]
      %v346 = vld [vmem:[#allocation2 + $0x78] sm:$0xff]
      %v347 = vld [vmem:[#allocation2 + $0x80] sm:$0xff]
      %v348 = vld [vmem:[#allocation2 + $0x90] sm:$0xff]
      %v349 = vld [vmem:[#allocation2 + $0x98] sm:$0xff]
      %v350 = vld [vmem:[#allocation2 + $0xa8] sm:$0xff]
      %v351 = vld [vmem:[#allocation2 + $0xb0] sm:$0xff]
      %v352 = vld [vmem:[#allocation2 + $0xc0] sm:$0xff]
      %v353 = vld [vmem:[#allocation2 + $0xc8] sm:$0xff]
      %v354 = vld [vmem:[#allocation2 + $0xd8] sm:$0xff]
      %v355 = vld [vmem:[#allocation2 + $0xe0] sm:$0xff]
      %v356 = vld [vmem:[#allocation2 + $0xf0] sm:$0xff]
      %v357 = vld [vmem:[#allocation2 + $0xf8] sm:$0xff]
      %v358 = vld [vmem:[#allocation2 + $0x108] sm:$0xff]
      %v359 = vld [vmem:[#allocation2 + $0x110] sm:$0xff]
      %v360 = vld [vmem:[#allocation2 + $0x120] sm:$0xff]
      %v361 = vld [vmem:[#allocation2 + $0x128] sm:$0xff]
      %v362 = vld [vmem:[#allocation2 + $0x138] sm:$0xff]
      %v363 = vld [vmem:[#allocation2 + $0x140] sm:$0xff]
      %v364 = vld [vmem:[#allocation2 + $0x150] sm:$0xff]
      %v365 = vld [vmem:[#allocation2 + $0x158] sm:$0xff]
      %v366 = vld [vmem:[#allocation2 + $0x168] sm:$0xff]
      %v367 = vld [vmem:[#allocation2 + $0x170] sm:$0xff]
      %v368 = vmax.f32 %v304, %v336
      %v369 = vmax.f32 %v305, %v337
      %v370 = vmax.f32 %v306, %v338
      %v371 = vmax.f32 %v307, %v339
      %v372 = vmax.f32 %v308, %v340
      %v373 = vmax.f32 %v309, %v341
      %v374 = vmax.f32 %v310, %v342
      %v375 = vmax.f32 %v311, %v343
      %v376 = vmax.f32 %v312, %v344
      %v377 = vmax.f32 %v313, %v345
      %v378 = vmax.f32 %v314, %v346
      %v379 = vmax.f32 %v315, %v347
      %v380 = vmax.f32 %v316, %v348
      %v381 = vmax.f32 %v317, %v349
      %v382 = vmax.f32 %v318, %v350
      %v383 = vmax.f32 %v319, %v351
      %v384 = vmax.f32 %v320, %v352
      %v385 = vmax.f32 %v321, %v353
      %v386 = vmax.f32 %v322, %v354
      %v387 = vmax.f32 %v323, %v355
      %v388 = vmax.f32 %v324, %v356
      %v389 = vmax.f32 %v325, %v357
      %v390 = vmax.f32 %v326, %v358
      %v391 = vmax.f32 %v327, %v359
      %v392 = vmax.f32 %v328, %v360
      %v393 = vmax.f32 %v329, %v361
      %v394 = vmax.f32 %v330, %v362
      %v395 = vmax.f32 %v331, %v363
      %v396 = vmax.f32 %v332, %v364
      %v397 = vmax.f32 %v333, %v365
      %v398 = vmax.f32 %v334, %v366
      %v399 = vmax.f32 %v335, %v367
      %v400 = vld [vmem:[#allocation2 + $0x1] sm:$0xff]
      %v401 = vld [vmem:[#allocation2 + $0x9] sm:$0xff]
      %v402 = vld [vmem:[#allocation2 + $0x19] sm:$0xff]
      %v403 = vld [vmem:[#allocation2 + $0x21] sm:$0xff]
      %v404 = vld [vmem:[#allocation2 + $0x31] sm:$0xff]
      %v405 = vld [vmem:[#allocation2 + $0x39] sm:$0xff]
      %v406 = vld [vmem:[#allocation2 + $0x49] sm:$0xff]
      %v407 = vld [vmem:[#allocation2 + $0x51] sm:$0xff]
      %v408 = vld [vmem:[#allocation2 + $0x61] sm:$0xff]
      %v409 = vld [vmem:[#allocation2 + $0x69] sm:$0xff]
      %v410 = vld [vmem:[#allocation2 + $0x79] sm:$0xff]
      %v411 = vld [vmem:[#allocation2 + $0x81] sm:$0xff]
      %v412 = vld [vmem:[#allocation2 + $0x91] sm:$0xff]
      %v413 = vld [vmem:[#allocation2 + $0x99] sm:$0xff]
      %v414 = vld [vmem:[#allocation2 + $0xa9] sm:$0xff]
      %v415 = vld [vmem:[#allocation2 + $0xb1] sm:$0xff]
      %v416 = vld [vmem:[#allocation2 + $0xc1] sm:$0xff]
      %v417 = vld [vmem:[#allocation2 + $0xc9] sm:$0xff]
      %v418 = vld [vmem:[#allocation2 + $0xd9] sm:$0xff]
      %v419 = vld [vmem:[#allocation2 + $0xe1] sm:$0xff]
      %v420 = vld [vmem:[#allocation2 + $0xf1] sm:$0xff]
      %v421 = vld [vmem:[#allocation2 + $0xf9] sm:$0xff]
      %v422 = vld [vmem:[#allocation2 + $0x109] sm:$0xff]
      %v423 = vld [vmem:[#allocation2 + $0x111] sm:$0xff]
      %v424 = vld [vmem:[#allocation2 + $0x121] sm:$0xff]
      %v425 = vld [vmem:[#allocation2 + $0x129] sm:$0xff]
      %v426 = vld [vmem:[#allocation2 + $0x139] sm:$0xff]
      %v427 = vld [vmem:[#allocation2 + $0x141] sm:$0xff]
      %v428 = vld [vmem:[#allocation2 + $0x151] sm:$0xff]
      %v429 = vld [vmem:[#allocation2 + $0x159] sm:$0xff]
      %v430 = vld [vmem:[#allocation2 + $0x169] sm:$0xff]
      %v431 = vld [vmem:[#allocation2 + $0x171] sm:$0xff]
      %v432 = vmax.f32 %v368, %v400
      %v433 = vmax.f32 %v369, %v401
      %v434 = vmax.f32 %v370, %v402
      %v435 = vmax.f32 %v371, %v403
      %v436 = vmax.f32 %v372, %v404
      %v437 = vmax.f32 %v373, %v405
      %v438 = vmax.f32 %v374, %v406
      %v439 = vmax.f32 %v375, %v407
      %v440 = vmax.f32 %v376, %v408
      %v441 = vmax.f32 %v377, %v409
      %v442 = vmax.f32 %v378, %v410
      %v443 = vmax.f32 %v379, %v411
      %v444 = vmax.f32 %v380, %v412
      %v445 = vmax.f32 %v381, %v413
      %v446 = vmax.f32 %v382, %v414
      %v447 = vmax.f32 %v383, %v415
      %v448 = vmax.f32 %v384, %v416
      %v449 = vmax.f32 %v385, %v417
      %v450 = vmax.f32 %v386, %v418
      %v451 = vmax.f32 %v387, %v419
      %v452 = vmax.f32 %v388, %v420
      %v453 = vmax.f32 %v389, %v421
      %v454 = vmax.f32 %v390, %v422
      %v455 = vmax.f32 %v391, %v423
      %v456 = vmax.f32 %v392, %v424
      %v457 = vmax.f32 %v393, %v425
      %v458 = vmax.f32 %v394, %v426
      %v459 = vmax.f32 %v395, %v427
      %v460 = vmax.f32 %v396, %v428
      %v461 = vmax.f32 %v397, %v429
      %v462 = vmax.f32 %v398, %v430
      %v463 = vmax.f32 %v399, %v431
      %v464 = vld [vmem:[#allocation2 + $0x2] sm:$0xff]
      %v465 = vld [vmem:[#allocation2 + $0xa] sm:$0xff]
      %v466 = vld [vmem:[#allocation2 + $0x1a] sm:$0xff]
      %v467 = vld [vmem:[#allocation2 + $0x22] sm:$0xff]
      %v468 = vld [vmem:[#allocation2 + $0x32] sm:$0xff]
      %v469 = vld [vmem:[#allocation2 + $0x3a] sm:$0xff]
      %v470 = vld [vmem:[#allocation2 + $0x4a] sm:$0xff]
      %v471 = vld [vmem:[#allocation2 + $0x52] sm:$0xff]
      %v472 = vld [vmem:[#allocation2 + $0x62] sm:$0xff]
      %v473 = vld [vmem:[#allocation2 + $0x6a] sm:$0xff]
      %v474 = vld [vmem:[#allocation2 + $0x7a] sm:$0xff]
      %v475 = vld [vmem:[#allocation2 + $0x82] sm:$0xff]
      %v476 = vld [vmem:[#allocation2 + $0x92] sm:$0xff]
      %v477 = vld [vmem:[#allocation2 + $0x9a] sm:$0xff]
      %v478 = vld [vmem:[#allocation2 + $0xaa] sm:$0xff]
      %v479 = vld [vmem:[#allocation2 + $0xb2] sm:$0xff]
      %v480 = vld [vmem:[#allocation2 + $0xc2] sm:$0xff]
      %v481 = vld [vmem:[#allocation2 + $0xca] sm:$0xff]
      %v482 = vld [vmem:[#allocation2 + $0xda] sm:$0xff]
      %v483 = vld [vmem:[#allocation2 + $0xe2] sm:$0xff]
      %v484 = vld [vmem:[#allocation2 + $0xf2] sm:$0xff]
      %v485 = vld [vmem:[#allocation2 + $0xfa] sm:$0xff]
      %v486 = vld [vmem:[#allocation2 + $0x10a] sm:$0xff]
      %v487 = vld [vmem:[#allocation2 + $0x112] sm:$0xff]
      %v488 = vld [vmem:[#allocation2 + $0x122] sm:$0xff]
      %v489 = vld [vmem:[#allocation2 + $0x12a] sm:$0xff]
      %v490 = vld [vmem:[#allocation2 + $0x13a] sm:$0xff]
      %v491 = vld [vmem:[#allocation2 + $0x142] sm:$0xff]
      %v492 = vld [vmem:[#allocation2 + $0x152] sm:$0xff]
      %v493 = vld [vmem:[#allocation2 + $0x15a] sm:$0xff]
      %v494 = vld [vmem:[#allocation2 + $0x16a] sm:$0xff]
      %v495 = vld [vmem:[#allocation2 + $0x172] sm:$0xff]
      %v496 = vmax.f32 %v432, %v464
      %v497 = vmax.f32 %v433, %v465
      %v498 = vmax.f32 %v434, %v466
      %v499 = vmax.f32 %v435, %v467
      %v500 = vmax.f32 %v436, %v468
      %v501 = vmax.f32 %v437, %v469
      %v502 = vmax.f32 %v438, %v470
      %v503 = vmax.f32 %v439, %v471
      %v504 = vmax.f32 %v440, %v472
      %v505 = vmax.f32 %v441, %v473
      %v506 = vmax.f32 %v442, %v474
      %v507 = vmax.f32 %v443, %v475
      %v508 = vmax.f32 %v444, %v476
      %v509 = vmax.f32 %v445, %v477
      %v510 = vmax.f32 %v446, %v478
      %v511 = vmax.f32 %v447, %v479
      %v512 = vmax.f32 %v448, %v480
      %v513 = vmax.f32 %v449, %v481
      %v514 = vmax.f32 %v450, %v482
      %v515 = vmax.f32 %v451, %v483
      %v516 = vmax.f32 %v452, %v484
      %v517 = vmax.f32 %v453, %v485
      %v518 = vmax.f32 %v454, %v486
      %v519 = vmax.f32 %v455, %v487
      %v520 = vmax.f32 %v456, %v488
      %v521 = vmax.f32 %v457, %v489
      %v522 = vmax.f32 %v458, %v490
      %v523 = vmax.f32 %v459, %v491
      %v524 = vmax.f32 %v460, %v492
      %v525 = vmax.f32 %v461, %v493
      %v526 = vmax.f32 %v462, %v494
      %v527 = vmax.f32 %v463, %v495
      %v528 = vld [vmem:[%s271] sm:$0xff]
      %v529 = vld [vmem:[%s271 + $0x8] sm:$0xff]
      %v530 = vld [vmem:[%s271 + $0x18] sm:$0xff]
      %v531 = vld [vmem:[%s271 + $0x20] sm:$0xff]
      %v532 = vld [vmem:[%s271 + $0x30] sm:$0xff]
      %v533 = vld [vmem:[%s271 + $0x38] sm:$0xff]
      %v534 = vld [vmem:[%s271 + $0x48] sm:$0xff]
      %v535 = vld [vmem:[%s271 + $0x50] sm:$0xff]
      %v536 = vld [vmem:[%s271 + $0x60] sm:$0xff]
      %v537 = vld [vmem:[%s271 + $0x68] sm:$0xff]
      %v538 = vld [vmem:[%s271 + $0x78] sm:$0xff]
      %v539 = vld [vmem:[%s271 + $0x80] sm:$0xff]
      %v540 = vld [vmem:[%s271 + $0x90] sm:$0xff]
      %v541 = vld [vmem:[%s271 + $0x98] sm:$0xff]
      %v542 = vld [vmem:[%s271 + $0xa8] sm:$0xff]
      %v543 = vld [vmem:[%s271 + $0xb0] sm:$0xff]
      %v544 = vld [vmem:[%s271 + $0xc0] sm:$0xff]
      %v545 = vld [vmem:[%s271 + $0xc8] sm:$0xff]
      %v546 = vld [vmem:[%s271 + $0xd8] sm:$0xff]
      %v547 = vld [vmem:[%s271 + $0xe0] sm:$0xff]
      %v548 = vld [vmem:[%s271 + $0xf0] sm:$0xff]
      %v549 = vld [vmem:[%s271 + $0xf8] sm:$0xff]
      %v550 = vld [vmem:[%s271 + $0x108] sm:$0xff]
      %v551 = vld [vmem:[%s271 + $0x110] sm:$0xff]
      %v552 = vld [vmem:[%s271 + $0x120] sm:$0xff]
      %v553 = vld [vmem:[%s271 + $0x128] sm:$0xff]
      %v554 = vld [vmem:[%s271 + $0x138] sm:$0xff]
      %v555 = vld [vmem:[%s271 + $0x140] sm:$0xff]
      %v556 = vld [vmem:[%s271 + $0x150] sm:$0xff]
      %v557 = vld [vmem:[%s271 + $0x158] sm:$0xff]
      %v558 = vld [vmem:[%s271 + $0x168] sm:$0xff]
      %v559 = vld [vmem:[%s271 + $0x170] sm:$0xff]
      %v560 = vmax.f32 %v496, %v528
      %v561 = vmax.f32 %v497, %v529
      %v562 = vmax.f32 %v498, %v530
      %v563 = vmax.f32 %v499, %v531
      %v564 = vmax.f32 %v500, %v532
      %v565 = vmax.f32 %v501, %v533
      %v566 = vmax.f32 %v502, %v534
      %v567 = vmax.f32 %v503, %v535
      %v568 = vmax.f32 %v504, %v536
      %v569 = vmax.f32 %v505, %v537
      %v570 = vmax.f32 %v506, %v538
      %v571 = vmax.f32 %v507, %v539
      %v572 = vmax.f32 %v508, %v540
      %v573 = vmax.f32 %v509, %v541
      %v574 = vmax.f32 %v510, %v542
      %v575 = vmax.f32 %v511, %v543
      %v576 = vmax.f32 %v512, %v544
      %v577 = vmax.f32 %v513, %v545
      %v578 = vmax.f32 %v514, %v546
      %v579 = vmax.f32 %v515, %v547
      %v580 = vmax.f32 %v516, %v548
      %v581 = vmax.f32 %v517, %v549
      %v582 = vmax.f32 %v518, %v550
      %v583 = vmax.f32 %v519, %v551
      %v584 = vmax.f32 %v520, %v552
      %v585 = vmax.f32 %v521, %v553
      %v586 = vmax.f32 %v522, %v554
      %v587 = vmax.f32 %v523, %v555
      %v588 = vmax.f32 %v524, %v556
      %v589 = vmax.f32 %v525, %v557
      %v590 = vmax.f32 %v526, %v558
      %v591 = vmax.f32 %v527, %v559
      %v592 = vld [vmem:[%s271 + $0x2] sm:$0xff]
      %v593 = vld [vmem:[%s271 + $0xa] sm:$0xff]
      %v594 = vld [vmem:[%s271 + $0x1a] sm:$0xff]
      %v595 = vld [vmem:[%s271 + $0x22] sm:$0xff]
      %v596 = vld [vmem:[%s271 + $0x32] sm:$0xff]
      %v597 = vld [vmem:[%s271 + $0x3a] sm:$0xff]
      %v598 = vld [vmem:[%s271 + $0x4a] sm:$0xff]
      %v599 = vld [vmem:[%s271 + $0x52] sm:$0xff]
      %v600 = vld [vmem:[%s271 + $0x62] sm:$0xff]
      %v601 = vld [vmem:[%s271 + $0x6a] sm:$0xff]
      %v602 = vld [vmem:[%s271 + $0x7a] sm:$0xff]
      %v603 = vld [vmem:[%s271 + $0x82] sm:$0xff]
      %v604 = vld [vmem:[%s271 + $0x92] sm:$0xff]
      %v605 = vld [vmem:[%s271 + $0x9a] sm:$0xff]
      %v606 = vld [vmem:[%s271 + $0xaa] sm:$0xff]
      %v607 = vld [vmem:[%s271 + $0xb2] sm:$0xff]
      %v608 = vld [vmem:[%s271 + $0xc2] sm:$0xff]
      %v609 = vld [vmem:[%s271 + $0xca] sm:$0xff]
      %v610 = vld [vmem:[%s271 + $0xda] sm:$0xff]
      %v611 = vld [vmem:[%s271 + $0xe2] sm:$0xff]
      %v612 = vld [vmem:[%s271 + $0xf2] sm:$0xff]
      %v613 = vld [vmem:[%s271 + $0xfa] sm:$0xff]
      %v614 = vld [vmem:[%s271 + $0x10a] sm:$0xff]
      %v615 = vld [vmem:[%s271 + $0x112] sm:$0xff]
      %v616 = vld [vmem:[%s271 + $0x122] sm:$0xff]
      %v617 = vld [vmem:[%s271 + $0x12a] sm:$0xff]
      %v618 = vld [vmem:[%s271 + $0x13a] sm:$0xff]
      %v619 = vld [vmem:[%s271 + $0x142] sm:$0xff]
      %v620 = vld [vmem:[%s271 + $0x152] sm:$0xff]
      %v621 = vld [vmem:[%s271 + $0x15a] sm:$0xff]
      %v622 = vld [vmem:[%s271 + $0x16a] sm:$0xff]
      %v623 = vld [vmem:[%s271 + $0x172] sm:$0xff]
      %v624 = vmax.f32 %v560, %v592
      %v625 = vmax.f32 %v561, %v593
      %v626 = vmax.f32 %v562, %v594
      %v627 = vmax.f32 %v563, %v595
      %v628 = vmax.f32 %v564, %v596
      %v629 = vmax.f32 %v565, %v597
      %v630 = vmax.f32 %v566, %v598
      %v631 = vmax.f32 %v567, %v599
      %v632 = vmax.f32 %v568, %v600
      %v633 = vmax.f32 %v569, %v601
      %v634 = vmax.f32 %v570, %v602
      %v635 = vmax.f32 %v571, %v603
      %v636 = vmax.f32 %v572, %v604
      %v637 = vmax.f32 %v573, %v605
      %v638 = vmax.f32 %v574, %v606
      %v639 = vmax.f32 %v575, %v607
      %v640 = vmax.f32 %v576, %v608
      %v641 = vmax.f32 %v577, %v609
      %v642 = vmax.f32 %v578, %v610
      %v643 = vmax.f32 %v579, %v611
      %v644 = vmax.f32 %v580, %v612
      %v645 = vmax.f32 %v581, %v613
      %v646 = vmax.f32 %v582, %v614
      %v647 = vmax.f32 %v583, %v615
      %v648 = vmax.f32 %v584, %v616
      %v649 = vmax.f32 %v585, %v617
      %v650 = vmax.f32 %v586, %v618
      %v651 = vmax.f32 %v587, %v619
      %v652 = vmax.f32 %v588, %v620
      %v653 = vmax.f32 %v589, %v621
      %v654 = vmax.f32 %v590, %v622
      %v655 = vmax.f32 %v591, %v623
      %s656 = scalar_lea.vmem [#allocation2], 48
      %v657 = vld [vmem:[%s656] sm:$0xff]
      %v658 = vld [vmem:[%s656 + $0x8] sm:$0xff]
      %v659 = vld [vmem:[%s656 + $0x18] sm:$0xff]
      %v660 = vld [vmem:[%s656 + $0x20] sm:$0xff]
      %v661 = vld [vmem:[%s656 + $0x30] sm:$0xff]
      %v662 = vld [vmem:[%s656 + $0x38] sm:$0xff]
      %v663 = vld [vmem:[%s656 + $0x48] sm:$0xff]
      %v664 = vld [vmem:[%s656 + $0x50] sm:$0xff]
      %v665 = vld [vmem:[%s656 + $0x60] sm:$0xff]
      %v666 = vld [vmem:[%s656 + $0x68] sm:$0xff]
      %v667 = vld [vmem:[%s656 + $0x78] sm:$0xff]
      %v668 = vld [vmem:[%s656 + $0x80] sm:$0xff]
      %v669 = vld [vmem:[%s656 + $0x90] sm:$0xff]
      %v670 = vld [vmem:[%s656 + $0x98] sm:$0xff]
      %v671 = vld [vmem:[%s656 + $0xa8] sm:$0xff]
      %v672 = vld [vmem:[%s656 + $0xb0] sm:$0xff]
      %v673 = vld [vmem:[%s656 + $0xc0] sm:$0xff]
      %v674 = vld [vmem:[%s656 + $0xc8] sm:$0xff]
      %v675 = vld [vmem:[%s656 + $0xd8] sm:$0xff]
      %v676 = vld [vmem:[%s656 + $0xe0] sm:$0xff]
      %v677 = vld [vmem:[%s656 + $0xf0] sm:$0xff]
      %v678 = vld [vmem:[%s656 + $0xf8] sm:$0xff]
      %v679 = vld [vmem:[%s656 + $0x108] sm:$0xff]
      %v680 = vld [vmem:[%s656 + $0x110] sm:$0xff]
      %v681 = vld [vmem:[%s656 + $0x120] sm:$0xff]
      %v682 = vld [vmem:[%s656 + $0x128] sm:$0xff]
      %v683 = vld [vmem:[%s656 + $0x138] sm:$0xff]
      %v684 = vld [vmem:[%s656 + $0x140] sm:$0xff]
      %v685 = vld [vmem:[%s656 + $0x150] sm:$0xff]
      %v686 = vld [vmem:[%s656 + $0x158] sm:$0xff]
      %v687 = vld [vmem:[%s656 + $0x168] sm:$0xff]
      %v688 = vld [vmem:[%s656 + $0x170] sm:$0xff]
      %v689 = vmax.f32 %v624, %v657
      %v690 = vmax.f32 %v625, %v658
      %v691 = vmax.f32 %v626, %v659
      %v692 = vmax.f32 %v627, %v660
      %v693 = vmax.f32 %v628, %v661
      %v694 = vmax.f32 %v629, %v662
      %v695 = vmax.f32 %v630, %v663
      %v696 = vmax.f32 %v631, %v664
      %v697 = vmax.f32 %v632, %v665
      %v698 = vmax.f32 %v633, %v666
      %v699 = vmax.f32 %v634, %v667
      %v700 = vmax.f32 %v635, %v668
      %v701 = vmax.f32 %v636, %v669
      %v702 = vmax.f32 %v637, %v670
      %v703 = vmax.f32 %v638, %v671
      %v704 = vmax.f32 %v639, %v672
      %v705 = vmax.f32 %v640, %v673
      %v706 = vmax.f32 %v641, %v674
      %v707 = vmax.f32 %v642, %v675
      %v708 = vmax.f32 %v643, %v676
      %v709 = vmax.f32 %v644, %v677
      %v710 = vmax.f32 %v645, %v678
      %v711 = vmax.f32 %v646, %v679
      %v712 = vmax.f32 %v647, %v680
      %v713 = vmax.f32 %v648, %v681
      %v714 = vmax.f32 %v649, %v682
      %v715 = vmax.f32 %v650, %v683
      %v716 = vmax.f32 %v651, %v684
      %v717 = vmax.f32 %v652, %v685
      %v718 = vmax.f32 %v653, %v686
      %v719 = vmax.f32 %v654, %v687
      %v720 = vmax.f32 %v655, %v688
      %v721 = vld [vmem:[%s656 + $0x1] sm:$0xff]
      %v722 = vld [vmem:[%s656 + $0x9] sm:$0xff]
      %v723 = vld [vmem:[%s656 + $0x19] sm:$0xff]
      %v724 = vld [vmem:[%s656 + $0x21] sm:$0xff]
      %v725 = vld [vmem:[%s656 + $0x31] sm:$0xff]
      %v726 = vld [vmem:[%s656 + $0x39] sm:$0xff]
      %v727 = vld [vmem:[%s656 + $0x49] sm:$0xff]
      %v728 = vld [vmem:[%s656 + $0x51] sm:$0xff]
      %v729 = vld [vmem:[%s656 + $0x61] sm:$0xff]
      %v730 = vld [vmem:[%s656 + $0x69] sm:$0xff]
      %v731 = vld [vmem:[%s656 + $0x79] sm:$0xff]
      %v732 = vld [vmem:[%s656 + $0x81] sm:$0xff]
      %v733 = vld [vmem:[%s656 + $0x91] sm:$0xff]
      %v734 = vld [vmem:[%s656 + $0x99] sm:$0xff]
      %v735 = vld [vmem:[%s656 + $0xa9] sm:$0xff]
      %v736 = vld [vmem:[%s656 + $0xb1] sm:$0xff]
      %v737 = vld [vmem:[%s656 + $0xc1] sm:$0xff]
      %v738 = vld [vmem:[%s656 + $0xc9] sm:$0xff]
      %v739 = vld [vmem:[%s656 + $0xd9] sm:$0xff]
      %v740 = vld [vmem:[%s656 + $0xe1] sm:$0xff]
      %v741 = vld [vmem:[%s656 + $0xf1] sm:$0xff]
      %v742 = vld [vmem:[%s656 + $0xf9] sm:$0xff]
      %v743 = vld [vmem:[%s656 + $0x109] sm:$0xff]
      %v744 = vld [vmem:[%s656 + $0x111] sm:$0xff]
      %v745 = vld [vmem:[%s656 + $0x121] sm:$0xff]
      %v746 = vld [vmem:[%s656 + $0x129] sm:$0xff]
      %v747 = vld [vmem:[%s656 + $0x139] sm:$0xff]
      %v748 = vld [vmem:[%s656 + $0x141] sm:$0xff]
      %v749 = vld [vmem:[%s656 + $0x151] sm:$0xff]
      %v750 = vld [vmem:[%s656 + $0x159] sm:$0xff]
      %v751 = vld [vmem:[%s656 + $0x169] sm:$0xff]
      %v752 = vld [vmem:[%s656 + $0x171] sm:$0xff]
      %v753 = vmax.f32 %v689, %v721
      %v754 = vmax.f32 %v690, %v722
      %v755 = vmax.f32 %v691, %v723
      %v756 = vmax.f32 %v692, %v724
      %v757 = vmax.f32 %v693, %v725
      %v758 = vmax.f32 %v694, %v726
      %v759 = vmax.f32 %v695, %v727
      %v760 = vmax.f32 %v696, %v728
      %v761 = vmax.f32 %v697, %v729
      %v762 = vmax.f32 %v698, %v730
      %v763 = vmax.f32 %v699, %v731
      %v764 = vmax.f32 %v700, %v732
      %v765 = vmax.f32 %v701, %v733
      %v766 = vmax.f32 %v702, %v734
      %v767 = vmax.f32 %v703, %v735
      %v768 = vmax.f32 %v704, %v736
      %v769 = vmax.f32 %v705, %v737
      %v770 = vmax.f32 %v706, %v738
      %v771 = vmax.f32 %v707, %v739
      %v772 = vmax.f32 %v708, %v740
      %v773 = vmax.f32 %v709, %v741
      %v774 = vmax.f32 %v710, %v742
      %v775 = vmax.f32 %v711, %v743
      %v776 = vmax.f32 %v712, %v744
      %v777 = vmax.f32 %v713, %v745
      %v778 = vmax.f32 %v714, %v746
      %v779 = vmax.f32 %v715, %v747
      %v780 = vmax.f32 %v716, %v748
      %v781 = vmax.f32 %v717, %v749
      %v782 = vmax.f32 %v718, %v750
      %v783 = vmax.f32 %v719, %v751
      %v784 = vmax.f32 %v720, %v752
      %v785 = vld [vmem:[%s656 + $0x2] sm:$0xff]
      %v786 = vld [vmem:[%s656 + $0xa] sm:$0xff]
      %v787 = vld [vmem:[%s656 + $0x1a] sm:$0xff]
      %v788 = vld [vmem:[%s656 + $0x22] sm:$0xff]
      %v789 = vld [vmem:[%s656 + $0x32] sm:$0xff]
      %v790 = vld [vmem:[%s656 + $0x3a] sm:$0xff]
      %v791 = vld [vmem:[%s656 + $0x4a] sm:$0xff]
      %v792 = vld [vmem:[%s656 + $0x52] sm:$0xff]
      %v793 = vld [vmem:[%s656 + $0x62] sm:$0xff]
      %v794 = vld [vmem:[%s656 + $0x6a] sm:$0xff]
      %v795 = vld [vmem:[%s656 + $0x7a] sm:$0xff]
      %v796 = vld [vmem:[%s656 + $0x82] sm:$0xff]
      %v797 = vld [vmem:[%s656 + $0x92] sm:$0xff]
      %v798 = vld [vmem:[%s656 + $0x9a] sm:$0xff]
      %v799 = vld [vmem:[%s656 + $0xaa] sm:$0xff]
      %v800 = vld [vmem:[%s656 + $0xb2] sm:$0xff]
      %v801 = vld [vmem:[%s656 + $0xc2] sm:$0xff]
      %v802 = vld [vmem:[%s656 + $0xca] sm:$0xff]
      %v803 = vld [vmem:[%s656 + $0xda] sm:$0xff]
      %v804 = vld [vmem:[%s656 + $0xe2] sm:$0xff]
      %v805 = vld [vmem:[%s656 + $0xf2] sm:$0xff]
      %v806 = vld [vmem:[%s656 + $0xfa] sm:$0xff]
      %v807 = vld [vmem:[%s656 + $0x10a] sm:$0xff]
      %v808 = vld [vmem:[%s656 + $0x112] sm:$0xff]
      %v809 = vld [vmem:[%s656 + $0x122] sm:$0xff]
      %v810 = vld [vmem:[%s656 + $0x12a] sm:$0xff]
      %v811 = vld [vmem:[%s656 + $0x13a] sm:$0xff]
      %v812 = vld [vmem:[%s656 + $0x142] sm:$0xff]
      %v813 = vld [vmem:[%s656 + $0x152] sm:$0xff]
      %v814 = vld [vmem:[%s656 + $0x15a] sm:$0xff]
      %v815 = vld [vmem:[%s656 + $0x16a] sm:$0xff]
      %v816 = vld [vmem:[%s656 + $0x172] sm:$0xff]
      %v817 = vmax.f32 %v753, %v785
      %v818 = vmax.f32 %v754, %v786
      %v819 = vmax.f32 %v755, %v787
      %v820 = vmax.f32 %v756, %v788
      %v821 = vmax.f32 %v757, %v789
      %v822 = vmax.f32 %v758, %v790
      %v823 = vmax.f32 %v759, %v791
      %v824 = vmax.f32 %v760, %v792
      %v825 = vmax.f32 %v761, %v793
      %v826 = vmax.f32 %v762, %v794
      %v827 = vmax.f32 %v763, %v795
      %v828 = vmax.f32 %v764, %v796
      %v829 = vmax.f32 %v765, %v797
      %v830 = vmax.f32 %v766, %v798
      %v831 = vmax.f32 %v767, %v799
      %v832 = vmax.f32 %v768, %v800
      %v833 = vmax.f32 %v769, %v801
      %v834 = vmax.f32 %v770, %v802
      %v835 = vmax.f32 %v771, %v803
      %v836 = vmax.f32 %v772, %v804
      %v837 = vmax.f32 %v773, %v805
      %v838 = vmax.f32 %v774, %v806
      %v839 = vmax.f32 %v775, %v807
      %v840 = vmax.f32 %v776, %v808
      %v841 = vmax.f32 %v777, %v809
      %v842 = vmax.f32 %v778, %v810
      %v843 = vmax.f32 %v779, %v811
      %v844 = vmax.f32 %v780, %v812
      %v845 = vmax.f32 %v781, %v813
      %v846 = vmax.f32 %v782, %v814
      %v847 = vmax.f32 %v783, %v815
      %v848 = vmax.f32 %v784, %v816
      %v849 = vld [vmem:[%s1] sm:$0xf]
      %v851 = vsel %vm183, %v817, 0
      %v854 = vsel %vm183, %v818, 0
      %v857 = vsel %vm183, %v819, 0
      %v860 = vsel %vm183, %v820, 0
      %v863 = vsel %vm183, %v821, 0
      %v866 = vsel %vm183, %v822, 0
      %v869 = vsel %vm183, %v823, 0
      %v872 = vsel %vm183, %v824, 0
      %v875 = vsel %vm183, %v825, 0
      %v878 = vsel %vm183, %v826, 0
      %v881 = vsel %vm183, %v827, 0
      %v884 = vsel %vm183, %v828, 0
      %v887 = vsel %vm183, %v829, 0
      %v890 = vsel %vm183, %v830, 0
      %v893 = vsel %vm183, %v831, 0
      %v896 = vsel %vm183, %v832, 0
      %v899 = vsel %vm183, %v833, 0
      %v902 = vsel %vm183, %v834, 0
      %v905 = vsel %vm183, %v835, 0
      %v908 = vsel %vm183, %v836, 0
      %v911 = vsel %vm183, %v837, 0
      %v914 = vsel %vm183, %v838, 0
      %v917 = vsel %vm183, %v839, 0
      %v920 = vsel %vm183, %v840, 0
      %v923 = vsel %vm183, %v841, 0
      %v926 = vsel %vm183, %v842, 0
      %v929 = vsel %vm183, %v843, 0
      %v932 = vsel %vm183, %v844, 0
      %v935 = vsel %vm183, %v845, 0
      %v938 = vsel %vm183, %v846, 0
      %v941 = vsel %vm183, %v847, 0
      %v944 = vsel %vm183, %v848, 0
      %vm946 = vcmask 1043456
      %v948 = vsel %vm946, %v849, 0
      %950 = vmatpush.msra.mxu0 0.0
      %951 = vmatpush.msra.mxu0 0.0
      %952 = vmatpush.msra.mxu0 0.0
      %953 = vmatpush.msra.mxu0 0.0
      %954 = vmatpush.msra.mxu0 0.0
      %955 = vmatpush.msra.mxu0 0.0
      %956 = vmatpush.msra.mxu0 0.0
      %957 = vmatpush.msra.mxu0 0.0
      %958 = vmatpush.msra.mxu0 0.0
      %959 = vmatpush.msra.mxu0 0.0
      %960 = vmatpush.msra.mxu0 0.0
      %961 = vmatpush.msra.mxu0 0.0
      %962 = vmatpush.msra.mxu0 0.0
      %963 = vmatpush.msra.mxu0 0.0
      %964 = vmatpush.msra.mxu0 0.0
      %965 = vmatpush.msra.mxu0 %v948
      %966 = vmatmul.f32.gmra.mxu0 %v851
      %v967 = vpop.f32.mrf.mxu0
      %v968 = vadd.f32 0.0, %v967
      %969 = vmatmul.f32.gmra.mxu0 %v854
      %v970 = vpop.f32.mrf.mxu0
      %v971 = vadd.f32 0.0, %v970
      %972 = vmatmul.f32.gmra.mxu0 %v857
      %v973 = vpop.f32.mrf.mxu0
      %v974 = vadd.f32 0.0, %v973
      %975 = vmatmul.f32.gmra.mxu0 %v860
      %v976 = vpop.f32.mrf.mxu0
      %v977 = vadd.f32 0.0, %v976
      %978 = vmatmul.f32.gmra.mxu0 %v863
      %v979 = vpop.f32.mrf.mxu0
      %v980 = vadd.f32 0.0, %v979
      %981 = vmatmul.f32.gmra.mxu0 %v866
      %v982 = vpop.f32.mrf.mxu0
      %v983 = vadd.f32 0.0, %v982
      %984 = vmatmul.f32.gmra.mxu0 %v869
      %v985 = vpop.f32.mrf.mxu0
      %v986 = vadd.f32 0.0, %v985
      %987 = vmatmul.f32.gmra.mxu0 %v872
      %v988 = vpop.f32.mrf.mxu0
      %v989 = vadd.f32 0.0, %v988
      %990 = vmatmul.f32.gmra.mxu0 %v875
      %v991 = vpop.f32.mrf.mxu0
      %v992 = vadd.f32 0.0, %v991
      %993 = vmatmul.f32.gmra.mxu0 %v878
      %v994 = vpop.f32.mrf.mxu0
      %v995 = vadd.f32 0.0, %v994
      %996 = vmatmul.f32.gmra.mxu0 %v881
      %v997 = vpop.f32.mrf.mxu0
      %v998 = vadd.f32 0.0, %v997
      %999 = vmatmul.f32.gmra.mxu0 %v884
      %v1000 = vpop.f32.mrf.mxu0
      %v1001 = vadd.f32 0.0, %v1000
      %1002 = vmatmul.f32.gmra.mxu0 %v887
      %v1003 = vpop.f32.mrf.mxu0
      %v1004 = vadd.f32 0.0, %v1003
      %1005 = vmatmul.f32.gmra.mxu0 %v890
      %v1006 = vpop.f32.mrf.mxu0
      %v1007 = vadd.f32 0.0, %v1006
      %1008 = vmatmul.f32.gmra.mxu0 %v893
      %v1009 = vpop.f32.mrf.mxu0
      %v1010 = vadd.f32 0.0, %v1009
      %1011 = vmatmul.f32.gmra.mxu0 %v896
      %v1012 = vpop.f32.mrf.mxu0
      %v1013 = vadd.f32 0.0, %v1012
      %1014 = vmatmul.f32.gmra.mxu0 %v899
      %v1015 = vpop.f32.mrf.mxu0
      %v1016 = vadd.f32 0.0, %v1015
      %1017 = vmatmul.f32.gmra.mxu0 %v902
      %v1018 = vpop.f32.mrf.mxu0
      %v1019 = vadd.f32 0.0, %v1018
      %1020 = vmatmul.f32.gmra.mxu0 %v905
      %v1021 = vpop.f32.mrf.mxu0
      %v1022 = vadd.f32 0.0, %v1021
      %1023 = vmatmul.f32.gmra.mxu0 %v908
      %v1024 = vpop.f32.mrf.mxu0
      %v1025 = vadd.f32 0.0, %v1024
      %1026 = vmatmul.f32.gmra.mxu0 %v911
      %v1027 = vpop.f32.mrf.mxu0
      %v1028 = vadd.f32 0.0, %v1027
      %1029 = vmatmul.f32.gmra.mxu0 %v914
      %v1030 = vpop.f32.mrf.mxu0
      %v1031 = vadd.f32 0.0, %v1030
      %1032 = vmatmul.f32.gmra.mxu0 %v917
      %v1033 = vpop.f32.mrf.mxu0
      %v1034 = vadd.f32 0.0, %v1033
      %1035 = vmatmul.f32.gmra.mxu0 %v920
      %v1036 = vpop.f32.mrf.mxu0
      %v1037 = vadd.f32 0.0, %v1036
      %1038 = vmatmul.f32.gmra.mxu0 %v923
      %v1039 = vpop.f32.mrf.mxu0
      %v1040 = vadd.f32 0.0, %v1039
      %1041 = vmatmul.f32.gmra.mxu0 %v926
      %v1042 = vpop.f32.mrf.mxu0
      %v1043 = vadd.f32 0.0, %v1042
      %1044 = vmatmul.f32.gmra.mxu0 %v929
      %v1045 = vpop.f32.mrf.mxu0
      %v1046 = vadd.f32 0.0, %v1045
      %1047 = vmatmul.f32.gmra.mxu0 %v932
      %v1048 = vpop.f32.mrf.mxu0
      %v1049 = vadd.f32 0.0, %v1048
      %1050 = vmatmul.f32.gmra.mxu0 %v935
      %v1051 = vpop.f32.mrf.mxu0
      %v1052 = vadd.f32 0.0, %v1051
      %1053 = vmatmul.f32.gmra.mxu0 %v938
      %v1054 = vpop.f32.mrf.mxu0
      %v1055 = vadd.f32 0.0, %v1054
      %1056 = vmatmul.f32.gmra.mxu0 %v941
      %v1057 = vpop.f32.mrf.mxu0
      %v1058 = vadd.f32 0.0, %v1057
      %1059 = vmatmul.f32.gmra.mxu0 %v944
      %v1060 = vpop.f32.mrf.mxu0
      %v1061 = vadd.f32 0.0, %v1060
      %1062 = vdwg.mxu0
      %v1063 = vpack.c.bf16 %v968, %v968
      %v1064 = vpack.c.bf16 %v971, %v971
      %v1065 = vpack.c.bf16 %v974, %v974
      %v1066 = vpack.c.bf16 %v977, %v977
      %v1067 = vpack.c.bf16 %v980, %v980
      %v1068 = vpack.c.bf16 %v983, %v983
      %v1069 = vpack.c.bf16 %v986, %v986
      %v1070 = vpack.c.bf16 %v989, %v989
      %v1071 = vpack.c.bf16 %v992, %v992
      %v1072 = vpack.c.bf16 %v995, %v995
      %v1073 = vpack.c.bf16 %v998, %v998
      %v1074 = vpack.c.bf16 %v1001, %v1001
      %v1075 = vpack.c.bf16 %v1004, %v1004
      %v1076 = vpack.c.bf16 %v1007, %v1007
      %v1077 = vpack.c.bf16 %v1010, %v1010
      %v1078 = vpack.c.bf16 %v1013, %v1013
      %v1079 = vpack.c.bf16 %v1016, %v1016
      %v1080 = vpack.c.bf16 %v1019, %v1019
      %v1081 = vpack.c.bf16 %v1022, %v1022
      %v1082 = vpack.c.bf16 %v1025, %v1025
      %v1083 = vpack.c.bf16 %v1028, %v1028
      %v1084 = vpack.c.bf16 %v1031, %v1031
      %v1085 = vpack.c.bf16 %v1034, %v1034
      %v1086 = vpack.c.bf16 %v1037, %v1037
      %v1087 = vpack.c.bf16 %v1040, %v1040
      %v1088 = vpack.c.bf16 %v1043, %v1043
      %v1089 = vpack.c.bf16 %v1046, %v1046
      %v1090 = vpack.c.bf16 %v1049, %v1049
      %v1091 = vpack.c.bf16 %v1052, %v1052
      %v1092 = vpack.c.bf16 %v1055, %v1055
      %v1093 = vpack.c.bf16 %v1058, %v1058
      %v1094 = vpack.c.bf16 %v1061, %v1061
      %vm1095 = vcmask 60416
      %1096 = vst.msk [vmem:[%s177] sm:$0xf] %vm1095, %v1063
      %1097 = vst.msk [vmem:[%s177 + $0x4] sm:$0xf] %vm1095, %v1064
      %1098 = vst.msk [vmem:[%s177 + $0x8] sm:$0xf] %vm1095, %v1065
      %1099 = vst.msk [vmem:[%s177 + $0xc] sm:$0xf] %vm1095, %v1066
      %1100 = vst.msk [vmem:[%s177 + $0x10] sm:$0xf] %vm1095, %v1067
      %1101 = vst.msk [vmem:[%s177 + $0x14] sm:$0xf] %vm1095, %v1068
      %1102 = vst.msk [vmem:[%s177 + $0x18] sm:$0xf] %vm1095, %v1069
      %1103 = vst.msk [vmem:[%s177 + $0x1c] sm:$0xf] %vm1095, %v1070
      %1104 = vst.msk [vmem:[%s177 + $0x20] sm:$0xf] %vm1095, %v1071
      %1105 = vst.msk [vmem:[%s177 + $0x24] sm:$0xf] %vm1095, %v1072
      %1106 = vst.msk [vmem:[%s177 + $0x28] sm:$0xf] %vm1095, %v1073
      %1107 = vst.msk [vmem:[%s177 + $0x2c] sm:$0xf] %vm1095, %v1074
      %1108 = vst.msk [vmem:[%s177 + $0x30] sm:$0xf] %vm1095, %v1075
      %1109 = vst.msk [vmem:[%s177 + $0x34] sm:$0xf] %vm1095, %v1076
      %1110 = vst.msk [vmem:[%s177 + $0x38] sm:$0xf] %vm1095, %v1077
      %1111 = vst.msk [vmem:[%s177 + $0x3c] sm:$0xf] %vm1095, %v1078
      %1112 = vst.msk [vmem:[%s177 + $0x40] sm:$0xf] %vm1095, %v1079
      %1113 = vst.msk [vmem:[%s177 + $0x44] sm:$0xf] %vm1095, %v1080
      %1114 = vst.msk [vmem:[%s177 + $0x48] sm:$0xf] %vm1095, %v1081
      %1115 = vst.msk [vmem:[%s177 + $0x4c] sm:$0xf] %vm1095, %v1082
      %1116 = vst.msk [vmem:[%s177 + $0x50] sm:$0xf] %vm1095, %v1083
      %1117 = vst.msk [vmem:[%s177 + $0x54] sm:$0xf] %vm1095, %v1084
      %1118 = vst.msk [vmem:[%s177 + $0x58] sm:$0xf] %vm1095, %v1085
      %1119 = vst.msk [vmem:[%s177 + $0x5c] sm:$0xf] %vm1095, %v1086
      %1120 = vst.msk [vmem:[%s177 + $0x60] sm:$0xf] %vm1095, %v1087
      %1121 = vst.msk [vmem:[%s177 + $0x64] sm:$0xf] %vm1095, %v1088
      %1122 = vst.msk [vmem:[%s177 + $0x68] sm:$0xf] %vm1095, %v1089
      %1123 = vst.msk [vmem:[%s177 + $0x6c] sm:$0xf] %vm1095, %v1090
      %1124 = vst.msk [vmem:[%s177 + $0x70] sm:$0xf] %vm1095, %v1091
      %1125 = vst.msk [vmem:[%s177 + $0x74] sm:$0xf] %vm1095, %v1092
      %1126 = vst.msk [vmem:[%s177 + $0x78] sm:$0xf] %vm1095, %v1093
      %1127 = vst.msk [vmem:[%s177 + $0x7c] sm:$0xf] %vm1095, %v1094
      %vm1128 = vcmask 64512
      %v1129 = vsel %vm1128, %v968, 0.0
      %v1130 = vsel %vm1128, %v971, 0.0
      %v1131 = vadd.f32 %v1129, %v1130
      %v1132 = vsel %vm1128, %v974, 0.0
      %v1133 = vadd.f32 %v1131, %v1132
      %v1134 = vsel %vm1128, %v977, 0.0
      %v1135 = vadd.f32 %v1133, %v1134
      %v1136 = vsel %vm1128, %v980, 0.0
      %v1137 = vadd.f32 %v1135, %v1136
      %v1138 = vsel %vm1128, %v983, 0.0
      %v1139 = vadd.f32 %v1137, %v1138
      %v1140 = vsel %vm1128, %v986, 0.0
      %v1141 = vadd.f32 %v1139, %v1140
      %v1142 = vsel %vm1128, %v989, 0.0
      %v1143 = vadd.f32 %v1141, %v1142
      %v1144 = vsel %vm1128, %v992, 0.0
      %v1145 = vadd.f32 %v1143, %v1144
      %v1146 = vsel %vm1128, %v995, 0.0
      %v1147 = vadd.f32 %v1145, %v1146
      %v1148 = vsel %vm1128, %v998, 0.0
      %v1149 = vadd.f32 %v1147, %v1148
      %v1150 = vsel %vm1128, %v1001, 0.0
      %v1151 = vadd.f32 %v1149, %v1150
      %v1152 = vsel %vm1128, %v1004, 0.0
      %v1153 = vadd.f32 %v1151, %v1152
      %v1154 = vsel %vm1128, %v1007, 0.0
      %v1155 = vadd.f32 %v1153, %v1154
      %v1156 = vsel %vm1128, %v1010, 0.0
      %v1157 = vadd.f32 %v1155, %v1156
      %v1158 = vsel %vm1128, %v1013, 0.0
      %v1159 = vadd.f32 %v1157, %v1158
      %v1160 = vsel %vm1128, %v1016, 0.0
      %v1161 = vadd.f32 %v1159, %v1160
      %v1162 = vsel %vm1128, %v1019, 0.0
      %v1163 = vadd.f32 %v1161, %v1162
      %v1164 = vsel %vm1128, %v1022, 0.0
      %v1165 = vadd.f32 %v1163, %v1164
      %v1166 = vsel %vm1128, %v1025, 0.0
      %v1167 = vadd.f32 %v1165, %v1166
      %v1168 = vsel %vm1128, %v1028, 0.0
      %v1169 = vadd.f32 %v1167, %v1168
      %v1170 = vsel %vm1128, %v1031, 0.0
      %v1171 = vadd.f32 %v1169, %v1170
      %v1172 = vsel %vm1128, %v1034, 0.0
      %v1173 = vadd.f32 %v1171, %v1172
      %v1174 = vsel %vm1128, %v1037, 0.0
      %v1175 = vadd.f32 %v1173, %v1174
      %v1176 = vsel %vm1128, %v1040, 0.0
      %v1177 = vadd.f32 %v1175, %v1176
      %v1178 = vsel %vm1128, %v1043, 0.0
      %v1179 = vadd.f32 %v1177, %v1178
      %v1180 = vsel %vm1128, %v1046, 0.0
      %v1181 = vadd.f32 %v1179, %v1180
      %v1182 = vsel %vm1128, %v1049, 0.0
      %v1183 = vadd.f32 %v1181, %v1182
      %v1184 = vsel %vm1128, %v1052, 0.0
      %v1185 = vadd.f32 %v1183, %v1184
      %v1186 = vsel %vm1128, %v1055, 0.0
      %v1187 = vadd.f32 %v1185, %v1186
      %v1188 = vsel %vm1128, %v1058, 0.0
      %v1189 = vadd.f32 %v1187, %v1188
      %v1190 = vsel %vm1128, %v1061, 0.0
      %v1191 = vadd.f32 %v1189, %v1190
      %v1192 = vrot.slane %v1191, 4
      %v1193 = vadd.f32 %v1191, %v1192
      %v1194 = vrot.slane %v1193, 2
      %v1195 = vadd.f32 %v1193, %v1194
      %v1196 = vrot.slane %v1195, 1
      %v1197 = vadd.f32 %v1195, %v1196
      %vm1198 = vcmask 57344
      %1199 = vst.msk [vmem:[%s182] sm:$0x1] %vm1198, %v1197
      %v1200 = vmul.f32 %v968, %v968
      %v1201 = vmul.f32 %v971, %v971
      %v1202 = vmul.f32 %v974, %v974
      %v1203 = vmul.f32 %v977, %v977
      %v1204 = vmul.f32 %v980, %v980
      %v1205 = vmul.f32 %v983, %v983
      %v1206 = vmul.f32 %v986, %v986
      %v1207 = vmul.f32 %v989, %v989
      %v1208 = vmul.f32 %v992, %v992
      %v1209 = vmul.f32 %v995, %v995
      %v1210 = vmul.f32 %v998, %v998
      %v1211 = vmul.f32 %v1001, %v1001
      %v1212 = vmul.f32 %v1004, %v1004
      %v1213 = vmul.f32 %v1007, %v1007
      %v1214 = vmul.f32 %v1010, %v1010
      %v1215 = vmul.f32 %v1013, %v1013
      %v1216 = vmul.f32 %v1016, %v1016
      %v1217 = vmul.f32 %v1019, %v1019
      %v1218 = vmul.f32 %v1022, %v1022
      %v1219 = vmul.f32 %v1025, %v1025
      %v1220 = vmul.f32 %v1028, %v1028
      %v1221 = vmul.f32 %v1031, %v1031
      %v1222 = vmul.f32 %v1034, %v1034
      %v1223 = vmul.f32 %v1037, %v1037
      %v1224 = vmul.f32 %v1040, %v1040
      %v1225 = vmul.f32 %v1043, %v1043
      %v1226 = vmul.f32 %v1046, %v1046
      %v1227 = vmul.f32 %v1049, %v1049
      %v1228 = vmul.f32 %v1052, %v1052
      %v1229 = vmul.f32 %v1055, %v1055
      %v1230 = vmul.f32 %v1058, %v1058
      %v1231 = vmul.f32 %v1061, %v1061
      %v1232 = vsel %vm1128, %v1200, 0.0
      %v1233 = vsel %vm1128, %v1201, 0.0
      %v1234 = vadd.f32 %v1232, %v1233
      %v1235 = vsel %vm1128, %v1202, 0.0
      %v1236 = vadd.f32 %v1234, %v1235
      %v1237 = vsel %vm1128, %v1203, 0.0
      %v1238 = vadd.f32 %v1236, %v1237
      %v1239 = vsel %vm1128, %v1204, 0.0
      %v1240 = vadd.f32 %v1238, %v1239
      %v1241 = vsel %vm1128, %v1205, 0.0
      %v1242 = vadd.f32 %v1240, %v1241
      %v1243 = vsel %vm1128, %v1206, 0.0
      %v1244 = vadd.f32 %v1242, %v1243
      %v1245 = vsel %vm1128, %v1207, 0.0
      %v1246 = vadd.f32 %v1244, %v1245
      %v1247 = vsel %vm1128, %v1208, 0.0
      %v1248 = vadd.f32 %v1246, %v1247
      %v1249 = vsel %vm1128, %v1209, 0.0
      %v1250 = vadd.f32 %v1248, %v1249
      %v1251 = vsel %vm1128, %v1210, 0.0
      %v1252 = vadd.f32 %v1250, %v1251
      %v1253 = vsel %vm1128, %v1211, 0.0
      %v1254 = vadd.f32 %v1252, %v1253
      %v1255 = vsel %vm1128, %v1212, 0.0
      %v1256 = vadd.f32 %v1254, %v1255
      %v1257 = vsel %vm1128, %v1213, 0.0
      %v1258 = vadd.f32 %v1256, %v1257
      %v1259 = vsel %vm1128, %v1214, 0.0
      %v1260 = vadd.f32 %v1258, %v1259
      %v1261 = vsel %vm1128, %v1215, 0.0
      %v1262 = vadd.f32 %v1260, %v1261
      %v1263 = vsel %vm1128, %v1216, 0.0
      %v1264 = vadd.f32 %v1262, %v1263
      %v1265 = vsel %vm1128, %v1217, 0.0
      %v1266 = vadd.f32 %v1264, %v1265
      %v1267 = vsel %vm1128, %v1218, 0.0
      %v1268 = vadd.f32 %v1266, %v1267
      %v1269 = vsel %vm1128, %v1219, 0.0
      %v1270 = vadd.f32 %v1268, %v1269
      %v1271 = vsel %vm1128, %v1220, 0.0
      %v1272 = vadd.f32 %v1270, %v1271
      %v1273 = vsel %vm1128, %v1221, 0.0
      %v1274 = vadd.f32 %v1272, %v1273
      %v1275 = vsel %vm1128, %v1222, 0.0
      %v1276 = vadd.f32 %v1274, %v1275
      %v1277 = vsel %vm1128, %v1223, 0.0
      %v1278 = vadd.f32 %v1276, %v1277
      %v1279 = vsel %vm1128, %v1224, 0.0
      %v1280 = vadd.f32 %v1278, %v1279
      %v1281 = vsel %vm1128, %v1225, 0.0
      %v1282 = vadd.f32 %v1280, %v1281
      %v1283 = vsel %vm1128, %v1226, 0.0
      %v1284 = vadd.f32 %v1282, %v1283
      %v1285 = vsel %vm1128, %v1227, 0.0
      %v1286 = vadd.f32 %v1284, %v1285
      %v1287 = vsel %vm1128, %v1228, 0.0
      %v1288 = vadd.f32 %v1286, %v1287
      %v1289 = vsel %vm1128, %v1229, 0.0
      %v1290 = vadd.f32 %v1288, %v1289
      %v1291 = vsel %vm1128, %v1230, 0.0
      %v1292 = vadd.f32 %v1290, %v1291
      %v1293 = vsel %vm1128, %v1231, 0.0
      %v1294 = vadd.f32 %v1292, %v1293
      %v1295 = vrot.slane %v1294, 4
      %v1296 = vadd.f32 %v1294, %v1295
      %v1297 = vrot.slane %v1296, 2
      %v1298 = vadd.f32 %v1296, %v1297
      %v1299 = vrot.slane %v1298, 1
      %v1300 = vadd.f32 %v1298, %v1299
      %1301 = vst.msk [vmem:[%s182 + $0x1] sm:$0x1] %vm1198, %v1300
      %s1302 = smul.u32 32, %s15
      %p1303 = scmp.lt.s32.totalorder %s1302, 63
      %s1304 = scalar_select %p1303, %s1302, 63
      %s1305 = smul.addr %s1304, 4
      %s1306 = scalar_lea.vmem %s2, %s1305
      %p1307 = scmp.lt.s32.totalorder %s15, 1
      %s1308 = scalar_select %p1307, %s15, 1
      %s1309 = smul.addr %s1308, 2
      %s1310 = scalar_lea.vmem %s3, %s1309
      // Predicated region
      $region29: #{inception_forward.10} parent=27 // pred_check
        %p1311 = pneg %p80
      $region30: #{inception_forward.10} parent=27 // pred_check_branch
        %1313 = sbr.rel (%p1311) target = $region32
      $region31: #{inception_forward.10} parent=27 // pred_region
        %s1314 = smul.u32 32, %s15
      $region32: #{inception_forward.10} parent=27 // pred_fallthru
        _
      // Predicated region
      $region33: #{inception_forward.10} parent=27 // pred_check
        %p1315 = pneg %p106
      $region34: #{inception_forward.10} parent=27 // pred_check_branch
        %1317 = sbr.rel (%p1315) target = $region36
      $region35: #{inception_forward.10} parent=27 // pred_region
        _
      $region36: #{inception_forward.10} parent=27 // pred_fallthru
        _
    $region28: #{inception_forward.10} parent=5 // pred_fallthru
      _
    %p1318 = scmp.le.s32.totalorder 2, %s10
    // Predicated region
    $region37: #{inception_forward.10} parent=5 // pred_check
      %p1319 = pneg %p1318
    $region38: #{inception_forward.10} parent=5 // pred_check_branch
      %1321 = sbr.rel (%p1319) target = $region40
    $region39: #{inception_forward.10} parent=5 // pred_region
      %s1322 = ssub.s32 %s10, 2
      // Predicated region
      $region41: #{inception_forward.10} parent=39 // pred_check
        %p1323 = pneg %p86
      $region42: #{inception_forward.10} parent=39 // pred_check_branch
        %1325 = sbr.rel (%p1323) target = $region44
      $region43: #{inception_forward.10} parent=39 // pred_region
        %s1326 = smul.u32 32, %s16
        %p1327 = scmp.lt.s32.totalorder %s1326, 63
        %s1328 = scalar_select %p1327, %s1326, 63
        %s1329 = smul.addr %s1328, 4
        %s1330 = scalar_lea.vmem %s2, %s1329
      $region44: #{inception_forward.10} parent=39 // pred_fallthru
        _
      // Predicated region
      $region45: #{inception_forward.10} parent=39 // pred_check
        %p1331 = pneg %p112
      $region46: #{inception_forward.10} parent=39 // pred_check_branch
        %1333 = sbr.rel (%p1331) target = $region48
      $region47: #{inception_forward.10} parent=39 // pred_region
        %p1334 = scmp.lt.s32.totalorder %s16, 1
        %s1335 = scalar_select %p1334, %s16, 1
        %s1336 = smul.addr %s1335, 2
        %s1337 = scalar_lea.vmem %s3, %s1336
      $region48: #{inception_forward.10} parent=39 // pred_fallthru
        _
    $region40: #{inception_forward.10} parent=5 // pred_fallthru
      _
  $region6: #{inception_forward.10} parent=0 // loop_footer
    %s14 = sadd.s32 1, %s10
  $region7: #{inception_forward.10} parent=0 // loop_footer_branch
    %9 = sbr.rel target = $region3
  $region8: #{inception_forward.10} parent=0 // loop_exit
    _

// kernel: inception_forward.8
$region0: #{inception_forward.8}
  #allocation0 [shape = 'u32[]', space=smem, size = 0x4, offset = 0x4, fixed_abs, tag = 'smem constant byte address 0x4 - core index']
  #allocation1 [shape = 'u32[72,128]{1,0:T(1,128)}', space=vmem, size = 0x9000, scoped, tag = 'internal scratch']
  #allocation2 [shape = 'f32[1,18,18,4]{3,2,1,0:T(8,128)}', space=vmem, size = 0x36000, scoped, tag = 'scratch operand']
  %s0 = inlined_call_operand.vmem [shape: bf16[2,16,16,4], index: 0, kind: input, shape index: {}]
  %s1 = inlined_call_operand.vmem [shape: f32[1,4], index: 1, kind: input, shape index: {}]
  %s2 = inlined_call_operand.vmem [shape: f32[1,4], index: 2, kind: input, shape index: {}]
  %s3 = inlined_call_operand.vmem [shape: f32[9,4,8], index: 3, kind: input, shape index: {}]
  %s4 = inlined_call_operand.vmem [shape: bf16[512,8], index: 4, kind: output, shape index: {0}]
  %s5 = inlined_call_operand.vmem [shape: f32[2,2,8], index: 5, kind: output, shape index: {1}]
  %6 = xla_tuple %s4, %s5
  %s7 = sld [smem:[#allocation0]]
  $region57: #{inception_forward.8} parent=0
    _
  %s9 = ssub.s32 1, %s7
  %s10 = scalar_select 0, %s9, %s7
  loop: start=0, step=1, limit=4
  $region2: #{inception_forward.8} parent=0 // loop_pre_header
    _
  $region3: #{inception_forward.8} parent=0 // loop_header
    %s12 = sphi 0, %s16
    %p13 = scmp.ge.s32.totalorder %s12, 4
    %s22 = sphi 0, %s24
    %s25 = sphi 0, %s22
    %s26 = sphi 0, %s25
    %s42 = sphi 0, %s26
    %s46 = sphi 0, %s46
    %s48 = sphi 0, %s46
    %s49 = sphi 0, %s48
    %s63 = sphi 0, %s49
    %s67 = sphi 0, %s67
    %s69 = sphi 0, %s67
    %s70 = sphi 0, %s69
    %s84 = sphi 0, %s70
    %s88 = sphi 0, %s88
    %s90 = sphi 0, %s88
    %s91 = sphi 0, %s90
    %s105 = sphi 0, %s91
    %s111 = sphi 0, %s113
    %s114 = sphi 0, %s111
    %s115 = sphi 0, %s114
    %s131 = sphi 0, %s115
    %s137 = sphi 0, %s139
    %s140 = sphi 0, %s137
    %s141 = sphi 0, %s140
    %s157 = sphi 0, %s141
  $region4: #{inception_forward.8} parent=0 // loop_header_branch
    %15 = sbr.rel (%p13) target = $region8
  $region5: #{inception_forward.8} parent=0 // loop_body
    %s17 = ssub.s32 %s12, 1
    %s18 = ssub.s32 %s12, 2
    %s19 = sadd.s32 %s12, 1
    %s20 = ssub.s32 %s12, %s19
    %p21 = scmp.eq.s32.totalorder %s20, 0
    %s23 = sadd.s32 %s22, 1
    %s24 = scalar_select %p21, %s22, %s23
    %p27 = pneg %p21
    %p28 = scmp.eq.s32.totalorder %s12, 1
    %p29 = por %p27, %p28
    %p30 = scmp.ne.s32.totalorder %s22, %s25
    %p31 = scmp.eq.s32.totalorder %s12, 0
    %p32 = por %p30, %p31
    %p33 = scmp.ne.s32.totalorder %s22, %s25
    %p34 = scmp.eq.s32.totalorder %s17, 1
    %p35 = por %p33, %p34
    %p36 = scmp.ne.s32.totalorder %s25, %s26
    %p37 = scmp.eq.s32.totalorder %s17, 0
    %p38 = por %p36, %p37
    %p39 = scmp.ne.s32.totalorder %s25, %s26
    %p40 = scmp.eq.s32.totalorder %s18, 1
    %p41 = por %p39, %p40
    %p43 = scmp.ne.s32.totalorder %s26, %s42
    %p44 = scmp.eq.s32.totalorder %s18, 0
    %p45 = por %p43, %p44
    %s47 = sadd.s32 %s46, 1
    %p50 = scmp.eq.s32.totalorder %s12, 1
    %p51 = scmp.ne.s32.totalorder %s46, %s48
    %p52 = scmp.eq.s32.totalorder %s12, 0
    %p53 = por %p51, %p52
    %p54 = scmp.ne.s32.totalorder %s46, %s48
    %p55 = scmp.eq.s32.totalorder %s17, 1
    %p56 = por %p54, %p55
    %p57 = scmp.ne.s32.totalorder %s48, %s49
    %p58 = scmp.eq.s32.totalorder %s17, 0
    %p59 = por %p57, %p58
    %p60 = scmp.ne.s32.totalorder %s48, %s49
    %p61 = scmp.eq.s32.totalorder %s18, 1
    %p62 = por %p60, %p61
    %p64 = scmp.ne.s32.totalorder %s49, %s63
    %p65 = scmp.eq.s32.totalorder %s18, 0
    %p66 = por %p64, %p65
    %s68 = sadd.s32 %s67, 1
    %p71 = scmp.eq.s32.totalorder %s12, 1
    %p72 = scmp.ne.s32.totalorder %s67, %s69
    %p73 = scmp.eq.s32.totalorder %s12, 0
    %p74 = por %p72, %p73
    %p75 = scmp.ne.s32.totalorder %s67, %s69
    %p76 = scmp.eq.s32.totalorder %s17, 1
    %p77 = por %p75, %p76
    %p78 = scmp.ne.s32.totalorder %s69, %s70
    %p79 = scmp.eq.s32.totalorder %s17, 0
    %p80 = por %p78, %p79
    %p81 = scmp.ne.s32.totalorder %s69, %s70
    %p82 = scmp.eq.s32.totalorder %s18, 1
    %p83 = por %p81, %p82
    %p85 = scmp.ne.s32.totalorder %s70, %s84
    %p86 = scmp.eq.s32.totalorder %s18, 0
    %p87 = por %p85, %p86
    %s89 = sadd.s32 %s88, 1
    %p92 = scmp.eq.s32.totalorder %s12, 1
    %p93 = scmp.ne.s32.totalorder %s88, %s90
    %p94 = scmp.eq.s32.totalorder %s12, 0
    %p95 = por %p93, %p94
    %p96 = scmp.ne.s32.totalorder %s88, %s90
    %p97 = scmp.eq.s32.totalorder %s17, 1
    %p98 = por %p96, %p97
    %p99 = scmp.ne.s32.totalorder %s90, %s91
    %p100 = scmp.eq.s32.totalorder %s17, 0
    %p101 = por %p99, %p100
    %p102 = scmp.ne.s32.totalorder %s90, %s91
    %p103 = scmp.eq.s32.totalorder %s18, 1
    %p104 = por %p102, %p103
    %p106 = scmp.ne.s32.totalorder %s91, %s105
    %p107 = scmp.eq.s32.totalorder %s18, 0
    %p108 = por %p106, %p107
    %s109 = ssub.s32 %s12, %s19
    %p110 = scmp.eq.s32.totalorder %s109, 0
    %s112 = sadd.s32 %s111, 1
    %s113 = scalar_select %p110, %s111, %s112
    %p116 = pneg %p110
    %p117 = scmp.eq.s32.totalorder %s12, 1
    %p118 = por %p116, %p117
    %p119 = scmp.ne.s32.totalorder %s111, %s114
    %p120 = scmp.eq.s32.totalorder %s12, 0
    %p121 = por %p119, %p120
    %p122 = scmp.ne.s32.totalorder %s111, %s114
    %p123 = scmp.eq.s32.totalorder %s17, 1
    %p124 = por %p122, %p123
    %p125 = scmp.ne.s32.totalorder %s114, %s115
    %p126 = scmp.eq.s32.totalorder %s17, 0
    %p127 = por %p125, %p126
    %p128 = scmp.ne.s32.totalorder %s114, %s115
    %p129 = scmp.eq.s32.totalorder %s18, 1
    %p130 = por %p128, %p129
    %p132 = scmp.ne.s32.totalorder %s115, %s131
    %p133 = scmp.eq.s32.totalorder %s18, 0
    %p134 = por %p132, %p133
    %s135 = ssub.s32 %s12, %s19
    %p136 = scmp.eq.s32.totalorder %s135, 0
    %s138 = sadd.s32 %s137, 1
    %s139 = scalar_select %p136, %s137, %s138
    %p142 = pneg %p136
    %p143 = scmp.eq.s32.totalorder %s12, 1
    %p144 = por %p142, %p143
    %p145 = scmp.ne.s32.totalorder %s137, %s140
    %p146 = scmp.eq.s32.totalorder %s12, 0
    %p147 = por %p145, %p146
    %p148 = scmp.ne.s32.totalorder %s137, %s140
    %p149 = scmp.eq.s32.totalorder %s17, 1
    %p150 = por %p148, %p149
    %p151 = scmp.ne.s32.totalorder %s140, %s141
    %p152 = scmp.eq.s32.totalorder %s17, 0
    %p153 = por %p151, %p152
    %p154 = scmp.ne.s32.totalorder %s140, %s141
    %p155 = scmp.eq.s32.totalorder %s18, 1
    %p156 = por %p154, %p155
    %p158 = scmp.ne.s32.totalorder %s141, %s157
    %p159 = scmp.eq.s32.totalorder %s18, 0
    %p160 = por %p158, %p159
    %p161 = scmp.le.s32.totalorder 1, %s12
    %p162 = scmp.lt.s32.totalorder %s12, 3
    %p163 = pnand %p161, %p162
    %p164 = pneg %p163
    // Predicated region
    $region9: #{inception_forward.8} parent=5 // pred_check
      _
    $region10: #{inception_forward.8} parent=5 // pred_check_branch
      %166 = sbr.rel (%p163) target = $region12
    $region11: #{inception_forward.8} parent=5 // pred_region
      %s167 = ssub.s32 %s12, 1
      // Predicated region
      $region13: #{inception_forward.8} parent=11 // pred_check
        %p168 = pneg %p59
      $region14: #{inception_forward.8} parent=11 // pred_check_branch
        %170 = sbr.rel (%p168) target = $region16
      $region15: #{inception_forward.8} parent=11 // pred_region
        _
      $region16: #{inception_forward.8} parent=11 // pred_fallthru
        _
      // Predicated region
      $region17: #{inception_forward.8} parent=11 // pred_check
        %p171 = pneg %p80
      $region18: #{inception_forward.8} parent=11 // pred_check_branch
        %173 = sbr.rel (%p171) target = $region20
      $region19: #{inception_forward.8} parent=11 // pred_region
        _
      $region20: #{inception_forward.8} parent=11 // pred_fallthru
        _
      // Predicated region
      $region21: #{inception_forward.8} parent=11 // pred_check
        %p174 = pneg %p101
      $region22: #{inception_forward.8} parent=11 // pred_check_branch
        %176 = sbr.rel (%p174) target = $region24
      $region23: #{inception_forward.8} parent=11 // pred_region
        _
      $region24: #{inception_forward.8} parent=11 // pred_fallthru
        _
    $region12: #{inception_forward.8} parent=5 // pred_fallthru
      _
    %p177 = scmp.lt.s32.totalorder %s12, 2
    // Predicated region
    $region25: #{inception_forward.8} parent=5 // pred_check
      %p178 = pneg %p177
    $region26: #{inception_forward.8} parent=5 // pred_check_branch
      %180 = sbr.rel (%p178) target = $region28
    $region27: #{inception_forward.8} parent=5 // pred_region
      // Predicated region
      $region29: #{inception_forward.8} parent=27 // pred_check
        %p181 = pneg %p32
      $region30: #{inception_forward.8} parent=27 // pred_check_branch
        %183 = sbr.rel (%p181) target = $region32
      $region31: #{inception_forward.8} parent=27 // pred_region
        %p184 = scmp.lt.s32.totalorder %s12, 1
        %s185 = scalar_select %p184, %s12, 1
        %s186 = smul.addr %s185, 32
        %s187 = smul.addr %s186, 4
        %s188 = scalar_lea.vmem %s0, %s187
      $region32: #{inception_forward.8} parent=27 // pred_fallthru
        _
    $region28: #{inception_forward.8} parent=5 // pred_fallthru
      _
    %p189 = scmp.le.s32.totalorder 1, %s12
    %p190 = scmp.lt.s32.totalorder %s12, 3
    %p191 = pnand %p189, %p190
    %p192 = pneg %p191
    // Predicated region
    $region33: #{inception_forward.8} parent=5 // pred_check
      _
    $region34: #{inception_forward.8} parent=5 // pred_check_branch
      %194 = sbr.rel (%p191) target = $region36
    $region35: #{inception_forward.8} parent=5 // pred_region
      %s195 = ssub.s32 %s12, 1
      %p196 = scmp.lt.s32.totalorder %s17, 1
      %s197 = scalar_select %p196, %s17, 1
      %s198 = smul.addr %s197, 32
      %s199 = smul.addr %s198, 4
      %s200 = scalar_lea.vmem %s0, %s199
      %p201 = pneg %p38
      %p202 = pneg %p35
      %p203 = pneg %p59
      %p204 = pneg %p56
      %p205 = pneg %p80
      %p206 = pneg %p77
      %p207 = pneg %p101
      %p208 = pneg %p98
      %p209 = pneg %p127
      %p210 = pneg %p124
      %s211 = smul.u32 32, %s17
      %p212 = scmp.lt.s32.totalorder %s211, 63
      %s213 = scalar_select %p212, %s211, 63
      %s214 = smul.addr %s213, 4
      %s215 = scalar_lea.vmem %s4, %s214
      %p216 = pneg %p153
      %p217 = pneg %p150
      %p218 = scmp.lt.s32.totalorder %s17, 1
      %s219 = scalar_select %p218, %s17, 1
      %s220 = smul.addr %s219, 2
      %s221 = scalar_lea.vmem %s5, %s220
      %p222 = scmp.lt.s32.totalorder %s17, 1
      %s223 = scalar_select %p222, %s17, 1
      %s224 = smul.addr %s223, 32
      %s225 = smul.addr %s224, 4
      %s226 = scalar_lea.vmem %s0, %s225
      %s227 = smul.u32 32, %s17
      %p228 = scmp.lt.s32.totalorder %s227, 63
      %s229 = scalar_select %p228, %s227, 63
      %s230 = smul.addr %s229, 4
      %s231 = scalar_lea.vmem %s4, %s230
      %s232 = smul.u32 32, %s17
      %p233 = scmp.lt.s32.totalorder %s17, 1
      %s234 = scalar_select %p233, %s17, 1
      %s235 = smul.addr %s234, 2
      %s236 = scalar_lea.vmem %s5, %s235
      %v237 = vld [vmem:[%s226] sm:$0xf]
      %v238 = vld [vmem:[%s226 + $0x4] sm:$0xf]
      %v239 = vld [vmem:[%s226 + $0x8] sm:$0xf]
      %v240 = vld [vmem:[%s226 + $0xc] sm:$0xf]
      %v241 = vld [vmem:[%s226 + $0x10] sm:$0xf]
      %v242 = vld [vmem:[%s226 + $0x14] sm:$0xf]
      %v243 = vld [vmem:[%s226 + $0x18] sm:$0xf]
      %v244 = vld [vmem:[%s226 + $0x1c] sm:$0xf]
      %v245 = vld [vmem:[%s226 + $0x20] sm:$0xf]
      %v246 = vld [vmem:[%s226 + $0x24] sm:$0xf]
      %v247 = vld [vmem:[%s226 + $0x28] sm:$0xf]
      %v248 = vld [vmem:[%s226 + $0x2c] sm:$0xf]
      %v249 = vld [vmem:[%s226 + $0x30] sm:$0xf]
      %v250 = vld [vmem:[%s226 + $0x34] sm:$0xf]
      %v251 = vld [vmem:[%s226 + $0x38] sm:$0xf]
      %v252 = vld [vmem:[%s226 + $0x3c] sm:$0xf]
      %v253 = vld [vmem:[%s226 + $0x40] sm:$0xf]
      %v254 = vld [vmem:[%s226 + $0x44] sm:$0xf]
      %v255 = vld [vmem:[%s226 + $0x48] sm:$0xf]
      %v256 = vld [vmem:[%s226 + $0x4c] sm:$0xf]
      %v257 = vld [vmem:[%s226 + $0x50] sm:$0xf]
      %v258 = vld [vmem:[%s226 + $0x54] sm:$0xf]
      %v259 = vld [vmem:[%s226 + $0x58] sm:$0xf]
      %v260 = vld [vmem:[%s226 + $0x5c] sm:$0xf]
      %v261 = vld [vmem:[%s226 + $0x60] sm:$0xf]
      %v262 = vld [vmem:[%s226 + $0x64] sm:$0xf]
      %v263 = vld [vmem:[%s226 + $0x68] sm:$0xf]
      %v264 = vld [vmem:[%s226 + $0x6c] sm:$0xf]
      %v265 = vld [vmem:[%s226 + $0x70] sm:$0xf]
      %v266 = vld [vmem:[%s226 + $0x74] sm:$0xf]
      %v267 = vld [vmem:[%s226 + $0x78] sm:$0xf]
      %v268 = vld [vmem:[%s226 + $0x7c] sm:$0xf]
      %v269 = vunpack.c.l.bf16 %v237
      %v270 = vunpack.c.l.bf16 %v238
      %v271 = vunpack.c.l.bf16 %v239
      %v272 = vunpack.c.l.bf16 %v240
      %v273 = vunpack.c.l.bf16 %v241
      %v274 = vunpack.c.l.bf16 %v242
      %v275 = vunpack.c.l.bf16 %v243
      %v276 = vunpack.c.l.bf16 %v244
      %v277 = vunpack.c.l.bf16 %v245
      %v278 = vunpack.c.l.bf16 %v246
      %v279 = vunpack.c.l.bf16 %v247
      %v280 = vunpack.c.l.bf16 %v248
      %v281 = vunpack.c.l.bf16 %v249
      %v282 = vunpack.c.l.bf16 %v250
      %v283 = vunpack.c.l.bf16 %v251
      %v284 = vunpack.c.l.bf16 %v252
      %v285 = vunpack.c.l.bf16 %v253
      %v286 = vunpack.c.l.bf16 %v254
      %v287 = vunpack.c.l.bf16 %v255
      %v288 = vunpack.c.l.bf16 %v256
      %v289 = vunpack.c.l.bf16 %v257
      %v290 = vunpack.c.l.bf16 %v258
      %v291 = vunpack.c.l.bf16 %v259
      %v292 = vunpack.c.l.bf16 %v260
      %v293 = vunpack.c.l.bf16 %v261
      %v294 = vunpack.c.l.bf16 %v262
      %v295 = vunpack.c.l.bf16 %v263
      %v296 = vunpack.c.l.bf16 %v264
      %v297 = vunpack.c.l.bf16 %v265
      %v298 = vunpack.c.l.bf16 %v266
      %v299 = vunpack.c.l.bf16 %v267
      %v300 = vunpack.c.l.bf16 %v268
      %v301 = vld [vmem:[%s1] sm:$0x1]
      %v303 = vperm.slane %v301, 0
      %v305 = vmul.f32 %v269, %v303
      %v306 = vmul.f32 %v270, %v303
      %v307 = vmul.f32 %v271, %v303
      %v308 = vmul.f32 %v272, %v303
      %v309 = vmul.f32 %v273, %v303
      %v310 = vmul.f32 %v274, %v303
      %v311 = vmul.f32 %v275, %v303
      %v312 = vmul.f32 %v276, %v303
      %v313 = vmul.f32 %v277, %v303
      %v314 = vmul.f32 %v278, %v303
      %v315 = vmul.f32 %v279, %v303
      %v316 = vmul.f32 %v280, %v303
      %v317 = vmul.f32 %v281, %v303
      %v318 = vmul.f32 %v282, %v303
      %v319 = vmul.f32 %v283, %v303
      %v320 = vmul.f32 %v284, %v303
      %v321 = vmul.f32 %v285, %v303
      %v322 = vmul.f32 %v286, %v303
      %v323 = vmul.f32 %v287, %v303
      %v324 = vmul.f32 %v288, %v303
      %v325 = vmul.f32 %v289, %v303
      %v326 = vmul.f32 %v290, %v303
      %v327 = vmul.f32 %v291, %v303
      %v328 = vmul.f32 %v292, %v303
      %v329 = vmul.f32 %v293, %v303
      %v330 = vmul.f32 %v294, %v303
      %v331 = vmul.f32 %v295, %v303
      %v332 = vmul.f32 %v296, %v303
      %v333 = vmul.f32 %v297, %v303
      %v334 = vmul.f32 %v298, %v303
      %v335 = vmul.f32 %v299, %v303
      %v336 = vmul.f32 %v300, %v303
      %v337 = vld [vmem:[%s2] sm:$0x1]
      %v339 = vperm.slane %v337, 0
      %v341 = vadd.f32 %v305, %v339
      %v342 = vadd.f32 %v306, %v339
      %v343 = vadd.f32 %v307, %v339
      %v344 = vadd.f32 %v308, %v339
      %v345 = vadd.f32 %v309, %v339
      %v346 = vadd.f32 %v310, %v339
      %v347 = vadd.f32 %v311, %v339
      %v348 = vadd.f32 %v312, %v339
      %v349 = vadd.f32 %v313, %v339
      %v350 = vadd.f32 %v314, %v339
      %v351 = vadd.f32 %v315, %v339
      %v352 = vadd.f32 %v316, %v339
      %v353 = vadd.f32 %v317, %v339
      %v354 = vadd.f32 %v318, %v339
      %v355 = vadd.f32 %v319, %v339
      %v356 = vadd.f32 %v320, %v339
      %v357 = vadd.f32 %v321, %v339
      %v358 = vadd.f32 %v322, %v339
      %v359 = vadd.f32 %v323, %v339
      %v360 = vadd.f32 %v324, %v339
      %v361 = vadd.f32 %v325, %v339
      %v362 = vadd.f32 %v326, %v339
      %v363 = vadd.f32 %v327, %v339
      %v364 = vadd.f32 %v328, %v339
      %v365 = vadd.f32 %v329, %v339
      %v366 = vadd.f32 %v330, %v339
      %v367 = vadd.f32 %v331, %v339
      %v368 = vadd.f32 %v332, %v339
      %v369 = vadd.f32 %v333, %v339
      %v370 = vadd.f32 %v334, %v339
      %v371 = vadd.f32 %v335, %v339
      %v372 = vadd.f32 %v336, %v339
      %v373 = vmax.f32 %v341, 0.0
      %v374 = vmax.f32 %v342, 0.0
      %v375 = vmax.f32 %v343, 0.0
      %v376 = vmax.f32 %v344, 0.0
      %v377 = vmax.f32 %v345, 0.0
      %v378 = vmax.f32 %v346, 0.0
      %v379 = vmax.f32 %v347, 0.0
      %v380 = vmax.f32 %v348, 0.0
      %v381 = vmax.f32 %v349, 0.0
      %v382 = vmax.f32 %v350, 0.0
      %v383 = vmax.f32 %v351, 0.0
      %v384 = vmax.f32 %v352, 0.0
      %v385 = vmax.f32 %v353, 0.0
      %v386 = vmax.f32 %v354, 0.0
      %v387 = vmax.f32 %v355, 0.0
      %v388 = vmax.f32 %v356, 0.0
      %v389 = vmax.f32 %v357, 0.0
      %v390 = vmax.f32 %v358, 0.0
      %v391 = vmax.f32 %v359, 0.0
      %v392 = vmax.f32 %v360, 0.0
      %v393 = vmax.f32 %v361, 0.0
      %v394 = vmax.f32 %v362, 0.0
      %v395 = vmax.f32 %v363, 0.0
      %v396 = vmax.f32 %v364, 0.0
      %v397 = vmax.f32 %v365, 0.0
      %v398 = vmax.f32 %v366, 0.0
      %v399 = vmax.f32 %v367, 0.0
      %v400 = vmax.f32 %v368, 0.0
      %v401 = vmax.f32 %v369, 0.0
      %v402 = vmax.f32 %v370, 0.0
      %v403 = vmax.f32 %v371, 0.0
      %v404 = vmax.f32 %v372, 0.0
      %vm405 = vcmask 31744
      %406 = vst.msk [vmem:[#allocation2] sm:$0xff] %vm405, 0.0
      %407 = vst.msk [vmem:[#allocation2 + $0x8] sm:$0xff] %vm405, 0.0
      %vm408 = vcmask 25600
      %409 = vst.msk [vmem:[#allocation2 + $0x10] sm:$0x3] %vm408, 0.0
      %410 = vst.msk [vmem:[#allocation2 + $0x18] sm:$0xff] %vm405, 0.0
      %411 = vst.msk [vmem:[#allocation2 + $0x20] sm:$0xff] %vm405, 0.0
      %412 = vst.msk [vmem:[#allocation2 + $0x28] sm:$0x3] %vm408, 0.0
      %413 = vst.msk [vmem:[#allocation2 + $0x30] sm:$0xff] %vm405, 0.0
      %414 = vst.msk [vmem:[#allocation2 + $0x38] sm:$0xff] %vm405, 0.0
      %415 = vst.msk [vmem:[#allocation2 + $0x40] sm:$0x3] %vm408, 0.0
      %416 = vst.msk [vmem:[#allocation2 + $0x48] sm:$0xff] %vm405, 0.0
      %417 = vst.msk [vmem:[#allocation2 + $0x50] sm:$0xff] %vm405, 0.0
      %418 = vst.msk [vmem:[#allocation2 + $0x58] sm:$0x3] %vm408, 0.0
      %419 = vst.msk [vmem:[#allocation2 + $0x60] sm:$0xff] %vm405, 0.0
      %420 = vst.msk [vmem:[#allocation2 + $0x68] sm:$0xff] %vm405, 0.0
      %421 = vst.msk [vmem:[#allocation2 + $0x70] sm:$0x3] %vm408, 0.0
      %422 = vst.msk [vmem:[#allocation2 + $0x78] sm:$0xff] %vm405, 0.0
      %423 = vst.msk [vmem:[#allocation2 + $0x80] sm:$0xff] %vm405, 0.0
      %424 = vst.msk [vmem:[#allocation2 + $0x88] sm:$0x3] %vm408, 0.0
      %425 = vst.msk [vmem:[#allocation2 + $0x90] sm:$0xff] %vm405, 0.0
      %426 = vst.msk [vmem:[#allocation2 + $0x98] sm:$0xff] %vm405, 0.0
      %427 = vst.msk [vmem:[#allocation2 + $0xa0] sm:$0x3] %vm408, 0.0
      %428 = vst.msk [vmem:[#allocation2 + $0xa8] sm:$0xff] %vm405, 0.0
      %429 = vst.msk [vmem:[#allocation2 + $0xb0] sm:$0xff] %vm405, 0.0
      %430 = vst.msk [vmem:[#allocation2 + $0xb8] sm:$0x3] %vm408, 0.0
      %431 = vst.msk [vmem:[#allocation2 + $0xc0] sm:$0xff] %vm405, 0.0
      %432 = vst.msk [vmem:[#allocation2 + $0xc8] sm:$0xff] %vm405, 0.0
      %433 = vst.msk [vmem:[#allocation2 + $0xd0] sm:$0x3] %vm408, 0.0
      %434 = vst.msk [vmem:[#allocation2 + $0xd8] sm:$0xff] %vm405, 0.0
      %435 = vst.msk [vmem:[#allocation2 + $0xe0] sm:$0xff] %vm405, 0.0
      %436 = vst.msk [vmem:[#allocation2 + $0xe8] sm:$0x3] %vm408, 0.0
      %437 = vst.msk [vmem:[#allocation2 + $0xf0] sm:$0xff] %vm405, 0.0
      %438 = vst.msk [vmem:[#allocation2 + $0xf8] sm:$0xff] %vm405, 0.0
      %439 = vst.msk [vmem:[#allocation2 + $0x100] sm:$0x3] %vm408, 0.0
      %440 = vst.msk [vmem:[#allocation2 + $0x108] sm:$0xff] %vm405, 0.0
      %441 = vst.msk [vmem:[#allocation2 + $0x110] sm:$0xff] %vm405, 0.0
      %442 = vst.msk [vmem:[#allocation2 + $0x118] sm:$0x3] %vm408, 0.0
      %443 = vst.msk [vmem:[#allocation2 + $0x120] sm:$0xff] %vm405, 0.0
      %444 = vst.msk [vmem:[#allocation2 + $0x128] sm:$0xff] %vm405, 0.0
      %445 = vst.msk [vmem:[#allocation2 + $0x130] sm:$0x3] %vm408, 0.0
      %446 = vst.msk [vmem:[#allocation2 + $0x138] sm:$0xff] %vm405, 0.0
      %447 = vst.msk [vmem:[#allocation2 + $0x140] sm:$0xff] %vm405, 0.0
      %448 = vst.msk [vmem:[#allocation2 + $0x148] sm:$0x3] %vm408, 0.0
      %449 = vst.msk [vmem:[#allocation2 + $0x150] sm:$0xff] %vm405, 0.0
      %450 = vst.msk [vmem:[#allocation2 + $0x158] sm:$0xff] %vm405, 0.0
      %451 = vst.msk [vmem:[#allocation2 + $0x160] sm:$0x3] %vm408, 0.0
      %452 = vst.msk [vmem:[#allocation2 + $0x168] sm:$0xff] %vm405, 0.0
      %453 = vst.msk [vmem:[#allocation2 + $0x170] sm:$0xff] %vm405, 0.0
      %454 = vst.msk [vmem:[#allocation2 + $0x178] sm:$0x3] %vm408, 0.0
      %455 = vst.msk [vmem:[#allocation2 + $0x180] sm:$0xff] %vm405, 0.0
      %456 = vst.msk [vmem:[#allocation2 + $0x188] sm:$0xff] %vm405, 0.0
      %457 = vst.msk [vmem:[#allocation2 + $0x190] sm:$0x3] %vm408, 0.0
      %458 = vst.msk [vmem:[#allocation2 + $0x198] sm:$0xff] %vm405, 0.0
      %459 = vst.msk [vmem:[#allocation2 + $0x1a0] sm:$0xff] %vm405, 0.0
      %460 = vst.msk [vmem:[#allocation2 + $0x1a8] sm:$0x3] %vm408, 0.0
      %s461 = scalar_lea.vmem [#allocation2], 24
      %462 = vst.msk [vmem:[%s461 + $0x1] sm:$0xff] %vm405, %v373
      %463 = vst.msk [vmem:[%s461 + $0x9] sm:$0xff] %vm405, %v374
      %464 = vst.msk [vmem:[%s461 + $0x19] sm:$0xff] %vm405, %v375
      %465 = vst.msk [vmem:[%s461 + $0x21] sm:$0xff] %vm405, %v376
      %466 = vst.msk [vmem:[%s461 + $0x31] sm:$0xff] %vm405, %v377
      %467 = vst.msk [vmem:[%s461 + $0x39] sm:$0xff] %vm405, %v378
      %468 = vst.msk [vmem:[%s461 + $0x49] sm:$0xff] %vm405, %v379
      %469 = vst.msk [vmem:[%s461 + $0x51] sm:$0xff] %vm405, %v380
      %470 = vst.msk [vmem:[%s461 + $0x61] sm:$0xff] %vm405, %v381
      %471 = vst.msk [vmem:[%s461 + $0x69] sm:$0xff] %vm405, %v382
      %472 = vst.msk [vmem:[%s461 + $0x79] sm:$0xff] %vm405, %v383
      %473 = vst.msk [vmem:[%s461 + $0x81] sm:$0xff] %vm405, %v384
      %474 = vst.msk [vmem:[%s461 + $0x91] sm:$0xff] %vm405, %v385
      %475 = vst.msk [vmem:[%s461 + $0x99] sm:$0xff] %vm405, %v386
      %476 = vst.msk [vmem:[%s461 + $0xa9] sm:$0xff] %vm405, %v387
      %477 = vst.msk [vmem:[%s461 + $0xb1] sm:$0xff] %vm405, %v388
      %478 = vst.msk [vmem:[%s461 + $0xc1] sm:$0xff] %vm405, %v389
      %479 = vst.msk [vmem:[%s461 + $0xc9] sm:$0xff] %vm405, %v390
      %480 = vst.msk [vmem:[%s461 + $0xd9] sm:$0xff] %vm405, %v391
      %481 = vst.msk [vmem:[%s461 + $0xe1] sm:$0xff] %vm405, %v392
      %482 = vst.msk [vmem:[%s461 + $0xf1] sm:$0xff] %vm405, %v393
      %483 = vst.msk [vmem:[%s461 + $0xf9] sm:$0xff] %vm405, %v394
      %484 = vst.msk [vmem:[%s461 + $0x109] sm:$0xff] %vm405, %v395
      %485 = vst.msk [vmem:[%s461 + $0x111] sm:$0xff] %vm405, %v396
      %486 = vst.msk [vmem:[%s461 + $0x121] sm:$0xff] %vm405, %v397
      %487 = vst.msk [vmem:[%s461 + $0x129] sm:$0xff] %vm405, %v398
      %488 = vst.msk [vmem:[%s461 + $0x139] sm:$0xff] %vm405, %v399
      %489 = vst.msk [vmem:[%s461 + $0x141] sm:$0xff] %vm405, %v400
      %490 = vst.msk [vmem:[%s461 + $0x151] sm:$0xff] %vm405, %v401
      %491 = vst.msk [vmem:[%s461 + $0x159] sm:$0xff] %vm405, %v402
      %492 = vst.msk [vmem:[%s461 + $0x169] sm:$0xff] %vm405, %v403
      %493 = vst.msk [vmem:[%s461 + $0x171] sm:$0xff] %vm405, %v404
      %v494 = vld [vmem:[#allocation2] sm:$0xff]
      %v495 = vld [vmem:[#allocation2 + $0x8] sm:$0xff]
      %v496 = vld [vmem:[#allocation2 + $0x18] sm:$0xff]
      %v497 = vld [vmem:[#allocation2 + $0x20] sm:$0xff]
      %v498 = vld [vmem:[#allocation2 + $0x30] sm:$0xff]
      %v499 = vld [vmem:[#allocation2 + $0x38] sm:$0xff]
      %v500 = vld [vmem:[#allocation2 + $0x48] sm:$0xff]
      %v501 = vld [vmem:[#allocation2 + $0x50] sm:$0xff]
      %v502 = vld [vmem:[#allocation2 + $0x60] sm:$0xff]
      %v503 = vld [vmem:[#allocation2 + $0x68] sm:$0xff]
      %v504 = vld [vmem:[#allocation2 + $0x78] sm:$0xff]
      %v505 = vld [vmem:[#allocation2 + $0x80] sm:$0xff]
      %v506 = vld [vmem:[#allocation2 + $0x90] sm:$0xff]
      %v507 = vld [vmem:[#allocation2 + $0x98] sm:$0xff]
      %v508 = vld [vmem:[#allocation2 + $0xa8] sm:$0xff]
      %v509 = vld [vmem:[#allocation2 + $0xb0] sm:$0xff]
      %v510 = vld [vmem:[#allocation2 + $0xc0] sm:$0xff]
      %v511 = vld [vmem:[#allocation2 + $0xc8] sm:$0xff]
      %v512 = vld [vmem:[#allocation2 + $0xd8] sm:$0xff]
      %v513 = vld [vmem:[#allocation2 + $0xe0] sm:$0xff]
      %v514 = vld [vmem:[#allocation2 + $0xf0] sm:$0xff]
      %v515 = vld [vmem:[#allocation2 + $0xf8] sm:$0xff]
      %v516 = vld [vmem:[#allocation2 + $0x108] sm:$0xff]
      %v517 = vld [vmem:[#allocation2 + $0x110] sm:$0xff]
      %v518 = vld [vmem:[#allocation2 + $0x120] sm:$0xff]
      %v519 = vld [vmem:[#allocation2 + $0x128] sm:$0xff]
      %v520 = vld [vmem:[#allocation2 + $0x138] sm:$0xff]
      %v521 = vld [vmem:[#allocation2 + $0x140] sm:$0xff]
      %v522 = vld [vmem:[#allocation2 + $0x150] sm:$0xff]
      %v523 = vld [vmem:[#allocation2 + $0x158] sm:$0xff]
      %v524 = vld [vmem:[#allocation2 + $0x168] sm:$0xff]
      %v525 = vld [vmem:[#allocation2 + $0x170] sm:$0xff]
      %v526 = vld [vmem:[%s3] sm:$0xf]
      %v527 = vld [vmem:[#allocation2 + $0x1] sm:$0xff]
      %v528 = vld [vmem:[#allocation2 + $0x9] sm:$0xff]
      %v529 = vld [vmem:[#allocation2 + $0x19] sm:$0xff]
      %v530 = vld [vmem:[#allocation2 + $0x21] sm:$0xff]
      %v531 = vld [vmem:[#allocation2 + $0x31] sm:$0xff]
      %v532 = vld [vmem:[#allocation2 + $0x39] sm:$0xff]
      %v533 = vld [vmem:[#allocation2 + $0x49] sm:$0xff]
      %v534 = vld [vmem:[#allocation2 + $0x51] sm:$0xff]
      %v535 = vld [vmem:[#allocation2 + $0x61] sm:$0xff]
      %v536 = vld [vmem:[#allocation2 + $0x69] sm:$0xff]
      %v537 = vld [vmem:[#allocation2 + $0x79] sm:$0xff]
      %v538 = vld [vmem:[#allocation2 + $0x81] sm:$0xff]
      %v539 = vld [vmem:[#allocation2 + $0x91] sm:$0xff]
      %v540 = vld [vmem:[#allocation2 + $0x99] sm:$0xff]
      %v541 = vld [vmem:[#allocation2 + $0xa9] sm:$0xff]
      %v542 = vld [vmem:[#allocation2 + $0xb1] sm:$0xff]
      %v543 = vld [vmem:[#allocation2 + $0xc1] sm:$0xff]
      %v544 = vld [vmem:[#allocation2 + $0xc9] sm:$0xff]
      %v545 = vld [vmem:[#allocation2 + $0xd9] sm:$0xff]
      %v546 = vld [vmem:[#allocation2 + $0xe1] sm:$0xff]
      %v547 = vld [vmem:[#allocation2 + $0xf1] sm:$0xff]
      %v548 = vld [vmem:[#allocation2 + $0xf9] sm:$0xff]
      %v549 = vld [vmem:[#allocation2 + $0x109] sm:$0xff]
      %v550 = vld [vmem:[#allocation2 + $0x111] sm:$0xff]
      %v551 = vld [vmem:[#allocation2 + $0x121] sm:$0xff]
      %v552 = vld [vmem:[#allocation2 + $0x129] sm:$0xff]
      %v553 = vld [vmem:[#allocation2 + $0x139] sm:$0xff]
      %v554 = vld [vmem:[#allocation2 + $0x141] sm:$0xff]
      %v555 = vld [vmem:[#allocation2 + $0x151] sm:$0xff]
      %v556 = vld [vmem:[#allocation2 + $0x159] sm:$0xff]
      %v557 = vld [vmem:[#allocation2 + $0x169] sm:$0xff]
      %v558 = vld [vmem:[#allocation2 + $0x171] sm:$0xff]
      %s559 = scalar_lea.vmem %s3, 4
      %v560 = vld [vmem:[%s559] sm:$0xf]
      %v562 = vsel %vm405, %v527, 0
      %v565 = vsel %vm405, %v528, 0
      %v568 = vsel %vm405, %v529, 0
      %v571 = vsel %vm405, %v530, 0
      %v574 = vsel %vm405, %v531, 0
      %v577 = vsel %vm405, %v532, 0
      %v580 = vsel %vm405, %v533, 0
      %v583 = vsel %vm405, %v534, 0
      %v586 = vsel %vm405, %v535, 0
      %v589 = vsel %vm405, %v536, 0
      %v592 = vsel %vm405, %v537, 0
      %v595 = vsel %vm405, %v538, 0
      %v598 = vsel %vm405, %v539, 0
      %v601 = vsel %vm405, %v540, 0
      %v604 = vsel %vm405, %v541, 0
      %v607 = vsel %vm405, %v542, 0
      %v610 = vsel %vm405, %v543, 0
      %v613 = vsel %vm405, %v544, 0
      %v616 = vsel %vm405, %v545, 0
      %v619 = vsel %vm405, %v546, 0
      %v622 = vsel %vm405, %v547, 0
      %v625 = vsel %vm405, %v548, 0
      %v628 = vsel %vm405, %v549, 0
      %v631 = vsel %vm405, %v550, 0
      %v634 = vsel %vm405, %v551, 0
      %v637 = vsel %vm405, %v552, 0
      %v640 = vsel %vm405, %v553, 0
      %v643 = vsel %vm405, %v554, 0
      %v646 = vsel %vm405, %v555, 0
      %v649 = vsel %vm405, %v556, 0
      %v652 = vsel %vm405, %v557, 0
      %v655 = vsel %vm405, %v558, 0
      %vm657 = vcmask 1043456
      %v659 = vsel %vm657, %v560, 0
      %661 = vmatpush.msra.mxu0 0.0
      %662 = vmatpush.msra.mxu0 0.0
      %663 = vmatpush.msra.mxu0 0.0
      %664 = vmatpush.msra.mxu0 0.0
      %665 = vmatpush.msra.mxu0 0.0
      %666 = vmatpush.msra.mxu0 0.0
      %667 = vmatpush.msra.mxu0 0.0
      %668 = vmatpush.msra.mxu0 0.0
      %669 = vmatpush.msra.mxu0 0.0
      %670 = vmatpush.msra.mxu0 0.0
      %671 = vmatpush.msra.mxu0 0.0
      %672 = vmatpush.msra.mxu0 0.0
      %673 = vmatpush.msra.mxu0 0.0
      %674 = vmatpush.msra.mxu0 0.0
      %675 = vmatpush.msra.mxu0 0.0
      %676 = vmatpush.msra.mxu0 %v659
      %677 = vmatmul.f32.gmra.mxu0 %v562
      %v678 = vpop.f32.mrf.mxu0
      %v679 = vadd.f32 0.0, %v678
      %680 = vmatmul.f32.gmra.mxu0 %v565
      %v681 = vpop.f32.mrf.mxu0
      %v682 = vadd.f32 0.0, %v681
      %683 = vmatmul.f32.gmra.mxu0 %v568
      %v684 = vpop.f32.mrf.mxu0
      %v685 = vadd.f32 0.0, %v684
      %686 = vmatmul.f32.gmra.mxu0 %v571
      %v687 = vpop.f32.mrf.mxu0
      %v688 = vadd.f32 0.0, %v687
      %689 = vmatmul.f32.gmra.mxu0 %v574
      %v690 = vpop.f32.mrf.mxu0
      %v691 = vadd.f32 0.0, %v690
      %692 = vmatmul.f32.gmra.mxu0 %v577
      %v693 = vpop.f32.mrf.mxu0
      %v694 = vadd.f32 0.0, %v693
      %695 = vmatmul.f32.gmra.mxu0 %v580
      %v696 = vpop.f32.mrf.mxu0
      %v697 = vadd.f32 0.0, %v696
      %698 = vmatmul.f32.gmra.mxu0 %v583
      %v699 = vpop.f32.mrf.mxu0
      %v700 = vadd.f32 0.0, %v699
      %701 = vmatmul.f32.gmra.mxu0 %v586
      %v702 = vpop.f32.mrf.mxu0
      %v703 = vadd.f32 0.0, %v702
      %704 = vmatmul.f32.gmra.mxu0 %v589
      %v705 = vpop.f32.mrf.mxu0
      %v706 = vadd.f32 0.0, %v705
      %707 = vmatmul.f32.gmra.mxu0 %v592
      %v708 = vpop.f32.mrf.mxu0
      %v709 = vadd.f32 0.0, %v708
      %710 = vmatmul.f32.gmra.mxu0 %v595
      %v711 = vpop.f32.mrf.mxu0
      %v712 = vadd.f32 0.0, %v711
      %713 = vmatmul.f32.gmra.mxu0 %v598
      %v714 = vpop.f32.mrf.mxu0
      %v715 = vadd.f32 0.0, %v714
      %716 = vmatmul.f32.gmra.mxu0 %v601
      %v717 = vpop.f32.mrf.mxu0
      %v718 = vadd.f32 0.0, %v717
      %719 = vmatmul.f32.gmra.mxu0 %v604
      %v720 = vpop.f32.mrf.mxu0
      %v721 = vadd.f32 0.0, %v720
      %722 = vmatmul.f32.gmra.mxu0 %v607
      %v723 = vpop.f32.mrf.mxu0
      %v724 = vadd.f32 0.0, %v723
      %725 = vmatmul.f32.gmra.mxu0 %v610
      %v726 = vpop.f32.mrf.mxu0
      %v727 = vadd.f32 0.0, %v726
      %728 = vmatmul.f32.gmra.mxu0 %v613
      %v729 = vpop.f32.mrf.mxu0
      %v730 = vadd.f32 0.0, %v729
      %731 = vmatmul.f32.gmra.mxu0 %v616
      %v732 = vpop.f32.mrf.mxu0
      %v733 = vadd.f32 0.0, %v732
      %734 = vmatmul.f32.gmra.mxu0 %v619
      %v735 = vpop.f32.mrf.mxu0
      %v736 = vadd.f32 0.0, %v735
      %737 = vmatmul.f32.gmra.mxu0 %v622
      %v738 = vpop.f32.mrf.mxu0
      %v739 = vadd.f32 0.0, %v738
      %740 = vmatmul.f32.gmra.mxu0 %v625
      %v741 = vpop.f32.mrf.mxu0
      %v742 = vadd.f32 0.0, %v741
      %743 = vmatmul.f32.gmra.mxu0 %v628
      %v744 = vpop.f32.mrf.mxu0
      %v745 = vadd.f32 0.0, %v744
      %746 = vmatmul.f32.gmra.mxu0 %v631
      %v747 = vpop.f32.mrf.mxu0
      %v748 = vadd.f32 0.0, %v747
      %749 = vmatmul.f32.gmra.mxu0 %v634
      %v750 = vpop.f32.mrf.mxu0
      %v751 = vadd.f32 0.0, %v750
      %752 = vmatmul.f32.gmra.mxu0 %v637
      %v753 = vpop.f32.mrf.mxu0
      %v754 = vadd.f32 0.0, %v753
      %755 = vmatmul.f32.gmra.mxu0 %v640
      %v756 = vpop.f32.mrf.mxu0
      %v757 = vadd.f32 0.0, %v756
      %758 = vmatmul.f32.gmra.mxu0 %v643
      %v759 = vpop.f32.mrf.mxu0
      %v760 = vadd.f32 0.0, %v759
      %761 = vmatmul.f32.gmra.mxu0 %v646
      %v762 = vpop.f32.mrf.mxu0
      %v763 = vadd.f32 0.0, %v762
      %764 = vmatmul.f32.gmra.mxu0 %v649
      %v765 = vpop.f32.mrf.mxu0
      %v766 = vadd.f32 0.0, %v765
      %767 = vmatmul.f32.gmra.mxu0 %v652
      %v768 = vpop.f32.mrf.mxu0
      %v769 = vadd.f32 0.0, %v768
      %770 = vmatmul.f32.gmra.mxu0 %v655
      %v771 = vpop.f32.mrf.mxu0
      %v772 = vadd.f32 0.0, %v771
      %773 = vdwg.mxu0
      %v775 = vsel %vm405, %v494, 0
      %v778 = vsel %vm405, %v495, 0
      %v781 = vsel %vm405, %v496, 0
      %v784 = vsel %vm405, %v497, 0
      %v787 = vsel %vm405, %v498, 0
      %v790 = vsel %vm405, %v499, 0
      %v793 = vsel %vm405, %v500, 0
      %v796 = vsel %vm405, %v501, 0
      %v799 = vsel %vm405, %v502, 0
      %v802 = vsel %vm405, %v503, 0
      %v805 = vsel %vm405, %v504, 0
      %v808 = vsel %vm405, %v505, 0
      %v811 = vsel %vm405, %v506, 0
      %v814 = vsel %vm405, %v507, 0
      %v817 = vsel %vm405, %v508, 0
      %v820 = vsel %vm405, %v509, 0
      %v823 = vsel %vm405, %v510, 0
      %v826 = vsel %vm405, %v511, 0
      %v829 = vsel %vm405, %v512, 0
      %v832 = vsel %vm405, %v513, 0
      %v835 = vsel %vm405, %v514, 0
      %v838 = vsel %vm405, %v515, 0
      %v841 = vsel %vm405, %v516, 0
      %v844 = vsel %vm405, %v517, 0
      %v847 = vsel %vm405, %v518, 0
      %v850 = vsel %vm405, %v519, 0
      %v853 = vsel %vm405, %v520, 0
      %v856 = vsel %vm405, %v521, 0
      %v859 = vsel %vm405, %v522, 0
      %v862 = vsel %vm405, %v523, 0
      %v865 = vsel %vm405, %v524, 0
      %v868 = vsel %vm405, %v525, 0
      %v871 = vsel %vm657, %v526, 0
      %873 = vmatpush.msra.mxu0 0.0
      %874 = vmatpush.msra.mxu0 0.0
      %875 = vmatpush.msra.mxu0 0.0
      %876 = vmatpush.msra.mxu0 0.0
      %877 = vmatpush.msra.mxu0 0.0
      %878 = vmatpush.msra.mxu0 0.0
      %879 = vmatpush.msra.mxu0 0.0
      %880 = vmatpush.msra.mxu0 0.0
      %881 = vmatpush.msra.mxu0 0.0
      %882 = vmatpush.msra.mxu0 0.0
      %883 = vmatpush.msra.mxu0 0.0
      %884 = vmatpush.msra.mxu0 0.0
      %885 = vmatpush.msra.mxu0 0.0
      %886 = vmatpush.msra.mxu0 0.0
      %887 = vmatpush.msra.mxu0 0.0
      %888 = vmatpush.msra.mxu0 %v871
      %889 = vmatmul.f32.gmra.mxu0 %v775
      %v890 = vpop.f32.mrf.mxu0
      %v891 = vadd.f32 %v679, %v890
      %892 = vmatmul.f32.gmra.mxu0 %v778
      %v893 = vpop.f32.mrf.mxu0
      %v894 = vadd.f32 %v682, %v893
      %895 = vmatmul.f32.gmra.mxu0 %v781
      %v896 = vpop.f32.mrf.mxu0
      %v897 = vadd.f32 %v685, %v896
      %898 = vmatmul.f32.gmra.mxu0 %v784
      %v899 = vpop.f32.mrf.mxu0
      %v900 = vadd.f32 %v688, %v899
      %901 = vmatmul.f32.gmra.mxu0 %v787
      %v902 = vpop.f32.mrf.mxu0
      %v903 = vadd.f32 %v691, %v902
      %904 = vmatmul.f32.gmra.mxu0 %v790
      %v905 = vpop.f32.mrf.mxu0
      %v906 = vadd.f32 %v694, %v905
      %907 = vmatmul.f32.gmra.mxu0 %v793
      %v908 = vpop.f32.mrf.mxu0
      %v909 = vadd.f32 %v697, %v908
      %910 = vmatmul.f32.gmra.mxu0 %v796
      %v911 = vpop.f32.mrf.mxu0
      %v912 = vadd.f32 %v700, %v911
      %913 = vmatmul.f32.gmra.mxu0 %v799
      %v914 = vpop.f32.mrf.mxu0
      %v915 = vadd.f32 %v703, %v914
      %916 = vmatmul.f32.gmra.mxu0 %v802
      %v917 = vpop.f32.mrf.mxu0
      %v918 = vadd.f32 %v706, %v917
      %919 = vmatmul.f32.gmra.mxu0 %v805
      %v920 = vpop.f32.mrf.mxu0
      %v921 = vadd.f32 %v709, %v920
      %922 = vmatmul.f32.gmra.mxu0 %v808
      %v923 = vpop.f32.mrf.mxu0
      %v924 = vadd.f32 %v712, %v923
      %925 = vmatmul.f32.gmra.mxu0 %v811
      %v926 = vpop.f32.mrf.mxu0
      %v927 = vadd.f32 %v715, %v926
      %928 = vmatmul.f32.gmra.mxu0 %v814
      %v929 = vpop.f32.mrf.mxu0
      %v930 = vadd.f32 %v718, %v929
      %931 = vmatmul.f32.gmra.mxu0 %v817
      %v932 = vpop.f32.mrf.mxu0
      %v933 = vadd.f32 %v721, %v932
      %934 = vmatmul.f32.gmra.mxu0 %v820
      %v935 = vpop.f32.mrf.mxu0
      %v936 = vadd.f32 %v724, %v935
      %937 = vmatmul.f32.gmra.mxu0 %v823
      %v938 = vpop.f32.mrf.mxu0
      %v939 = vadd.f32 %v727, %v938
      %940 = vmatmul.f32.gmra.mxu0 %v826
      %v941 = vpop.f32.mrf.mxu0
      %v942 = vadd.f32 %v730, %v941
      %943 = vmatmul.f32.gmra.mxu0 %v829
      %v944 = vpop.f32.mrf.mxu0
      %v945 = vadd.f32 %v733, %v944
      %946 = vmatmul.f32.gmra.mxu0 %v832
      %v947 = vpop.f32.mrf.mxu0
      %v948 = vadd.f32 %v736, %v947
      %949 = vmatmul.f32.gmra.mxu0 %v835
      %v950 = vpop.f32.mrf.mxu0
      %v951 = vadd.f32 %v739, %v950
      %952 = vmatmul.f32.gmra.mxu0 %v838
      %v953 = vpop.f32.mrf.mxu0
      %v954 = vadd.f32 %v742, %v953
      %955 = vmatmul.f32.gmra.mxu0 %v841
      %v956 = vpop.f32.mrf.mxu0
      %v957 = vadd.f32 %v745, %v956
      %958 = vmatmul.f32.gmra.mxu0 %v844
      %v959 = vpop.f32.mrf.mxu0
      %v960 = vadd.f32 %v748, %v959
      %961 = vmatmul.f32.gmra.mxu0 %v847
      %v962 = vpop.f32.mrf.mxu0
      %v963 = vadd.f32 %v751, %v962
      %964 = vmatmul.f32.gmra.mxu0 %v850
      %v965 = vpop.f32.mrf.mxu0
      %v966 = vadd.f32 %v754, %v965
      %967 = vmatmul.f32.gmra.mxu0 %v853
      %v968 = vpop.f32.mrf.mxu0
      %v969 = vadd.f32 %v757, %v968
      %970 = vmatmul.f32.gmra.mxu0 %v856
      %v971 = vpop.f32.mrf.mxu0
      %v972 = vadd.f32 %v760, %v971
      %973 = vmatmul.f32.gmra.mxu0 %v859
      %v974 = vpop.f32.mrf.mxu0
      %v975 = vadd.f32 %v763, %v974
      %976 = vmatmul.f32.gmra.mxu0 %v862
      %v977 = vpop.f32.mrf.mxu0
      %v978 = vadd.f32 %v766, %v977
      %979 = vmatmul.f32.gmra.mxu0 %v865
      %v980 = vpop.f32.mrf.mxu0
      %v981 = vadd.f32 %v769, %v980
      %982 = vmatmul.f32.gmra.mxu0 %v868
      %v983 = vpop.f32.mrf.mxu0
      %v984 = vadd.f32 %v772, %v983
      %985 = vdwg.mxu0
      %v986 = vld [vmem:[#allocation2 + $0x2] sm:$0xff]
      %v987 = vld [vmem:[#allocation2 + $0xa] sm:$0xff]
      %v988 = vld [vmem:[#allocation2 + $0x1a] sm:$0xff]
      %v989 = vld [vmem:[#allocation2 + $0x22] sm:$0xff]
      %v990 = vld [vmem:[#allocation2 + $0x32] sm:$0xff]
      %v991 = vld [vmem:[#allocation2 + $0x3a] sm:$0xff]
      %v992 = vld [vmem:[#allocation2 + $0x4a] sm:$0xff]
      %v993 = vld [vmem:[#allocation2 + $0x52] sm:$0xff]
      %v994 = vld [vmem:[#allocation2 + $0x62] sm:$0xff]
      %v995 = vld [vmem:[#allocation2 + $0x6a] sm:$0xff]
      %v996 = vld [vmem:[#allocation2 + $0x7a] sm:$0xff]
      %v997 = vld [vmem:[#allocation2 + $0x82] sm:$0xff]
      %v998 = vld [vmem:[#allocation2 + $0x92] sm:$0xff]
      %v999 = vld [vmem:[#allocation2 + $0x9a] sm:$0xff]
      %v1000 = vld [vmem:[#allocation2 + $0xaa] sm:$0xff]
      %v1001 = vld [vmem:[#allocation2 + $0xb2] sm:$0xff]
      %v1002 = vld [vmem:[#allocation2 + $0xc2] sm:$0xff]
      %v1003 = vld [vmem:[#allocation2 + $0xca] sm:$0xff]
      %v1004 = vld [vmem:[#allocation2 + $0xda] sm:$0xff]
      %v1005 = vld [vmem:[#allocation2 + $0xe2] sm:$0xff]
      %v1006 = vld [vmem:[#allocation2 + $0xf2] sm:$0xff]
      %v1007 = vld [vmem:[#allocation2 + $0xfa] sm:$0xff]
      %v1008 = vld [vmem:[#allocation2 + $0x10a] sm:$0xff]
      %v1009 = vld [vmem:[#allocation2 + $0x112] sm:$0xff]
      %v1010 = vld [vmem:[#allocation2 + $0x122] sm:$0xff]
      %v1011 = vld [vmem:[#allocation2 + $0x12a] sm:$0xff]
      %v1012 = vld [vmem:[#allocation2 + $0x13a] sm:$0xff]
      %v1013 = vld [vmem:[#allocation2 + $0x142] sm:$0xff]
      %v1014 = vld [vmem:[#allocation2 + $0x152] sm:$0xff]
      %v1015 = vld [vmem:[#allocation2 + $0x15a] sm:$0xff]
      %v1016 = vld [vmem:[#allocation2 + $0x16a] sm:$0xff]
      %v1017 = vld [vmem:[#allocation2 + $0x172] sm:$0xff]
      %s1018 = scalar_lea.vmem %s3, 8
      %v1019 = vld [vmem:[%s1018] sm:$0xf]
      %v1021 = vsel %vm405, %v986, 0
      %v1024 = vsel %vm405, %v987, 0
      %v1027 = vsel %vm405, %v988, 0
      %v1030 = vsel %vm405, %v989, 0
      %v1033 = vsel %vm405, %v990, 0
      %v1036 = vsel %vm405, %v991, 0
      %v1039 = vsel %vm405, %v992, 0
      %v1042 = vsel %vm405, %v993, 0
      %v1045 = vsel %vm405, %v994, 0
      %v1048 = vsel %vm405, %v995, 0
      %v1051 = vsel %vm405, %v996, 0
      %v1054 = vsel %vm405, %v997, 0
      %v1057 = vsel %vm405, %v998, 0
      %v1060 = vsel %vm405, %v999, 0
      %v1063 = vsel %vm405, %v1000, 0
      %v1066 = vsel %vm405, %v1001, 0
      %v1069 = vsel %vm405, %v1002, 0
      %v1072 = vsel %vm405, %v1003, 0
      %v1075 = vsel %vm405, %v1004, 0
      %v1078 = vsel %vm405, %v1005, 0
      %v1081 = vsel %vm405, %v1006, 0
      %v1084 = vsel %vm405, %v1007, 0
      %v1087 = vsel %vm405, %v1008, 0
      %v1090 = vsel %vm405, %v1009, 0
      %v1093 = vsel %vm405, %v1010, 0
      %v1096 = vsel %vm405, %v1011, 0
      %v1099 = vsel %vm405, %v1012, 0
      %v1102 = vsel %vm405, %v1013, 0
      %v1105 = vsel %vm405, %v1014, 0
      %v1108 = vsel %vm405, %v1015, 0
      %v1111 = vsel %vm405, %v1016, 0
      %v1114 = vsel %vm405, %v1017, 0
      %v1117 = vsel %vm657, %v1019, 0
      %1119 = vmatpush.msra.mxu0 0.0
      %1120 = vmatpush.msra.mxu0 0.0
      %1121 = vmatpush.msra.mxu0 0.0
      %1122 = vmatpush.msra.mxu0 0.0
      %1123 = vmatpush.msra.mxu0 0.0
      %1124 = vmatpush.msra.mxu0 0.0
      %1125 = vmatpush.msra.mxu0 0.0
      %1126 = vmatpush.msra.mxu0 0.0
      %1127 = vmatpush.msra.mxu0 0.0
      %1128 = vmatpush.msra.mxu0 0.0
      %1129 = vmatpush.msra.mxu0 0.0
      %1130 = vmatpush.msra.mxu0 0.0
      %1131 = vmatpush.msra.mxu0 0.0
      %1132 = vmatpush.msra.mxu0 0.0
      %1133 = vmatpush.msra.mxu0 0.0
      %1134 = vmatpush.msra.mxu0 %v1117
      %1135 = vmatmul.f32.gmra.mxu0 %v1021
      %v1136 = vpop.f32.mrf.mxu0
      %v1137 = vadd.f32 0.0, %v1136
      %1138 = vmatmul.f32.gmra.mxu0 %v1024
      %v1139 = vpop.f32.mrf.mxu0
      %v1140 = vadd.f32 0.0, %v1139
      %1141 = vmatmul.f32.gmra.mxu0 %v1027
      %v1142 = vpop.f32.mrf.mxu0
      %v1143 = vadd.f32 0.0, %v1142
      %1144 = vmatmul.f32.gmra.mxu0 %v1030
      %v1145 = vpop.f32.mrf.mxu0
      %v1146 = vadd.f32 0.0, %v1145
      %1147 = vmatmul.f32.gmra.mxu0 %v1033
      %v1148 = vpop.f32.mrf.mxu0
      %v1149 = vadd.f32 0.0, %v1148
      %1150 = vmatmul.f32.gmra.mxu0 %v1036
      %v1151 = vpop.f32.mrf.mxu0
      %v1152 = vadd.f32 0.0, %v1151
      %1153 = vmatmul.f32.gmra.mxu0 %v1039
      %v1154 = vpop.f32.mrf.mxu0
      %v1155 = vadd.f32 0.0, %v1154
      %1156 = vmatmul.f32.gmra.mxu0 %v1042
      %v1157 = vpop.f32.mrf.mxu0
      %v1158 = vadd.f32 0.0, %v1157
      %1159 = vmatmul.f32.gmra.mxu0 %v1045
      %v1160 = vpop.f32.mrf.mxu0
      %v1161 = vadd.f32 0.0, %v1160
      %1162 = vmatmul.f32.gmra.mxu0 %v1048
      %v1163 = vpop.f32.mrf.mxu0
      %v1164 = vadd.f32 0.0, %v1163
      %1165 = vmatmul.f32.gmra.mxu0 %v1051
      %v1166 = vpop.f32.mrf.mxu0
      %v1167 = vadd.f32 0.0, %v1166
      %1168 = vmatmul.f32.gmra.mxu0 %v1054
      %v1169 = vpop.f32.mrf.mxu0
      %v1170 = vadd.f32 0.0, %v1169
      %1171 = vmatmul.f32.gmra.mxu0 %v1057
      %v1172 = vpop.f32.mrf.mxu0
      %v1173 = vadd.f32 0.0, %v1172
      %1174 = vmatmul.f32.gmra.mxu0 %v1060
      %v1175 = vpop.f32.mrf.mxu0
      %v1176 = vadd.f32 0.0, %v1175
      %1177 = vmatmul.f32.gmra.mxu0 %v1063
      %v1178 = vpop.f32.mrf.mxu0
      %v1179 = vadd.f32 0.0, %v1178
      %1180 = vmatmul.f32.gmra.mxu0 %v1066
      %v1181 = vpop.f32.mrf.mxu0
      %v1182 = vadd.f32 0.0, %v1181
      %1183 = vmatmul.f32.gmra.mxu0 %v1069
      %v1184 = vpop.f32.mrf.mxu0
      %v1185 = vadd.f32 0.0, %v1184
      %1186 = vmatmul.f32.gmra.mxu0 %v1072
      %v1187 = vpop.f32.mrf.mxu0
      %v1188 = vadd.f32 0.0, %v1187
      %1189 = vmatmul.f32.gmra.mxu0 %v1075
      %v1190 = vpop.f32.mrf.mxu0
      %v1191 = vadd.f32 0.0, %v1190
      %1192 = vmatmul.f32.gmra.mxu0 %v1078
      %v1193 = vpop.f32.mrf.mxu0
      %v1194 = vadd.f32 0.0, %v1193
      %1195 = vmatmul.f32.gmra.mxu0 %v1081
      %v1196 = vpop.f32.mrf.mxu0
      %v1197 = vadd.f32 0.0, %v1196
      %1198 = vmatmul.f32.gmra.mxu0 %v1084
      %v1199 = vpop.f32.mrf.mxu0
      %v1200 = vadd.f32 0.0, %v1199
      %1201 = vmatmul.f32.gmra.mxu0 %v1087
      %v1202 = vpop.f32.mrf.mxu0
      %v1203 = vadd.f32 0.0, %v1202
      %1204 = vmatmul.f32.gmra.mxu0 %v1090
      %v1205 = vpop.f32.mrf.mxu0
      %v1206 = vadd.f32 0.0, %v1205
      %1207 = vmatmul.f32.gmra.mxu0 %v1093
      %v1208 = vpop.f32.mrf.mxu0
      %v1209 = vadd.f32 0.0, %v1208
      %1210 = vmatmul.f32.gmra.mxu0 %v1096
      %v1211 = vpop.f32.mrf.mxu0
      %v1212 = vadd.f32 0.0, %v1211
      %1213 = vmatmul.f32.gmra.mxu0 %v1099
      %v1214 = vpop.f32.mrf.mxu0
      %v1215 = vadd.f32 0.0, %v1214
      %1216 = vmatmul.f32.gmra.mxu0 %v1102
      %v1217 = vpop.f32.mrf.mxu0
      %v1218 = vadd.f32 0.0, %v1217
      %1219 = vmatmul.f32.gmra.mxu0 %v1105
      %v1220 = vpop.f32.mrf.mxu0
      %v1221 = vadd.f32 0.0, %v1220
      %1222 = vmatmul.f32.gmra.mxu0 %v1108
      %v1223 = vpop.f32.mrf.mxu0
      %v1224 = vadd.f32 0.0, %v1223
      %1225 = vmatmul.f32.gmra.mxu0 %v1111
      %v1226 = vpop.f32.mrf.mxu0
      %v1227 = vadd.f32 0.0, %v1226
      %1228 = vmatmul.f32.gmra.mxu0 %v1114
      %v1229 = vpop.f32.mrf.mxu0
      %v1230 = vadd.f32 0.0, %v1229
      %1231 = vdwg.mxu0
      %v1232 = vadd.f32 %v891, %v1137
      %v1233 = vadd.f32 %v894, %v1140
      %v1234 = vadd.f32 %v897, %v1143
      %v1235 = vadd.f32 %v900, %v1146
      %v1236 = vadd.f32 %v903, %v1149
      %v1237 = vadd.f32 %v906, %v1152
      %v1238 = vadd.f32 %v909, %v1155
      %v1239 = vadd.f32 %v912, %v1158
      %v1240 = vadd.f32 %v915, %v1161
      %v1241 = vadd.f32 %v918, %v1164
      %v1242 = vadd.f32 %v921, %v1167
      %v1243 = vadd.f32 %v924, %v1170
      %v1244 = vadd.f32 %v927, %v1173
      %v1245 = vadd.f32 %v930, %v1176
      %v1246 = vadd.f32 %v933, %v1179
      %v1247 = vadd.f32 %v936, %v1182
      %v1248 = vadd.f32 %v939, %v1185
      %v1249 = vadd.f32 %v942, %v1188
      %v1250 = vadd.f32 %v945, %v1191
      %v1251 = vadd.f32 %v948, %v1194
      %v1252 = vadd.f32 %v951, %v1197
      %v1253 = vadd.f32 %v954, %v1200
      %v1254 = vadd.f32 %v957, %v1203
      %v1255 = vadd.f32 %v960, %v1206
      %v1256 = vadd.f32 %v963, %v1209
      %v1257 = vadd.f32 %v966, %v1212
      %v1258 = vadd.f32 %v969, %v1215
      %v1259 = vadd.f32 %v972, %v1218
      %v1260 = vadd.f32 %v975, %v1221
      %v1261 = vadd.f32 %v978, %v1224
      %v1262 = vadd.f32 %v981, %v1227
      %v1263 = vadd.f32 %v984, %v1230
      %v1264 = vld [vmem:[%s461] sm:$0xff]
      %v1265 = vld [vmem:[%s461 + $0x8] sm:$0xff]
      %v1266 = vld [vmem:[%s461 + $0x18] sm:$0xff]
      %v1267 = vld [vmem:[%s461 + $0x20] sm:$0xff]
      %v1268 = vld [vmem:[%s461 + $0x30] sm:$0xff]
      %v1269 = vld [vmem:[%s461 + $0x38] sm:$0xff]
      %v1270 = vld [vmem:[%s461 + $0x48] sm:$0xff]
      %v1271 = vld [vmem:[%s461 + $0x50] sm:$0xff]
      %v1272 = vld [vmem:[%s461 + $0x60] sm:$0xff]
      %v1273 = vld [vmem:[%s461 + $0x68] sm:$0xff]
      %v1274 = vld [vmem:[%s461 + $0x78] sm:$0xff]
      %v1275 = vld [vmem:[%s461 + $0x80] sm:$0xff]
      %v1276 = vld [vmem:[%s461 + $0x90] sm:$0xff]
      %v1277 = vld [vmem:[%s461 + $0x98] sm:$0xff]
      %v1278 = vld [vmem:[%s461 + $0xa8] sm:$0xff]
      %v1279 = vld [vmem:[%s461 + $0xb0] sm:$0xff]
      %v1280 = vld [vmem:[%s461 + $0xc0] sm:$0xff]
      %v1281 = vld [vmem:[%s461 + $0xc8] sm:$0xff]
      %v1282 = vld [vmem:[%s461 + $0xd8] sm:$0xff]
      %v1283 = vld [vmem:[%s461 + $0xe0] sm:$0xff]
      %v1284 = vld [vmem:[%s461 + $0xf0] sm:$0xff]
      %v1285 = vld [vmem:[%s461 + $0xf8] sm:$0xff]
      %v1286 = vld [vmem:[%s461 + $0x108] sm:$0xff]
      %v1287 = vld [vmem:[%s461 + $0x110] sm:$0xff]
      %v1288 = vld [vmem:[%s461 + $0x120] sm:$0xff]
      %v1289 = vld [vmem:[%s461 + $0x128] sm:$0xff]
      %v1290 = vld [vmem:[%s461 + $0x138] sm:$0xff]
      %v1291 = vld [vmem:[%s461 + $0x140] sm:$0xff]
      %v1292 = vld [vmem:[%s461 + $0x150] sm:$0xff]
      %v1293 = vld [vmem:[%s461 + $0x158] sm:$0xff]
      %v1294 = vld [vmem:[%s461 + $0x168] sm:$0xff]
      %v1295 = vld [vmem:[%s461 + $0x170] sm:$0xff]
      %s1296 = scalar_lea.vmem %s3, 12
      %v1297 = vld [vmem:[%s1296] sm:$0xf]
      %v1299 = vsel %vm405, %v1264, 0
      %v1302 = vsel %vm405, %v1265, 0
      %v1305 = vsel %vm405, %v1266, 0
      %v1308 = vsel %vm405, %v1267, 0
      %v1311 = vsel %vm405, %v1268, 0
      %v1314 = vsel %vm405, %v1269, 0
      %v1317 = vsel %vm405, %v1270, 0
      %v1320 = vsel %vm405, %v1271, 0
      %v1323 = vsel %vm405, %v1272, 0
      %v1326 = vsel %vm405, %v1273, 0
      %v1329 = vsel %vm405, %v1274, 0
      %v1332 = vsel %vm405, %v1275, 0
      %v1335 = vsel %vm405, %v1276, 0
      %v1338 = vsel %vm405, %v1277, 0
      %v1341 = vsel %vm405, %v1278, 0
      %v1344 = vsel %vm405, %v1279, 0
      %v1347 = vsel %vm405, %v1280, 0
      %v1350 = vsel %vm405, %v1281, 0
      %v1353 = vsel %vm405, %v1282, 0
      %v1356 = vsel %vm405, %v1283, 0
      %v1359 = vsel %vm405, %v1284, 0
      %v1362 = vsel %vm405, %v1285, 0
      %v1365 = vsel %vm405, %v1286, 0
      %v1368 = vsel %vm405, %v1287, 0
      %v1371 = vsel %vm405, %v1288, 0
      %v1374 = vsel %vm405, %v1289, 0
      %v1377 = vsel %vm405, %v1290, 0
      %v1380 = vsel %vm405, %v1291, 0
      %v1383 = vsel %vm405, %v1292, 0
      %v1386 = vsel %vm405, %v1293, 0
      %v1389 = vsel %vm405, %v1294, 0
      %v1392 = vsel %vm405, %v1295, 0
      %v1395 = vsel %vm657, %v1297, 0
      %1397 = vmatpush.msra.mxu0 0.0
      %1398 = vmatpush.msra.mxu0 0.0
      %1399 = vmatpush.msra.mxu0 0.0
      %1400 = vmatpush.msra.mxu0 0.0
      %1401 = vmatpush.msra.mxu0 0.0
      %1402 = vmatpush.msra.mxu0 0.0
      %1403 = vmatpush.msra.mxu0 0.0
      %1404 = vmatpush.msra.mxu0 0.0
      %1405 = vmatpush.msra.mxu0 0.0
      %1406 = vmatpush.msra.mxu0 0.0
      %1407 = vmatpush.msra.mxu0 0.0
      %1408 = vmatpush.msra.mxu0 0.0
      %1409 = vmatpush.msra.mxu0 0.0
      %1410 = vmatpush.msra.mxu0 0.0
      %1411 = vmatpush.msra.mxu0 0.0
      %1412 = vmatpush.msra.mxu0 %v1395
      %1413 = vmatmul.f32.gmra.mxu0 %v1299
      %v1414 = vpop.f32.mrf.mxu0
      %v1415 = vadd.f32 0.0, %v1414
      %1416 = vmatmul.f32.gmra.mxu0 %v1302
      %v1417 = vpop.f32.mrf.mxu0
      %v1418 = vadd.f32 0.0, %v1417
      %1419 = vmatmul.f32.gmra.mxu0 %v1305
      %v1420 = vpop.f32.mrf.mxu0
      %v1421 = vadd.f32 0.0, %v1420
      %1422 = vmatmul.f32.gmra.mxu0 %v1308
      %v1423 = vpop.f32.mrf.mxu0
      %v1424 = vadd.f32 0.0, %v1423
      %1425 = vmatmul.f32.gmra.mxu0 %v1311
      %v1426 = vpop.f32.mrf.mxu0
      %v1427 = vadd.f32 0.0, %v1426
      %1428 = vmatmul.f32.gmra.mxu0 %v1314
      %v1429 = vpop.f32.mrf.mxu0
      %v1430 = vadd.f32 0.0, %v1429
      %1431 = vmatmul.f32.gmra.mxu0 %v1317
      %v1432 = vpop.f32.mrf.mxu0
      %v1433 = vadd.f32 0.0, %v1432
      %1434 = vmatmul.f32.gmra.mxu0 %v1320
      %v1435 = vpop.f32.mrf.mxu0
      %v1436 = vadd.f32 0.0, %v1435
      %1437 = vmatmul.f32.gmra.mxu0 %v1323
      %v1438 = vpop.f32.mrf.mxu0
      %v1439 = vadd.f32 0.0, %v1438
      %1440 = vmatmul.f32.gmra.mxu0 %v1326
      %v1441 = vpop.f32.mrf.mxu0
      %v1442 = vadd.f32 0.0, %v1441
      %1443 = vmatmul.f32.gmra.mxu0 %v1329
      %v1444 = vpop.f32.mrf.mxu0
      %v1445 = vadd.f32 0.0, %v1444
      %1446 = vmatmul.f32.gmra.mxu0 %v1332
      %v1447 = vpop.f32.mrf.mxu0
      %v1448 = vadd.f32 0.0, %v1447
      %1449 = vmatmul.f32.gmra.mxu0 %v1335
      %v1450 = vpop.f32.mrf.mxu0
      %v1451 = vadd.f32 0.0, %v1450
      %1452 = vmatmul.f32.gmra.mxu0 %v1338
      %v1453 = vpop.f32.mrf.mxu0
      %v1454 = vadd.f32 0.0, %v1453
      %1455 = vmatmul.f32.gmra.mxu0 %v1341
      %v1456 = vpop.f32.mrf.mxu0
      %v1457 = vadd.f32 0.0, %v1456
      %1458 = vmatmul.f32.gmra.mxu0 %v1344
      %v1459 = vpop.f32.mrf.mxu0
      %v1460 = vadd.f32 0.0, %v1459
      %1461 = vmatmul.f32.gmra.mxu0 %v1347
      %v1462 = vpop.f32.mrf.mxu0
      %v1463 = vadd.f32 0.0, %v1462
      %1464 = vmatmul.f32.gmra.mxu0 %v1350
      %v1465 = vpop.f32.mrf.mxu0
      %v1466 = vadd.f32 0.0, %v1465
      %1467 = vmatmul.f32.gmra.mxu0 %v1353
      %v1468 = vpop.f32.mrf.mxu0
      %v1469 = vadd.f32 0.0, %v1468
      %1470 = vmatmul.f32.gmra.mxu0 %v1356
      %v1471 = vpop.f32.mrf.mxu0
      %v1472 = vadd.f32 0.0, %v1471
      %1473 = vmatmul.f32.gmra.mxu0 %v1359
      %v1474 = vpop.f32.mrf.mxu0
      %v1475 = vadd.f32 0.0, %v1474
      %1476 = vmatmul.f32.gmra.mxu0 %v1362
      %v1477 = vpop.f32.mrf.mxu0
      %v1478 = vadd.f32 0.0, %v1477
      %1479 = vmatmul.f32.gmra.mxu0 %v1365
      %v1480 = vpop.f32.mrf.mxu0
      %v1481 = vadd.f32 0.0, %v1480
      %1482 = vmatmul.f32.gmra.mxu0 %v1368
      %v1483 = vpop.f32.mrf.mxu0
      %v1484 = vadd.f32 0.0, %v1483
      %1485 = vmatmul.f32.gmra.mxu0 %v1371
      %v1486 = vpop.f32.mrf.mxu0
      %v1487 = vadd.f32 0.0, %v1486
      %1488 = vmatmul.f32.gmra.mxu0 %v1374
      %v1489 = vpop.f32.mrf.mxu0
      %v1490 = vadd.f32 0.0, %v1489
      %1491 = vmatmul.f32.gmra.mxu0 %v1377
      %v1492 = vpop.f32.mrf.mxu0
      %v1493 = vadd.f32 0.0, %v1492
      %1494 = vmatmul.f32.gmra.mxu0 %v1380
      %v1495 = vpop.f32.mrf.mxu0
      %v1496 = vadd.f32 0.0, %v1495
      %1497 = vmatmul.f32.gmra.mxu0 %v1383
      %v1498 = vpop.f32.mrf.mxu0
      %v1499 = vadd.f32 0.0, %v1498
      %1500 = vmatmul.f32.gmra.mxu0 %v1386
      %v1501 = vpop.f32.mrf.mxu0
      %v1502 = vadd.f32 0.0, %v1501
      %1503 = vmatmul.f32.gmra.mxu0 %v1389
      %v1504 = vpop.f32.mrf.mxu0
      %v1505 = vadd.f32 0.0, %v1504
      %1506 = vmatmul.f32.gmra.mxu0 %v1392
      %v1507 = vpop.f32.mrf.mxu0
      %v1508 = vadd.f32 0.0, %v1507
      %1509 = vdwg.mxu0
      %v1510 = vadd.f32 %v1232, %v1415
      %v1511 = vadd.f32 %v1233, %v1418
      %v1512 = vadd.f32 %v1234, %v1421
      %v1513 = vadd.f32 %v1235, %v1424
      %v1514 = vadd.f32 %v1236, %v1427
      %v1515 = vadd.f32 %v1237, %v1430
      %v1516 = vadd.f32 %v1238, %v1433
      %v1517 = vadd.f32 %v1239, %v1436
      %v1518 = vadd.f32 %v1240, %v1439
      %v1519 = vadd.f32 %v1241, %v1442
      %v1520 = vadd.f32 %v1242, %v1445
      %v1521 = vadd.f32 %v1243, %v1448
      %v1522 = vadd.f32 %v1244, %v1451
      %v1523 = vadd.f32 %v1245, %v1454
      %v1524 = vadd.f32 %v1246, %v1457
      %v1525 = vadd.f32 %v1247, %v1460
      %v1526 = vadd.f32 %v1248, %v1463
      %v1527 = vadd.f32 %v1249, %v1466
      %v1528 = vadd.f32 %v1250, %v1469
      %v1529 = vadd.f32 %v1251, %v1472
      %v1530 = vadd.f32 %v1252, %v1475
      %v1531 = vadd.f32 %v1253, %v1478
      %v1532 = vadd.f32 %v1254, %v1481
      %v1533 = vadd.f32 %v1255, %v1484
      %v1534 = vadd.f32 %v1256, %v1487
      %v1535 = vadd.f32 %v1257, %v1490
      %v1536 = vadd.f32 %v1258, %v1493
      %v1537 = vadd.f32 %v1259, %v1496
      %v1538 = vadd.f32 %v1260, %v1499
      %v1539 = vadd.f32 %v1261, %v1502
      %v1540 = vadd.f32 %v1262, %v1505
      %v1541 = vadd.f32 %v1263, %v1508
      %v1542 = vld [vmem:[%s461 + $0x1] sm:$0xff]
      %v1543 = vld [vmem:[%s461 + $0x9] sm:$0xff]
      %v1544 = vld [vmem:[%s461 + $0x19] sm:$0xff]
      %v1545 = vld [vmem:[%s461 + $0x21] sm:$0xff]
      %v1546 = vld [vmem:[%s461 + $0x31] sm:$0xff]
      %v1547 = vld [vmem:[%s461 + $0x39] sm:$0xff]
      %v1548 = vld [vmem:[%s461 + $0x49] sm:$0xff]
      %v1549 = vld [vmem:[%s461 + $0x51] sm:$0xff]
      %v1550 = vld [vmem:[%s461 + $0x61] sm:$0xff]
      %v1551 = vld [vmem:[%s461 + $0x69] sm:$0xff]
      %v1552 = vld [vmem:[%s461 + $0x79] sm:$0xff]
      %v1553 = vld [vmem:[%s461 + $0x81] sm:$0xff]
      %v1554 = vld [vmem:[%s461 + $0x91] sm:$0xff]
      %v1555 = vld [vmem:[%s461 + $0x99] sm:$0xff]
      %v1556 = vld [vmem:[%s461 + $0xa9] sm:$0xff]
      %v1557 = vld [vmem:[%s461 + $0xb1] sm:$0xff]
      %v1558 = vld [vmem:[%s461 + $0xc1] sm:$0xff]
      %v1559 = vld [vmem:[%s461 + $0xc9] sm:$0xff]
      %v1560 = vld [vmem:[%s461 + $0xd9] sm:$0xff]
      %v1561 = vld [vmem:[%s461 + $0xe1] sm:$0xff]
      %v1562 = vld [vmem:[%s461 + $0xf1] sm:$0xff]
      %v1563 = vld [vmem:[%s461 + $0xf9] sm:$0xff]
      %v1564 = vld [vmem:[%s461 + $0x109] sm:$0xff]
      %v1565 = vld [vmem:[%s461 + $0x111] sm:$0xff]
      %v1566 = vld [vmem:[%s461 + $0x121] sm:$0xff]
      %v1567 = vld [vmem:[%s461 + $0x129] sm:$0xff]
      %v1568 = vld [vmem:[%s461 + $0x139] sm:$0xff]
      %v1569 = vld [vmem:[%s461 + $0x141] sm:$0xff]
      %v1570 = vld [vmem:[%s461 + $0x151] sm:$0xff]
      %v1571 = vld [vmem:[%s461 + $0x159] sm:$0xff]
      %v1572 = vld [vmem:[%s461 + $0x169] sm:$0xff]
      %v1573 = vld [vmem:[%s461 + $0x171] sm:$0xff]
      %s1574 = scalar_lea.vmem %s3, 16
      %v1575 = vld [vmem:[%s1574] sm:$0xf]
      %v1577 = vsel %vm405, %v1542, 0
      %v1580 = vsel %vm405, %v1543, 0
      %v1583 = vsel %vm405, %v1544, 0
      %v1586 = vsel %vm405, %v1545, 0
      %v1589 = vsel %vm405, %v1546, 0
      %v1592 = vsel %vm405, %v1547, 0
      %v1595 = vsel %vm405, %v1548, 0
      %v1598 = vsel %vm405, %v1549, 0
      %v1601 = vsel %vm405, %v1550, 0
      %v1604 = vsel %vm405, %v1551, 0
      %v1607 = vsel %vm405, %v1552, 0
      %v1610 = vsel %vm405, %v1553, 0
      %v1613 = vsel %vm405, %v1554, 0
      %v1616 = vsel %vm405, %v1555, 0
      %v1619 = vsel %vm405, %v1556, 0
      %v1622 = vsel %vm405, %v1557, 0
      %v1625 = vsel %vm405, %v1558, 0
      %v1628 = vsel %vm405, %v1559, 0
      %v1631 = vsel %vm405, %v1560, 0
      %v1634 = vsel %vm405, %v1561, 0
      %v1637 = vsel %vm405, %v1562, 0
      %v1640 = vsel %vm405, %v1563, 0
      %v1643 = vsel %vm405, %v1564, 0
      %v1646 = vsel %vm405, %v1565, 0
      %v1649 = vsel %vm405, %v1566, 0
      %v1652 = vsel %vm405, %v1567, 0
      %v1655 = vsel %vm405, %v1568, 0
      %v1658 = vsel %vm405, %v1569, 0
      %v1661 = vsel %vm405, %v1570, 0
      %v1664 = vsel %vm405, %v1571, 0
      %v1667 = vsel %vm405, %v1572, 0
      %v1670 = vsel %vm405, %v1573, 0
      %v1673 = vsel %vm657, %v1575, 0
      %1675 = vmatpush.msra.mxu0 0.0
      %1676 = vmatpush.msra.mxu0 0.0
      %1677 = vmatpush.msra.mxu0 0.0
      %1678 = vmatpush.msra.mxu0 0.0
      %1679 = vmatpush.msra.mxu0 0.0
      %1680 = vmatpush.msra.mxu0 0.0
      %1681 = vmatpush.msra.mxu0 0.0
      %1682 = vmatpush.msra.mxu0 0.0
      %1683 = vmatpush.msra.mxu0 0.0
      %1684 = vmatpush.msra.mxu0 0.0
      %1685 = vmatpush.msra.mxu0 0.0
      %1686 = vmatpush.msra.mxu0 0.0
      %1687 = vmatpush.msra.mxu0 0.0
      %1688 = vmatpush.msra.mxu0 0.0
      %1689 = vmatpush.msra.mxu0 0.0
      %1690 = vmatpush.msra.mxu0 %v1673
      %1691 = vmatmul.f32.gmra.mxu0 %v1577
      %v1692 = vpop.f32.mrf.mxu0
      %v1693 = vadd.f32 0.0, %v1692
      %1694 = vmatmul.f32.gmra.mxu0 %v1580
      %v1695 = vpop.f32.mrf.mxu0
      %v1696 = vadd.f32 0.0, %v1695
      %1697 = vmatmul.f32.gmra.mxu0 %v1583
      %v1698 = vpop.f32.mrf.mxu0
      %v1699 = vadd.f32 0.0, %v1698
      %1700 = vmatmul.f32.gmra.mxu0 %v1586
      %v1701 = vpop.f32.mrf.mxu0
      %v1702 = vadd.f32 0.0, %v1701
      %1703 = vmatmul.f32.gmra.mxu0 %v1589
      %v1704 = vpop.f32.mrf.mxu0
      %v1705 = vadd.f32 0.0, %v1704
      %1706 = vmatmul.f32.gmra.mxu0 %v1592
      %v1707 = vpop.f32.mrf.mxu0
      %v1708 = vadd.f32 0.0, %v1707
      %1709 = vmatmul.f32.gmra.mxu0 %v1595
      %v1710 = vpop.f32.mrf.mxu0
      %v1711 = vadd.f32 0.0, %v1710
      %1712 = vmatmul.f32.gmra.mxu0 %v1598
      %v1713 = vpop.f32.mrf.mxu0
      %v1714 = vadd.f32 0.0, %v1713
      %1715 = vmatmul.f32.gmra.mxu0 %v1601
      %v1716 = vpop.f32.mrf.mxu0
      %v1717 = vadd.f32 0.0, %v1716
      %1718 = vmatmul.f32.gmra.mxu0 %v1604
      %v1719 = vpop.f32.mrf.mxu0
      %v1720 = vadd.f32 0.0, %v1719
      %1721 = vmatmul.f32.gmra.mxu0 %v1607
      %v1722 = vpop.f32.mrf.mxu0
      %v1723 = vadd.f32 0.0, %v1722
      %1724 = vmatmul.f32.gmra.mxu0 %v1610
      %v1725 = vpop.f32.mrf.mxu0
      %v1726 = vadd.f32 0.0, %v1725
      %1727 = vmatmul.f32.gmra.mxu0 %v1613
      %v1728 = vpop.f32.mrf.mxu0
      %v1729 = vadd.f32 0.0, %v1728
      %1730 = vmatmul.f32.gmra.mxu0 %v1616
      %v1731 = vpop.f32.mrf.mxu0
      %v1732 = vadd.f32 0.0, %v1731
      %1733 = vmatmul.f32.gmra.mxu0 %v1619
      %v1734 = vpop.f32.mrf.mxu0
      %v1735 = vadd.f32 0.0, %v1734
      %1736 = vmatmul.f32.gmra.mxu0 %v1622
      %v1737 = vpop.f32.mrf.mxu0
      %v1738 = vadd.f32 0.0, %v1737
      %1739 = vmatmul.f32.gmra.mxu0 %v1625
      %v1740 = vpop.f32.mrf.mxu0
      %v1741 = vadd.f32 0.0, %v1740
      %1742 = vmatmul.f32.gmra.mxu0 %v1628
      %v1743 = vpop.f32.mrf.mxu0
      %v1744 = vadd.f32 0.0, %v1743
      %1745 = vmatmul.f32.gmra.mxu0 %v1631
      %v1746 = vpop.f32.mrf.mxu0
      %v1747 = vadd.f32 0.0, %v1746
      %1748 = vmatmul.f32.gmra.mxu0 %v1634
      %v1749 = vpop.f32.mrf.mxu0
      %v1750 = vadd.f32 0.0, %v1749
      %1751 = vmatmul.f32.gmra.mxu0 %v1637
      %v1752 = vpop.f32.mrf.mxu0
      %v1753 = vadd.f32 0.0, %v1752
      %1754 = vmatmul.f32.gmra.mxu0 %v1640
      %v1755 = vpop.f32.mrf.mxu0
      %v1756 = vadd.f32 0.0, %v1755
      %1757 = vmatmul.f32.gmra.mxu0 %v1643
      %v1758 = vpop.f32.mrf.mxu0
      %v1759 = vadd.f32 0.0, %v1758
      %1760 = vmatmul.f32.gmra.mxu0 %v1646
      %v1761 = vpop.f32.mrf.mxu0
      %v1762 = vadd.f32 0.0, %v1761
      %1763 = vmatmul.f32.gmra.mxu0 %v1649
      %v1764 = vpop.f32.mrf.mxu0
      %v1765 = vadd.f32 0.0, %v1764
      %1766 = vmatmul.f32.gmra.mxu0 %v1652
      %v1767 = vpop.f32.mrf.mxu0
      %v1768 = vadd.f32 0.0, %v1767
      %1769 = vmatmul.f32.gmra.mxu0 %v1655
      %v1770 = vpop.f32.mrf.mxu0
      %v1771 = vadd.f32 0.0, %v1770
      %1772 = vmatmul.f32.gmra.mxu0 %v1658
      %v1773 = vpop.f32.mrf.mxu0
      %v1774 = vadd.f32 0.0, %v1773
      %1775 = vmatmul.f32.gmra.mxu0 %v1661
      %v1776 = vpop.f32.mrf.mxu0
      %v1777 = vadd.f32 0.0, %v1776
      %1778 = vmatmul.f32.gmra.mxu0 %v1664
      %v1779 = vpop.f32.mrf.mxu0
      %v1780 = vadd.f32 0.0, %v1779
      %1781 = vmatmul.f32.gmra.mxu0 %v1667
      %v1782 = vpop.f32.mrf.mxu0
      %v1783 = vadd.f32 0.0, %v1782
      %1784 = vmatmul.f32.gmra.mxu0 %v1670
      %v1785 = vpop.f32.mrf.mxu0
      %v1786 = vadd.f32 0.0, %v1785
      %1787 = vdwg.mxu0
      %v1788 = vadd.f32 %v1510, %v1693
      %v1789 = vadd.f32 %v1511, %v1696
      %v1790 = vadd.f32 %v1512, %v1699
      %v1791 = vadd.f32 %v1513, %v1702
      %v1792 = vadd.f32 %v1514, %v1705
      %v1793 = vadd.f32 %v1515, %v1708
      %v1794 = vadd.f32 %v1516, %v1711
      %v1795 = vadd.f32 %v1517, %v1714
      %v1796 = vadd.f32 %v1518, %v1717
      %v1797 = vadd.f32 %v1519, %v1720
      %v1798 = vadd.f32 %v1520, %v1723
      %v1799 = vadd.f32 %v1521, %v1726
      %v1800 = vadd.f32 %v1522, %v1729
      %v1801 = vadd.f32 %v1523, %v1732
      %v1802 = vadd.f32 %v1524, %v1735
      %v1803 = vadd.f32 %v1525, %v1738
      %v1804 = vadd.f32 %v1526, %v1741
      %v1805 = vadd.f32 %v1527, %v1744
      %v1806 = vadd.f32 %v1528, %v1747
      %v1807 = vadd.f32 %v1529, %v1750
      %v1808 = vadd.f32 %v1530, %v1753
      %v1809 = vadd.f32 %v1531, %v1756
      %v1810 = vadd.f32 %v1532, %v1759
      %v1811 = vadd.f32 %v1533, %v1762
      %v1812 = vadd.f32 %v1534, %v1765
      %v1813 = vadd.f32 %v1535, %v1768
      %v1814 = vadd.f32 %v1536, %v1771
      %v1815 = vadd.f32 %v1537, %v1774
      %v1816 = vadd.f32 %v1538, %v1777
      %v1817 = vadd.f32 %v1539, %v1780
      %v1818 = vadd.f32 %v1540, %v1783
      %v1819 = vadd.f32 %v1541, %v1786
      %v1820 = vld [vmem:[%s461 + $0x2] sm:$0xff]
      %v1821 = vld [vmem:[%s461 + $0xa] sm:$0xff]
      %v1822 = vld [vmem:[%s461 + $0x1a] sm:$0xff]
      %v1823 = vld [vmem:[%s461 + $0x22] sm:$0xff]
      %v1824 = vld [vmem:[%s461 + $0x32] sm:$0xff]
      %v1825 = vld [vmem:[%s461 + $0x3a] sm:$0xff]
      %v1826 = vld [vmem:[%s461 + $0x4a] sm:$0xff]
      %v1827 = vld [vmem:[%s461 + $0x52] sm:$0xff]
      %v1828 = vld [vmem:[%s461 + $0x62] sm:$0xff]
      %v1829 = vld [vmem:[%s461 + $0x6a] sm:$0xff]
      %v1830 = vld [vmem:[%s461 + $0x7a] sm:$0xff]
      %v1831 = vld [vmem:[%s461 + $0x82] sm:$0xff]
      %v1832 = vld [vmem:[%s461 + $0x92] sm:$0xff]
      %v1833 = vld [vmem:[%s461 + $0x9a] sm:$0xff]
      %v1834 = vld [vmem:[%s461 + $0xaa] sm:$0xff]
      %v1835 = vld [vmem:[%s461 + $0xb2] sm:$0xff]
      %v1836 = vld [vmem:[%s461 + $0xc2] sm:$0xff]
      %v1837 = vld [vmem:[%s461 + $0xca] sm:$0xff]
      %v1838 = vld [vmem:[%s461 + $0xda] sm:$0xff]
      %v1839 = vld [vmem:[%s461 + $0xe2] sm:$0xff]
      %v1840 = vld [vmem:[%s461 + $0xf2] sm:$0xff]
      %v1841 = vld [vmem:[%s461 + $0xfa] sm:$0xff]
      %v1842 = vld [vmem:[%s461 + $0x10a] sm:$0xff]
      %v1843 = vld [vmem:[%s461 + $0x112] sm:$0xff]
      %v1844 = vld [vmem:[%s461 + $0x122] sm:$0xff]
      %v1845 = vld [vmem:[%s461 + $0x12a] sm:$0xff]
      %v1846 = vld [vmem:[%s461 + $0x13a] sm:$0xff]
      %v1847 = vld [vmem:[%s461 + $0x142] sm:$0xff]
      %v1848 = vld [vmem:[%s461 + $0x152] sm:$0xff]
      %v1849 = vld [vmem:[%s461 + $0x15a] sm:$0xff]
      %v1850 = vld [vmem:[%s461 + $0x16a] sm:$0xff]
      %v1851 = vld [vmem:[%s461 + $0x172] sm:$0xff]
      %s1852 = scalar_lea.vmem %s3, 20
      %v1853 = vld [vmem:[%s1852] sm:$0xf]
      %v1855 = vsel %vm405, %v1820, 0
      %v1858 = vsel %vm405, %v1821, 0
      %v1861 = vsel %vm405, %v1822, 0
      %v1864 = vsel %vm405, %v1823, 0
      %v1867 = vsel %vm405, %v1824, 0
      %v1870 = vsel %vm405, %v1825, 0
      %v1873 = vsel %vm405, %v1826, 0
      %v1876 = vsel %vm405, %v1827, 0
      %v1879 = vsel %vm405, %v1828, 0
      %v1882 = vsel %vm405, %v1829, 0
      %v1885 = vsel %vm405, %v1830, 0
      %v1888 = vsel %vm405, %v1831, 0
      %v1891 = vsel %vm405, %v1832, 0
      %v1894 = vsel %vm405, %v1833, 0
      %v1897 = vsel %vm405, %v1834, 0
      %v1900 = vsel %vm405, %v1835, 0
      %v1903 = vsel %vm405, %v1836, 0
      %v1906 = vsel %vm405, %v1837, 0
      %v1909 = vsel %vm405, %v1838, 0
      %v1912 = vsel %vm405, %v1839, 0
      %v1915 = vsel %vm405, %v1840, 0
      %v1918 = vsel %vm405, %v1841, 0
      %v1921 = vsel %vm405, %v1842, 0
      %v1924 = vsel %vm405, %v1843, 0
      %v1927 = vsel %vm405, %v1844, 0
      %v1930 = vsel %vm405, %v1845, 0
      %v1933 = vsel %vm405, %v1846, 0
      %v1936 = vsel %vm405, %v1847, 0
      %v1939 = vsel %vm405, %v1848, 0
      %v1942 = vsel %vm405, %v1849, 0
      %v1945 = vsel %vm405, %v1850, 0
      %v1948 = vsel %vm405, %v1851, 0
      %v1951 = vsel %vm657, %v1853, 0
      %1953 = vmatpush.msra.mxu0 0.0
      %1954 = vmatpush.msra.mxu0 0.0
      %1955 = vmatpush.msra.mxu0 0.0
      %1956 = vmatpush.msra.mxu0 0.0
      %1957 = vmatpush.msra.mxu0 0.0
      %1958 = vmatpush.msra.mxu0 0.0
      %1959 = vmatpush.msra.mxu0 0.0
      %1960 = vmatpush.msra.mxu0 0.0
      %1961 = vmatpush.msra.mxu0 0.0
      %1962 = vmatpush.msra.mxu0 0.0
      %1963 = vmatpush.msra.mxu0 0.0
      %1964 = vmatpush.msra.mxu0 0.0
      %1965 = vmatpush.msra.mxu0 0.0
      %1966 = vmatpush.msra.mxu0 0.0
      %1967 = vmatpush.msra.mxu0 0.0
      %1968 = vmatpush.msra.mxu0 %v1951
      %1969 = vmatmul.f32.gmra.mxu0 %v1855
      %v1970 = vpop.f32.mrf.mxu0
      %v1971 = vadd.f32 0.0, %v1970
      %1972 = vmatmul.f32.gmra.mxu0 %v1858
      %v1973 = vpop.f32.mrf.mxu0
      %v1974 = vadd.f32 0.0, %v1973
      %1975 = vmatmul.f32.gmra.mxu0 %v1861
      %v1976 = vpop.f32.mrf.mxu0
      %v1977 = vadd.f32 0.0, %v1976
      %1978 = vmatmul.f32.gmra.mxu0 %v1864
      %v1979 = vpop.f32.mrf.mxu0
      %v1980 = vadd.f32 0.0, %v1979
      %1981 = vmatmul.f32.gmra.mxu0 %v1867
      %v1982 = vpop.f32.mrf.mxu0
      %v1983 = vadd.f32 0.0, %v1982
      %1984 = vmatmul.f32.gmra.mxu0 %v1870
      %v1985 = vpop.f32.mrf.mxu0
      %v1986 = vadd.f32 0.0, %v1985
      %1987 = vmatmul.f32.gmra.mxu0 %v1873
      %v1988 = vpop.f32.mrf.mxu0
      %v1989 = vadd.f32 0.0, %v1988
      %1990 = vmatmul.f32.gmra.mxu0 %v1876
      %v1991 = vpop.f32.mrf.mxu0
      %v1992 = vadd.f32 0.0, %v1991
      %1993 = vmatmul.f32.gmra.mxu0 %v1879
      %v1994 = vpop.f32.mrf.mxu0
      %v1995 = vadd.f32 0.0, %v1994
      %1996 = vmatmul.f32.gmra.mxu0 %v1882
      %v1997 = vpop.f32.mrf.mxu0
      %v1998 = vadd.f32 0.0, %v1997
      %1999 = vmatmul.f32.gmra.mxu0 %v1885
      %v2000 = vpop.f32.mrf.mxu0
      %v2001 = vadd.f32 0.0, %v2000
      %2002 = vmatmul.f32.gmra.mxu0 %v1888
      %v2003 = vpop.f32.mrf.mxu0
      %v2004 = vadd.f32 0.0, %v2003
      %2005 = vmatmul.f32.gmra.mxu0 %v1891
      %v2006 = vpop.f32.mrf.mxu0
      %v2007 = vadd.f32 0.0, %v2006
      %2008 = vmatmul.f32.gmra.mxu0 %v1894
      %v2009 = vpop.f32.mrf.mxu0
      %v2010 = vadd.f32 0.0, %v2009
      %2011 = vmatmul.f32.gmra.mxu0 %v1897
      %v2012 = vpop.f32.mrf.mxu0
      %v2013 = vadd.f32 0.0, %v2012
      %2014 = vmatmul.f32.gmra.mxu0 %v1900
      %v2015 = vpop.f32.mrf.mxu0
      %v2016 = vadd.f32 0.0, %v2015
      %2017 = vmatmul.f32.gmra.mxu0 %v1903
      %v2018 = vpop.f32.mrf.mxu0
      %v2019 = vadd.f32 0.0, %v2018
      %2020 = vmatmul.f32.gmra.mxu0 %v1906
      %v2021 = vpop.f32.mrf.mxu0
      %v2022 = vadd.f32 0.0, %v2021
      %2023 = vmatmul.f32.gmra.mxu0 %v1909
      %v2024 = vpop.f32.mrf.mxu0
      %v2025 = vadd.f32 0.0, %v2024
      %2026 = vmatmul.f32.gmra.mxu0 %v1912
      %v2027 = vpop.f32.mrf.mxu0
      %v2028 = vadd.f32 0.0, %v2027
      %2029 = vmatmul.f32.gmra.mxu0 %v1915
      %v2030 = vpop.f32.mrf.mxu0
      %v2031 = vadd.f32 0.0, %v2030
      %2032 = vmatmul.f32.gmra.mxu0 %v1918
      %v2033 = vpop.f32.mrf.mxu0
      %v2034 = vadd.f32 0.0, %v2033
      %2035 = vmatmul.f32.gmra.mxu0 %v1921
      %v2036 = vpop.f32.mrf.mxu0
      %v2037 = vadd.f32 0.0, %v2036
      %2038 = vmatmul.f32.gmra.mxu0 %v1924
      %v2039 = vpop.f32.mrf.mxu0
      %v2040 = vadd.f32 0.0, %v2039
      %2041 = vmatmul.f32.gmra.mxu0 %v1927
      %v2042 = vpop.f32.mrf.mxu0
      %v2043 = vadd.f32 0.0, %v2042
      %2044 = vmatmul.f32.gmra.mxu0 %v1930
      %v2045 = vpop.f32.mrf.mxu0
      %v2046 = vadd.f32 0.0, %v2045
      %2047 = vmatmul.f32.gmra.mxu0 %v1933
      %v2048 = vpop.f32.mrf.mxu0
      %v2049 = vadd.f32 0.0, %v2048
      %2050 = vmatmul.f32.gmra.mxu0 %v1936
      %v2051 = vpop.f32.mrf.mxu0
      %v2052 = vadd.f32 0.0, %v2051
      %2053 = vmatmul.f32.gmra.mxu0 %v1939
      %v2054 = vpop.f32.mrf.mxu0
      %v2055 = vadd.f32 0.0, %v2054
      %2056 = vmatmul.f32.gmra.mxu0 %v1942
      %v2057 = vpop.f32.mrf.mxu0
      %v2058 = vadd.f32 0.0, %v2057
      %2059 = vmatmul.f32.gmra.mxu0 %v1945
      %v2060 = vpop.f32.mrf.mxu0
      %v2061 = vadd.f32 0.0, %v2060
      %2062 = vmatmul.f32.gmra.mxu0 %v1948
      %v2063 = vpop.f32.mrf.mxu0
      %v2064 = vadd.f32 0.0, %v2063
      %2065 = vdwg.mxu0
      %v2066 = vadd.f32 %v1788, %v1971
      %v2067 = vadd.f32 %v1789, %v1974
      %v2068 = vadd.f32 %v1790, %v1977
      %v2069 = vadd.f32 %v1791, %v1980
      %v2070 = vadd.f32 %v1792, %v1983
      %v2071 = vadd.f32 %v1793, %v1986
      %v2072 = vadd.f32 %v1794, %v1989
      %v2073 = vadd.f32 %v1795, %v1992
      %v2074 = vadd.f32 %v1796, %v1995
      %v2075 = vadd.f32 %v1797, %v1998
      %v2076 = vadd.f32 %v1798, %v2001
      %v2077 = vadd.f32 %v1799, %v2004
      %v2078 = vadd.f32 %v1800, %v2007
      %v2079 = vadd.f32 %v1801, %v2010
      %v2080 = vadd.f32 %v1802, %v2013
      %v2081 = vadd.f32 %v1803, %v2016
      %v2082 = vadd.f32 %v1804, %v2019
      %v2083 = vadd.f32 %v1805, %v2022
      %v2084 = vadd.f32 %v1806, %v2025
      %v2085 = vadd.f32 %v1807, %v2028
      %v2086 = vadd.f32 %v1808, %v2031
      %v2087 = vadd.f32 %v1809, %v2034
      %v2088 = vadd.f32 %v1810, %v2037
      %v2089 = vadd.f32 %v1811, %v2040
      %v2090 = vadd.f32 %v1812, %v2043
      %v2091 = vadd.f32 %v1813, %v2046
      %v2092 = vadd.f32 %v1814, %v2049
      %v2093 = vadd.f32 %v1815, %v2052
      %v2094 = vadd.f32 %v1816, %v2055
      %v2095 = vadd.f32 %v1817, %v2058
      %v2096 = vadd.f32 %v1818, %v2061
      %v2097 = vadd.f32 %v1819, %v2064
      %s2098 = scalar_lea.vmem [#allocation2], 48
      %v2099 = vld [vmem:[%s2098] sm:$0xff]
      %v2100 = vld [vmem:[%s2098 + $0x8] sm:$0xff]
      %v2101 = vld [vmem:[%s2098 + $0x18] sm:$0xff]
      %v2102 = vld [vmem:[%s2098 + $0x20] sm:$0xff]
      %v2103 = vld [vmem:[%s2098 + $0x30] sm:$0xff]
      %v2104 = vld [vmem:[%s2098 + $0x38] sm:$0xff]
      %v2105 = vld [vmem:[%s2098 + $0x48] sm:$0xff]
      %v2106 = vld [vmem:[%s2098 + $0x50] sm:$0xff]
      %v2107 = vld [vmem:[%s2098 + $0x60] sm:$0xff]
      %v2108 = vld [vmem:[%s2098 + $0x68] sm:$0xff]
      %v2109 = vld [vmem:[%s2098 + $0x78] sm:$0xff]
      %v2110 = vld [vmem:[%s2098 + $0x80] sm:$0xff]
      %v2111 = vld [vmem:[%s2098 + $0x90] sm:$0xff]
      %v2112 = vld [vmem:[%s2098 + $0x98] sm:$0xff]
      %v2113 = vld [vmem:[%s2098 + $0xa8] sm:$0xff]
      %v2114 = vld [vmem:[%s2098 + $0xb0] sm:$0xff]
      %v2115 = vld [vmem:[%s2098 + $0xc0] sm:$0xff]
      %v2116 = vld [vmem:[%s2098 + $0xc8] sm:$0xff]
      %v2117 = vld [vmem:[%s2098 + $0xd8] sm:$0xff]
      %v2118 = vld [vmem:[%s2098 + $0xe0] sm:$0xff]
      %v2119 = vld [vmem:[%s2098 + $0xf0] sm:$0xff]
      %v2120 = vld [vmem:[%s2098 + $0xf8] sm:$0xff]
      %v2121 = vld [vmem:[%s2098 + $0x108] sm:$0xff]
      %v2122 = vld [vmem:[%s2098 + $0x110] sm:$0xff]
      %v2123 = vld [vmem:[%s2098 + $0x120] sm:$0xff]
      %v2124 = vld [vmem:[%s2098 + $0x128] sm:$0xff]
      %v2125 = vld [vmem:[%s2098 + $0x138] sm:$0xff]
      %v2126 = vld [vmem:[%s2098 + $0x140] sm:$0xff]
      %v2127 = vld [vmem:[%s2098 + $0x150] sm:$0xff]
      %v2128 = vld [vmem:[%s2098 + $0x158] sm:$0xff]
      %v2129 = vld [vmem:[%s2098 + $0x168] sm:$0xff]
      %v2130 = vld [vmem:[%s2098 + $0x170] sm:$0xff]
      %s2131 = scalar_lea.vmem %s3, 24
      %v2132 = vld [vmem:[%s2131] sm:$0xf]
      %v2134 = vsel %vm405, %v2099, 0
      %v2137 = vsel %vm405, %v2100, 0
      %v2140 = vsel %vm405, %v2101, 0
      %v2143 = vsel %vm405, %v2102, 0
      %v2146 = vsel %vm405, %v2103, 0
      %v2149 = vsel %vm405, %v2104, 0
      %v2152 = vsel %vm405, %v2105, 0
      %v2155 = vsel %vm405, %v2106, 0
      %v2158 = vsel %vm405, %v2107, 0
      %v2161 = vsel %vm405, %v2108, 0
      %v2164 = vsel %vm405, %v2109, 0
      %v2167 = vsel %vm405, %v2110, 0
      %v2170 = vsel %vm405, %v2111, 0
      %v2173 = vsel %vm405, %v2112, 0
      %v2176 = vsel %vm405, %v2113, 0
      %v2179 = vsel %vm405, %v2114, 0
      %v2182 = vsel %vm405, %v2115, 0
      %v2185 = vsel %vm405, %v2116, 0
      %v2188 = vsel %vm405, %v2117, 0
      %v2191 = vsel %vm405, %v2118, 0
      %v2194 = vsel %vm405, %v2119, 0
      %v2197 = vsel %vm405, %v2120, 0
      %v2200 = vsel %vm405, %v2121, 0
      %v2203 = vsel %vm405, %v2122, 0
      %v2206 = vsel %vm405, %v2123, 0
      %v2209 = vsel %vm405, %v2124, 0
      %v2212 = vsel %vm405, %v2125, 0
      %v2215 = vsel %vm405, %v2126, 0
      %v2218 = vsel %vm405, %v2127, 0
      %v2221 = vsel %vm405, %v2128, 0
      %v2224 = vsel %vm405, %v2129, 0
      %v2227 = vsel %vm405, %v2130, 0
      %v2230 = vsel %vm657, %v2132, 0
      %2232 = vmatpush.msra.mxu0 0.0
      %2233 = vmatpush.msra.mxu0 0.0
      %2234 = vmatpush.msra.mxu0 0.0
      %2235 = vmatpush.msra.mxu0 0.0
      %2236 = vmatpush.msra.mxu0 0.0
      %2237 = vmatpush.msra.mxu0 0.0
      %2238 = vmatpush.msra.mxu0 0.0
      %2239 = vmatpush.msra.mxu0 0.0
      %2240 = vmatpush.msra.mxu0 0.0
      %2241 = vmatpush.msra.mxu0 0.0
      %2242 = vmatpush.msra.mxu0 0.0
      %2243 = vmatpush.msra.mxu0 0.0
      %2244 = vmatpush.msra.mxu0 0.0
      %2245 = vmatpush.msra.mxu0 0.0
      %2246 = vmatpush.msra.mxu0 0.0
      %2247 = vmatpush.msra.mxu0 %v2230
      %2248 = vmatmul.f32.gmra.mxu0 %v2134
      %v2249 = vpop.f32.mrf.mxu0
      %v2250 = vadd.f32 0.0, %v2249
      %2251 = vmatmul.f32.gmra.mxu0 %v2137
      %v2252 = vpop.f32.mrf.mxu0
      %v2253 = vadd.f32 0.0, %v2252
      %2254 = vmatmul.f32.gmra.mxu0 %v2140
      %v2255 = vpop.f32.mrf.mxu0
      %v2256 = vadd.f32 0.0, %v2255
      %2257 = vmatmul.f32.gmra.mxu0 %v2143
      %v2258 = vpop.f32.mrf.mxu0
      %v2259 = vadd.f32 0.0, %v2258
      %2260 = vmatmul.f32.gmra.mxu0 %v2146
      %v2261 = vpop.f32.mrf.mxu0
      %v2262 = vadd.f32 0.0, %v2261
      %2263 = vmatmul.f32.gmra.mxu0 %v2149
      %v2264 = vpop.f32.mrf.mxu0
      %v2265 = vadd.f32 0.0, %v2264
      %2266 = vmatmul.f32.gmra.mxu0 %v2152
      %v2267 = vpop.f32.mrf.mxu0
      %v2268 = vadd.f32 0.0, %v2267
      %2269 = vmatmul.f32.gmra.mxu0 %v2155
      %v2270 = vpop.f32.mrf.mxu0
      %v2271 = vadd.f32 0.0, %v2270
      %2272 = vmatmul.f32.gmra.mxu0 %v2158
      %v2273 = vpop.f32.mrf.mxu0
      %v2274 = vadd.f32 0.0, %v2273
      %2275 = vmatmul.f32.gmra.mxu0 %v2161
      %v2276 = vpop.f32.mrf.mxu0
      %v2277 = vadd.f32 0.0, %v2276
      %2278 = vmatmul.f32.gmra.mxu0 %v2164
      %v2279 = vpop.f32.mrf.mxu0
      %v2280 = vadd.f32 0.0, %v2279
      %2281 = vmatmul.f32.gmra.mxu0 %v2167
      %v2282 = vpop.f32.mrf.mxu0
      %v2283 = vadd.f32 0.0, %v2282
      %2284 = vmatmul.f32.gmra.mxu0 %v2170
      %v2285 = vpop.f32.mrf.mxu0
      %v2286 = vadd.f32 0.0, %v2285
      %2287 = vmatmul.f32.gmra.mxu0 %v2173
      %v2288 = vpop.f32.mrf.mxu0
      %v2289 = vadd.f32 0.0, %v2288
      %2290 = vmatmul.f32.gmra.mxu0 %v2176
      %v2291 = vpop.f32.mrf.mxu0
      %v2292 = vadd.f32 0.0, %v2291
      %2293 = vmatmul.f32.gmra.mxu0 %v2179
      %v2294 = vpop.f32.mrf.mxu0
      %v2295 = vadd.f32 0.0, %v2294
      %2296 = vmatmul.f32.gmra.mxu0 %v2182
      %v2297 = vpop.f32.mrf.mxu0
      %v2298 = vadd.f32 0.0, %v2297
      %2299 = vmatmul.f32.gmra.mxu0 %v2185
      %v2300 = vpop.f32.mrf.mxu0
      %v2301 = vadd.f32 0.0, %v2300
      %2302 = vmatmul.f32.gmra.mxu0 %v2188
      %v2303 = vpop.f32.mrf.mxu0
      %v2304 = vadd.f32 0.0, %v2303
      %2305 = vmatmul.f32.gmra.mxu0 %v2191
      %v2306 = vpop.f32.mrf.mxu0
      %v2307 = vadd.f32 0.0, %v2306
      %2308 = vmatmul.f32.gmra.mxu0 %v2194
      %v2309 = vpop.f32.mrf.mxu0
      %v2310 = vadd.f32 0.0, %v2309
      %2311 = vmatmul.f32.gmra.mxu0 %v2197
      %v2312 = vpop.f32.mrf.mxu0
      %v2313 = vadd.f32 0.0, %v2312
      %2314 = vmatmul.f32.gmra.mxu0 %v2200
      %v2315 = vpop.f32.mrf.mxu0
      %v2316 = vadd.f32 0.0, %v2315
      %2317 = vmatmul.f32.gmra.mxu0 %v2203
      %v2318 = vpop.f32.mrf.mxu0
      %v2319 = vadd.f32 0.0, %v2318
      %2320 = vmatmul.f32.gmra.mxu0 %v2206
      %v2321 = vpop.f32.mrf.mxu0
      %v2322 = vadd.f32 0.0, %v2321
      %2323 = vmatmul.f32.gmra.mxu0 %v2209
      %v2324 = vpop.f32.mrf.mxu0
      %v2325 = vadd.f32 0.0, %v2324
      %2326 = vmatmul.f32.gmra.mxu0 %v2212
      %v2327 = vpop.f32.mrf.mxu0
      %v2328 = vadd.f32 0.0, %v2327
      %2329 = vmatmul.f32.gmra.mxu0 %v2215
      %v2330 = vpop.f32.mrf.mxu0
      %v2331 = vadd.f32 0.0, %v2330
      %2332 = vmatmul.f32.gmra.mxu0 %v2218
      %v2333 = vpop.f32.mrf.mxu0
      %v2334 = vadd.f32 0.0, %v2333
      %2335 = vmatmul.f32.gmra.mxu0 %v2221
      %v2336 = vpop.f32.mrf.mxu0
      %v2337 = vadd.f32 0.0, %v2336
      %2338 = vmatmul.f32.gmra.mxu0 %v2224
      %v2339 = vpop.f32.mrf.mxu0
      %v2340 = vadd.f32 0.0, %v2339
      %2341 = vmatmul.f32.gmra.mxu0 %v2227
      %v2342 = vpop.f32.mrf.mxu0
      %v2343 = vadd.f32 0.0, %v2342
      %2344 = vdwg.mxu0
      %v2345 = vadd.f32 %v2066, %v2250
      %v2346 = vadd.f32 %v2067, %v2253
      %v2347 = vadd.f32 %v2068, %v2256
      %v2348 = vadd.f32 %v2069, %v2259
      %v2349 = vadd.f32 %v2070, %v2262
      %v2350 = vadd.f32 %v2071, %v2265
      %v2351 = vadd.f32 %v2072, %v2268
      %v2352 = vadd.f32 %v2073, %v2271
      %v2353 = vadd.f32 %v2074, %v2274
      %v2354 = vadd.f32 %v2075, %v2277
      %v2355 = vadd.f32 %v2076, %v2280
      %v2356 = vadd.f32 %v2077, %v2283
      %v2357 = vadd.f32 %v2078, %v2286
      %v2358 = vadd.f32 %v2079, %v2289
      %v2359 = vadd.f32 %v2080, %v2292
      %v2360 = vadd.f32 %v2081, %v2295
      %v2361 = vadd.f32 %v2082, %v2298
      %v2362 = vadd.f32 %v2083, %v2301
      %v2363 = vadd.f32 %v2084, %v2304
      %v2364 = vadd.f32 %v2085, %v2307
      %v2365 = vadd.f32 %v2086, %v2310
      %v2366 = vadd.f32 %v2087, %v2313
      %v2367 = vadd.f32 %v2088, %v2316
      %v2368 = vadd.f32 %v2089, %v2319
      %v2369 = vadd.f32 %v2090, %v2322
      %v2370 = vadd.f32 %v2091, %v2325
      %v2371 = vadd.f32 %v2092, %v2328
      %v2372 = vadd.f32 %v2093, %v2331
      %v2373 = vadd.f32 %v2094, %v2334
      %v2374 = vadd.f32 %v2095, %v2337
      %v2375 = vadd.f32 %v2096, %v2340
      %v2376 = vadd.f32 %v2097, %v2343
      %v2377 = vld [vmem:[%s2098 + $0x1] sm:$0xff]
      %v2378 = vld [vmem:[%s2098 + $0x9] sm:$0xff]
      %v2379 = vld [vmem:[%s2098 + $0x19] sm:$0xff]
      %v2380 = vld [vmem:[%s2098 + $0x21] sm:$0xff]
      %v2381 = vld [vmem:[%s2098 + $0x31] sm:$0xff]
      %v2382 = vld [vmem:[%s2098 + $0x39] sm:$0xff]
      %v2383 = vld [vmem:[%s2098 + $0x49] sm:$0xff]
      %v2384 = vld [vmem:[%s2098 + $0x51] sm:$0xff]
      %v2385 = vld [vmem:[%s2098 + $0x61] sm:$0xff]
      %v2386 = vld [vmem:[%s2098 + $0x69] sm:$0xff]
      %v2387 = vld [vmem:[%s2098 + $0x79] sm:$0xff]
      %v2388 = vld [vmem:[%s2098 + $0x81] sm:$0xff]
      %v2389 = vld [vmem:[%s2098 + $0x91] sm:$0xff]
      %v2390 = vld [vmem:[%s2098 + $0x99] sm:$0xff]
      %v2391 = vld [vmem:[%s2098 + $0xa9] sm:$0xff]
      %v2392 = vld [vmem:[%s2098 + $0xb1] sm:$0xff]
      %v2393 = vld [vmem:[%s2098 + $0xc1] sm:$0xff]
      %v2394 = vld [vmem:[%s2098 + $0xc9] sm:$0xff]
      %v2395 = vld [vmem:[%s2098 + $0xd9] sm:$0xff]
      %v2396 = vld [vmem:[%s2098 + $0xe1] sm:$0xff]
      %v2397 = vld [vmem:[%s2098 + $0xf1] sm:$0xff]
      %v2398 = vld [vmem:[%s2098 + $0xf9] sm:$0xff]
      %v2399 = vld [vmem:[%s2098 + $0x109] sm:$0xff]
      %v2400 = vld [vmem:[%s2098 + $0x111] sm:$0xff]
      %v2401 = vld [vmem:[%s2098 + $0x121] sm:$0xff]
      %v2402 = vld [vmem:[%s2098 + $0x129] sm:$0xff]
      %v2403 = vld [vmem:[%s2098 + $0x139] sm:$0xff]
      %v2404 = vld [vmem:[%s2098 + $0x141] sm:$0xff]
      %v2405 = vld [vmem:[%s2098 + $0x151] sm:$0xff]
      %v2406 = vld [vmem:[%s2098 + $0x159] sm:$0xff]
      %v2407 = vld [vmem:[%s2098 + $0x169] sm:$0xff]
      %v2408 = vld [vmem:[%s2098 + $0x171] sm:$0xff]
      %s2409 = scalar_lea.vmem %s3, 28
      %v2410 = vld [vmem:[%s2409] sm:$0xf]
      %v2412 = vsel %vm405, %v2377, 0
      %v2415 = vsel %vm405, %v2378, 0
      %v2418 = vsel %vm405, %v2379, 0
      %v2421 = vsel %vm405, %v2380, 0
      %v2424 = vsel %vm405, %v2381, 0
      %v2427 = vsel %vm405, %v2382, 0
      %v2430 = vsel %vm405, %v2383, 0
      %v2433 = vsel %vm405, %v2384, 0
      %v2436 = vsel %vm405, %v2385, 0
      %v2439 = vsel %vm405, %v2386, 0
      %v2442 = vsel %vm405, %v2387, 0
      %v2445 = vsel %vm405, %v2388, 0
      %v2448 = vsel %vm405, %v2389, 0
      %v2451 = vsel %vm405, %v2390, 0
      %v2454 = vsel %vm405, %v2391, 0
      %v2457 = vsel %vm405, %v2392, 0
      %v2460 = vsel %vm405, %v2393, 0
      %v2463 = vsel %vm405, %v2394, 0
      %v2466 = vsel %vm405, %v2395, 0
      %v2469 = vsel %vm405, %v2396, 0
      %v2472 = vsel %vm405, %v2397, 0
      %v2475 = vsel %vm405, %v2398, 0
      %v2478 = vsel %vm405, %v2399, 0
      %v2481 = vsel %vm405, %v2400, 0
      %v2484 = vsel %vm405, %v2401, 0
      %v2487 = vsel %vm405, %v2402, 0
      %v2490 = vsel %vm405, %v2403, 0
      %v2493 = vsel %vm405, %v2404, 0
      %v2496 = vsel %vm405, %v2405, 0
      %v2499 = vsel %vm405, %v2406, 0
      %v2502 = vsel %vm405, %v2407, 0
      %v2505 = vsel %vm405, %v2408, 0
      %v2508 = vsel %vm657, %v2410, 0
      %2510 = vmatpush.msra.mxu0 0.0
      %2511 = vmatpush.msra.mxu0 0.0
      %2512 = vmatpush.msra.mxu0 0.0
      %2513 = vmatpush.msra.mxu0 0.0
      %2514 = vmatpush.msra.mxu0 0.0
      %2515 = vmatpush.msra.mxu0 0.0
      %2516 = vmatpush.msra.mxu0 0.0
      %2517 = vmatpush.msra.mxu0 0.0
      %2518 = vmatpush.msra.mxu0 0.0
      %2519 = vmatpush.msra.mxu0 0.0
      %2520 = vmatpush.msra.mxu0 0.0
      %2521 = vmatpush.msra.mxu0 0.0
      %2522 = vmatpush.msra.mxu0 0.0
      %2523 = vmatpush.msra.mxu0 0.0
      %2524 = vmatpush.msra.mxu0 0.0
      %2525 = vmatpush.msra.mxu0 %v2508
      %2526 = vmatmul.f32.gmra.mxu0 %v2412
      %v2527 = vpop.f32.mrf.mxu0
      %v2528 = vadd.f32 0.0, %v2527
      %2529 = vmatmul.f32.gmra.mxu0 %v2415
      %v2530 = vpop.f32.mrf.mxu0
      %v2531 = vadd.f32 0.0, %v2530
      %2532 = vmatmul.f32.gmra.mxu0 %v2418
      %v2533 = vpop.f32.mrf.mxu0
      %v2534 = vadd.f32 0.0, %v2533
      %2535 = vmatmul.f32.gmra.mxu0 %v2421
      %v2536 = vpop.f32.mrf.mxu0
      %v2537 = vadd.f32 0.0, %v2536
      %2538 = vmatmul.f32.gmra.mxu0 %v2424
      %v2539 = vpop.f32.mrf.mxu0
      %v2540 = vadd.f32 0.0, %v2539
      %2541 = vmatmul.f32.gmra.mxu0 %v2427
      %v2542 = vpop.f32.mrf.mxu0
      %v2543 = vadd.f32 0.0, %v2542
      %2544 = vmatmul.f32.gmra.mxu0 %v2430
      %v2545 = vpop.f32.mrf.mxu0
      %v2546 = vadd.f32 0.0, %v2545
      %2547 = vmatmul.f32.gmra.mxu0 %v2433
      %v2548 = vpop.f32.mrf.mxu0
      %v2549 = vadd.f32 0.0, %v2548
      %2550 = vmatmul.f32.gmra.mxu0 %v2436
      %v2551 = vpop.f32.mrf.mxu0
      %v2552 = vadd.f32 0.0, %v2551
      %2553 = vmatmul.f32.gmra.mxu0 %v2439
      %v2554 = vpop.f32.mrf.mxu0
      %v2555 = vadd.f32 0.0, %v2554
      %2556 = vmatmul.f32.gmra.mxu0 %v2442
      %v2557 = vpop.f32.mrf.mxu0
      %v2558 = vadd.f32 0.0, %v2557
      %2559 = vmatmul.f32.gmra.mxu0 %v2445
      %v2560 = vpop.f32.mrf.mxu0
      %v2561 = vadd.f32 0.0, %v2560
      %2562 = vmatmul.f32.gmra.mxu0 %v2448
      %v2563 = vpop.f32.mrf.mxu0
      %v2564 = vadd.f32 0.0, %v2563
      %2565 = vmatmul.f32.gmra.mxu0 %v2451
      %v2566 = vpop.f32.mrf.mxu0
      %v2567 = vadd.f32 0.0, %v2566
      %2568 = vmatmul.f32.gmra.mxu0 %v2454
      %v2569 = vpop.f32.mrf.mxu0
      %v2570 = vadd.f32 0.0, %v2569
      %2571 = vmatmul.f32.gmra.mxu0 %v2457
      %v2572 = vpop.f32.mrf.mxu0
      %v2573 = vadd.f32 0.0, %v2572
      %2574 = vmatmul.f32.gmra.mxu0 %v2460
      %v2575 = vpop.f32.mrf.mxu0
      %v2576 = vadd.f32 0.0, %v2575
      %2577 = vmatmul.f32.gmra.mxu0 %v2463
      %v2578 = vpop.f32.mrf.mxu0
      %v2579 = vadd.f32 0.0, %v2578
      %2580 = vmatmul.f32.gmra.mxu0 %v2466
      %v2581 = vpop.f32.mrf.mxu0
      %v2582 = vadd.f32 0.0, %v2581
      %2583 = vmatmul.f32.gmra.mxu0 %v2469
      %v2584 = vpop.f32.mrf.mxu0
      %v2585 = vadd.f32 0.0, %v2584
      %2586 = vmatmul.f32.gmra.mxu0 %v2472
      %v2587 = vpop.f32.mrf.mxu0
      %v2588 = vadd.f32 0.0, %v2587
      %2589 = vmatmul.f32.gmra.mxu0 %v2475
      %v2590 = vpop.f32.mrf.mxu0
      %v2591 = vadd.f32 0.0, %v2590
      %2592 = vmatmul.f32.gmra.mxu0 %v2478
      %v2593 = vpop.f32.mrf.mxu0
      %v2594 = vadd.f32 0.0, %v2593
      %2595 = vmatmul.f32.gmra.mxu0 %v2481
      %v2596 = vpop.f32.mrf.mxu0
      %v2597 = vadd.f32 0.0, %v2596
      %2598 = vmatmul.f32.gmra.mxu0 %v2484
      %v2599 = vpop.f32.mrf.mxu0
      %v2600 = vadd.f32 0.0, %v2599
      %2601 = vmatmul.f32.gmra.mxu0 %v2487
      %v2602 = vpop.f32.mrf.mxu0
      %v2603 = vadd.f32 0.0, %v2602
      %2604 = vmatmul.f32.gmra.mxu0 %v2490
      %v2605 = vpop.f32.mrf.mxu0
      %v2606 = vadd.f32 0.0, %v2605
      %2607 = vmatmul.f32.gmra.mxu0 %v2493
      %v2608 = vpop.f32.mrf.mxu0
      %v2609 = vadd.f32 0.0, %v2608
      %2610 = vmatmul.f32.gmra.mxu0 %v2496
      %v2611 = vpop.f32.mrf.mxu0
      %v2612 = vadd.f32 0.0, %v2611
      %2613 = vmatmul.f32.gmra.mxu0 %v2499
      %v2614 = vpop.f32.mrf.mxu0
      %v2615 = vadd.f32 0.0, %v2614
      %2616 = vmatmul.f32.gmra.mxu0 %v2502
      %v2617 = vpop.f32.mrf.mxu0
      %v2618 = vadd.f32 0.0, %v2617
      %2619 = vmatmul.f32.gmra.mxu0 %v2505
      %v2620 = vpop.f32.mrf.mxu0
      %v2621 = vadd.f32 0.0, %v2620
      %2622 = vdwg.mxu0
      %v2623 = vadd.f32 %v2345, %v2528
      %v2624 = vadd.f32 %v2346, %v2531
      %v2625 = vadd.f32 %v2347, %v2534
      %v2626 = vadd.f32 %v2348, %v2537
      %v2627 = vadd.f32 %v2349, %v2540
      %v2628 = vadd.f32 %v2350, %v2543
      %v2629 = vadd.f32 %v2351, %v2546
      %v2630 = vadd.f32 %v2352, %v2549
      %v2631 = vadd.f32 %v2353, %v2552
      %v2632 = vadd.f32 %v2354, %v2555
      %v2633 = vadd.f32 %v2355, %v2558
      %v2634 = vadd.f32 %v2356, %v2561
      %v2635 = vadd.f32 %v2357, %v2564
      %v2636 = vadd.f32 %v2358, %v2567
      %v2637 = vadd.f32 %v2359, %v2570
      %v2638 = vadd.f32 %v2360, %v2573
      %v2639 = vadd.f32 %v2361, %v2576
      %v2640 = vadd.f32 %v2362, %v2579
      %v2641 = vadd.f32 %v2363, %v2582
      %v2642 = vadd.f32 %v2364, %v2585
      %v2643 = vadd.f32 %v2365, %v2588
      %v2644 = vadd.f32 %v2366, %v2591
      %v2645 = vadd.f32 %v2367, %v2594
      %v2646 = vadd.f32 %v2368, %v2597
      %v2647 = vadd.f32 %v2369, %v2600
      %v2648 = vadd.f32 %v2370, %v2603
      %v2649 = vadd.f32 %v2371, %v2606
      %v2650 = vadd.f32 %v2372, %v2609
      %v2651 = vadd.f32 %v2373, %v2612
      %v2652 = vadd.f32 %v2374, %v2615
      %v2653 = vadd.f32 %v2375, %v2618
      %v2654 = vadd.f32 %v2376, %v2621
      %v2655 = vld [vmem:[%s2098 + $0x2] sm:$0xff]
      %v2656 = vld [vmem:[%s2098 + $0xa] sm:$0xff]
      %v2657 = vld [vmem:[%s2098 + $0x1a] sm:$0xff]
      %v2658 = vld [vmem:[%s2098 + $0x22] sm:$0xff]
      %v2659 = vld [vmem:[%s2098 + $0x32] sm:$0xff]
      %v2660 = vld [vmem:[%s2098 + $0x3a] sm:$0xff]
      %v2661 = vld [vmem:[%s2098 + $0x4a] sm:$0xff]
      %v2662 = vld [vmem:[%s2098 + $0x52] sm:$0xff]
      %v2663 = vld [vmem:[%s2098 + $0x62] sm:$0xff]
      %v2664 = vld [vmem:[%s2098 + $0x6a] sm:$0xff]
      %v2665 = vld [vmem:[%s2098 + $0x7a] sm:$0xff]
      %v2666 = vld [vmem:[%s2098 + $0x82] sm:$0xff]
      %v2667 = vld [vmem:[%s2098 + $0x92] sm:$0xff]
      %v2668 = vld [vmem:[%s2098 + $0x9a] sm:$0xff]
      %v2669 = vld [vmem:[%s2098 + $0xaa] sm:$0xff]
      %v2670 = vld [vmem:[%s2098 + $0xb2] sm:$0xff]
      %v2671 = vld [vmem:[%s2098 + $0xc2] sm:$0xff]
      %v2672 = vld [vmem:[%s2098 + $0xca] sm:$0xff]
      %v2673 = vld [vmem:[%s2098 + $0xda] sm:$0xff]
      %v2674 = vld [vmem:[%s2098 + $0xe2] sm:$0xff]
      %v2675 = vld [vmem:[%s2098 + $0xf2] sm:$0xff]
      %v2676 = vld [vmem:[%s2098 + $0xfa] sm:$0xff]
      %v2677 = vld [vmem:[%s2098 + $0x10a] sm:$0xff]
      %v2678 = vld [vmem:[%s2098 + $0x112] sm:$0xff]
      %v2679 = vld [vmem:[%s2098 + $0x122] sm:$0xff]
      %v2680 = vld [vmem:[%s2098 + $0x12a] sm:$0xff]
      %v2681 = vld [vmem:[%s2098 + $0x13a] sm:$0xff]
      %v2682 = vld [vmem:[%s2098 + $0x142] sm:$0xff]
      %v2683 = vld [vmem:[%s2098 + $0x152] sm:$0xff]
      %v2684 = vld [vmem:[%s2098 + $0x15a] sm:$0xff]
      %v2685 = vld [vmem:[%s2098 + $0x16a] sm:$0xff]
      %v2686 = vld [vmem:[%s2098 + $0x172] sm:$0xff]
      %s2687 = scalar_lea.vmem %s3, 32
      %v2688 = vld [vmem:[%s2687] sm:$0xf]
      %v2690 = vsel %vm405, %v2655, 0
      %v2693 = vsel %vm405, %v2656, 0
      %v2696 = vsel %vm405, %v2657, 0
      %v2699 = vsel %vm405, %v2658, 0
      %v2702 = vsel %vm405, %v2659, 0
      %v2705 = vsel %vm405, %v2660, 0
      %v2708 = vsel %vm405, %v2661, 0
      %v2711 = vsel %vm405, %v2662, 0
      %v2714 = vsel %vm405, %v2663, 0
      %v2717 = vsel %vm405, %v2664, 0
      %v2720 = vsel %vm405, %v2665, 0
      %v2723 = vsel %vm405, %v2666, 0
      %v2726 = vsel %vm405, %v2667, 0
      %v2729 = vsel %vm405, %v2668, 0
      %v2732 = vsel %vm405, %v2669, 0
      %v2735 = vsel %vm405, %v2670, 0
      %v2738 = vsel %vm405, %v2671, 0
      %v2741 = vsel %vm405, %v2672, 0
      %v2744 = vsel %vm405, %v2673, 0
      %v2747 = vsel %vm405, %v2674, 0
      %v2750 = vsel %vm405, %v2675, 0
      %v2753 = vsel %vm405, %v2676, 0
      %v2756 = vsel %vm405, %v2677, 0
      %v2759 = vsel %vm405, %v2678, 0
      %v2762 = vsel %vm405, %v2679, 0
      %v2765 = vsel %vm405, %v2680, 0
      %v2768 = vsel %vm405, %v2681, 0
      %v2771 = vsel %vm405, %v2682, 0
      %v2774 = vsel %vm405, %v2683, 0
      %v2777 = vsel %vm405, %v2684, 0
      %v2780 = vsel %vm405, %v2685, 0
      %v2783 = vsel %vm405, %v2686, 0
      %v2786 = vsel %vm657, %v2688, 0
      %2788 = vmatpush.msra.mxu0 0.0
      %2789 = vmatpush.msra.mxu0 0.0
      %2790 = vmatpush.msra.mxu0 0.0
      %2791 = vmatpush.msra.mxu0 0.0
      %2792 = vmatpush.msra.mxu0 0.0
      %2793 = vmatpush.msra.mxu0 0.0
      %2794 = vmatpush.msra.mxu0 0.0
      %2795 = vmatpush.msra.mxu0 0.0
      %2796 = vmatpush.msra.mxu0 0.0
      %2797 = vmatpush.msra.mxu0 0.0
      %2798 = vmatpush.msra.mxu0 0.0
      %2799 = vmatpush.msra.mxu0 0.0
      %2800 = vmatpush.msra.mxu0 0.0
      %2801 = vmatpush.msra.mxu0 0.0
      %2802 = vmatpush.msra.mxu0 0.0
      %2803 = vmatpush.msra.mxu0 %v2786
      %2804 = vmatmul.f32.gmra.mxu0 %v2690
      %v2805 = vpop.f32.mrf.mxu0
      %v2806 = vadd.f32 0.0, %v2805
      %2807 = vmatmul.f32.gmra.mxu0 %v2693
      %v2808 = vpop.f32.mrf.mxu0
      %v2809 = vadd.f32 0.0, %v2808
      %2810 = vmatmul.f32.gmra.mxu0 %v2696
      %v2811 = vpop.f32.mrf.mxu0
      %v2812 = vadd.f32 0.0, %v2811
      %2813 = vmatmul.f32.gmra.mxu0 %v2699
      %v2814 = vpop.f32.mrf.mxu0
      %v2815 = vadd.f32 0.0, %v2814
      %2816 = vmatmul.f32.gmra.mxu0 %v2702
      %v2817 = vpop.f32.mrf.mxu0
      %v2818 = vadd.f32 0.0, %v2817
      %2819 = vmatmul.f32.gmra.mxu0 %v2705
      %v2820 = vpop.f32.mrf.mxu0
      %v2821 = vadd.f32 0.0, %v2820
      %2822 = vmatmul.f32.gmra.mxu0 %v2708
      %v2823 = vpop.f32.mrf.mxu0
      %v2824 = vadd.f32 0.0, %v2823
      %2825 = vmatmul.f32.gmra.mxu0 %v2711
      %v2826 = vpop.f32.mrf.mxu0
      %v2827 = vadd.f32 0.0, %v2826
      %2828 = vmatmul.f32.gmra.mxu0 %v2714
      %v2829 = vpop.f32.mrf.mxu0
      %v2830 = vadd.f32 0.0, %v2829
      %2831 = vmatmul.f32.gmra.mxu0 %v2717
      %v2832 = vpop.f32.mrf.mxu0
      %v2833 = vadd.f32 0.0, %v2832
      %2834 = vmatmul.f32.gmra.mxu0 %v2720
      %v2835 = vpop.f32.mrf.mxu0
      %v2836 = vadd.f32 0.0, %v2835
      %2837 = vmatmul.f32.gmra.mxu0 %v2723
      %v2838 = vpop.f32.mrf.mxu0
      %v2839 = vadd.f32 0.0, %v2838
      %2840 = vmatmul.f32.gmra.mxu0 %v2726
      %v2841 = vpop.f32.mrf.mxu0
      %v2842 = vadd.f32 0.0, %v2841
      %2843 = vmatmul.f32.gmra.mxu0 %v2729
      %v2844 = vpop.f32.mrf.mxu0
      %v2845 = vadd.f32 0.0, %v2844
      %2846 = vmatmul.f32.gmra.mxu0 %v2732
      %v2847 = vpop.f32.mrf.mxu0
      %v2848 = vadd.f32 0.0, %v2847
      %2849 = vmatmul.f32.gmra.mxu0 %v2735
      %v2850 = vpop.f32.mrf.mxu0
      %v2851 = vadd.f32 0.0, %v2850
      %2852 = vmatmul.f32.gmra.mxu0 %v2738
      %v2853 = vpop.f32.mrf.mxu0
      %v2854 = vadd.f32 0.0, %v2853
      %2855 = vmatmul.f32.gmra.mxu0 %v2741
      %v2856 = vpop.f32.mrf.mxu0
      %v2857 = vadd.f32 0.0, %v2856
      %2858 = vmatmul.f32.gmra.mxu0 %v2744
      %v2859 = vpop.f32.mrf.mxu0
      %v2860 = vadd.f32 0.0, %v2859
      %2861 = vmatmul.f32.gmra.mxu0 %v2747
      %v2862 = vpop.f32.mrf.mxu0
      %v2863 = vadd.f32 0.0, %v2862
      %2864 = vmatmul.f32.gmra.mxu0 %v2750
      %v2865 = vpop.f32.mrf.mxu0
      %v2866 = vadd.f32 0.0, %v2865
      %2867 = vmatmul.f32.gmra.mxu0 %v2753
      %v2868 = vpop.f32.mrf.mxu0
      %v2869 = vadd.f32 0.0, %v2868
      %2870 = vmatmul.f32.gmra.mxu0 %v2756
      %v2871 = vpop.f32.mrf.mxu0
      %v2872 = vadd.f32 0.0, %v2871
      %2873 = vmatmul.f32.gmra.mxu0 %v2759
      %v2874 = vpop.f32.mrf.mxu0
      %v2875 = vadd.f32 0.0, %v2874
      %2876 = vmatmul.f32.gmra.mxu0 %v2762
      %v2877 = vpop.f32.mrf.mxu0
      %v2878 = vadd.f32 0.0, %v2877
      %2879 = vmatmul.f32.gmra.mxu0 %v2765
      %v2880 = vpop.f32.mrf.mxu0
      %v2881 = vadd.f32 0.0, %v2880
      %2882 = vmatmul.f32.gmra.mxu0 %v2768
      %v2883 = vpop.f32.mrf.mxu0
      %v2884 = vadd.f32 0.0, %v2883
      %2885 = vmatmul.f32.gmra.mxu0 %v2771
      %v2886 = vpop.f32.mrf.mxu0
      %v2887 = vadd.f32 0.0, %v2886
      %2888 = vmatmul.f32.gmra.mxu0 %v2774
      %v2889 = vpop.f32.mrf.mxu0
      %v2890 = vadd.f32 0.0, %v2889
      %2891 = vmatmul.f32.gmra.mxu0 %v2777
      %v2892 = vpop.f32.mrf.mxu0
      %v2893 = vadd.f32 0.0, %v2892
      %2894 = vmatmul.f32.gmra.mxu0 %v2780
      %v2895 = vpop.f32.mrf.mxu0
      %v2896 = vadd.f32 0.0, %v2895
      %2897 = vmatmul.f32.gmra.mxu0 %v2783
      %v2898 = vpop.f32.mrf.mxu0
      %v2899 = vadd.f32 0.0, %v2898
      %2900 = vdwg.mxu0
      %v2901 = vadd.f32 %v2623, %v2806
      %v2902 = vadd.f32 %v2624, %v2809
      %v2903 = vadd.f32 %v2625, %v2812
      %v2904 = vadd.f32 %v2626, %v2815
      %v2905 = vadd.f32 %v2627, %v2818
      %v2906 = vadd.f32 %v2628, %v2821
      %v2907 = vadd.f32 %v2629, %v2824
      %v2908 = vadd.f32 %v2630, %v2827
      %v2909 = vadd.f32 %v2631, %v2830
      %v2910 = vadd.f32 %v2632, %v2833
      %v2911 = vadd.f32 %v2633, %v2836
      %v2912 = vadd.f32 %v2634, %v2839
      %v2913 = vadd.f32 %v2635, %v2842
      %v2914 = vadd.f32 %v2636, %v2845
      %v2915 = vadd.f32 %v2637, %v2848
      %v2916 = vadd.f32 %v2638, %v2851
      %v2917 = vadd.f32 %v2639, %v2854
      %v2918 = vadd.f32 %v2640, %v2857
      %v2919 = vadd.f32 %v2641, %v2860
      %v2920 = vadd.f32 %v2642, %v2863
      %v2921 = vadd.f32 %v2643, %v2866
      %v2922 = vadd.f32 %v2644, %v2869
      %v2923 = vadd.f32 %v2645, %v2872
      %v2924 = vadd.f32 %v2646, %v2875
      %v2925 = vadd.f32 %v2647, %v2878
      %v2926 = vadd.f32 %v2648, %v2881
      %v2927 = vadd.f32 %v2649, %v2884
      %v2928 = vadd.f32 %v2650, %v2887
      %v2929 = vadd.f32 %v2651, %v2890
      %v2930 = vadd.f32 %v2652, %v2893
      %v2931 = vadd.f32 %v2653, %v2896
      %v2932 = vadd.f32 %v2654, %v2899
      %v2933 = vpack.c.bf16 %v2901, %v2901
      %v2934 = vpack.c.bf16 %v2902, %v2902
      %v2935 = vpack.c.bf16 %v2903, %v2903
      %v2936 = vpack.c.bf16 %v2904, %v2904
      %v2937 = vpack.c.bf16 %v2905, %v2905
      %v2938 = vpack.c.bf16 %v2906, %v2906
      %v2939 = vpack.c.bf16 %v2907, %v2907
      %v2940 = vpack.c.bf16 %v2908, %v2908
      %v2941 = vpack.c.bf16 %v2909, %v2909
      %v2942 = vpack.c.bf16 %v2910, %v2910
      %v2943 = vpack.c.bf16 %v2911, %v2911
      %v2944 = vpack.c.bf16 %v2912, %v2912
      %v2945 = vpack.c.bf16 %v2913, %v2913
      %v2946 = vpack.c.bf16 %v2914, %v2914
      %v2947 = vpack.c.bf16 %v2915, %v2915
      %v2948 = vpack.c.bf16 %v2916, %v2916
      %v2949 = vpack.c.bf16 %v2917, %v2917
      %v2950 = vpack.c.bf16 %v2918, %v2918
      %v2951 = vpack.c.bf16 %v2919, %v2919
      %v2952 = vpack.c.bf16 %v2920, %v2920
      %v2953 = vpack.c.bf16 %v2921, %v2921
      %v2954 = vpack.c.bf16 %v2922, %v2922
      %v2955 = vpack.c.bf16 %v2923, %v2923
      %v2956 = vpack.c.bf16 %v2924, %v2924
      %v2957 = vpack.c.bf16 %v2925, %v2925
      %v2958 = vpack.c.bf16 %v2926, %v2926
      %v2959 = vpack.c.bf16 %v2927, %v2927
      %v2960 = vpack.c.bf16 %v2928, %v2928
      %v2961 = vpack.c.bf16 %v2929, %v2929
      %v2962 = vpack.c.bf16 %v2930, %v2930
      %v2963 = vpack.c.bf16 %v2931, %v2931
      %v2964 = vpack.c.bf16 %v2932, %v2932
      %vm2965 = vcmask 60416
      %2966 = vst.msk [vmem:[%s231] sm:$0xf] %vm2965, %v2933
      %2967 = vst.msk [vmem:[%s231 + $0x4] sm:$0xf] %vm2965, %v2934
      %2968 = vst.msk [vmem:[%s231 + $0x8] sm:$0xf] %vm2965, %v2935
      %2969 = vst.msk [vmem:[%s231 + $0xc] sm:$0xf] %vm2965, %v2936
      %2970 = vst.msk [vmem:[%s231 + $0x10] sm:$0xf] %vm2965, %v2937
      %2971 = vst.msk [vmem:[%s231 + $0x14] sm:$0xf] %vm2965, %v2938
      %2972 = vst.msk [vmem:[%s231 + $0x18] sm:$0xf] %vm2965, %v2939
      %2973 = vst.msk [vmem:[%s231 + $0x1c] sm:$0xf] %vm2965, %v2940
      %2974 = vst.msk [vmem:[%s231 + $0x20] sm:$0xf] %vm2965, %v2941
      %2975 = vst.msk [vmem:[%s231 + $0x24] sm:$0xf] %vm2965, %v2942
      %2976 = vst.msk [vmem:[%s231 + $0x28] sm:$0xf] %vm2965, %v2943
      %2977 = vst.msk [vmem:[%s231 + $0x2c] sm:$0xf] %vm2965, %v2944
      %2978 = vst.msk [vmem:[%s231 + $0x30] sm:$0xf] %vm2965, %v2945
      %2979 = vst.msk [vmem:[%s231 + $0x34] sm:$0xf] %vm2965, %v2946
      %2980 = vst.msk [vmem:[%s231 + $0x38] sm:$0xf] %vm2965, %v2947
      %2981 = vst.msk [vmem:[%s231 + $0x3c] sm:$0xf] %vm2965, %v2948
      %2982 = vst.msk [vmem:[%s231 + $0x40] sm:$0xf] %vm2965, %v2949
      %2983 = vst.msk [vmem:[%s231 + $0x44] sm:$0xf] %vm2965, %v2950
      %2984 = vst.msk [vmem:[%s231 + $0x48] sm:$0xf] %vm2965, %v2951
      %2985 = vst.msk [vmem:[%s231 + $0x4c] sm:$0xf] %vm2965, %v2952
      %2986 = vst.msk [vmem:[%s231 + $0x50] sm:$0xf] %vm2965, %v2953
      %2987 = vst.msk [vmem:[%s231 + $0x54] sm:$0xf] %vm2965, %v2954
      %2988 = vst.msk [vmem:[%s231 + $0x58] sm:$0xf] %vm2965, %v2955
      %2989 = vst.msk [vmem:[%s231 + $0x5c] sm:$0xf] %vm2965, %v2956
      %2990 = vst.msk [vmem:[%s231 + $0x60] sm:$0xf] %vm2965, %v2957
      %2991 = vst.msk [vmem:[%s231 + $0x64] sm:$0xf] %vm2965, %v2958
      %2992 = vst.msk [vmem:[%s231 + $0x68] sm:$0xf] %vm2965, %v2959
      %2993 = vst.msk [vmem:[%s231 + $0x6c] sm:$0xf] %vm2965, %v2960
      %2994 = vst.msk [vmem:[%s231 + $0x70] sm:$0xf] %vm2965, %v2961
      %2995 = vst.msk [vmem:[%s231 + $0x74] sm:$0xf] %vm2965, %v2962
      %2996 = vst.msk [vmem:[%s231 + $0x78] sm:$0xf] %vm2965, %v2963
      %2997 = vst.msk [vmem:[%s231 + $0x7c] sm:$0xf] %vm2965, %v2964
      %vm2998 = vcmask 64512
      %v2999 = vsel %vm2998, %v2901, 0.0
      %v3000 = vsel %vm2998, %v2902, 0.0
      %v3001 = vadd.f32 %v2999, %v3000
      %v3002 = vsel %vm2998, %v2903, 0.0
      %v3003 = vadd.f32 %v3001, %v3002
      %v3004 = vsel %vm2998, %v2904, 0.0
      %v3005 = vadd.f32 %v3003, %v3004
      %v3006 = vsel %vm2998, %v2905, 0.0
      %v3007 = vadd.f32 %v3005, %v3006
      %v3008 = vsel %vm2998, %v2906, 0.0
      %v3009 = vadd.f32 %v3007, %v3008
      %v3010 = vsel %vm2998, %v2907, 0.0
      %v3011 = vadd.f32 %v3009, %v3010
      %v3012 = vsel %vm2998, %v2908, 0.0
      %v3013 = vadd.f32 %v3011, %v3012
      %v3014 = vsel %vm2998, %v2909, 0.0
      %v3015 = vadd.f32 %v3013, %v3014
      %v3016 = vsel %vm2998, %v2910, 0.0
      %v3017 = vadd.f32 %v3015, %v3016
      %v3018 = vsel %vm2998, %v2911, 0.0
      %v3019 = vadd.f32 %v3017, %v3018
      %v3020 = vsel %vm2998, %v2912, 0.0
      %v3021 = vadd.f32 %v3019, %v3020
      %v3022 = vsel %vm2998, %v2913, 0.0
      %v3023 = vadd.f32 %v3021, %v3022
      %v3024 = vsel %vm2998, %v2914, 0.0
      %v3025 = vadd.f32 %v3023, %v3024
      %v3026 = vsel %vm2998, %v2915, 0.0
      %v3027 = vadd.f32 %v3025, %v3026
      %v3028 = vsel %vm2998, %v2916, 0.0
      %v3029 = vadd.f32 %v3027, %v3028
      %v3030 = vsel %vm2998, %v2917, 0.0
      %v3031 = vadd.f32 %v3029, %v3030
      %v3032 = vsel %vm2998, %v2918, 0.0
      %v3033 = vadd.f32 %v3031, %v3032
      %v3034 = vsel %vm2998, %v2919, 0.0
      %v3035 = vadd.f32 %v3033, %v3034
      %v3036 = vsel %vm2998, %v2920, 0.0
      %v3037 = vadd.f32 %v3035, %v3036
      %v3038 = vsel %vm2998, %v2921, 0.0
      %v3039 = vadd.f32 %v3037, %v3038
      %v3040 = vsel %vm2998, %v2922, 0.0
      %v3041 = vadd.f32 %v3039, %v3040
      %v3042 = vsel %vm2998, %v2923, 0.0
      %v3043 = vadd.f32 %v3041, %v3042
      %v3044 = vsel %vm2998, %v2924, 0.0
      %v3045 = vadd.f32 %v3043, %v3044
      %v3046 = vsel %vm2998, %v2925, 0.0
      %v3047 = vadd.f32 %v3045, %v3046
      %v3048 = vsel %vm2998, %v2926, 0.0
      %v3049 = vadd.f32 %v3047, %v3048
      %v3050 = vsel %vm2998, %v2927, 0.0
      %v3051 = vadd.f32 %v3049, %v3050
      %v3052 = vsel %vm2998, %v2928, 0.0
      %v3053 = vadd.f32 %v3051, %v3052
      %v3054 = vsel %vm2998, %v2929, 0.0
      %v3055 = vadd.f32 %v3053, %v3054
      %v3056 = vsel %vm2998, %v2930, 0.0
      %v3057 = vadd.f32 %v3055, %v3056
      %v3058 = vsel %vm2998, %v2931, 0.0
      %v3059 = vadd.f32 %v3057, %v3058
      %v3060 = vsel %vm2998, %v2932, 0.0
      %v3061 = vadd.f32 %v3059, %v3060
      %v3062 = vrot.slane %v3061, 4
      %v3063 = vadd.f32 %v3061, %v3062
      %v3064 = vrot.slane %v3063, 2
      %v3065 = vadd.f32 %v3063, %v3064
      %v3066 = vrot.slane %v3065, 1
      %v3067 = vadd.f32 %v3065, %v3066
      %vm3068 = vcmask 57344
      %3069 = vst.msk [vmem:[%s236] sm:$0x1] %vm3068, %v3067
      %v3070 = vmul.f32 %v2901, %v2901
      %v3071 = vmul.f32 %v2902, %v2902
      %v3072 = vmul.f32 %v2903, %v2903
      %v3073 = vmul.f32 %v2904, %v2904
      %v3074 = vmul.f32 %v2905, %v2905
      %v3075 = vmul.f32 %v2906, %v2906
      %v3076 = vmul.f32 %v2907, %v2907
      %v3077 = vmul.f32 %v2908, %v2908
      %v3078 = vmul.f32 %v2909, %v2909
      %v3079 = vmul.f32 %v2910, %v2910
      %v3080 = vmul.f32 %v2911, %v2911
      %v3081 = vmul.f32 %v2912, %v2912
      %v3082 = vmul.f32 %v2913, %v2913
      %v3083 = vmul.f32 %v2914, %v2914
      %v3084 = vmul.f32 %v2915, %v2915
      %v3085 = vmul.f32 %v2916, %v2916
      %v3086 = vmul.f32 %v2917, %v2917
      %v3087 = vmul.f32 %v2918, %v2918
      %v3088 = vmul.f32 %v2919, %v2919
      %v3089 = vmul.f32 %v2920, %v2920
      %v3090 = vmul.f32 %v2921, %v2921
      %v3091 = vmul.f32 %v2922, %v2922
      %v3092 = vmul.f32 %v2923, %v2923
      %v3093 = vmul.f32 %v2924, %v2924
      %v3094 = vmul.f32 %v2925, %v2925
      %v3095 = vmul.f32 %v2926, %v2926
      %v3096 = vmul.f32 %v2927, %v2927
      %v3097 = vmul.f32 %v2928, %v2928
      %v3098 = vmul.f32 %v2929, %v2929
      %v3099 = vmul.f32 %v2930, %v2930
      %v3100 = vmul.f32 %v2931, %v2931
      %v3101 = vmul.f32 %v2932, %v2932
      %v3102 = vsel %vm2998, %v3070, 0.0
      %v3103 = vsel %vm2998, %v3071, 0.0
      %v3104 = vadd.f32 %v3102, %v3103
      %v3105 = vsel %vm2998, %v3072, 0.0
      %v3106 = vadd.f32 %v3104, %v3105
      %v3107 = vsel %vm2998, %v3073, 0.0
      %v3108 = vadd.f32 %v3106, %v3107
      %v3109 = vsel %vm2998, %v3074, 0.0
      %v3110 = vadd.f32 %v3108, %v3109
      %v3111 = vsel %vm2998, %v3075, 0.0
      %v3112 = vadd.f32 %v3110, %v3111
      %v3113 = vsel %vm2998, %v3076, 0.0
      %v3114 = vadd.f32 %v3112, %v3113
      %v3115 = vsel %vm2998, %v3077, 0.0
      %v3116 = vadd.f32 %v3114, %v3115
      %v3117 = vsel %vm2998, %v3078, 0.0
      %v3118 = vadd.f32 %v3116, %v3117
      %v3119 = vsel %vm2998, %v3079, 0.0
      %v3120 = vadd.f32 %v3118, %v3119
      %v3121 = vsel %vm2998, %v3080, 0.0
      %v3122 = vadd.f32 %v3120, %v3121
      %v3123 = vsel %vm2998, %v3081, 0.0
      %v3124 = vadd.f32 %v3122, %v3123
      %v3125 = vsel %vm2998, %v3082, 0.0
      %v3126 = vadd.f32 %v3124, %v3125
      %v3127 = vsel %vm2998, %v3083, 0.0
      %v3128 = vadd.f32 %v3126, %v3127
      %v3129 = vsel %vm2998, %v3084, 0.0
      %v3130 = vadd.f32 %v3128, %v3129
      %v3131 = vsel %vm2998, %v3085, 0.0
      %v3132 = vadd.f32 %v3130, %v3131
      %v3133 = vsel %vm2998, %v3086, 0.0
      %v3134 = vadd.f32 %v3132, %v3133
      %v3135 = vsel %vm2998, %v3087, 0.0
      %v3136 = vadd.f32 %v3134, %v3135
      %v3137 = vsel %vm2998, %v3088, 0.0
      %v3138 = vadd.f32 %v3136, %v3137
      %v3139 = vsel %vm2998, %v3089, 0.0
      %v3140 = vadd.f32 %v3138, %v3139
      %v3141 = vsel %vm2998, %v3090, 0.0
      %v3142 = vadd.f32 %v3140, %v3141
      %v3143 = vsel %vm2998, %v3091, 0.0
      %v3144 = vadd.f32 %v3142, %v3143
      %v3145 = vsel %vm2998, %v3092, 0.0
      %v3146 = vadd.f32 %v3144, %v3145
      %v3147 = vsel %vm2998, %v3093, 0.0
      %v3148 = vadd.f32 %v3146, %v3147
      %v3149 = vsel %vm2998, %v3094, 0.0
      %v3150 = vadd.f32 %v3148, %v3149
      %v3151 = vsel %vm2998, %v3095, 0.0
      %v3152 = vadd.f32 %v3150, %v3151
      %v3153 = vsel %vm2998, %v3096, 0.0
      %v3154 = vadd.f32 %v3152, %v3153
      %v3155 = vsel %vm2998, %v3097, 0.0
      %v3156 = vadd.f32 %v3154, %v3155
      %v3157 = vsel %vm2998, %v3098, 0.0
      %v3158 = vadd.f32 %v3156, %v3157
      %v3159 = vsel %vm2998, %v3099, 0.0
      %v3160 = vadd.f32 %v3158, %v3159
      %v3161 = vsel %vm2998, %v3100, 0.0
      %v3162 = vadd.f32 %v3160, %v3161
      %v3163 = vsel %vm2998, %v3101, 0.0
      %v3164 = vadd.f32 %v3162, %v3163
      %v3165 = vrot.slane %v3164, 4
      %v3166 = vadd.f32 %v3164, %v3165
      %v3167 = vrot.slane %v3166, 2
      %v3168 = vadd.f32 %v3166, %v3167
      %v3169 = vrot.slane %v3168, 1
      %v3170 = vadd.f32 %v3168, %v3169
      %3171 = vst.msk [vmem:[%s236 + $0x1] sm:$0x1] %vm3068, %v3170
      %s3172 = smul.u32 32, %s17
      %p3173 = scmp.lt.s32.totalorder %s3172, 63
      %s3174 = scalar_select %p3173, %s3172, 63
      %s3175 = smul.addr %s3174, 4
      %s3176 = scalar_lea.vmem %s4, %s3175
      %p3177 = scmp.lt.s32.totalorder %s17, 1
      %s3178 = scalar_select %p3177, %s17, 1
      %s3179 = smul.addr %s3178, 2
      %s3180 = scalar_lea.vmem %s5, %s3179
      // Predicated region
      $region37: #{inception_forward.8} parent=35 // pred_check
        %p3181 = pneg %p124
      $region38: #{inception_forward.8} parent=35 // pred_check_branch
        %3183 = sbr.rel (%p3181) target = $region40
      $region39: #{inception_forward.8} parent=35 // pred_region
        %s3184 = smul.u32 32, %s17
      $region40: #{inception_forward.8} parent=35 // pred_fallthru
        _
      // Predicated region
      $region41: #{inception_forward.8} parent=35 // pred_check
        %p3185 = pneg %p150
      $region42: #{inception_forward.8} parent=35 // pred_check_branch
        %3187 = sbr.rel (%p3185) target = $region44
      $region43: #{inception_forward.8} parent=35 // pred_region
        _
      $region44: #{inception_forward.8} parent=35 // pred_fallthru
        _
    $region36: #{inception_forward.8} parent=5 // pred_fallthru
      _
    %p3188 = scmp.le.s32.totalorder 2, %s12
    // Predicated region
    $region45: #{inception_forward.8} parent=5 // pred_check
      %p3189 = pneg %p3188
    $region46: #{inception_forward.8} parent=5 // pred_check_branch
      %3191 = sbr.rel (%p3189) target = $region48
    $region47: #{inception_forward.8} parent=5 // pred_region
      %s3192 = ssub.s32 %s12, 2
      // Predicated region
      $region49: #{inception_forward.8} parent=47 // pred_check
        %p3193 = pneg %p130
      $region50: #{inception_forward.8} parent=47 // pred_check_branch
        %3195 = sbr.rel (%p3193) target = $region52
      $region51: #{inception_forward.8} parent=47 // pred_region
        %s3196 = smul.u32 32, %s18
        %p3197 = scmp.lt.s32.totalorder %s3196, 63
        %s3198 = scalar_select %p3197, %s3196, 63
        %s3199 = smul.addr %s3198, 4
        %s3200 = scalar_lea.vmem %s4, %s3199
      $region52: #{inception_forward.8} parent=47 // pred_fallthru
        _
      // Predicated region
      $region53: #{inception_forward.8} parent=47 // pred_check
        %p3201 = pneg %p156
      $region54: #{inception_forward.8} parent=47 // pred_check_branch
        %3203 = sbr.rel (%p3201) target = $region56
      $region55: #{inception_forward.8} parent=47 // pred_region
        %p3204 = scmp.lt.s32.totalorder %s18, 1
        %s3205 = scalar_select %p3204, %s18, 1
        %s3206 = smul.addr %s3205, 2
        %s3207 = scalar_lea.vmem %s5, %s3206
      $region56: #{inception_forward.8} parent=47 // pred_fallthru
        _
    $region48: #{inception_forward.8} parent=5 // pred_fallthru
      _
  $region6: #{inception_forward.8} parent=0 // loop_footer
    %s16 = sadd.s32 1, %s12
  $region7: #{inception_forward.8} parent=0 // loop_footer_branch
    %11 = sbr.rel target = $region3
  $region8: #{inception_forward.8} parent=0 // loop_exit
    _

// kernel: inception_forward.9
$region0: #{inception_forward.9}
  #allocation0 [shape = 'u32[]', space=smem, size = 0x4, offset = 0x4, fixed_abs, tag = 'smem constant byte address 0x4 - core index']
  #allocation1 [shape = 'u32[72,128]{1,0:T(1,128)}', space=vmem, size = 0x9000, scoped, tag = 'internal scratch']
  #allocation2 [shape = 'f32[1,18,18,8]{3,2,1,0:T(8,128)}', space=vmem, size = 0x36000, scoped, tag = 'scratch operand']
  %s0 = inlined_call_operand.vmem [shape: bf16[2,16,16,8], index: 0, kind: input, shape index: {}]
  %s1 = inlined_call_operand.vmem [shape: f32[1,8], index: 1, kind: input, shape index: {}]
  %s2 = inlined_call_operand.vmem [shape: f32[1,8], index: 2, kind: input, shape index: {}]
  %s3 = inlined_call_operand.vmem [shape: f32[9,8,8], index: 3, kind: input, shape index: {}]
  %s4 = inlined_call_operand.vmem [shape: bf16[512,8], index: 4, kind: output, shape index: {0}]
  %s5 = inlined_call_operand.vmem [shape: f32[2,2,8], index: 5, kind: output, shape index: {1}]
  %6 = xla_tuple %s4, %s5
  %s7 = sld [smem:[#allocation0]]
  $region57: #{inception_forward.9} parent=0
    _
  %s9 = ssub.s32 1, %s7
  %s10 = scalar_select 0, %s9, %s7
  loop: start=0, step=1, limit=4
  $region2: #{inception_forward.9} parent=0 // loop_pre_header
    _
  $region3: #{inception_forward.9} parent=0 // loop_header
    %s12 = sphi 0, %s16
    %p13 = scmp.ge.s32.totalorder %s12, 4
    %s22 = sphi 0, %s24
    %s25 = sphi 0, %s22
    %s26 = sphi 0, %s25
    %s42 = sphi 0, %s26
    %s46 = sphi 0, %s46
    %s48 = sphi 0, %s46
    %s49 = sphi 0, %s48
    %s63 = sphi 0, %s49
    %s67 = sphi 0, %s67
    %s69 = sphi 0, %s67
    %s70 = sphi 0, %s69
    %s84 = sphi 0, %s70
    %s88 = sphi 0, %s88
    %s90 = sphi 0, %s88
    %s91 = sphi 0, %s90
    %s105 = sphi 0, %s91
    %s111 = sphi 0, %s113
    %s114 = sphi 0, %s111
    %s115 = sphi 0, %s114
    %s131 = sphi 0, %s115
    %s137 = sphi 0, %s139
    %s140 = sphi 0, %s137
    %s141 = sphi 0, %s140
    %s157 = sphi 0, %s141
  $region4: #{inception_forward.9} parent=0 // loop_header_branch
    %15 = sbr.rel (%p13) target = $region8
  $region5: #{inception_forward.9} parent=0 // loop_body
    %s17 = ssub.s32 %s12, 1
    %s18 = ssub.s32 %s12, 2
    %s19 = sadd.s32 %s12, 1
    %s20 = ssub.s32 %s12, %s19
    %p21 = scmp.eq.s32.totalorder %s20, 0
    %s23 = sadd.s32 %s22, 1
    %s24 = scalar_select %p21, %s22, %s23
    %p27 = pneg %p21
    %p28 = scmp.eq.s32.totalorder %s12, 1
    %p29 = por %p27, %p28
    %p30 = scmp.ne.s32.totalorder %s22, %s25
    %p31 = scmp.eq.s32.totalorder %s12, 0
    %p32 = por %p30, %p31
    %p33 = scmp.ne.s32.totalorder %s22, %s25
    %p34 = scmp.eq.s32.totalorder %s17, 1
    %p35 = por %p33, %p34
    %p36 = scmp.ne.s32.totalorder %s25, %s26
    %p37 = scmp.eq.s32.totalorder %s17, 0
    %p38 = por %p36, %p37
    %p39 = scmp.ne.s32.totalorder %s25, %s26
    %p40 = scmp.eq.s32.totalorder %s18, 1
    %p41 = por %p39, %p40
    %p43 = scmp.ne.s32.totalorder %s26, %s42
    %p44 = scmp.eq.s32.totalorder %s18, 0
    %p45 = por %p43, %p44
    %s47 = sadd.s32 %s46, 1
    %p50 = scmp.eq.s32.totalorder %s12, 1
    %p51 = scmp.ne.s32.totalorder %s46, %s48
    %p52 = scmp.eq.s32.totalorder %s12, 0
    %p53 = por %p51, %p52
    %p54 = scmp.ne.s32.totalorder %s46, %s48
    %p55 = scmp.eq.s32.totalorder %s17, 1
    %p56 = por %p54, %p55
    %p57 = scmp.ne.s32.totalorder %s48, %s49
    %p58 = scmp.eq.s32.totalorder %s17, 0
    %p59 = por %p57, %p58
    %p60 = scmp.ne.s32.totalorder %s48, %s49
    %p61 = scmp.eq.s32.totalorder %s18, 1
    %p62 = por %p60, %p61
    %p64 = scmp.ne.s32.totalorder %s49, %s63
    %p65 = scmp.eq.s32.totalorder %s18, 0
    %p66 = por %p64, %p65
    %s68 = sadd.s32 %s67, 1
    %p71 = scmp.eq.s32.totalorder %s12, 1
    %p72 = scmp.ne.s32.totalorder %s67, %s69
    %p73 = scmp.eq.s32.totalorder %s12, 0
    %p74 = por %p72, %p73
    %p75 = scmp.ne.s32.totalorder %s67, %s69
    %p76 = scmp.eq.s32.totalorder %s17, 1
    %p77 = por %p75, %p76
    %p78 = scmp.ne.s32.totalorder %s69, %s70
    %p79 = scmp.eq.s32.totalorder %s17, 0
    %p80 = por %p78, %p79
    %p81 = scmp.ne.s32.totalorder %s69, %s70
    %p82 = scmp.eq.s32.totalorder %s18, 1
    %p83 = por %p81, %p82
    %p85 = scmp.ne.s32.totalorder %s70, %s84
    %p86 = scmp.eq.s32.totalorder %s18, 0
    %p87 = por %p85, %p86
    %s89 = sadd.s32 %s88, 1
    %p92 = scmp.eq.s32.totalorder %s12, 1
    %p93 = scmp.ne.s32.totalorder %s88, %s90
    %p94 = scmp.eq.s32.totalorder %s12, 0
    %p95 = por %p93, %p94
    %p96 = scmp.ne.s32.totalorder %s88, %s90
    %p97 = scmp.eq.s32.totalorder %s17, 1
    %p98 = por %p96, %p97
    %p99 = scmp.ne.s32.totalorder %s90, %s91
    %p100 = scmp.eq.s32.totalorder %s17, 0
    %p101 = por %p99, %p100
    %p102 = scmp.ne.s32.totalorder %s90, %s91
    %p103 = scmp.eq.s32.totalorder %s18, 1
    %p104 = por %p102, %p103
    %p106 = scmp.ne.s32.totalorder %s91, %s105
    %p107 = scmp.eq.s32.totalorder %s18, 0
    %p108 = por %p106, %p107
    %s109 = ssub.s32 %s12, %s19
    %p110 = scmp.eq.s32.totalorder %s109, 0
    %s112 = sadd.s32 %s111, 1
    %s113 = scalar_select %p110, %s111, %s112
    %p116 = pneg %p110
    %p117 = scmp.eq.s32.totalorder %s12, 1
    %p118 = por %p116, %p117
    %p119 = scmp.ne.s32.totalorder %s111, %s114
    %p120 = scmp.eq.s32.totalorder %s12, 0
    %p121 = por %p119, %p120
    %p122 = scmp.ne.s32.totalorder %s111, %s114
    %p123 = scmp.eq.s32.totalorder %s17, 1
    %p124 = por %p122, %p123
    %p125 = scmp.ne.s32.totalorder %s114, %s115
    %p126 = scmp.eq.s32.totalorder %s17, 0
    %p127 = por %p125, %p126
    %p128 = scmp.ne.s32.totalorder %s114, %s115
    %p129 = scmp.eq.s32.totalorder %s18, 1
    %p130 = por %p128, %p129
    %p132 = scmp.ne.s32.totalorder %s115, %s131
    %p133 = scmp.eq.s32.totalorder %s18, 0
    %p134 = por %p132, %p133
    %s135 = ssub.s32 %s12, %s19
    %p136 = scmp.eq.s32.totalorder %s135, 0
    %s138 = sadd.s32 %s137, 1
    %s139 = scalar_select %p136, %s137, %s138
    %p142 = pneg %p136
    %p143 = scmp.eq.s32.totalorder %s12, 1
    %p144 = por %p142, %p143
    %p145 = scmp.ne.s32.totalorder %s137, %s140
    %p146 = scmp.eq.s32.totalorder %s12, 0
    %p147 = por %p145, %p146
    %p148 = scmp.ne.s32.totalorder %s137, %s140
    %p149 = scmp.eq.s32.totalorder %s17, 1
    %p150 = por %p148, %p149
    %p151 = scmp.ne.s32.totalorder %s140, %s141
    %p152 = scmp.eq.s32.totalorder %s17, 0
    %p153 = por %p151, %p152
    %p154 = scmp.ne.s32.totalorder %s140, %s141
    %p155 = scmp.eq.s32.totalorder %s18, 1
    %p156 = por %p154, %p155
    %p158 = scmp.ne.s32.totalorder %s141, %s157
    %p159 = scmp.eq.s32.totalorder %s18, 0
    %p160 = por %p158, %p159
    %p161 = scmp.le.s32.totalorder 1, %s12
    %p162 = scmp.lt.s32.totalorder %s12, 3
    %p163 = pnand %p161, %p162
    %p164 = pneg %p163
    // Predicated region
    $region9: #{inception_forward.9} parent=5 // pred_check
      _
    $region10: #{inception_forward.9} parent=5 // pred_check_branch
      %166 = sbr.rel (%p163) target = $region12
    $region11: #{inception_forward.9} parent=5 // pred_region
      %s167 = ssub.s32 %s12, 1
      // Predicated region
      $region13: #{inception_forward.9} parent=11 // pred_check
        %p168 = pneg %p59
      $region14: #{inception_forward.9} parent=11 // pred_check_branch
        %170 = sbr.rel (%p168) target = $region16
      $region15: #{inception_forward.9} parent=11 // pred_region
        _
      $region16: #{inception_forward.9} parent=11 // pred_fallthru
        _
      // Predicated region
      $region17: #{inception_forward.9} parent=11 // pred_check
        %p171 = pneg %p80
      $region18: #{inception_forward.9} parent=11 // pred_check_branch
        %173 = sbr.rel (%p171) target = $region20
      $region19: #{inception_forward.9} parent=11 // pred_region
        _
      $region20: #{inception_forward.9} parent=11 // pred_fallthru
        _
      // Predicated region
      $region21: #{inception_forward.9} parent=11 // pred_check
        %p174 = pneg %p101
      $region22: #{inception_forward.9} parent=11 // pred_check_branch
        %176 = sbr.rel (%p174) target = $region24
      $region23: #{inception_forward.9} parent=11 // pred_region
        _
      $region24: #{inception_forward.9} parent=11 // pred_fallthru
        _
    $region12: #{inception_forward.9} parent=5 // pred_fallthru
      _
    %p177 = scmp.lt.s32.totalorder %s12, 2
    // Predicated region
    $region25: #{inception_forward.9} parent=5 // pred_check
      %p178 = pneg %p177
    $region26: #{inception_forward.9} parent=5 // pred_check_branch
      %180 = sbr.rel (%p178) target = $region28
    $region27: #{inception_forward.9} parent=5 // pred_region
      // Predicated region
      $region29: #{inception_forward.9} parent=27 // pred_check
        %p181 = pneg %p32
      $region30: #{inception_forward.9} parent=27 // pred_check_branch
        %183 = sbr.rel (%p181) target = $region32
      $region31: #{inception_forward.9} parent=27 // pred_region
        %p184 = scmp.lt.s32.totalorder %s12, 1
        %s185 = scalar_select %p184, %s12, 1
        %s186 = smul.addr %s185, 32
        %s187 = smul.addr %s186, 4
        %s188 = scalar_lea.vmem %s0, %s187
      $region32: #{inception_forward.9} parent=27 // pred_fallthru
        _
    $region28: #{inception_forward.9} parent=5 // pred_fallthru
      _
    %p189 = scmp.le.s32.totalorder 1, %s12
    %p190 = scmp.lt.s32.totalorder %s12, 3
    %p191 = pnand %p189, %p190
    %p192 = pneg %p191
    // Predicated region
    $region33: #{inception_forward.9} parent=5 // pred_check
      _
    $region34: #{inception_forward.9} parent=5 // pred_check_branch
      %194 = sbr.rel (%p191) target = $region36
    $region35: #{inception_forward.9} parent=5 // pred_region
      %s195 = ssub.s32 %s12, 1
      %p196 = scmp.lt.s32.totalorder %s17, 1
      %s197 = scalar_select %p196, %s17, 1
      %s198 = smul.addr %s197, 32
      %s199 = smul.addr %s198, 4
      %s200 = scalar_lea.vmem %s0, %s199
      %p201 = pneg %p38
      %p202 = pneg %p35
      %p203 = pneg %p59
      %p204 = pneg %p56
      %p205 = pneg %p80
      %p206 = pneg %p77
      %p207 = pneg %p101
      %p208 = pneg %p98
      %p209 = pneg %p127
      %p210 = pneg %p124
      %s211 = smul.u32 32, %s17
      %p212 = scmp.lt.s32.totalorder %s211, 63
      %s213 = scalar_select %p212, %s211, 63
      %s214 = smul.addr %s213, 4
      %s215 = scalar_lea.vmem %s4, %s214
      %p216 = pneg %p153
      %p217 = pneg %p150
      %p218 = scmp.lt.s32.totalorder %s17, 1
      %s219 = scalar_select %p218, %s17, 1
      %s220 = smul.addr %s219, 2
      %s221 = scalar_lea.vmem %s5, %s220
      %p222 = scmp.lt.s32.totalorder %s17, 1
      %s223 = scalar_select %p222, %s17, 1
      %s224 = smul.addr %s223, 32
      %s225 = smul.addr %s224, 4
      %s226 = scalar_lea.vmem %s0, %s225
      %s227 = smul.u32 32, %s17
      %p228 = scmp.lt.s32.totalorder %s227, 63
      %s229 = scalar_select %p228, %s227, 63
      %s230 = smul.addr %s229, 4
      %s231 = scalar_lea.vmem %s4, %s230
      %s232 = smul.u32 32, %s17
      %p233 = scmp.lt.s32.totalorder %s17, 1
      %s234 = scalar_select %p233, %s17, 1
      %s235 = smul.addr %s234, 2
      %s236 = scalar_lea.vmem %s5, %s235
      %v237 = vld [vmem:[%s226] sm:$0xf]
      %v238 = vld [vmem:[%s226 + $0x4] sm:$0xf]
      %v239 = vld [vmem:[%s226 + $0x8] sm:$0xf]
      %v240 = vld [vmem:[%s226 + $0xc] sm:$0xf]
      %v241 = vld [vmem:[%s226 + $0x10] sm:$0xf]
      %v242 = vld [vmem:[%s226 + $0x14] sm:$0xf]
      %v243 = vld [vmem:[%s226 + $0x18] sm:$0xf]
      %v244 = vld [vmem:[%s226 + $0x1c] sm:$0xf]
      %v245 = vld [vmem:[%s226 + $0x20] sm:$0xf]
      %v246 = vld [vmem:[%s226 + $0x24] sm:$0xf]
      %v247 = vld [vmem:[%s226 + $0x28] sm:$0xf]
      %v248 = vld [vmem:[%s226 + $0x2c] sm:$0xf]
      %v249 = vld [vmem:[%s226 + $0x30] sm:$0xf]
      %v250 = vld [vmem:[%s226 + $0x34] sm:$0xf]
      %v251 = vld [vmem:[%s226 + $0x38] sm:$0xf]
      %v252 = vld [vmem:[%s226 + $0x3c] sm:$0xf]
      %v253 = vld [vmem:[%s226 + $0x40] sm:$0xf]
      %v254 = vld [vmem:[%s226 + $0x44] sm:$0xf]
      %v255 = vld [vmem:[%s226 + $0x48] sm:$0xf]
      %v256 = vld [vmem:[%s226 + $0x4c] sm:$0xf]
      %v257 = vld [vmem:[%s226 + $0x50] sm:$0xf]
      %v258 = vld [vmem:[%s226 + $0x54] sm:$0xf]
      %v259 = vld [vmem:[%s226 + $0x58] sm:$0xf]
      %v260 = vld [vmem:[%s226 + $0x5c] sm:$0xf]
      %v261 = vld [vmem:[%s226 + $0x60] sm:$0xf]
      %v262 = vld [vmem:[%s226 + $0x64] sm:$0xf]
      %v263 = vld [vmem:[%s226 + $0x68] sm:$0xf]
      %v264 = vld [vmem:[%s226 + $0x6c] sm:$0xf]
      %v265 = vld [vmem:[%s226 + $0x70] sm:$0xf]
      %v266 = vld [vmem:[%s226 + $0x74] sm:$0xf]
      %v267 = vld [vmem:[%s226 + $0x78] sm:$0xf]
      %v268 = vld [vmem:[%s226 + $0x7c] sm:$0xf]
      %v269 = vunpack.c.l.bf16 %v237
      %v270 = vunpack.c.l.bf16 %v238
      %v271 = vunpack.c.l.bf16 %v239
      %v272 = vunpack.c.l.bf16 %v240
      %v273 = vunpack.c.l.bf16 %v241
      %v274 = vunpack.c.l.bf16 %v242
      %v275 = vunpack.c.l.bf16 %v243
      %v276 = vunpack.c.l.bf16 %v244
      %v277 = vunpack.c.l.bf16 %v245
      %v278 = vunpack.c.l.bf16 %v246
      %v279 = vunpack.c.l.bf16 %v247
      %v280 = vunpack.c.l.bf16 %v248
      %v281 = vunpack.c.l.bf16 %v249
      %v282 = vunpack.c.l.bf16 %v250
      %v283 = vunpack.c.l.bf16 %v251
      %v284 = vunpack.c.l.bf16 %v252
      %v285 = vunpack.c.l.bf16 %v253
      %v286 = vunpack.c.l.bf16 %v254
      %v287 = vunpack.c.l.bf16 %v255
      %v288 = vunpack.c.l.bf16 %v256
      %v289 = vunpack.c.l.bf16 %v257
      %v290 = vunpack.c.l.bf16 %v258
      %v291 = vunpack.c.l.bf16 %v259
      %v292 = vunpack.c.l.bf16 %v260
      %v293 = vunpack.c.l.bf16 %v261
      %v294 = vunpack.c.l.bf16 %v262
      %v295 = vunpack.c.l.bf16 %v263
      %v296 = vunpack.c.l.bf16 %v264
      %v297 = vunpack.c.l.bf16 %v265
      %v298 = vunpack.c.l.bf16 %v266
      %v299 = vunpack.c.l.bf16 %v267
      %v300 = vunpack.c.l.bf16 %v268
      %v301 = vld [vmem:[%s1] sm:$0x1]
      %v303 = vperm.slane %v301, 0
      %v305 = vmul.f32 %v269, %v303
      %v306 = vmul.f32 %v270, %v303
      %v307 = vmul.f32 %v271, %v303
      %v308 = vmul.f32 %v272, %v303
      %v309 = vmul.f32 %v273, %v303
      %v310 = vmul.f32 %v274, %v303
      %v311 = vmul.f32 %v275, %v303
      %v312 = vmul.f32 %v276, %v303
      %v313 = vmul.f32 %v277, %v303
      %v314 = vmul.f32 %v278, %v303
      %v315 = vmul.f32 %v279, %v303
      %v316 = vmul.f32 %v280, %v303
      %v317 = vmul.f32 %v281, %v303
      %v318 = vmul.f32 %v282, %v303
      %v319 = vmul.f32 %v283, %v303
      %v320 = vmul.f32 %v284, %v303
      %v321 = vmul.f32 %v285, %v303
      %v322 = vmul.f32 %v286, %v303
      %v323 = vmul.f32 %v287, %v303
      %v324 = vmul.f32 %v288, %v303
      %v325 = vmul.f32 %v289, %v303
      %v326 = vmul.f32 %v290, %v303
      %v327 = vmul.f32 %v291, %v303
      %v328 = vmul.f32 %v292, %v303
      %v329 = vmul.f32 %v293, %v303
      %v330 = vmul.f32 %v294, %v303
      %v331 = vmul.f32 %v295, %v303
      %v332 = vmul.f32 %v296, %v303
      %v333 = vmul.f32 %v297, %v303
      %v334 = vmul.f32 %v298, %v303
      %v335 = vmul.f32 %v299, %v303
      %v336 = vmul.f32 %v300, %v303
      %v337 = vld [vmem:[%s2] sm:$0x1]
      %v339 = vperm.slane %v337, 0
      %v341 = vadd.f32 %v305, %v339
      %v342 = vadd.f32 %v306, %v339
      %v343 = vadd.f32 %v307, %v339
      %v344 = vadd.f32 %v308, %v339
      %v345 = vadd.f32 %v309, %v339
      %v346 = vadd.f32 %v310, %v339
      %v347 = vadd.f32 %v311, %v339
      %v348 = vadd.f32 %v312, %v339
      %v349 = vadd.f32 %v313, %v339
      %v350 = vadd.f32 %v314, %v339
      %v351 = vadd.f32 %v315, %v339
      %v352 = vadd.f32 %v316, %v339
      %v353 = vadd.f32 %v317, %v339
      %v354 = vadd.f32 %v318, %v339
      %v355 = vadd.f32 %v319, %v339
      %v356 = vadd.f32 %v320, %v339
      %v357 = vadd.f32 %v321, %v339
      %v358 = vadd.f32 %v322, %v339
      %v359 = vadd.f32 %v323, %v339
      %v360 = vadd.f32 %v324, %v339
      %v361 = vadd.f32 %v325, %v339
      %v362 = vadd.f32 %v326, %v339
      %v363 = vadd.f32 %v327, %v339
      %v364 = vadd.f32 %v328, %v339
      %v365 = vadd.f32 %v329, %v339
      %v366 = vadd.f32 %v330, %v339
      %v367 = vadd.f32 %v331, %v339
      %v368 = vadd.f32 %v332, %v339
      %v369 = vadd.f32 %v333, %v339
      %v370 = vadd.f32 %v334, %v339
      %v371 = vadd.f32 %v335, %v339
      %v372 = vadd.f32 %v336, %v339
      %v373 = vmax.f32 %v341, 0.0
      %v374 = vmax.f32 %v342, 0.0
      %v375 = vmax.f32 %v343, 0.0
      %v376 = vmax.f32 %v344, 0.0
      %v377 = vmax.f32 %v345, 0.0
      %v378 = vmax.f32 %v346, 0.0
      %v379 = vmax.f32 %v347, 0.0
      %v380 = vmax.f32 %v348, 0.0
      %v381 = vmax.f32 %v349, 0.0
      %v382 = vmax.f32 %v350, 0.0
      %v383 = vmax.f32 %v351, 0.0
      %v384 = vmax.f32 %v352, 0.0
      %v385 = vmax.f32 %v353, 0.0
      %v386 = vmax.f32 %v354, 0.0
      %v387 = vmax.f32 %v355, 0.0
      %v388 = vmax.f32 %v356, 0.0
      %v389 = vmax.f32 %v357, 0.0
      %v390 = vmax.f32 %v358, 0.0
      %v391 = vmax.f32 %v359, 0.0
      %v392 = vmax.f32 %v360, 0.0
      %v393 = vmax.f32 %v361, 0.0
      %v394 = vmax.f32 %v362, 0.0
      %v395 = vmax.f32 %v363, 0.0
      %v396 = vmax.f32 %v364, 0.0
      %v397 = vmax.f32 %v365, 0.0
      %v398 = vmax.f32 %v366, 0.0
      %v399 = vmax.f32 %v367, 0.0
      %v400 = vmax.f32 %v368, 0.0
      %v401 = vmax.f32 %v369, 0.0
      %v402 = vmax.f32 %v370, 0.0
      %v403 = vmax.f32 %v371, 0.0
      %v404 = vmax.f32 %v372, 0.0
      %vm405 = vcmask 64512
      %406 = vst.msk [vmem:[#allocation2] sm:$0xff] %vm405, 0.0
      %407 = vst.msk [vmem:[#allocation2 + $0x8] sm:$0xff] %vm405, 0.0
      %vm408 = vcmask 58368
      %409 = vst.msk [vmem:[#allocation2 + $0x10] sm:$0x3] %vm408, 0.0
      %410 = vst.msk [vmem:[#allocation2 + $0x18] sm:$0xff] %vm405, 0.0
      %411 = vst.msk [vmem:[#allocation2 + $0x20] sm:$0xff] %vm405, 0.0
      %412 = vst.msk [vmem:[#allocation2 + $0x28] sm:$0x3] %vm408, 0.0
      %413 = vst.msk [vmem:[#allocation2 + $0x30] sm:$0xff] %vm405, 0.0
      %414 = vst.msk [vmem:[#allocation2 + $0x38] sm:$0xff] %vm405, 0.0
      %415 = vst.msk [vmem:[#allocation2 + $0x40] sm:$0x3] %vm408, 0.0
      %416 = vst.msk [vmem:[#allocation2 + $0x48] sm:$0xff] %vm405, 0.0
      %417 = vst.msk [vmem:[#allocation2 + $0x50] sm:$0xff] %vm405, 0.0
      %418 = vst.msk [vmem:[#allocation2 + $0x58] sm:$0x3] %vm408, 0.0
      %419 = vst.msk [vmem:[#allocation2 + $0x60] sm:$0xff] %vm405, 0.0
      %420 = vst.msk [vmem:[#allocation2 + $0x68] sm:$0xff] %vm405, 0.0
      %421 = vst.msk [vmem:[#allocation2 + $0x70] sm:$0x3] %vm408, 0.0
      %422 = vst.msk [vmem:[#allocation2 + $0x78] sm:$0xff] %vm405, 0.0
      %423 = vst.msk [vmem:[#allocation2 + $0x80] sm:$0xff] %vm405, 0.0
      %424 = vst.msk [vmem:[#allocation2 + $0x88] sm:$0x3] %vm408, 0.0
      %425 = vst.msk [vmem:[#allocation2 + $0x90] sm:$0xff] %vm405, 0.0
      %426 = vst.msk [vmem:[#allocation2 + $0x98] sm:$0xff] %vm405, 0.0
      %427 = vst.msk [vmem:[#allocation2 + $0xa0] sm:$0x3] %vm408, 0.0
      %428 = vst.msk [vmem:[#allocation2 + $0xa8] sm:$0xff] %vm405, 0.0
      %429 = vst.msk [vmem:[#allocation2 + $0xb0] sm:$0xff] %vm405, 0.0
      %430 = vst.msk [vmem:[#allocation2 + $0xb8] sm:$0x3] %vm408, 0.0
      %431 = vst.msk [vmem:[#allocation2 + $0xc0] sm:$0xff] %vm405, 0.0
      %432 = vst.msk [vmem:[#allocation2 + $0xc8] sm:$0xff] %vm405, 0.0
      %433 = vst.msk [vmem:[#allocation2 + $0xd0] sm:$0x3] %vm408, 0.0
      %434 = vst.msk [vmem:[#allocation2 + $0xd8] sm:$0xff] %vm405, 0.0
      %435 = vst.msk [vmem:[#allocation2 + $0xe0] sm:$0xff] %vm405, 0.0
      %436 = vst.msk [vmem:[#allocation2 + $0xe8] sm:$0x3] %vm408, 0.0
      %437 = vst.msk [vmem:[#allocation2 + $0xf0] sm:$0xff] %vm405, 0.0
      %438 = vst.msk [vmem:[#allocation2 + $0xf8] sm:$0xff] %vm405, 0.0
      %439 = vst.msk [vmem:[#allocation2 + $0x100] sm:$0x3] %vm408, 0.0
      %440 = vst.msk [vmem:[#allocation2 + $0x108] sm:$0xff] %vm405, 0.0
      %441 = vst.msk [vmem:[#allocation2 + $0x110] sm:$0xff] %vm405, 0.0
      %442 = vst.msk [vmem:[#allocation2 + $0x118] sm:$0x3] %vm408, 0.0
      %443 = vst.msk [vmem:[#allocation2 + $0x120] sm:$0xff] %vm405, 0.0
      %444 = vst.msk [vmem:[#allocation2 + $0x128] sm:$0xff] %vm405, 0.0
      %445 = vst.msk [vmem:[#allocation2 + $0x130] sm:$0x3] %vm408, 0.0
      %446 = vst.msk [vmem:[#allocation2 + $0x138] sm:$0xff] %vm405, 0.0
      %447 = vst.msk [vmem:[#allocation2 + $0x140] sm:$0xff] %vm405, 0.0
      %448 = vst.msk [vmem:[#allocation2 + $0x148] sm:$0x3] %vm408, 0.0
      %449 = vst.msk [vmem:[#allocation2 + $0x150] sm:$0xff] %vm405, 0.0
      %450 = vst.msk [vmem:[#allocation2 + $0x158] sm:$0xff] %vm405, 0.0
      %451 = vst.msk [vmem:[#allocation2 + $0x160] sm:$0x3] %vm408, 0.0
      %452 = vst.msk [vmem:[#allocation2 + $0x168] sm:$0xff] %vm405, 0.0
      %453 = vst.msk [vmem:[#allocation2 + $0x170] sm:$0xff] %vm405, 0.0
      %454 = vst.msk [vmem:[#allocation2 + $0x178] sm:$0x3] %vm408, 0.0
      %455 = vst.msk [vmem:[#allocation2 + $0x180] sm:$0xff] %vm405, 0.0
      %456 = vst.msk [vmem:[#allocation2 + $0x188] sm:$0xff] %vm405, 0.0
      %457 = vst.msk [vmem:[#allocation2 + $0x190] sm:$0x3] %vm408, 0.0
      %458 = vst.msk [vmem:[#allocation2 + $0x198] sm:$0xff] %vm405, 0.0
      %459 = vst.msk [vmem:[#allocation2 + $0x1a0] sm:$0xff] %vm405, 0.0
      %460 = vst.msk [vmem:[#allocation2 + $0x1a8] sm:$0x3] %vm408, 0.0
      %s461 = scalar_lea.vmem [#allocation2], 24
      %462 = vst.msk [vmem:[%s461 + $0x1] sm:$0xff] %vm405, %v373
      %463 = vst.msk [vmem:[%s461 + $0x9] sm:$0xff] %vm405, %v374
      %464 = vst.msk [vmem:[%s461 + $0x19] sm:$0xff] %vm405, %v375
      %465 = vst.msk [vmem:[%s461 + $0x21] sm:$0xff] %vm405, %v376
      %466 = vst.msk [vmem:[%s461 + $0x31] sm:$0xff] %vm405, %v377
      %467 = vst.msk [vmem:[%s461 + $0x39] sm:$0xff] %vm405, %v378
      %468 = vst.msk [vmem:[%s461 + $0x49] sm:$0xff] %vm405, %v379
      %469 = vst.msk [vmem:[%s461 + $0x51] sm:$0xff] %vm405, %v380
      %470 = vst.msk [vmem:[%s461 + $0x61] sm:$0xff] %vm405, %v381
      %471 = vst.msk [vmem:[%s461 + $0x69] sm:$0xff] %vm405, %v382
      %472 = vst.msk [vmem:[%s461 + $0x79] sm:$0xff] %vm405, %v383
      %473 = vst.msk [vmem:[%s461 + $0x81] sm:$0xff] %vm405, %v384
      %474 = vst.msk [vmem:[%s461 + $0x91] sm:$0xff] %vm405, %v385
      %475 = vst.msk [vmem:[%s461 + $0x99] sm:$0xff] %vm405, %v386
      %476 = vst.msk [vmem:[%s461 + $0xa9] sm:$0xff] %vm405, %v387
      %477 = vst.msk [vmem:[%s461 + $0xb1] sm:$0xff] %vm405, %v388
      %478 = vst.msk [vmem:[%s461 + $0xc1] sm:$0xff] %vm405, %v389
      %479 = vst.msk [vmem:[%s461 + $0xc9] sm:$0xff] %vm405, %v390
      %480 = vst.msk [vmem:[%s461 + $0xd9] sm:$0xff] %vm405, %v391
      %481 = vst.msk [vmem:[%s461 + $0xe1] sm:$0xff] %vm405, %v392
      %482 = vst.msk [vmem:[%s461 + $0xf1] sm:$0xff] %vm405, %v393
      %483 = vst.msk [vmem:[%s461 + $0xf9] sm:$0xff] %vm405, %v394
      %484 = vst.msk [vmem:[%s461 + $0x109] sm:$0xff] %vm405, %v395
      %485 = vst.msk [vmem:[%s461 + $0x111] sm:$0xff] %vm405, %v396
      %486 = vst.msk [vmem:[%s461 + $0x121] sm:$0xff] %vm405, %v397
      %487 = vst.msk [vmem:[%s461 + $0x129] sm:$0xff] %vm405, %v398
      %488 = vst.msk [vmem:[%s461 + $0x139] sm:$0xff] %vm405, %v399
      %489 = vst.msk [vmem:[%s461 + $0x141] sm:$0xff] %vm405, %v400
      %490 = vst.msk [vmem:[%s461 + $0x151] sm:$0xff] %vm405, %v401
      %491 = vst.msk [vmem:[%s461 + $0x159] sm:$0xff] %vm405, %v402
      %492 = vst.msk [vmem:[%s461 + $0x169] sm:$0xff] %vm405, %v403
      %493 = vst.msk [vmem:[%s461 + $0x171] sm:$0xff] %vm405, %v404
      %v494 = vld [vmem:[#allocation2] sm:$0xff]
      %v495 = vld [vmem:[#allocation2 + $0x8] sm:$0xff]
      %v496 = vld [vmem:[#allocation2 + $0x18] sm:$0xff]
      %v497 = vld [vmem:[#allocation2 + $0x20] sm:$0xff]
      %v498 = vld [vmem:[#allocation2 + $0x30] sm:$0xff]
      %v499 = vld [vmem:[#allocation2 + $0x38] sm:$0xff]
      %v500 = vld [vmem:[#allocation2 + $0x48] sm:$0xff]
      %v501 = vld [vmem:[#allocation2 + $0x50] sm:$0xff]
      %v502 = vld [vmem:[#allocation2 + $0x60] sm:$0xff]
      %v503 = vld [vmem:[#allocation2 + $0x68] sm:$0xff]
      %v504 = vld [vmem:[#allocation2 + $0x78] sm:$0xff]
      %v505 = vld [vmem:[#allocation2 + $0x80] sm:$0xff]
      %v506 = vld [vmem:[#allocation2 + $0x90] sm:$0xff]
      %v507 = vld [vmem:[#allocation2 + $0x98] sm:$0xff]
      %v508 = vld [vmem:[#allocation2 + $0xa8] sm:$0xff]
      %v509 = vld [vmem:[#allocation2 + $0xb0] sm:$0xff]
      %v510 = vld [vmem:[#allocation2 + $0xc0] sm:$0xff]
      %v511 = vld [vmem:[#allocation2 + $0xc8] sm:$0xff]
      %v512 = vld [vmem:[#allocation2 + $0xd8] sm:$0xff]
      %v513 = vld [vmem:[#allocation2 + $0xe0] sm:$0xff]
      %v514 = vld [vmem:[#allocation2 + $0xf0] sm:$0xff]
      %v515 = vld [vmem:[#allocation2 + $0xf8] sm:$0xff]
      %v516 = vld [vmem:[#allocation2 + $0x108] sm:$0xff]
      %v517 = vld [vmem:[#allocation2 + $0x110] sm:$0xff]
      %v518 = vld [vmem:[#allocation2 + $0x120] sm:$0xff]
      %v519 = vld [vmem:[#allocation2 + $0x128] sm:$0xff]
      %v520 = vld [vmem:[#allocation2 + $0x138] sm:$0xff]
      %v521 = vld [vmem:[#allocation2 + $0x140] sm:$0xff]
      %v522 = vld [vmem:[#allocation2 + $0x150] sm:$0xff]
      %v523 = vld [vmem:[#allocation2 + $0x158] sm:$0xff]
      %v524 = vld [vmem:[#allocation2 + $0x168] sm:$0xff]
      %v525 = vld [vmem:[#allocation2 + $0x170] sm:$0xff]
      %v526 = vld [vmem:[%s3] sm:$0xff]
      %v527 = vld [vmem:[#allocation2 + $0x1] sm:$0xff]
      %v528 = vld [vmem:[#allocation2 + $0x9] sm:$0xff]
      %v529 = vld [vmem:[#allocation2 + $0x19] sm:$0xff]
      %v530 = vld [vmem:[#allocation2 + $0x21] sm:$0xff]
      %v531 = vld [vmem:[#allocation2 + $0x31] sm:$0xff]
      %v532 = vld [vmem:[#allocation2 + $0x39] sm:$0xff]
      %v533 = vld [vmem:[#allocation2 + $0x49] sm:$0xff]
      %v534 = vld [vmem:[#allocation2 + $0x51] sm:$0xff]
      %v535 = vld [vmem:[#allocation2 + $0x61] sm:$0xff]
      %v536 = vld [vmem:[#allocation2 + $0x69] sm:$0xff]
      %v537 = vld [vmem:[#allocation2 + $0x79] sm:$0xff]
      %v538 = vld [vmem:[#allocation2 + $0x81] sm:$0xff]
      %v539 = vld [vmem:[#allocation2 + $0x91] sm:$0xff]
      %v540 = vld [vmem:[#allocation2 + $0x99] sm:$0xff]
      %v541 = vld [vmem:[#allocation2 + $0xa9] sm:$0xff]
      %v542 = vld [vmem:[#allocation2 + $0xb1] sm:$0xff]
      %v543 = vld [vmem:[#allocation2 + $0xc1] sm:$0xff]
      %v544 = vld [vmem:[#allocation2 + $0xc9] sm:$0xff]
      %v545 = vld [vmem:[#allocation2 + $0xd9] sm:$0xff]
      %v546 = vld [vmem:[#allocation2 + $0xe1] sm:$0xff]
      %v547 = vld [vmem:[#allocation2 + $0xf1] sm:$0xff]
      %v548 = vld [vmem:[#allocation2 + $0xf9] sm:$0xff]
      %v549 = vld [vmem:[#allocation2 + $0x109] sm:$0xff]
      %v550 = vld [vmem:[#allocation2 + $0x111] sm:$0xff]
      %v551 = vld [vmem:[#allocation2 + $0x121] sm:$0xff]
      %v552 = vld [vmem:[#allocation2 + $0x129] sm:$0xff]
      %v553 = vld [vmem:[#allocation2 + $0x139] sm:$0xff]
      %v554 = vld [vmem:[#allocation2 + $0x141] sm:$0xff]
      %v555 = vld [vmem:[#allocation2 + $0x151] sm:$0xff]
      %v556 = vld [vmem:[#allocation2 + $0x159] sm:$0xff]
      %v557 = vld [vmem:[#allocation2 + $0x169] sm:$0xff]
      %v558 = vld [vmem:[#allocation2 + $0x171] sm:$0xff]
      %s559 = scalar_lea.vmem %s3, 8
      %v560 = vld [vmem:[%s559] sm:$0xff]
      %v562 = vsel %vm405, %v527, 0
      %v565 = vsel %vm405, %v528, 0
      %v568 = vsel %vm405, %v529, 0
      %v571 = vsel %vm405, %v530, 0
      %v574 = vsel %vm405, %v531, 0
      %v577 = vsel %vm405, %v532, 0
      %v580 = vsel %vm405, %v533, 0
      %v583 = vsel %vm405, %v534, 0
      %v586 = vsel %vm405, %v535, 0
      %v589 = vsel %vm405, %v536, 0
      %v592 = vsel %vm405, %v537, 0
      %v595 = vsel %vm405, %v538, 0
      %v598 = vsel %vm405, %v539, 0
      %v601 = vsel %vm405, %v540, 0
      %v604 = vsel %vm405, %v541, 0
      %v607 = vsel %vm405, %v542, 0
      %v610 = vsel %vm405, %v543, 0
      %v613 = vsel %vm405, %v544, 0
      %v616 = vsel %vm405, %v545, 0
      %v619 = vsel %vm405, %v546, 0
      %v622 = vsel %vm405, %v547, 0
      %v625 = vsel %vm405, %v548, 0
      %v628 = vsel %vm405, %v549, 0
      %v631 = vsel %vm405, %v550, 0
      %v634 = vsel %vm405, %v551, 0
      %v637 = vsel %vm405, %v552, 0
      %v640 = vsel %vm405, %v553, 0
      %v643 = vsel %vm405, %v554, 0
      %v646 = vsel %vm405, %v555, 0
      %v649 = vsel %vm405, %v556, 0
      %v652 = vsel %vm405, %v557, 0
      %v655 = vsel %vm405, %v558, 0
      %657 = vmatpush.msra.mxu0 0.0
      %658 = vmatpush.msra.mxu0 0.0
      %659 = vmatpush.msra.mxu0 0.0
      %660 = vmatpush.msra.mxu0 0.0
      %661 = vmatpush.msra.mxu0 0.0
      %662 = vmatpush.msra.mxu0 0.0
      %663 = vmatpush.msra.mxu0 0.0
      %664 = vmatpush.msra.mxu0 0.0
      %665 = vmatpush.msra.mxu0 0.0
      %666 = vmatpush.msra.mxu0 0.0
      %667 = vmatpush.msra.mxu0 0.0
      %668 = vmatpush.msra.mxu0 0.0
      %669 = vmatpush.msra.mxu0 0.0
      %670 = vmatpush.msra.mxu0 0.0
      %671 = vmatpush.msra.mxu0 0.0
      %672 = vmatpush.msra.mxu0 %v560
      %673 = vmatmul.f32.gmra.mxu0 %v562
      %v674 = vpop.f32.mrf.mxu0
      %v675 = vadd.f32 0.0, %v674
      %676 = vmatmul.f32.gmra.mxu0 %v565
      %v677 = vpop.f32.mrf.mxu0
      %v678 = vadd.f32 0.0, %v677
      %679 = vmatmul.f32.gmra.mxu0 %v568
      %v680 = vpop.f32.mrf.mxu0
      %v681 = vadd.f32 0.0, %v680
      %682 = vmatmul.f32.gmra.mxu0 %v571
      %v683 = vpop.f32.mrf.mxu0
      %v684 = vadd.f32 0.0, %v683
      %685 = vmatmul.f32.gmra.mxu0 %v574
      %v686 = vpop.f32.mrf.mxu0
      %v687 = vadd.f32 0.0, %v686
      %688 = vmatmul.f32.gmra.mxu0 %v577
      %v689 = vpop.f32.mrf.mxu0
      %v690 = vadd.f32 0.0, %v689
      %691 = vmatmul.f32.gmra.mxu0 %v580
      %v692 = vpop.f32.mrf.mxu0
      %v693 = vadd.f32 0.0, %v692
      %694 = vmatmul.f32.gmra.mxu0 %v583
      %v695 = vpop.f32.mrf.mxu0
      %v696 = vadd.f32 0.0, %v695
      %697 = vmatmul.f32.gmra.mxu0 %v586
      %v698 = vpop.f32.mrf.mxu0
      %v699 = vadd.f32 0.0, %v698
      %700 = vmatmul.f32.gmra.mxu0 %v589
      %v701 = vpop.f32.mrf.mxu0
      %v702 = vadd.f32 0.0, %v701
      %703 = vmatmul.f32.gmra.mxu0 %v592
      %v704 = vpop.f32.mrf.mxu0
      %v705 = vadd.f32 0.0, %v704
      %706 = vmatmul.f32.gmra.mxu0 %v595
      %v707 = vpop.f32.mrf.mxu0
      %v708 = vadd.f32 0.0, %v707
      %709 = vmatmul.f32.gmra.mxu0 %v598
      %v710 = vpop.f32.mrf.mxu0
      %v711 = vadd.f32 0.0, %v710
      %712 = vmatmul.f32.gmra.mxu0 %v601
      %v713 = vpop.f32.mrf.mxu0
      %v714 = vadd.f32 0.0, %v713
      %715 = vmatmul.f32.gmra.mxu0 %v604
      %v716 = vpop.f32.mrf.mxu0
      %v717 = vadd.f32 0.0, %v716
      %718 = vmatmul.f32.gmra.mxu0 %v607
      %v719 = vpop.f32.mrf.mxu0
      %v720 = vadd.f32 0.0, %v719
      %721 = vmatmul.f32.gmra.mxu0 %v610
      %v722 = vpop.f32.mrf.mxu0
      %v723 = vadd.f32 0.0, %v722
      %724 = vmatmul.f32.gmra.mxu0 %v613
      %v725 = vpop.f32.mrf.mxu0
      %v726 = vadd.f32 0.0, %v725
      %727 = vmatmul.f32.gmra.mxu0 %v616
      %v728 = vpop.f32.mrf.mxu0
      %v729 = vadd.f32 0.0, %v728
      %730 = vmatmul.f32.gmra.mxu0 %v619
      %v731 = vpop.f32.mrf.mxu0
      %v732 = vadd.f32 0.0, %v731
      %733 = vmatmul.f32.gmra.mxu0 %v622
      %v734 = vpop.f32.mrf.mxu0
      %v735 = vadd.f32 0.0, %v734
      %736 = vmatmul.f32.gmra.mxu0 %v625
      %v737 = vpop.f32.mrf.mxu0
      %v738 = vadd.f32 0.0, %v737
      %739 = vmatmul.f32.gmra.mxu0 %v628
      %v740 = vpop.f32.mrf.mxu0
      %v741 = vadd.f32 0.0, %v740
      %742 = vmatmul.f32.gmra.mxu0 %v631
      %v743 = vpop.f32.mrf.mxu0
      %v744 = vadd.f32 0.0, %v743
      %745 = vmatmul.f32.gmra.mxu0 %v634
      %v746 = vpop.f32.mrf.mxu0
      %v747 = vadd.f32 0.0, %v746
      %748 = vmatmul.f32.gmra.mxu0 %v637
      %v749 = vpop.f32.mrf.mxu0
      %v750 = vadd.f32 0.0, %v749
      %751 = vmatmul.f32.gmra.mxu0 %v640
      %v752 = vpop.f32.mrf.mxu0
      %v753 = vadd.f32 0.0, %v752
      %754 = vmatmul.f32.gmra.mxu0 %v643
      %v755 = vpop.f32.mrf.mxu0
      %v756 = vadd.f32 0.0, %v755
      %757 = vmatmul.f32.gmra.mxu0 %v646
      %v758 = vpop.f32.mrf.mxu0
      %v759 = vadd.f32 0.0, %v758
      %760 = vmatmul.f32.gmra.mxu0 %v649
      %v761 = vpop.f32.mrf.mxu0
      %v762 = vadd.f32 0.0, %v761
      %763 = vmatmul.f32.gmra.mxu0 %v652
      %v764 = vpop.f32.mrf.mxu0
      %v765 = vadd.f32 0.0, %v764
      %766 = vmatmul.f32.gmra.mxu0 %v655
      %v767 = vpop.f32.mrf.mxu0
      %v768 = vadd.f32 0.0, %v767
      %769 = vdwg.mxu0
      %v771 = vsel %vm405, %v494, 0
      %v774 = vsel %vm405, %v495, 0
      %v777 = vsel %vm405, %v496, 0
      %v780 = vsel %vm405, %v497, 0
      %v783 = vsel %vm405, %v498, 0
      %v786 = vsel %vm405, %v499, 0
      %v789 = vsel %vm405, %v500, 0
      %v792 = vsel %vm405, %v501, 0
      %v795 = vsel %vm405, %v502, 0
      %v798 = vsel %vm405, %v503, 0
      %v801 = vsel %vm405, %v504, 0
      %v804 = vsel %vm405, %v505, 0
      %v807 = vsel %vm405, %v506, 0
      %v810 = vsel %vm405, %v507, 0
      %v813 = vsel %vm405, %v508, 0
      %v816 = vsel %vm405, %v509, 0
      %v819 = vsel %vm405, %v510, 0
      %v822 = vsel %vm405, %v511, 0
      %v825 = vsel %vm405, %v512, 0
      %v828 = vsel %vm405, %v513, 0
      %v831 = vsel %vm405, %v514, 0
      %v834 = vsel %vm405, %v515, 0
      %v837 = vsel %vm405, %v516, 0
      %v840 = vsel %vm405, %v517, 0
      %v843 = vsel %vm405, %v518, 0
      %v846 = vsel %vm405, %v519, 0
      %v849 = vsel %vm405, %v520, 0
      %v852 = vsel %vm405, %v521, 0
      %v855 = vsel %vm405, %v522, 0
      %v858 = vsel %vm405, %v523, 0
      %v861 = vsel %vm405, %v524, 0
      %v864 = vsel %vm405, %v525, 0
      %866 = vmatpush.msra.mxu0 0.0
      %867 = vmatpush.msra.mxu0 0.0
      %868 = vmatpush.msra.mxu0 0.0
      %869 = vmatpush.msra.mxu0 0.0
      %870 = vmatpush.msra.mxu0 0.0
      %871 = vmatpush.msra.mxu0 0.0
      %872 = vmatpush.msra.mxu0 0.0
      %873 = vmatpush.msra.mxu0 0.0
      %874 = vmatpush.msra.mxu0 0.0
      %875 = vmatpush.msra.mxu0 0.0
      %876 = vmatpush.msra.mxu0 0.0
      %877 = vmatpush.msra.mxu0 0.0
      %878 = vmatpush.msra.mxu0 0.0
      %879 = vmatpush.msra.mxu0 0.0
      %880 = vmatpush.msra.mxu0 0.0
      %881 = vmatpush.msra.mxu0 %v526
      %882 = vmatmul.f32.gmra.mxu0 %v771
      %v883 = vpop.f32.mrf.mxu0
      %v884 = vadd.f32 %v675, %v883
      %885 = vmatmul.f32.gmra.mxu0 %v774
      %v886 = vpop.f32.mrf.mxu0
      %v887 = vadd.f32 %v678, %v886
      %888 = vmatmul.f32.gmra.mxu0 %v777
      %v889 = vpop.f32.mrf.mxu0
      %v890 = vadd.f32 %v681, %v889
      %891 = vmatmul.f32.gmra.mxu0 %v780
      %v892 = vpop.f32.mrf.mxu0
      %v893 = vadd.f32 %v684, %v892
      %894 = vmatmul.f32.gmra.mxu0 %v783
      %v895 = vpop.f32.mrf.mxu0
      %v896 = vadd.f32 %v687, %v895
      %897 = vmatmul.f32.gmra.mxu0 %v786
      %v898 = vpop.f32.mrf.mxu0
      %v899 = vadd.f32 %v690, %v898
      %900 = vmatmul.f32.gmra.mxu0 %v789
      %v901 = vpop.f32.mrf.mxu0
      %v902 = vadd.f32 %v693, %v901
      %903 = vmatmul.f32.gmra.mxu0 %v792
      %v904 = vpop.f32.mrf.mxu0
      %v905 = vadd.f32 %v696, %v904
      %906 = vmatmul.f32.gmra.mxu0 %v795
      %v907 = vpop.f32.mrf.mxu0
      %v908 = vadd.f32 %v699, %v907
      %909 = vmatmul.f32.gmra.mxu0 %v798
      %v910 = vpop.f32.mrf.mxu0
      %v911 = vadd.f32 %v702, %v910
      %912 = vmatmul.f32.gmra.mxu0 %v801
      %v913 = vpop.f32.mrf.mxu0
      %v914 = vadd.f32 %v705, %v913
      %915 = vmatmul.f32.gmra.mxu0 %v804
      %v916 = vpop.f32.mrf.mxu0
      %v917 = vadd.f32 %v708, %v916
      %918 = vmatmul.f32.gmra.mxu0 %v807
      %v919 = vpop.f32.mrf.mxu0
      %v920 = vadd.f32 %v711, %v919
      %921 = vmatmul.f32.gmra.mxu0 %v810
      %v922 = vpop.f32.mrf.mxu0
      %v923 = vadd.f32 %v714, %v922
      %924 = vmatmul.f32.gmra.mxu0 %v813
      %v925 = vpop.f32.mrf.mxu0
      %v926 = vadd.f32 %v717, %v925
      %927 = vmatmul.f32.gmra.mxu0 %v816
      %v928 = vpop.f32.mrf.mxu0
      %v929 = vadd.f32 %v720, %v928
      %930 = vmatmul.f32.gmra.mxu0 %v819
      %v931 = vpop.f32.mrf.mxu0
      %v932 = vadd.f32 %v723, %v931
      %933 = vmatmul.f32.gmra.mxu0 %v822
      %v934 = vpop.f32.mrf.mxu0
      %v935 = vadd.f32 %v726, %v934
      %936 = vmatmul.f32.gmra.mxu0 %v825
      %v937 = vpop.f32.mrf.mxu0
      %v938 = vadd.f32 %v729, %v937
      %939 = vmatmul.f32.gmra.mxu0 %v828
      %v940 = vpop.f32.mrf.mxu0
      %v941 = vadd.f32 %v732, %v940
      %942 = vmatmul.f32.gmra.mxu0 %v831
      %v943 = vpop.f32.mrf.mxu0
      %v944 = vadd.f32 %v735, %v943
      %945 = vmatmul.f32.gmra.mxu0 %v834
      %v946 = vpop.f32.mrf.mxu0
      %v947 = vadd.f32 %v738, %v946
      %948 = vmatmul.f32.gmra.mxu0 %v837
      %v949 = vpop.f32.mrf.mxu0
      %v950 = vadd.f32 %v741, %v949
      %951 = vmatmul.f32.gmra.mxu0 %v840
      %v952 = vpop.f32.mrf.mxu0
      %v953 = vadd.f32 %v744, %v952
      %954 = vmatmul.f32.gmra.mxu0 %v843
      %v955 = vpop.f32.mrf.mxu0
      %v956 = vadd.f32 %v747, %v955
      %957 = vmatmul.f32.gmra.mxu0 %v846
      %v958 = vpop.f32.mrf.mxu0
      %v959 = vadd.f32 %v750, %v958
      %960 = vmatmul.f32.gmra.mxu0 %v849
      %v961 = vpop.f32.mrf.mxu0
      %v962 = vadd.f32 %v753, %v961
      %963 = vmatmul.f32.gmra.mxu0 %v852
      %v964 = vpop.f32.mrf.mxu0
      %v965 = vadd.f32 %v756, %v964
      %966 = vmatmul.f32.gmra.mxu0 %v855
      %v967 = vpop.f32.mrf.mxu0
      %v968 = vadd.f32 %v759, %v967
      %969 = vmatmul.f32.gmra.mxu0 %v858
      %v970 = vpop.f32.mrf.mxu0
      %v971 = vadd.f32 %v762, %v970
      %972 = vmatmul.f32.gmra.mxu0 %v861
      %v973 = vpop.f32.mrf.mxu0
      %v974 = vadd.f32 %v765, %v973
      %975 = vmatmul.f32.gmra.mxu0 %v864
      %v976 = vpop.f32.mrf.mxu0
      %v977 = vadd.f32 %v768, %v976
      %978 = vdwg.mxu0
      %v979 = vld [vmem:[#allocation2 + $0x2] sm:$0xff]
      %v980 = vld [vmem:[#allocation2 + $0xa] sm:$0xff]
      %v981 = vld [vmem:[#allocation2 + $0x1a] sm:$0xff]
      %v982 = vld [vmem:[#allocation2 + $0x22] sm:$0xff]
      %v983 = vld [vmem:[#allocation2 + $0x32] sm:$0xff]
      %v984 = vld [vmem:[#allocation2 + $0x3a] sm:$0xff]
      %v985 = vld [vmem:[#allocation2 + $0x4a] sm:$0xff]
      %v986 = vld [vmem:[#allocation2 + $0x52] sm:$0xff]
      %v987 = vld [vmem:[#allocation2 + $0x62] sm:$0xff]
      %v988 = vld [vmem:[#allocation2 + $0x6a] sm:$0xff]
      %v989 = vld [vmem:[#allocation2 + $0x7a] sm:$0xff]
      %v990 = vld [vmem:[#allocation2 + $0x82] sm:$0xff]
      %v991 = vld [vmem:[#allocation2 + $0x92] sm:$0xff]
      %v992 = vld [vmem:[#allocation2 + $0x9a] sm:$0xff]
      %v993 = vld [vmem:[#allocation2 + $0xaa] sm:$0xff]
      %v994 = vld [vmem:[#allocation2 + $0xb2] sm:$0xff]
      %v995 = vld [vmem:[#allocation2 + $0xc2] sm:$0xff]
      %v996 = vld [vmem:[#allocation2 + $0xca] sm:$0xff]
      %v997 = vld [vmem:[#allocation2 + $0xda] sm:$0xff]
      %v998 = vld [vmem:[#allocation2 + $0xe2] sm:$0xff]
      %v999 = vld [vmem:[#allocation2 + $0xf2] sm:$0xff]
      %v1000 = vld [vmem:[#allocation2 + $0xfa] sm:$0xff]
      %v1001 = vld [vmem:[#allocation2 + $0x10a] sm:$0xff]
      %v1002 = vld [vmem:[#allocation2 + $0x112] sm:$0xff]
      %v1003 = vld [vmem:[#allocation2 + $0x122] sm:$0xff]
      %v1004 = vld [vmem:[#allocation2 + $0x12a] sm:$0xff]
      %v1005 = vld [vmem:[#allocation2 + $0x13a] sm:$0xff]
      %v1006 = vld [vmem:[#allocation2 + $0x142] sm:$0xff]
      %v1007 = vld [vmem:[#allocation2 + $0x152] sm:$0xff]
      %v1008 = vld [vmem:[#allocation2 + $0x15a] sm:$0xff]
      %v1009 = vld [vmem:[#allocation2 + $0x16a] sm:$0xff]
      %v1010 = vld [vmem:[#allocation2 + $0x172] sm:$0xff]
      %s1011 = scalar_lea.vmem %s3, 16
      %v1012 = vld [vmem:[%s1011] sm:$0xff]
      %v1014 = vsel %vm405, %v979, 0
      %v1017 = vsel %vm405, %v980, 0
      %v1020 = vsel %vm405, %v981, 0
      %v1023 = vsel %vm405, %v982, 0
      %v1026 = vsel %vm405, %v983, 0
      %v1029 = vsel %vm405, %v984, 0
      %v1032 = vsel %vm405, %v985, 0
      %v1035 = vsel %vm405, %v986, 0
      %v1038 = vsel %vm405, %v987, 0
      %v1041 = vsel %vm405, %v988, 0
      %v1044 = vsel %vm405, %v989, 0
      %v1047 = vsel %vm405, %v990, 0
      %v1050 = vsel %vm405, %v991, 0
      %v1053 = vsel %vm405, %v992, 0
      %v1056 = vsel %vm405, %v993, 0
      %v1059 = vsel %vm405, %v994, 0
      %v1062 = vsel %vm405, %v995, 0
      %v1065 = vsel %vm405, %v996, 0
      %v1068 = vsel %vm405, %v997, 0
      %v1071 = vsel %vm405, %v998, 0
      %v1074 = vsel %vm405, %v999, 0
      %v1077 = vsel %vm405, %v1000, 0
      %v1080 = vsel %vm405, %v1001, 0
      %v1083 = vsel %vm405, %v1002, 0
      %v1086 = vsel %vm405, %v1003, 0
      %v1089 = vsel %vm405, %v1004, 0
      %v1092 = vsel %vm405, %v1005, 0
      %v1095 = vsel %vm405, %v1006, 0
      %v1098 = vsel %vm405, %v1007, 0
      %v1101 = vsel %vm405, %v1008, 0
      %v1104 = vsel %vm405, %v1009, 0
      %v1107 = vsel %vm405, %v1010, 0
      %1109 = vmatpush.msra.mxu0 0.0
      %1110 = vmatpush.msra.mxu0 0.0
      %1111 = vmatpush.msra.mxu0 0.0
      %1112 = vmatpush.msra.mxu0 0.0
      %1113 = vmatpush.msra.mxu0 0.0
      %1114 = vmatpush.msra.mxu0 0.0
      %1115 = vmatpush.msra.mxu0 0.0
      %1116 = vmatpush.msra.mxu0 0.0
      %1117 = vmatpush.msra.mxu0 0.0
      %1118 = vmatpush.msra.mxu0 0.0
      %1119 = vmatpush.msra.mxu0 0.0
      %1120 = vmatpush.msra.mxu0 0.0
      %1121 = vmatpush.msra.mxu0 0.0
      %1122 = vmatpush.msra.mxu0 0.0
      %1123 = vmatpush.msra.mxu0 0.0
      %1124 = vmatpush.msra.mxu0 %v1012
      %1125 = vmatmul.f32.gmra.mxu0 %v1014
      %v1126 = vpop.f32.mrf.mxu0
      %v1127 = vadd.f32 0.0, %v1126
      %1128 = vmatmul.f32.gmra.mxu0 %v1017
      %v1129 = vpop.f32.mrf.mxu0
      %v1130 = vadd.f32 0.0, %v1129
      %1131 = vmatmul.f32.gmra.mxu0 %v1020
      %v1132 = vpop.f32.mrf.mxu0
      %v1133 = vadd.f32 0.0, %v1132
      %1134 = vmatmul.f32.gmra.mxu0 %v1023
      %v1135 = vpop.f32.mrf.mxu0
      %v1136 = vadd.f32 0.0, %v1135
      %1137 = vmatmul.f32.gmra.mxu0 %v1026
      %v1138 = vpop.f32.mrf.mxu0
      %v1139 = vadd.f32 0.0, %v1138
      %1140 = vmatmul.f32.gmra.mxu0 %v1029
      %v1141 = vpop.f32.mrf.mxu0
      %v1142 = vadd.f32 0.0, %v1141
      %1143 = vmatmul.f32.gmra.mxu0 %v1032
      %v1144 = vpop.f32.mrf.mxu0
      %v1145 = vadd.f32 0.0, %v1144
      %1146 = vmatmul.f32.gmra.mxu0 %v1035
      %v1147 = vpop.f32.mrf.mxu0
      %v1148 = vadd.f32 0.0, %v1147
      %1149 = vmatmul.f32.gmra.mxu0 %v1038
      %v1150 = vpop.f32.mrf.mxu0
      %v1151 = vadd.f32 0.0, %v1150
      %1152 = vmatmul.f32.gmra.mxu0 %v1041
      %v1153 = vpop.f32.mrf.mxu0
      %v1154 = vadd.f32 0.0, %v1153
      %1155 = vmatmul.f32.gmra.mxu0 %v1044
      %v1156 = vpop.f32.mrf.mxu0
      %v1157 = vadd.f32 0.0, %v1156
      %1158 = vmatmul.f32.gmra.mxu0 %v1047
      %v1159 = vpop.f32.mrf.mxu0
      %v1160 = vadd.f32 0.0, %v1159
      %1161 = vmatmul.f32.gmra.mxu0 %v1050
      %v1162 = vpop.f32.mrf.mxu0
      %v1163 = vadd.f32 0.0, %v1162
      %1164 = vmatmul.f32.gmra.mxu0 %v1053
      %v1165 = vpop.f32.mrf.mxu0
      %v1166 = vadd.f32 0.0, %v1165
      %1167 = vmatmul.f32.gmra.mxu0 %v1056
      %v1168 = vpop.f32.mrf.mxu0
      %v1169 = vadd.f32 0.0, %v1168
      %1170 = vmatmul.f32.gmra.mxu0 %v1059
      %v1171 = vpop.f32.mrf.mxu0
      %v1172 = vadd.f32 0.0, %v1171
      %1173 = vmatmul.f32.gmra.mxu0 %v1062
      %v1174 = vpop.f32.mrf.mxu0
      %v1175 = vadd.f32 0.0, %v1174
      %1176 = vmatmul.f32.gmra.mxu0 %v1065
      %v1177 = vpop.f32.mrf.mxu0
      %v1178 = vadd.f32 0.0, %v1177
      %1179 = vmatmul.f32.gmra.mxu0 %v1068
      %v1180 = vpop.f32.mrf.mxu0
      %v1181 = vadd.f32 0.0, %v1180
      %1182 = vmatmul.f32.gmra.mxu0 %v1071
      %v1183 = vpop.f32.mrf.mxu0
      %v1184 = vadd.f32 0.0, %v1183
      %1185 = vmatmul.f32.gmra.mxu0 %v1074
      %v1186 = vpop.f32.mrf.mxu0
      %v1187 = vadd.f32 0.0, %v1186
      %1188 = vmatmul.f32.gmra.mxu0 %v1077
      %v1189 = vpop.f32.mrf.mxu0
      %v1190 = vadd.f32 0.0, %v1189
      %1191 = vmatmul.f32.gmra.mxu0 %v1080
      %v1192 = vpop.f32.mrf.mxu0
      %v1193 = vadd.f32 0.0, %v1192
      %1194 = vmatmul.f32.gmra.mxu0 %v1083
      %v1195 = vpop.f32.mrf.mxu0
      %v1196 = vadd.f32 0.0, %v1195
      %1197 = vmatmul.f32.gmra.mxu0 %v1086
      %v1198 = vpop.f32.mrf.mxu0
      %v1199 = vadd.f32 0.0, %v1198
      %1200 = vmatmul.f32.gmra.mxu0 %v1089
      %v1201 = vpop.f32.mrf.mxu0
      %v1202 = vadd.f32 0.0, %v1201
      %1203 = vmatmul.f32.gmra.mxu0 %v1092
      %v1204 = vpop.f32.mrf.mxu0
      %v1205 = vadd.f32 0.0, %v1204
      %1206 = vmatmul.f32.gmra.mxu0 %v1095
      %v1207 = vpop.f32.mrf.mxu0
      %v1208 = vadd.f32 0.0, %v1207
      %1209 = vmatmul.f32.gmra.mxu0 %v1098
      %v1210 = vpop.f32.mrf.mxu0
      %v1211 = vadd.f32 0.0, %v1210
      %1212 = vmatmul.f32.gmra.mxu0 %v1101
      %v1213 = vpop.f32.mrf.mxu0
      %v1214 = vadd.f32 0.0, %v1213
      %1215 = vmatmul.f32.gmra.mxu0 %v1104
      %v1216 = vpop.f32.mrf.mxu0
      %v1217 = vadd.f32 0.0, %v1216
      %1218 = vmatmul.f32.gmra.mxu0 %v1107
      %v1219 = vpop.f32.mrf.mxu0
      %v1220 = vadd.f32 0.0, %v1219
      %1221 = vdwg.mxu0
      %v1222 = vadd.f32 %v884, %v1127
      %v1223 = vadd.f32 %v887, %v1130
      %v1224 = vadd.f32 %v890, %v1133
      %v1225 = vadd.f32 %v893, %v1136
      %v1226 = vadd.f32 %v896, %v1139
      %v1227 = vadd.f32 %v899, %v1142
      %v1228 = vadd.f32 %v902, %v1145
      %v1229 = vadd.f32 %v905, %v1148
      %v1230 = vadd.f32 %v908, %v1151
      %v1231 = vadd.f32 %v911, %v1154
      %v1232 = vadd.f32 %v914, %v1157
      %v1233 = vadd.f32 %v917, %v1160
      %v1234 = vadd.f32 %v920, %v1163
      %v1235 = vadd.f32 %v923, %v1166
      %v1236 = vadd.f32 %v926, %v1169
      %v1237 = vadd.f32 %v929, %v1172
      %v1238 = vadd.f32 %v932, %v1175
      %v1239 = vadd.f32 %v935, %v1178
      %v1240 = vadd.f32 %v938, %v1181
      %v1241 = vadd.f32 %v941, %v1184
      %v1242 = vadd.f32 %v944, %v1187
      %v1243 = vadd.f32 %v947, %v1190
      %v1244 = vadd.f32 %v950, %v1193
      %v1245 = vadd.f32 %v953, %v1196
      %v1246 = vadd.f32 %v956, %v1199
      %v1247 = vadd.f32 %v959, %v1202
      %v1248 = vadd.f32 %v962, %v1205
      %v1249 = vadd.f32 %v965, %v1208
      %v1250 = vadd.f32 %v968, %v1211
      %v1251 = vadd.f32 %v971, %v1214
      %v1252 = vadd.f32 %v974, %v1217
      %v1253 = vadd.f32 %v977, %v1220
      %v1254 = vld [vmem:[%s461] sm:$0xff]
      %v1255 = vld [vmem:[%s461 + $0x8] sm:$0xff]
      %v1256 = vld [vmem:[%s461 + $0x18] sm:$0xff]
      %v1257 = vld [vmem:[%s461 + $0x20] sm:$0xff]
      %v1258 = vld [vmem:[%s461 + $0x30] sm:$0xff]
      %v1259 = vld [vmem:[%s461 + $0x38] sm:$0xff]
      %v1260 = vld [vmem:[%s461 + $0x48] sm:$0xff]
      %v1261 = vld [vmem:[%s461 + $0x50] sm:$0xff]
      %v1262 = vld [vmem:[%s461 + $0x60] sm:$0xff]
      %v1263 = vld [vmem:[%s461 + $0x68] sm:$0xff]
      %v1264 = vld [vmem:[%s461 + $0x78] sm:$0xff]
      %v1265 = vld [vmem:[%s461 + $0x80] sm:$0xff]
      %v1266 = vld [vmem:[%s461 + $0x90] sm:$0xff]
      %v1267 = vld [vmem:[%s461 + $0x98] sm:$0xff]
      %v1268 = vld [vmem:[%s461 + $0xa8] sm:$0xff]
      %v1269 = vld [vmem:[%s461 + $0xb0] sm:$0xff]
      %v1270 = vld [vmem:[%s461 + $0xc0] sm:$0xff]
      %v1271 = vld [vmem:[%s461 + $0xc8] sm:$0xff]
      %v1272 = vld [vmem:[%s461 + $0xd8] sm:$0xff]
      %v1273 = vld [vmem:[%s461 + $0xe0] sm:$0xff]
      %v1274 = vld [vmem:[%s461 + $0xf0] sm:$0xff]
      %v1275 = vld [vmem:[%s461 + $0xf8] sm:$0xff]
      %v1276 = vld [vmem:[%s461 + $0x108] sm:$0xff]
      %v1277 = vld [vmem:[%s461 + $0x110] sm:$0xff]
      %v1278 = vld [vmem:[%s461 + $0x120] sm:$0xff]
      %v1279 = vld [vmem:[%s461 + $0x128] sm:$0xff]
      %v1280 = vld [vmem:[%s461 + $0x138] sm:$0xff]
      %v1281 = vld [vmem:[%s461 + $0x140] sm:$0xff]
      %v1282 = vld [vmem:[%s461 + $0x150] sm:$0xff]
      %v1283 = vld [vmem:[%s461 + $0x158] sm:$0xff]
      %v1284 = vld [vmem:[%s461 + $0x168] sm:$0xff]
      %v1285 = vld [vmem:[%s461 + $0x170] sm:$0xff]
      %s1286 = scalar_lea.vmem %s3, 24
      %v1287 = vld [vmem:[%s1286] sm:$0xff]
      %v1289 = vsel %vm405, %v1254, 0
      %v1292 = vsel %vm405, %v1255, 0
      %v1295 = vsel %vm405, %v1256, 0
      %v1298 = vsel %vm405, %v1257, 0
      %v1301 = vsel %vm405, %v1258, 0
      %v1304 = vsel %vm405, %v1259, 0
      %v1307 = vsel %vm405, %v1260, 0
      %v1310 = vsel %vm405, %v1261, 0
      %v1313 = vsel %vm405, %v1262, 0
      %v1316 = vsel %vm405, %v1263, 0
      %v1319 = vsel %vm405, %v1264, 0
      %v1322 = vsel %vm405, %v1265, 0
      %v1325 = vsel %vm405, %v1266, 0
      %v1328 = vsel %vm405, %v1267, 0
      %v1331 = vsel %vm405, %v1268, 0
      %v1334 = vsel %vm405, %v1269, 0
      %v1337 = vsel %vm405, %v1270, 0
      %v1340 = vsel %vm405, %v1271, 0
      %v1343 = vsel %vm405, %v1272, 0
      %v1346 = vsel %vm405, %v1273, 0
      %v1349 = vsel %vm405, %v1274, 0
      %v1352 = vsel %vm405, %v1275, 0
      %v1355 = vsel %vm405, %v1276, 0
      %v1358 = vsel %vm405, %v1277, 0
      %v1361 = vsel %vm405, %v1278, 0
      %v1364 = vsel %vm405, %v1279, 0
      %v1367 = vsel %vm405, %v1280, 0
      %v1370 = vsel %vm405, %v1281, 0
      %v1373 = vsel %vm405, %v1282, 0
      %v1376 = vsel %vm405, %v1283, 0
      %v1379 = vsel %vm405, %v1284, 0
      %v1382 = vsel %vm405, %v1285, 0
      %1384 = vmatpush.msra.mxu0 0.0
      %1385 = vmatpush.msra.mxu0 0.0
      %1386 = vmatpush.msra.mxu0 0.0
      %1387 = vmatpush.msra.mxu0 0.0
      %1388 = vmatpush.msra.mxu0 0.0
      %1389 = vmatpush.msra.mxu0 0.0
      %1390 = vmatpush.msra.mxu0 0.0
      %1391 = vmatpush.msra.mxu0 0.0
      %1392 = vmatpush.msra.mxu0 0.0
      %1393 = vmatpush.msra.mxu0 0.0
      %1394 = vmatpush.msra.mxu0 0.0
      %1395 = vmatpush.msra.mxu0 0.0
      %1396 = vmatpush.msra.mxu0 0.0
      %1397 = vmatpush.msra.mxu0 0.0
      %1398 = vmatpush.msra.mxu0 0.0
      %1399 = vmatpush.msra.mxu0 %v1287
      %1400 = vmatmul.f32.gmra.mxu0 %v1289
      %v1401 = vpop.f32.mrf.mxu0
      %v1402 = vadd.f32 0.0, %v1401
      %1403 = vmatmul.f32.gmra.mxu0 %v1292
      %v1404 = vpop.f32.mrf.mxu0
      %v1405 = vadd.f32 0.0, %v1404
      %1406 = vmatmul.f32.gmra.mxu0 %v1295
      %v1407 = vpop.f32.mrf.mxu0
      %v1408 = vadd.f32 0.0, %v1407
      %1409 = vmatmul.f32.gmra.mxu0 %v1298
      %v1410 = vpop.f32.mrf.mxu0
      %v1411 = vadd.f32 0.0, %v1410
      %1412 = vmatmul.f32.gmra.mxu0 %v1301
      %v1413 = vpop.f32.mrf.mxu0
      %v1414 = vadd.f32 0.0, %v1413
      %1415 = vmatmul.f32.gmra.mxu0 %v1304
      %v1416 = vpop.f32.mrf.mxu0
      %v1417 = vadd.f32 0.0, %v1416
      %1418 = vmatmul.f32.gmra.mxu0 %v1307
      %v1419 = vpop.f32.mrf.mxu0
      %v1420 = vadd.f32 0.0, %v1419
      %1421 = vmatmul.f32.gmra.mxu0 %v1310
      %v1422 = vpop.f32.mrf.mxu0
      %v1423 = vadd.f32 0.0, %v1422
      %1424 = vmatmul.f32.gmra.mxu0 %v1313
      %v1425 = vpop.f32.mrf.mxu0
      %v1426 = vadd.f32 0.0, %v1425
      %1427 = vmatmul.f32.gmra.mxu0 %v1316
      %v1428 = vpop.f32.mrf.mxu0
      %v1429 = vadd.f32 0.0, %v1428
      %1430 = vmatmul.f32.gmra.mxu0 %v1319
      %v1431 = vpop.f32.mrf.mxu0
      %v1432 = vadd.f32 0.0, %v1431
      %1433 = vmatmul.f32.gmra.mxu0 %v1322
      %v1434 = vpop.f32.mrf.mxu0
      %v1435 = vadd.f32 0.0, %v1434
      %1436 = vmatmul.f32.gmra.mxu0 %v1325
      %v1437 = vpop.f32.mrf.mxu0
      %v1438 = vadd.f32 0.0, %v1437
      %1439 = vmatmul.f32.gmra.mxu0 %v1328
      %v1440 = vpop.f32.mrf.mxu0
      %v1441 = vadd.f32 0.0, %v1440
      %1442 = vmatmul.f32.gmra.mxu0 %v1331
      %v1443 = vpop.f32.mrf.mxu0
      %v1444 = vadd.f32 0.0, %v1443
      %1445 = vmatmul.f32.gmra.mxu0 %v1334
      %v1446 = vpop.f32.mrf.mxu0
      %v1447 = vadd.f32 0.0, %v1446
      %1448 = vmatmul.f32.gmra.mxu0 %v1337
      %v1449 = vpop.f32.mrf.mxu0
      %v1450 = vadd.f32 0.0, %v1449
      %1451 = vmatmul.f32.gmra.mxu0 %v1340
      %v1452 = vpop.f32.mrf.mxu0
      %v1453 = vadd.f32 0.0, %v1452
      %1454 = vmatmul.f32.gmra.mxu0 %v1343
      %v1455 = vpop.f32.mrf.mxu0
      %v1456 = vadd.f32 0.0, %v1455
      %1457 = vmatmul.f32.gmra.mxu0 %v1346
      %v1458 = vpop.f32.mrf.mxu0
      %v1459 = vadd.f32 0.0, %v1458
      %1460 = vmatmul.f32.gmra.mxu0 %v1349
      %v1461 = vpop.f32.mrf.mxu0
      %v1462 = vadd.f32 0.0, %v1461
      %1463 = vmatmul.f32.gmra.mxu0 %v1352
      %v1464 = vpop.f32.mrf.mxu0
      %v1465 = vadd.f32 0.0, %v1464
      %1466 = vmatmul.f32.gmra.mxu0 %v1355
      %v1467 = vpop.f32.mrf.mxu0
      %v1468 = vadd.f32 0.0, %v1467
      %1469 = vmatmul.f32.gmra.mxu0 %v1358
      %v1470 = vpop.f32.mrf.mxu0
      %v1471 = vadd.f32 0.0, %v1470
      %1472 = vmatmul.f32.gmra.mxu0 %v1361
      %v1473 = vpop.f32.mrf.mxu0
      %v1474 = vadd.f32 0.0, %v1473
      %1475 = vmatmul.f32.gmra.mxu0 %v1364
      %v1476 = vpop.f32.mrf.mxu0
      %v1477 = vadd.f32 0.0, %v1476
      %1478 = vmatmul.f32.gmra.mxu0 %v1367
      %v1479 = vpop.f32.mrf.mxu0
      %v1480 = vadd.f32 0.0, %v1479
      %1481 = vmatmul.f32.gmra.mxu0 %v1370
      %v1482 = vpop.f32.mrf.mxu0
      %v1483 = vadd.f32 0.0, %v1482
      %1484 = vmatmul.f32.gmra.mxu0 %v1373
      %v1485 = vpop.f32.mrf.mxu0
      %v1486 = vadd.f32 0.0, %v1485
      %1487 = vmatmul.f32.gmra.mxu0 %v1376
      %v1488 = vpop.f32.mrf.mxu0
      %v1489 = vadd.f32 0.0, %v1488
      %1490 = vmatmul.f32.gmra.mxu0 %v1379
      %v1491 = vpop.f32.mrf.mxu0
      %v1492 = vadd.f32 0.0, %v1491
      %1493 = vmatmul.f32.gmra.mxu0 %v1382
      %v1494 = vpop.f32.mrf.mxu0
      %v1495 = vadd.f32 0.0, %v1494
      %1496 = vdwg.mxu0
      %v1497 = vadd.f32 %v1222, %v1402
      %v1498 = vadd.f32 %v1223, %v1405
      %v1499 = vadd.f32 %v1224, %v1408
      %v1500 = vadd.f32 %v1225, %v1411
      %v1501 = vadd.f32 %v1226, %v1414
      %v1502 = vadd.f32 %v1227, %v1417
      %v1503 = vadd.f32 %v1228, %v1420
      %v1504 = vadd.f32 %v1229, %v1423
      %v1505 = vadd.f32 %v1230, %v1426
      %v1506 = vadd.f32 %v1231, %v1429
      %v1507 = vadd.f32 %v1232, %v1432
      %v1508 = vadd.f32 %v1233, %v1435
      %v1509 = vadd.f32 %v1234, %v1438
      %v1510 = vadd.f32 %v1235, %v1441
      %v1511 = vadd.f32 %v1236, %v1444
      %v1512 = vadd.f32 %v1237, %v1447
      %v1513 = vadd.f32 %v1238, %v1450
      %v1514 = vadd.f32 %v1239, %v1453
      %v1515 = vadd.f32 %v1240, %v1456
      %v1516 = vadd.f32 %v1241, %v1459
      %v1517 = vadd.f32 %v1242, %v1462
      %v1518 = vadd.f32 %v1243, %v1465
      %v1519 = vadd.f32 %v1244, %v1468
      %v1520 = vadd.f32 %v1245, %v1471
      %v1521 = vadd.f32 %v1246, %v1474
      %v1522 = vadd.f32 %v1247, %v1477
      %v1523 = vadd.f32 %v1248, %v1480
      %v1524 = vadd.f32 %v1249, %v1483
      %v1525 = vadd.f32 %v1250, %v1486
      %v1526 = vadd.f32 %v1251, %v1489
      %v1527 = vadd.f32 %v1252, %v1492
      %v1528 = vadd.f32 %v1253, %v1495
      %v1529 = vld [vmem:[%s461 + $0x1] sm:$0xff]
      %v1530 = vld [vmem:[%s461 + $0x9] sm:$0xff]
      %v1531 = vld [vmem:[%s461 + $0x19] sm:$0xff]
      %v1532 = vld [vmem:[%s461 + $0x21] sm:$0xff]
      %v1533 = vld [vmem:[%s461 + $0x31] sm:$0xff]
      %v1534 = vld [vmem:[%s461 + $0x39] sm:$0xff]
      %v1535 = vld [vmem:[%s461 + $0x49] sm:$0xff]
      %v1536 = vld [vmem:[%s461 + $0x51] sm:$0xff]
      %v1537 = vld [vmem:[%s461 + $0x61] sm:$0xff]
      %v1538 = vld [vmem:[%s461 + $0x69] sm:$0xff]
      %v1539 = vld [vmem:[%s461 + $0x79] sm:$0xff]
      %v1540 = vld [vmem:[%s461 + $0x81] sm:$0xff]
      %v1541 = vld [vmem:[%s461 + $0x91] sm:$0xff]
      %v1542 = vld [vmem:[%s461 + $0x99] sm:$0xff]
      %v1543 = vld [vmem:[%s461 + $0xa9] sm:$0xff]
      %v1544 = vld [vmem:[%s461 + $0xb1] sm:$0xff]
      %v1545 = vld [vmem:[%s461 + $0xc1] sm:$0xff]
      %v1546 = vld [vmem:[%s461 + $0xc9] sm:$0xff]
      %v1547 = vld [vmem:[%s461 + $0xd9] sm:$0xff]
      %v1548 = vld [vmem:[%s461 + $0xe1] sm:$0xff]
      %v1549 = vld [vmem:[%s461 + $0xf1] sm:$0xff]
      %v1550 = vld [vmem:[%s461 + $0xf9] sm:$0xff]
      %v1551 = vld [vmem:[%s461 + $0x109] sm:$0xff]
      %v1552 = vld [vmem:[%s461 + $0x111] sm:$0xff]
      %v1553 = vld [vmem:[%s461 + $0x121] sm:$0xff]
      %v1554 = vld [vmem:[%s461 + $0x129] sm:$0xff]
      %v1555 = vld [vmem:[%s461 + $0x139] sm:$0xff]
      %v1556 = vld [vmem:[%s461 + $0x141] sm:$0xff]
      %v1557 = vld [vmem:[%s461 + $0x151] sm:$0xff]
      %v1558 = vld [vmem:[%s461 + $0x159] sm:$0xff]
      %v1559 = vld [vmem:[%s461 + $0x169] sm:$0xff]
      %v1560 = vld [vmem:[%s461 + $0x171] sm:$0xff]
      %s1561 = scalar_lea.vmem %s3, 32
      %v1562 = vld [vmem:[%s1561] sm:$0xff]
      %v1564 = vsel %vm405, %v1529, 0
      %v1567 = vsel %vm405, %v1530, 0
      %v1570 = vsel %vm405, %v1531, 0
      %v1573 = vsel %vm405, %v1532, 0
      %v1576 = vsel %vm405, %v1533, 0
      %v1579 = vsel %vm405, %v1534, 0
      %v1582 = vsel %vm405, %v1535, 0
      %v1585 = vsel %vm405, %v1536, 0
      %v1588 = vsel %vm405, %v1537, 0
      %v1591 = vsel %vm405, %v1538, 0
      %v1594 = vsel %vm405, %v1539, 0
      %v1597 = vsel %vm405, %v1540, 0
      %v1600 = vsel %vm405, %v1541, 0
      %v1603 = vsel %vm405, %v1542, 0
      %v1606 = vsel %vm405, %v1543, 0
      %v1609 = vsel %vm405, %v1544, 0
      %v1612 = vsel %vm405, %v1545, 0
      %v1615 = vsel %vm405, %v1546, 0
      %v1618 = vsel %vm405, %v1547, 0
      %v1621 = vsel %vm405, %v1548, 0
      %v1624 = vsel %vm405, %v1549, 0
      %v1627 = vsel %vm405, %v1550, 0
      %v1630 = vsel %vm405, %v1551, 0
      %v1633 = vsel %vm405, %v1552, 0
      %v1636 = vsel %vm405, %v1553, 0
      %v1639 = vsel %vm405, %v1554, 0
      %v1642 = vsel %vm405, %v1555, 0
      %v1645 = vsel %vm405, %v1556, 0
      %v1648 = vsel %vm405, %v1557, 0
      %v1651 = vsel %vm405, %v1558, 0
      %v1654 = vsel %vm405, %v1559, 0
      %v1657 = vsel %vm405, %v1560, 0
      %1659 = vmatpush.msra.mxu0 0.0
      %1660 = vmatpush.msra.mxu0 0.0
      %1661 = vmatpush.msra.mxu0 0.0
      %1662 = vmatpush.msra.mxu0 0.0
      %1663 = vmatpush.msra.mxu0 0.0
      %1664 = vmatpush.msra.mxu0 0.0
      %1665 = vmatpush.msra.mxu0 0.0
      %1666 = vmatpush.msra.mxu0 0.0
      %1667 = vmatpush.msra.mxu0 0.0
      %1668 = vmatpush.msra.mxu0 0.0
      %1669 = vmatpush.msra.mxu0 0.0
      %1670 = vmatpush.msra.mxu0 0.0
      %1671 = vmatpush.msra.mxu0 0.0
      %1672 = vmatpush.msra.mxu0 0.0
      %1673 = vmatpush.msra.mxu0 0.0
      %1674 = vmatpush.msra.mxu0 %v1562
      %1675 = vmatmul.f32.gmra.mxu0 %v1564
      %v1676 = vpop.f32.mrf.mxu0
      %v1677 = vadd.f32 0.0, %v1676
      %1678 = vmatmul.f32.gmra.mxu0 %v1567
      %v1679 = vpop.f32.mrf.mxu0
      %v1680 = vadd.f32 0.0, %v1679
      %1681 = vmatmul.f32.gmra.mxu0 %v1570
      %v1682 = vpop.f32.mrf.mxu0
      %v1683 = vadd.f32 0.0, %v1682
      %1684 = vmatmul.f32.gmra.mxu0 %v1573
      %v1685 = vpop.f32.mrf.mxu0
      %v1686 = vadd.f32 0.0, %v1685
      %1687 = vmatmul.f32.gmra.mxu0 %v1576
      %v1688 = vpop.f32.mrf.mxu0
      %v1689 = vadd.f32 0.0, %v1688
      %1690 = vmatmul.f32.gmra.mxu0 %v1579
      %v1691 = vpop.f32.mrf.mxu0
      %v1692 = vadd.f32 0.0, %v1691
      %1693 = vmatmul.f32.gmra.mxu0 %v1582
      %v1694 = vpop.f32.mrf.mxu0
      %v1695 = vadd.f32 0.0, %v1694
      %1696 = vmatmul.f32.gmra.mxu0 %v1585
      %v1697 = vpop.f32.mrf.mxu0
      %v1698 = vadd.f32 0.0, %v1697
      %1699 = vmatmul.f32.gmra.mxu0 %v1588
      %v1700 = vpop.f32.mrf.mxu0
      %v1701 = vadd.f32 0.0, %v1700
      %1702 = vmatmul.f32.gmra.mxu0 %v1591
      %v1703 = vpop.f32.mrf.mxu0
      %v1704 = vadd.f32 0.0, %v1703
      %1705 = vmatmul.f32.gmra.mxu0 %v1594
      %v1706 = vpop.f32.mrf.mxu0
      %v1707 = vadd.f32 0.0, %v1706
      %1708 = vmatmul.f32.gmra.mxu0 %v1597
      %v1709 = vpop.f32.mrf.mxu0
      %v1710 = vadd.f32 0.0, %v1709
      %1711 = vmatmul.f32.gmra.mxu0 %v1600
      %v1712 = vpop.f32.mrf.mxu0
      %v1713 = vadd.f32 0.0, %v1712
      %1714 = vmatmul.f32.gmra.mxu0 %v1603
      %v1715 = vpop.f32.mrf.mxu0
      %v1716 = vadd.f32 0.0, %v1715
      %1717 = vmatmul.f32.gmra.mxu0 %v1606
      %v1718 = vpop.f32.mrf.mxu0
      %v1719 = vadd.f32 0.0, %v1718
      %1720 = vmatmul.f32.gmra.mxu0 %v1609
      %v1721 = vpop.f32.mrf.mxu0
      %v1722 = vadd.f32 0.0, %v1721
      %1723 = vmatmul.f32.gmra.mxu0 %v1612
      %v1724 = vpop.f32.mrf.mxu0
      %v1725 = vadd.f32 0.0, %v1724
      %1726 = vmatmul.f32.gmra.mxu0 %v1615
      %v1727 = vpop.f32.mrf.mxu0
      %v1728 = vadd.f32 0.0, %v1727
      %1729 = vmatmul.f32.gmra.mxu0 %v1618
      %v1730 = vpop.f32.mrf.mxu0
      %v1731 = vadd.f32 0.0, %v1730
      %1732 = vmatmul.f32.gmra.mxu0 %v1621
      %v1733 = vpop.f32.mrf.mxu0
      %v1734 = vadd.f32 0.0, %v1733
      %1735 = vmatmul.f32.gmra.mxu0 %v1624
      %v1736 = vpop.f32.mrf.mxu0
      %v1737 = vadd.f32 0.0, %v1736
      %1738 = vmatmul.f32.gmra.mxu0 %v1627
      %v1739 = vpop.f32.mrf.mxu0
      %v1740 = vadd.f32 0.0, %v1739
      %1741 = vmatmul.f32.gmra.mxu0 %v1630
      %v1742 = vpop.f32.mrf.mxu0
      %v1743 = vadd.f32 0.0, %v1742
      %1744 = vmatmul.f32.gmra.mxu0 %v1633
      %v1745 = vpop.f32.mrf.mxu0
      %v1746 = vadd.f32 0.0, %v1745
      %1747 = vmatmul.f32.gmra.mxu0 %v1636
      %v1748 = vpop.f32.mrf.mxu0
      %v1749 = vadd.f32 0.0, %v1748
      %1750 = vmatmul.f32.gmra.mxu0 %v1639
      %v1751 = vpop.f32.mrf.mxu0
      %v1752 = vadd.f32 0.0, %v1751
      %1753 = vmatmul.f32.gmra.mxu0 %v1642
      %v1754 = vpop.f32.mrf.mxu0
      %v1755 = vadd.f32 0.0, %v1754
      %1756 = vmatmul.f32.gmra.mxu0 %v1645
      %v1757 = vpop.f32.mrf.mxu0
      %v1758 = vadd.f32 0.0, %v1757
      %1759 = vmatmul.f32.gmra.mxu0 %v1648
      %v1760 = vpop.f32.mrf.mxu0
      %v1761 = vadd.f32 0.0, %v1760
      %1762 = vmatmul.f32.gmra.mxu0 %v1651
      %v1763 = vpop.f32.mrf.mxu0
      %v1764 = vadd.f32 0.0, %v1763
      %1765 = vmatmul.f32.gmra.mxu0 %v1654
      %v1766 = vpop.f32.mrf.mxu0
      %v1767 = vadd.f32 0.0, %v1766
      %1768 = vmatmul.f32.gmra.mxu0 %v1657
      %v1769 = vpop.f32.mrf.mxu0
      %v1770 = vadd.f32 0.0, %v1769
      %1771 = vdwg.mxu0
      %v1772 = vadd.f32 %v1497, %v1677
      %v1773 = vadd.f32 %v1498, %v1680
      %v1774 = vadd.f32 %v1499, %v1683
      %v1775 = vadd.f32 %v1500, %v1686
      %v1776 = vadd.f32 %v1501, %v1689
      %v1777 = vadd.f32 %v1502, %v1692
      %v1778 = vadd.f32 %v1503, %v1695
      %v1779 = vadd.f32 %v1504, %v1698
      %v1780 = vadd.f32 %v1505, %v1701
      %v1781 = vadd.f32 %v1506, %v1704
      %v1782 = vadd.f32 %v1507, %v1707
      %v1783 = vadd.f32 %v1508, %v1710
      %v1784 = vadd.f32 %v1509, %v1713
      %v1785 = vadd.f32 %v1510, %v1716
      %v1786 = vadd.f32 %v1511, %v1719
      %v1787 = vadd.f32 %v1512, %v1722
      %v1788 = vadd.f32 %v1513, %v1725
      %v1789 = vadd.f32 %v1514, %v1728
      %v1790 = vadd.f32 %v1515, %v1731
      %v1791 = vadd.f32 %v1516, %v1734
      %v1792 = vadd.f32 %v1517, %v1737
      %v1793 = vadd.f32 %v1518, %v1740
      %v1794 = vadd.f32 %v1519, %v1743
      %v1795 = vadd.f32 %v1520, %v1746
      %v1796 = vadd.f32 %v1521, %v1749
      %v1797 = vadd.f32 %v1522, %v1752
      %v1798 = vadd.f32 %v1523, %v1755
      %v1799 = vadd.f32 %v1524, %v1758
      %v1800 = vadd.f32 %v1525, %v1761
      %v1801 = vadd.f32 %v1526, %v1764
      %v1802 = vadd.f32 %v1527, %v1767
      %v1803 = vadd.f32 %v1528, %v1770
      %v1804 = vld [vmem:[%s461 + $0x2] sm:$0xff]
      %v1805 = vld [vmem:[%s461 + $0xa] sm:$0xff]
      %v1806 = vld [vmem:[%s461 + $0x1a] sm:$0xff]
      %v1807 = vld [vmem:[%s461 + $0x22] sm:$0xff]
      %v1808 = vld [vmem:[%s461 + $0x32] sm:$0xff]
      %v1809 = vld [vmem:[%s461 + $0x3a] sm:$0xff]
      %v1810 = vld [vmem:[%s461 + $0x4a] sm:$0xff]
      %v1811 = vld [vmem:[%s461 + $0x52] sm:$0xff]
      %v1812 = vld [vmem:[%s461 + $0x62] sm:$0xff]
      %v1813 = vld [vmem:[%s461 + $0x6a] sm:$0xff]
      %v1814 = vld [vmem:[%s461 + $0x7a] sm:$0xff]
      %v1815 = vld [vmem:[%s461 + $0x82] sm:$0xff]
      %v1816 = vld [vmem:[%s461 + $0x92] sm:$0xff]
      %v1817 = vld [vmem:[%s461 + $0x9a] sm:$0xff]
      %v1818 = vld [vmem:[%s461 + $0xaa] sm:$0xff]
      %v1819 = vld [vmem:[%s461 + $0xb2] sm:$0xff]
      %v1820 = vld [vmem:[%s461 + $0xc2] sm:$0xff]
      %v1821 = vld [vmem:[%s461 + $0xca] sm:$0xff]
      %v1822 = vld [vmem:[%s461 + $0xda] sm:$0xff]
      %v1823 = vld [vmem:[%s461 + $0xe2] sm:$0xff]
      %v1824 = vld [vmem:[%s461 + $0xf2] sm:$0xff]
      %v1825 = vld [vmem:[%s461 + $0xfa] sm:$0xff]
      %v1826 = vld [vmem:[%s461 + $0x10a] sm:$0xff]
      %v1827 = vld [vmem:[%s461 + $0x112] sm:$0xff]
      %v1828 = vld [vmem:[%s461 + $0x122] sm:$0xff]
      %v1829 = vld [vmem:[%s461 + $0x12a] sm:$0xff]
      %v1830 = vld [vmem:[%s461 + $0x13a] sm:$0xff]
      %v1831 = vld [vmem:[%s461 + $0x142] sm:$0xff]
      %v1832 = vld [vmem:[%s461 + $0x152] sm:$0xff]
      %v1833 = vld [vmem:[%s461 + $0x15a] sm:$0xff]
      %v1834 = vld [vmem:[%s461 + $0x16a] sm:$0xff]
      %v1835 = vld [vmem:[%s461 + $0x172] sm:$0xff]
      %s1836 = scalar_lea.vmem %s3, 40
      %v1837 = vld [vmem:[%s1836] sm:$0xff]
      %v1839 = vsel %vm405, %v1804, 0
      %v1842 = vsel %vm405, %v1805, 0
      %v1845 = vsel %vm405, %v1806, 0
      %v1848 = vsel %vm405, %v1807, 0
      %v1851 = vsel %vm405, %v1808, 0
      %v1854 = vsel %vm405, %v1809, 0
      %v1857 = vsel %vm405, %v1810, 0
      %v1860 = vsel %vm405, %v1811, 0
      %v1863 = vsel %vm405, %v1812, 0
      %v1866 = vsel %vm405, %v1813, 0
      %v1869 = vsel %vm405, %v1814, 0
      %v1872 = vsel %vm405, %v1815, 0
      %v1875 = vsel %vm405, %v1816, 0
      %v1878 = vsel %vm405, %v1817, 0
      %v1881 = vsel %vm405, %v1818, 0
      %v1884 = vsel %vm405, %v1819, 0
      %v1887 = vsel %vm405, %v1820, 0
      %v1890 = vsel %vm405, %v1821, 0
      %v1893 = vsel %vm405, %v1822, 0
      %v1896 = vsel %vm405, %v1823, 0
      %v1899 = vsel %vm405, %v1824, 0
      %v1902 = vsel %vm405, %v1825, 0
      %v1905 = vsel %vm405, %v1826, 0
      %v1908 = vsel %vm405, %v1827, 0
      %v1911 = vsel %vm405, %v1828, 0
      %v1914 = vsel %vm405, %v1829, 0
      %v1917 = vsel %vm405, %v1830, 0
      %v1920 = vsel %vm405, %v1831, 0
      %v1923 = vsel %vm405, %v1832, 0
      %v1926 = vsel %vm405, %v1833, 0
      %v1929 = vsel %vm405, %v1834, 0
      %v1932 = vsel %vm405, %v1835, 0
      %1934 = vmatpush.msra.mxu0 0.0
      %1935 = vmatpush.msra.mxu0 0.0
      %1936 = vmatpush.msra.mxu0 0.0
      %1937 = vmatpush.msra.mxu0 0.0
      %1938 = vmatpush.msra.mxu0 0.0
      %1939 = vmatpush.msra.mxu0 0.0
      %1940 = vmatpush.msra.mxu0 0.0
      %1941 = vmatpush.msra.mxu0 0.0
      %1942 = vmatpush.msra.mxu0 0.0
      %1943 = vmatpush.msra.mxu0 0.0
      %1944 = vmatpush.msra.mxu0 0.0
      %1945 = vmatpush.msra.mxu0 0.0
      %1946 = vmatpush.msra.mxu0 0.0
      %1947 = vmatpush.msra.mxu0 0.0
      %1948 = vmatpush.msra.mxu0 0.0
      %1949 = vmatpush.msra.mxu0 %v1837
      %1950 = vmatmul.f32.gmra.mxu0 %v1839
      %v1951 = vpop.f32.mrf.mxu0
      %v1952 = vadd.f32 0.0, %v1951
      %1953 = vmatmul.f32.gmra.mxu0 %v1842
      %v1954 = vpop.f32.mrf.mxu0
      %v1955 = vadd.f32 0.0, %v1954
      %1956 = vmatmul.f32.gmra.mxu0 %v1845
      %v1957 = vpop.f32.mrf.mxu0
      %v1958 = vadd.f32 0.0, %v1957
      %1959 = vmatmul.f32.gmra.mxu0 %v1848
      %v1960 = vpop.f32.mrf.mxu0
      %v1961 = vadd.f32 0.0, %v1960
      %1962 = vmatmul.f32.gmra.mxu0 %v1851
      %v1963 = vpop.f32.mrf.mxu0
      %v1964 = vadd.f32 0.0, %v1963
      %1965 = vmatmul.f32.gmra.mxu0 %v1854
      %v1966 = vpop.f32.mrf.mxu0
      %v1967 = vadd.f32 0.0, %v1966
      %1968 = vmatmul.f32.gmra.mxu0 %v1857
      %v1969 = vpop.f32.mrf.mxu0
      %v1970 = vadd.f32 0.0, %v1969
      %1971 = vmatmul.f32.gmra.mxu0 %v1860
      %v1972 = vpop.f32.mrf.mxu0
      %v1973 = vadd.f32 0.0, %v1972
      %1974 = vmatmul.f32.gmra.mxu0 %v1863
      %v1975 = vpop.f32.mrf.mxu0
      %v1976 = vadd.f32 0.0, %v1975
      %1977 = vmatmul.f32.gmra.mxu0 %v1866
      %v1978 = vpop.f32.mrf.mxu0
      %v1979 = vadd.f32 0.0, %v1978
      %1980 = vmatmul.f32.gmra.mxu0 %v1869
      %v1981 = vpop.f32.mrf.mxu0
      %v1982 = vadd.f32 0.0, %v1981
      %1983 = vmatmul.f32.gmra.mxu0 %v1872
      %v1984 = vpop.f32.mrf.mxu0
      %v1985 = vadd.f32 0.0, %v1984
      %1986 = vmatmul.f32.gmra.mxu0 %v1875
      %v1987 = vpop.f32.mrf.mxu0
      %v1988 = vadd.f32 0.0, %v1987
      %1989 = vmatmul.f32.gmra.mxu0 %v1878
      %v1990 = vpop.f32.mrf.mxu0
      %v1991 = vadd.f32 0.0, %v1990
      %1992 = vmatmul.f32.gmra.mxu0 %v1881
      %v1993 = vpop.f32.mrf.mxu0
      %v1994 = vadd.f32 0.0, %v1993
      %1995 = vmatmul.f32.gmra.mxu0 %v1884
      %v1996 = vpop.f32.mrf.mxu0
      %v1997 = vadd.f32 0.0, %v1996
      %1998 = vmatmul.f32.gmra.mxu0 %v1887
      %v1999 = vpop.f32.mrf.mxu0
      %v2000 = vadd.f32 0.0, %v1999
      %2001 = vmatmul.f32.gmra.mxu0 %v1890
      %v2002 = vpop.f32.mrf.mxu0
      %v2003 = vadd.f32 0.0, %v2002
      %2004 = vmatmul.f32.gmra.mxu0 %v1893
      %v2005 = vpop.f32.mrf.mxu0
      %v2006 = vadd.f32 0.0, %v2005
      %2007 = vmatmul.f32.gmra.mxu0 %v1896
      %v2008 = vpop.f32.mrf.mxu0
      %v2009 = vadd.f32 0.0, %v2008
      %2010 = vmatmul.f32.gmra.mxu0 %v1899
      %v2011 = vpop.f32.mrf.mxu0
      %v2012 = vadd.f32 0.0, %v2011
      %2013 = vmatmul.f32.gmra.mxu0 %v1902
      %v2014 = vpop.f32.mrf.mxu0
      %v2015 = vadd.f32 0.0, %v2014
      %2016 = vmatmul.f32.gmra.mxu0 %v1905
      %v2017 = vpop.f32.mrf.mxu0
      %v2018 = vadd.f32 0.0, %v2017
      %2019 = vmatmul.f32.gmra.mxu0 %v1908
      %v2020 = vpop.f32.mrf.mxu0
      %v2021 = vadd.f32 0.0, %v2020
      %2022 = vmatmul.f32.gmra.mxu0 %v1911
      %v2023 = vpop.f32.mrf.mxu0
      %v2024 = vadd.f32 0.0, %v2023
      %2025 = vmatmul.f32.gmra.mxu0 %v1914
      %v2026 = vpop.f32.mrf.mxu0
      %v2027 = vadd.f32 0.0, %v2026
      %2028 = vmatmul.f32.gmra.mxu0 %v1917
      %v2029 = vpop.f32.mrf.mxu0
      %v2030 = vadd.f32 0.0, %v2029
      %2031 = vmatmul.f32.gmra.mxu0 %v1920
      %v2032 = vpop.f32.mrf.mxu0
      %v2033 = vadd.f32 0.0, %v2032
      %2034 = vmatmul.f32.gmra.mxu0 %v1923
      %v2035 = vpop.f32.mrf.mxu0
      %v2036 = vadd.f32 0.0, %v2035
      %2037 = vmatmul.f32.gmra.mxu0 %v1926
      %v2038 = vpop.f32.mrf.mxu0
      %v2039 = vadd.f32 0.0, %v2038
      %2040 = vmatmul.f32.gmra.mxu0 %v1929
      %v2041 = vpop.f32.mrf.mxu0
      %v2042 = vadd.f32 0.0, %v2041
      %2043 = vmatmul.f32.gmra.mxu0 %v1932
      %v2044 = vpop.f32.mrf.mxu0
      %v2045 = vadd.f32 0.0, %v2044
      %2046 = vdwg.mxu0
      %v2047 = vadd.f32 %v1772, %v1952
      %v2048 = vadd.f32 %v1773, %v1955
      %v2049 = vadd.f32 %v1774, %v1958
      %v2050 = vadd.f32 %v1775, %v1961
      %v2051 = vadd.f32 %v1776, %v1964
      %v2052 = vadd.f32 %v1777, %v1967
      %v2053 = vadd.f32 %v1778, %v1970
      %v2054 = vadd.f32 %v1779, %v1973
      %v2055 = vadd.f32 %v1780, %v1976
      %v2056 = vadd.f32 %v1781, %v1979
      %v2057 = vadd.f32 %v1782, %v1982
      %v2058 = vadd.f32 %v1783, %v1985
      %v2059 = vadd.f32 %v1784, %v1988
      %v2060 = vadd.f32 %v1785, %v1991
      %v2061 = vadd.f32 %v1786, %v1994
      %v2062 = vadd.f32 %v1787, %v1997
      %v2063 = vadd.f32 %v1788, %v2000
      %v2064 = vadd.f32 %v1789, %v2003
      %v2065 = vadd.f32 %v1790, %v2006
      %v2066 = vadd.f32 %v1791, %v2009
      %v2067 = vadd.f32 %v1792, %v2012
      %v2068 = vadd.f32 %v1793, %v2015
      %v2069 = vadd.f32 %v1794, %v2018
      %v2070 = vadd.f32 %v1795, %v2021
      %v2071 = vadd.f32 %v1796, %v2024
      %v2072 = vadd.f32 %v1797, %v2027
      %v2073 = vadd.f32 %v1798, %v2030
      %v2074 = vadd.f32 %v1799, %v2033
      %v2075 = vadd.f32 %v1800, %v2036
      %v2076 = vadd.f32 %v1801, %v2039
      %v2077 = vadd.f32 %v1802, %v2042
      %v2078 = vadd.f32 %v1803, %v2045
      %s2079 = scalar_lea.vmem [#allocation2], 48
      %v2080 = vld [vmem:[%s2079] sm:$0xff]
      %v2081 = vld [vmem:[%s2079 + $0x8] sm:$0xff]
      %v2082 = vld [vmem:[%s2079 + $0x18] sm:$0xff]
      %v2083 = vld [vmem:[%s2079 + $0x20] sm:$0xff]
      %v2084 = vld [vmem:[%s2079 + $0x30] sm:$0xff]
      %v2085 = vld [vmem:[%s2079 + $0x38] sm:$0xff]
      %v2086 = vld [vmem:[%s2079 + $0x48] sm:$0xff]
      %v2087 = vld [vmem:[%s2079 + $0x50] sm:$0xff]
      %v2088 = vld [vmem:[%s2079 + $0x60] sm:$0xff]
      %v2089 = vld [vmem:[%s2079 + $0x68] sm:$0xff]
      %v2090 = vld [vmem:[%s2079 + $0x78] sm:$0xff]
      %v2091 = vld [vmem:[%s2079 + $0x80] sm:$0xff]
      %v2092 = vld [vmem:[%s2079 + $0x90] sm:$0xff]
      %v2093 = vld [vmem:[%s2079 + $0x98] sm:$0xff]
      %v2094 = vld [vmem:[%s2079 + $0xa8] sm:$0xff]
      %v2095 = vld [vmem:[%s2079 + $0xb0] sm:$0xff]
      %v2096 = vld [vmem:[%s2079 + $0xc0] sm:$0xff]
      %v2097 = vld [vmem:[%s2079 + $0xc8] sm:$0xff]
      %v2098 = vld [vmem:[%s2079 + $0xd8] sm:$0xff]
      %v2099 = vld [vmem:[%s2079 + $0xe0] sm:$0xff]
      %v2100 = vld [vmem:[%s2079 + $0xf0] sm:$0xff]
      %v2101 = vld [vmem:[%s2079 + $0xf8] sm:$0xff]
      %v2102 = vld [vmem:[%s2079 + $0x108] sm:$0xff]
      %v2103 = vld [vmem:[%s2079 + $0x110] sm:$0xff]
      %v2104 = vld [vmem:[%s2079 + $0x120] sm:$0xff]
      %v2105 = vld [vmem:[%s2079 + $0x128] sm:$0xff]
      %v2106 = vld [vmem:[%s2079 + $0x138] sm:$0xff]
      %v2107 = vld [vmem:[%s2079 + $0x140] sm:$0xff]
      %v2108 = vld [vmem:[%s2079 + $0x150] sm:$0xff]
      %v2109 = vld [vmem:[%s2079 + $0x158] sm:$0xff]
      %v2110 = vld [vmem:[%s2079 + $0x168] sm:$0xff]
      %v2111 = vld [vmem:[%s2079 + $0x170] sm:$0xff]
      %s2112 = scalar_lea.vmem %s3, 48
      %v2113 = vld [vmem:[%s2112] sm:$0xff]
      %v2115 = vsel %vm405, %v2080, 0
      %v2118 = vsel %vm405, %v2081, 0
      %v2121 = vsel %vm405, %v2082, 0
      %v2124 = vsel %vm405, %v2083, 0
      %v2127 = vsel %vm405, %v2084, 0
      %v2130 = vsel %vm405, %v2085, 0
      %v2133 = vsel %vm405, %v2086, 0
      %v2136 = vsel %vm405, %v2087, 0
      %v2139 = vsel %vm405, %v2088, 0
      %v2142 = vsel %vm405, %v2089, 0
      %v2145 = vsel %vm405, %v2090, 0
      %v2148 = vsel %vm405, %v2091, 0
      %v2151 = vsel %vm405, %v2092, 0
      %v2154 = vsel %vm405, %v2093, 0
      %v2157 = vsel %vm405, %v2094, 0
      %v2160 = vsel %vm405, %v2095, 0
      %v2163 = vsel %vm405, %v2096, 0
      %v2166 = vsel %vm405, %v2097, 0
      %v2169 = vsel %vm405, %v2098, 0
      %v2172 = vsel %vm405, %v2099, 0
      %v2175 = vsel %vm405, %v2100, 0
      %v2178 = vsel %vm405, %v2101, 0
      %v2181 = vsel %vm405, %v2102, 0
      %v2184 = vsel %vm405, %v2103, 0
      %v2187 = vsel %vm405, %v2104, 0
      %v2190 = vsel %vm405, %v2105, 0
      %v2193 = vsel %vm405, %v2106, 0
      %v2196 = vsel %vm405, %v2107, 0
      %v2199 = vsel %vm405, %v2108, 0
      %v2202 = vsel %vm405, %v2109, 0
      %v2205 = vsel %vm405, %v2110, 0
      %v2208 = vsel %vm405, %v2111, 0
      %2210 = vmatpush.msra.mxu0 0.0
      %2211 = vmatpush.msra.mxu0 0.0
      %2212 = vmatpush.msra.mxu0 0.0
      %2213 = vmatpush.msra.mxu0 0.0
      %2214 = vmatpush.msra.mxu0 0.0
      %2215 = vmatpush.msra.mxu0 0.0
      %2216 = vmatpush.msra.mxu0 0.0
      %2217 = vmatpush.msra.mxu0 0.0
      %2218 = vmatpush.msra.mxu0 0.0
      %2219 = vmatpush.msra.mxu0 0.0
      %2220 = vmatpush.msra.mxu0 0.0
      %2221 = vmatpush.msra.mxu0 0.0
      %2222 = vmatpush.msra.mxu0 0.0
      %2223 = vmatpush.msra.mxu0 0.0
      %2224 = vmatpush.msra.mxu0 0.0
      %2225 = vmatpush.msra.mxu0 %v2113
      %2226 = vmatmul.f32.gmra.mxu0 %v2115
      %v2227 = vpop.f32.mrf.mxu0
      %v2228 = vadd.f32 0.0, %v2227
      %2229 = vmatmul.f32.gmra.mxu0 %v2118
      %v2230 = vpop.f32.mrf.mxu0
      %v2231 = vadd.f32 0.0, %v2230
      %2232 = vmatmul.f32.gmra.mxu0 %v2121
      %v2233 = vpop.f32.mrf.mxu0
      %v2234 = vadd.f32 0.0, %v2233
      %2235 = vmatmul.f32.gmra.mxu0 %v2124
      %v2236 = vpop.f32.mrf.mxu0
      %v2237 = vadd.f32 0.0, %v2236
      %2238 = vmatmul.f32.gmra.mxu0 %v2127
      %v2239 = vpop.f32.mrf.mxu0
      %v2240 = vadd.f32 0.0, %v2239
      %2241 = vmatmul.f32.gmra.mxu0 %v2130
      %v2242 = vpop.f32.mrf.mxu0
      %v2243 = vadd.f32 0.0, %v2242
      %2244 = vmatmul.f32.gmra.mxu0 %v2133
      %v2245 = vpop.f32.mrf.mxu0
      %v2246 = vadd.f32 0.0, %v2245
      %2247 = vmatmul.f32.gmra.mxu0 %v2136
      %v2248 = vpop.f32.mrf.mxu0
      %v2249 = vadd.f32 0.0, %v2248
      %2250 = vmatmul.f32.gmra.mxu0 %v2139
      %v2251 = vpop.f32.mrf.mxu0
      %v2252 = vadd.f32 0.0, %v2251
      %2253 = vmatmul.f32.gmra.mxu0 %v2142
      %v2254 = vpop.f32.mrf.mxu0
      %v2255 = vadd.f32 0.0, %v2254
      %2256 = vmatmul.f32.gmra.mxu0 %v2145
      %v2257 = vpop.f32.mrf.mxu0
      %v2258 = vadd.f32 0.0, %v2257
      %2259 = vmatmul.f32.gmra.mxu0 %v2148
      %v2260 = vpop.f32.mrf.mxu0
      %v2261 = vadd.f32 0.0, %v2260
      %2262 = vmatmul.f32.gmra.mxu0 %v2151
      %v2263 = vpop.f32.mrf.mxu0
      %v2264 = vadd.f32 0.0, %v2263
      %2265 = vmatmul.f32.gmra.mxu0 %v2154
      %v2266 = vpop.f32.mrf.mxu0
      %v2267 = vadd.f32 0.0, %v2266
      %2268 = vmatmul.f32.gmra.mxu0 %v2157
      %v2269 = vpop.f32.mrf.mxu0
      %v2270 = vadd.f32 0.0, %v2269
      %2271 = vmatmul.f32.gmra.mxu0 %v2160
      %v2272 = vpop.f32.mrf.mxu0
      %v2273 = vadd.f32 0.0, %v2272
      %2274 = vmatmul.f32.gmra.mxu0 %v2163
      %v2275 = vpop.f32.mrf.mxu0
      %v2276 = vadd.f32 0.0, %v2275
      %2277 = vmatmul.f32.gmra.mxu0 %v2166
      %v2278 = vpop.f32.mrf.mxu0
      %v2279 = vadd.f32 0.0, %v2278
      %2280 = vmatmul.f32.gmra.mxu0 %v2169
      %v2281 = vpop.f32.mrf.mxu0
      %v2282 = vadd.f32 0.0, %v2281
      %2283 = vmatmul.f32.gmra.mxu0 %v2172
      %v2284 = vpop.f32.mrf.mxu0
      %v2285 = vadd.f32 0.0, %v2284
      %2286 = vmatmul.f32.gmra.mxu0 %v2175
      %v2287 = vpop.f32.mrf.mxu0
      %v2288 = vadd.f32 0.0, %v2287
      %2289 = vmatmul.f32.gmra.mxu0 %v2178
      %v2290 = vpop.f32.mrf.mxu0
      %v2291 = vadd.f32 0.0, %v2290
      %2292 = vmatmul.f32.gmra.mxu0 %v2181
      %v2293 = vpop.f32.mrf.mxu0
      %v2294 = vadd.f32 0.0, %v2293
      %2295 = vmatmul.f32.gmra.mxu0 %v2184
      %v2296 = vpop.f32.mrf.mxu0
      %v2297 = vadd.f32 0.0, %v2296
      %2298 = vmatmul.f32.gmra.mxu0 %v2187
      %v2299 = vpop.f32.mrf.mxu0
      %v2300 = vadd.f32 0.0, %v2299
      %2301 = vmatmul.f32.gmra.mxu0 %v2190
      %v2302 = vpop.f32.mrf.mxu0
      %v2303 = vadd.f32 0.0, %v2302
      %2304 = vmatmul.f32.gmra.mxu0 %v2193
      %v2305 = vpop.f32.mrf.mxu0
      %v2306 = vadd.f32 0.0, %v2305
      %2307 = vmatmul.f32.gmra.mxu0 %v2196
      %v2308 = vpop.f32.mrf.mxu0
      %v2309 = vadd.f32 0.0, %v2308
      %2310 = vmatmul.f32.gmra.mxu0 %v2199
      %v2311 = vpop.f32.mrf.mxu0
      %v2312 = vadd.f32 0.0, %v2311
      %2313 = vmatmul.f32.gmra.mxu0 %v2202
      %v2314 = vpop.f32.mrf.mxu0
      %v2315 = vadd.f32 0.0, %v2314
      %2316 = vmatmul.f32.gmra.mxu0 %v2205
      %v2317 = vpop.f32.mrf.mxu0
      %v2318 = vadd.f32 0.0, %v2317
      %2319 = vmatmul.f32.gmra.mxu0 %v2208
      %v2320 = vpop.f32.mrf.mxu0
      %v2321 = vadd.f32 0.0, %v2320
      %2322 = vdwg.mxu0
      %v2323 = vadd.f32 %v2047, %v2228
      %v2324 = vadd.f32 %v2048, %v2231
      %v2325 = vadd.f32 %v2049, %v2234
      %v2326 = vadd.f32 %v2050, %v2237
      %v2327 = vadd.f32 %v2051, %v2240
      %v2328 = vadd.f32 %v2052, %v2243
      %v2329 = vadd.f32 %v2053, %v2246
      %v2330 = vadd.f32 %v2054, %v2249
      %v2331 = vadd.f32 %v2055, %v2252
      %v2332 = vadd.f32 %v2056, %v2255
      %v2333 = vadd.f32 %v2057, %v2258
      %v2334 = vadd.f32 %v2058, %v2261
      %v2335 = vadd.f32 %v2059, %v2264
      %v2336 = vadd.f32 %v2060, %v2267
      %v2337 = vadd.f32 %v2061, %v2270
      %v2338 = vadd.f32 %v2062, %v2273
      %v2339 = vadd.f32 %v2063, %v2276
      %v2340 = vadd.f32 %v2064, %v2279
      %v2341 = vadd.f32 %v2065, %v2282
      %v2342 = vadd.f32 %v2066, %v2285
      %v2343 = vadd.f32 %v2067, %v2288
      %v2344 = vadd.f32 %v2068, %v2291
      %v2345 = vadd.f32 %v2069, %v2294
      %v2346 = vadd.f32 %v2070, %v2297
      %v2347 = vadd.f32 %v2071, %v2300
      %v2348 = vadd.f32 %v2072, %v2303
      %v2349 = vadd.f32 %v2073, %v2306
      %v2350 = vadd.f32 %v2074, %v2309
      %v2351 = vadd.f32 %v2075, %v2312
      %v2352 = vadd.f32 %v2076, %v2315
      %v2353 = vadd.f32 %v2077, %v2318
      %v2354 = vadd.f32 %v2078, %v2321
      %v2355 = vld [vmem:[%s2079 + $0x1] sm:$0xff]
      %v2356 = vld [vmem:[%s2079 + $0x9] sm:$0xff]
      %v2357 = vld [vmem:[%s2079 + $0x19] sm:$0xff]
      %v2358 = vld [vmem:[%s2079 + $0x21] sm:$0xff]
      %v2359 = vld [vmem:[%s2079 + $0x31] sm:$0xff]
      %v2360 = vld [vmem:[%s2079 + $0x39] sm:$0xff]
      %v2361 = vld [vmem:[%s2079 + $0x49] sm:$0xff]
      %v2362 = vld [vmem:[%s2079 + $0x51] sm:$0xff]
      %v2363 = vld [vmem:[%s2079 + $0x61] sm:$0xff]
      %v2364 = vld [vmem:[%s2079 + $0x69] sm:$0xff]
      %v2365 = vld [vmem:[%s2079 + $0x79] sm:$0xff]
      %v2366 = vld [vmem:[%s2079 + $0x81] sm:$0xff]
      %v2367 = vld [vmem:[%s2079 + $0x91] sm:$0xff]
      %v2368 = vld [vmem:[%s2079 + $0x99] sm:$0xff]
      %v2369 = vld [vmem:[%s2079 + $0xa9] sm:$0xff]
      %v2370 = vld [vmem:[%s2079 + $0xb1] sm:$0xff]
      %v2371 = vld [vmem:[%s2079 + $0xc1] sm:$0xff]
      %v2372 = vld [vmem:[%s2079 + $0xc9] sm:$0xff]
      %v2373 = vld [vmem:[%s2079 + $0xd9] sm:$0xff]
      %v2374 = vld [vmem:[%s2079 + $0xe1] sm:$0xff]
      %v2375 = vld [vmem:[%s2079 + $0xf1] sm:$0xff]
      %v2376 = vld [vmem:[%s2079 + $0xf9] sm:$0xff]
      %v2377 = vld [vmem:[%s2079 + $0x109] sm:$0xff]
      %v2378 = vld [vmem:[%s2079 + $0x111] sm:$0xff]
      %v2379 = vld [vmem:[%s2079 + $0x121] sm:$0xff]
      %v2380 = vld [vmem:[%s2079 + $0x129] sm:$0xff]
      %v2381 = vld [vmem:[%s2079 + $0x139] sm:$0xff]
      %v2382 = vld [vmem:[%s2079 + $0x141] sm:$0xff]
      %v2383 = vld [vmem:[%s2079 + $0x151] sm:$0xff]
      %v2384 = vld [vmem:[%s2079 + $0x159] sm:$0xff]
      %v2385 = vld [vmem:[%s2079 + $0x169] sm:$0xff]
      %v2386 = vld [vmem:[%s2079 + $0x171] sm:$0xff]
      %s2387 = scalar_lea.vmem %s3, 56
      %v2388 = vld [vmem:[%s2387] sm:$0xff]
      %v2390 = vsel %vm405, %v2355, 0
      %v2393 = vsel %vm405, %v2356, 0
      %v2396 = vsel %vm405, %v2357, 0
      %v2399 = vsel %vm405, %v2358, 0
      %v2402 = vsel %vm405, %v2359, 0
      %v2405 = vsel %vm405, %v2360, 0
      %v2408 = vsel %vm405, %v2361, 0
      %v2411 = vsel %vm405, %v2362, 0
      %v2414 = vsel %vm405, %v2363, 0
      %v2417 = vsel %vm405, %v2364, 0
      %v2420 = vsel %vm405, %v2365, 0
      %v2423 = vsel %vm405, %v2366, 0
      %v2426 = vsel %vm405, %v2367, 0
      %v2429 = vsel %vm405, %v2368, 0
      %v2432 = vsel %vm405, %v2369, 0
      %v2435 = vsel %vm405, %v2370, 0
      %v2438 = vsel %vm405, %v2371, 0
      %v2441 = vsel %vm405, %v2372, 0
      %v2444 = vsel %vm405, %v2373, 0
      %v2447 = vsel %vm405, %v2374, 0
      %v2450 = vsel %vm405, %v2375, 0
      %v2453 = vsel %vm405, %v2376, 0
      %v2456 = vsel %vm405, %v2377, 0
      %v2459 = vsel %vm405, %v2378, 0
      %v2462 = vsel %vm405, %v2379, 0
      %v2465 = vsel %vm405, %v2380, 0
      %v2468 = vsel %vm405, %v2381, 0
      %v2471 = vsel %vm405, %v2382, 0
      %v2474 = vsel %vm405, %v2383, 0
      %v2477 = vsel %vm405, %v2384, 0
      %v2480 = vsel %vm405, %v2385, 0
      %v2483 = vsel %vm405, %v2386, 0
      %2485 = vmatpush.msra.mxu0 0.0
      %2486 = vmatpush.msra.mxu0 0.0
      %2487 = vmatpush.msra.mxu0 0.0
      %2488 = vmatpush.msra.mxu0 0.0
      %2489 = vmatpush.msra.mxu0 0.0
      %2490 = vmatpush.msra.mxu0 0.0
      %2491 = vmatpush.msra.mxu0 0.0
      %2492 = vmatpush.msra.mxu0 0.0
      %2493 = vmatpush.msra.mxu0 0.0
      %2494 = vmatpush.msra.mxu0 0.0
      %2495 = vmatpush.msra.mxu0 0.0
      %2496 = vmatpush.msra.mxu0 0.0
      %2497 = vmatpush.msra.mxu0 0.0
      %2498 = vmatpush.msra.mxu0 0.0
      %2499 = vmatpush.msra.mxu0 0.0
      %2500 = vmatpush.msra.mxu0 %v2388
      %2501 = vmatmul.f32.gmra.mxu0 %v2390
      %v2502 = vpop.f32.mrf.mxu0
      %v2503 = vadd.f32 0.0, %v2502
      %2504 = vmatmul.f32.gmra.mxu0 %v2393
      %v2505 = vpop.f32.mrf.mxu0
      %v2506 = vadd.f32 0.0, %v2505
      %2507 = vmatmul.f32.gmra.mxu0 %v2396
      %v2508 = vpop.f32.mrf.mxu0
      %v2509 = vadd.f32 0.0, %v2508
      %2510 = vmatmul.f32.gmra.mxu0 %v2399
      %v2511 = vpop.f32.mrf.mxu0
      %v2512 = vadd.f32 0.0, %v2511
      %2513 = vmatmul.f32.gmra.mxu0 %v2402
      %v2514 = vpop.f32.mrf.mxu0
      %v2515 = vadd.f32 0.0, %v2514
      %2516 = vmatmul.f32.gmra.mxu0 %v2405
      %v2517 = vpop.f32.mrf.mxu0
      %v2518 = vadd.f32 0.0, %v2517
      %2519 = vmatmul.f32.gmra.mxu0 %v2408
      %v2520 = vpop.f32.mrf.mxu0
      %v2521 = vadd.f32 0.0, %v2520
      %2522 = vmatmul.f32.gmra.mxu0 %v2411
      %v2523 = vpop.f32.mrf.mxu0
      %v2524 = vadd.f32 0.0, %v2523
      %2525 = vmatmul.f32.gmra.mxu0 %v2414
      %v2526 = vpop.f32.mrf.mxu0
      %v2527 = vadd.f32 0.0, %v2526
      %2528 = vmatmul.f32.gmra.mxu0 %v2417
      %v2529 = vpop.f32.mrf.mxu0
      %v2530 = vadd.f32 0.0, %v2529
      %2531 = vmatmul.f32.gmra.mxu0 %v2420
      %v2532 = vpop.f32.mrf.mxu0
      %v2533 = vadd.f32 0.0, %v2532
      %2534 = vmatmul.f32.gmra.mxu0 %v2423
      %v2535 = vpop.f32.mrf.mxu0
      %v2536 = vadd.f32 0.0, %v2535
      %2537 = vmatmul.f32.gmra.mxu0 %v2426
      %v2538 = vpop.f32.mrf.mxu0
      %v2539 = vadd.f32 0.0, %v2538
      %2540 = vmatmul.f32.gmra.mxu0 %v2429
      %v2541 = vpop.f32.mrf.mxu0
      %v2542 = vadd.f32 0.0, %v2541
      %2543 = vmatmul.f32.gmra.mxu0 %v2432
      %v2544 = vpop.f32.mrf.mxu0
      %v2545 = vadd.f32 0.0, %v2544
      %2546 = vmatmul.f32.gmra.mxu0 %v2435
      %v2547 = vpop.f32.mrf.mxu0
      %v2548 = vadd.f32 0.0, %v2547
      %2549 = vmatmul.f32.gmra.mxu0 %v2438
      %v2550 = vpop.f32.mrf.mxu0
      %v2551 = vadd.f32 0.0, %v2550
      %2552 = vmatmul.f32.gmra.mxu0 %v2441
      %v2553 = vpop.f32.mrf.mxu0
      %v2554 = vadd.f32 0.0, %v2553
      %2555 = vmatmul.f32.gmra.mxu0 %v2444
      %v2556 = vpop.f32.mrf.mxu0
      %v2557 = vadd.f32 0.0, %v2556
      %2558 = vmatmul.f32.gmra.mxu0 %v2447
      %v2559 = vpop.f32.mrf.mxu0
      %v2560 = vadd.f32 0.0, %v2559
      %2561 = vmatmul.f32.gmra.mxu0 %v2450
      %v2562 = vpop.f32.mrf.mxu0
      %v2563 = vadd.f32 0.0, %v2562
      %2564 = vmatmul.f32.gmra.mxu0 %v2453
      %v2565 = vpop.f32.mrf.mxu0
      %v2566 = vadd.f32 0.0, %v2565
      %2567 = vmatmul.f32.gmra.mxu0 %v2456
      %v2568 = vpop.f32.mrf.mxu0
      %v2569 = vadd.f32 0.0, %v2568
      %2570 = vmatmul.f32.gmra.mxu0 %v2459
      %v2571 = vpop.f32.mrf.mxu0
      %v2572 = vadd.f32 0.0, %v2571
      %2573 = vmatmul.f32.gmra.mxu0 %v2462
      %v2574 = vpop.f32.mrf.mxu0
      %v2575 = vadd.f32 0.0, %v2574
      %2576 = vmatmul.f32.gmra.mxu0 %v2465
      %v2577 = vpop.f32.mrf.mxu0
      %v2578 = vadd.f32 0.0, %v2577
      %2579 = vmatmul.f32.gmra.mxu0 %v2468
      %v2580 = vpop.f32.mrf.mxu0
      %v2581 = vadd.f32 0.0, %v2580
      %2582 = vmatmul.f32.gmra.mxu0 %v2471
      %v2583 = vpop.f32.mrf.mxu0
      %v2584 = vadd.f32 0.0, %v2583
      %2585 = vmatmul.f32.gmra.mxu0 %v2474
      %v2586 = vpop.f32.mrf.mxu0
      %v2587 = vadd.f32 0.0, %v2586
      %2588 = vmatmul.f32.gmra.mxu0 %v2477
      %v2589 = vpop.f32.mrf.mxu0
      %v2590 = vadd.f32 0.0, %v2589
      %2591 = vmatmul.f32.gmra.mxu0 %v2480
      %v2592 = vpop.f32.mrf.mxu0
      %v2593 = vadd.f32 0.0, %v2592
      %2594 = vmatmul.f32.gmra.mxu0 %v2483
      %v2595 = vpop.f32.mrf.mxu0
      %v2596 = vadd.f32 0.0, %v2595
      %2597 = vdwg.mxu0
      %v2598 = vadd.f32 %v2323, %v2503
      %v2599 = vadd.f32 %v2324, %v2506
      %v2600 = vadd.f32 %v2325, %v2509
      %v2601 = vadd.f32 %v2326, %v2512
      %v2602 = vadd.f32 %v2327, %v2515
      %v2603 = vadd.f32 %v2328, %v2518
      %v2604 = vadd.f32 %v2329, %v2521
      %v2605 = vadd.f32 %v2330, %v2524
      %v2606 = vadd.f32 %v2331, %v2527
      %v2607 = vadd.f32 %v2332, %v2530
      %v2608 = vadd.f32 %v2333, %v2533
      %v2609 = vadd.f32 %v2334, %v2536
      %v2610 = vadd.f32 %v2335, %v2539
      %v2611 = vadd.f32 %v2336, %v2542
      %v2612 = vadd.f32 %v2337, %v2545
      %v2613 = vadd.f32 %v2338, %v2548
      %v2614 = vadd.f32 %v2339, %v2551
      %v2615 = vadd.f32 %v2340, %v2554
      %v2616 = vadd.f32 %v2341, %v2557
      %v2617 = vadd.f32 %v2342, %v2560
      %v2618 = vadd.f32 %v2343, %v2563
      %v2619 = vadd.f32 %v2344, %v2566
      %v2620 = vadd.f32 %v2345, %v2569
      %v2621 = vadd.f32 %v2346, %v2572
      %v2622 = vadd.f32 %v2347, %v2575
      %v2623 = vadd.f32 %v2348, %v2578
      %v2624 = vadd.f32 %v2349, %v2581
      %v2625 = vadd.f32 %v2350, %v2584
      %v2626 = vadd.f32 %v2351, %v2587
      %v2627 = vadd.f32 %v2352, %v2590
      %v2628 = vadd.f32 %v2353, %v2593
      %v2629 = vadd.f32 %v2354, %v2596
      %v2630 = vld [vmem:[%s2079 + $0x2] sm:$0xff]
      %v2631 = vld [vmem:[%s2079 + $0xa] sm:$0xff]
      %v2632 = vld [vmem:[%s2079 + $0x1a] sm:$0xff]
      %v2633 = vld [vmem:[%s2079 + $0x22] sm:$0xff]
      %v2634 = vld [vmem:[%s2079 + $0x32] sm:$0xff]
      %v2635 = vld [vmem:[%s2079 + $0x3a] sm:$0xff]
      %v2636 = vld [vmem:[%s2079 + $0x4a] sm:$0xff]
      %v2637 = vld [vmem:[%s2079 + $0x52] sm:$0xff]
      %v2638 = vld [vmem:[%s2079 + $0x62] sm:$0xff]
      %v2639 = vld [vmem:[%s2079 + $0x6a] sm:$0xff]
      %v2640 = vld [vmem:[%s2079 + $0x7a] sm:$0xff]
      %v2641 = vld [vmem:[%s2079 + $0x82] sm:$0xff]
      %v2642 = vld [vmem:[%s2079 + $0x92] sm:$0xff]
      %v2643 = vld [vmem:[%s2079 + $0x9a] sm:$0xff]
      %v2644 = vld [vmem:[%s2079 + $0xaa] sm:$0xff]
      %v2645 = vld [vmem:[%s2079 + $0xb2] sm:$0xff]
      %v2646 = vld [vmem:[%s2079 + $0xc2] sm:$0xff]
      %v2647 = vld [vmem:[%s2079 + $0xca] sm:$0xff]
      %v2648 = vld [vmem:[%s2079 + $0xda] sm:$0xff]
      %v2649 = vld [vmem:[%s2079 + $0xe2] sm:$0xff]
      %v2650 = vld [vmem:[%s2079 + $0xf2] sm:$0xff]
      %v2651 = vld [vmem:[%s2079 + $0xfa] sm:$0xff]
      %v2652 = vld [vmem:[%s2079 + $0x10a] sm:$0xff]
      %v2653 = vld [vmem:[%s2079 + $0x112] sm:$0xff]
      %v2654 = vld [vmem:[%s2079 + $0x122] sm:$0xff]
      %v2655 = vld [vmem:[%s2079 + $0x12a] sm:$0xff]
      %v2656 = vld [vmem:[%s2079 + $0x13a] sm:$0xff]
      %v2657 = vld [vmem:[%s2079 + $0x142] sm:$0xff]
      %v2658 = vld [vmem:[%s2079 + $0x152] sm:$0xff]
      %v2659 = vld [vmem:[%s2079 + $0x15a] sm:$0xff]
      %v2660 = vld [vmem:[%s2079 + $0x16a] sm:$0xff]
      %v2661 = vld [vmem:[%s2079 + $0x172] sm:$0xff]
      %s2662 = scalar_lea.vmem %s3, 64
      %v2663 = vld [vmem:[%s2662] sm:$0xff]
      %v2665 = vsel %vm405, %v2630, 0
      %v2668 = vsel %vm405, %v2631, 0
      %v2671 = vsel %vm405, %v2632, 0
      %v2674 = vsel %vm405, %v2633, 0
      %v2677 = vsel %vm405, %v2634, 0
      %v2680 = vsel %vm405, %v2635, 0
      %v2683 = vsel %vm405, %v2636, 0
      %v2686 = vsel %vm405, %v2637, 0
      %v2689 = vsel %vm405, %v2638, 0
      %v2692 = vsel %vm405, %v2639, 0
      %v2695 = vsel %vm405, %v2640, 0
      %v2698 = vsel %vm405, %v2641, 0
      %v2701 = vsel %vm405, %v2642, 0
      %v2704 = vsel %vm405, %v2643, 0
      %v2707 = vsel %vm405, %v2644, 0
      %v2710 = vsel %vm405, %v2645, 0
      %v2713 = vsel %vm405, %v2646, 0
      %v2716 = vsel %vm405, %v2647, 0
      %v2719 = vsel %vm405, %v2648, 0
      %v2722 = vsel %vm405, %v2649, 0
      %v2725 = vsel %vm405, %v2650, 0
      %v2728 = vsel %vm405, %v2651, 0
      %v2731 = vsel %vm405, %v2652, 0
      %v2734 = vsel %vm405, %v2653, 0
      %v2737 = vsel %vm405, %v2654, 0
      %v2740 = vsel %vm405, %v2655, 0
      %v2743 = vsel %vm405, %v2656, 0
      %v2746 = vsel %vm405, %v2657, 0
      %v2749 = vsel %vm405, %v2658, 0
      %v2752 = vsel %vm405, %v2659, 0
      %v2755 = vsel %vm405, %v2660, 0
      %v2758 = vsel %vm405, %v2661, 0
      %2760 = vmatpush.msra.mxu0 0.0
      %2761 = vmatpush.msra.mxu0 0.0
      %2762 = vmatpush.msra.mxu0 0.0
      %2763 = vmatpush.msra.mxu0 0.0
      %2764 = vmatpush.msra.mxu0 0.0
      %2765 = vmatpush.msra.mxu0 0.0
      %2766 = vmatpush.msra.mxu0 0.0
      %2767 = vmatpush.msra.mxu0 0.0
      %2768 = vmatpush.msra.mxu0 0.0
      %2769 = vmatpush.msra.mxu0 0.0
      %2770 = vmatpush.msra.mxu0 0.0
      %2771 = vmatpush.msra.mxu0 0.0
      %2772 = vmatpush.msra.mxu0 0.0
      %2773 = vmatpush.msra.mxu0 0.0
      %2774 = vmatpush.msra.mxu0 0.0
      %2775 = vmatpush.msra.mxu0 %v2663
      %2776 = vmatmul.f32.gmra.mxu0 %v2665
      %v2777 = vpop.f32.mrf.mxu0
      %v2778 = vadd.f32 0.0, %v2777
      %2779 = vmatmul.f32.gmra.mxu0 %v2668
      %v2780 = vpop.f32.mrf.mxu0
      %v2781 = vadd.f32 0.0, %v2780
      %2782 = vmatmul.f32.gmra.mxu0 %v2671
      %v2783 = vpop.f32.mrf.mxu0
      %v2784 = vadd.f32 0.0, %v2783
      %2785 = vmatmul.f32.gmra.mxu0 %v2674
      %v2786 = vpop.f32.mrf.mxu0
      %v2787 = vadd.f32 0.0, %v2786
      %2788 = vmatmul.f32.gmra.mxu0 %v2677
      %v2789 = vpop.f32.mrf.mxu0
      %v2790 = vadd.f32 0.0, %v2789
      %2791 = vmatmul.f32.gmra.mxu0 %v2680
      %v2792 = vpop.f32.mrf.mxu0
      %v2793 = vadd.f32 0.0, %v2792
      %2794 = vmatmul.f32.gmra.mxu0 %v2683
      %v2795 = vpop.f32.mrf.mxu0
      %v2796 = vadd.f32 0.0, %v2795
      %2797 = vmatmul.f32.gmra.mxu0 %v2686
      %v2798 = vpop.f32.mrf.mxu0
      %v2799 = vadd.f32 0.0, %v2798
      %2800 = vmatmul.f32.gmra.mxu0 %v2689
      %v2801 = vpop.f32.mrf.mxu0
      %v2802 = vadd.f32 0.0, %v2801
      %2803 = vmatmul.f32.gmra.mxu0 %v2692
      %v2804 = vpop.f32.mrf.mxu0
      %v2805 = vadd.f32 0.0, %v2804
      %2806 = vmatmul.f32.gmra.mxu0 %v2695
      %v2807 = vpop.f32.mrf.mxu0
      %v2808 = vadd.f32 0.0, %v2807
      %2809 = vmatmul.f32.gmra.mxu0 %v2698
      %v2810 = vpop.f32.mrf.mxu0
      %v2811 = vadd.f32 0.0, %v2810
      %2812 = vmatmul.f32.gmra.mxu0 %v2701
      %v2813 = vpop.f32.mrf.mxu0
      %v2814 = vadd.f32 0.0, %v2813
      %2815 = vmatmul.f32.gmra.mxu0 %v2704
      %v2816 = vpop.f32.mrf.mxu0
      %v2817 = vadd.f32 0.0, %v2816
      %2818 = vmatmul.f32.gmra.mxu0 %v2707
      %v2819 = vpop.f32.mrf.mxu0
      %v2820 = vadd.f32 0.0, %v2819
      %2821 = vmatmul.f32.gmra.mxu0 %v2710
      %v2822 = vpop.f32.mrf.mxu0
      %v2823 = vadd.f32 0.0, %v2822
      %2824 = vmatmul.f32.gmra.mxu0 %v2713
      %v2825 = vpop.f32.mrf.mxu0
      %v2826 = vadd.f32 0.0, %v2825
      %2827 = vmatmul.f32.gmra.mxu0 %v2716
      %v2828 = vpop.f32.mrf.mxu0
      %v2829 = vadd.f32 0.0, %v2828
      %2830 = vmatmul.f32.gmra.mxu0 %v2719
      %v2831 = vpop.f32.mrf.mxu0
      %v2832 = vadd.f32 0.0, %v2831
      %2833 = vmatmul.f32.gmra.mxu0 %v2722
      %v2834 = vpop.f32.mrf.mxu0
      %v2835 = vadd.f32 0.0, %v2834
      %2836 = vmatmul.f32.gmra.mxu0 %v2725
      %v2837 = vpop.f32.mrf.mxu0
      %v2838 = vadd.f32 0.0, %v2837
      %2839 = vmatmul.f32.gmra.mxu0 %v2728
      %v2840 = vpop.f32.mrf.mxu0
      %v2841 = vadd.f32 0.0, %v2840
      %2842 = vmatmul.f32.gmra.mxu0 %v2731
      %v2843 = vpop.f32.mrf.mxu0
      %v2844 = vadd.f32 0.0, %v2843
      %2845 = vmatmul.f32.gmra.mxu0 %v2734
      %v2846 = vpop.f32.mrf.mxu0
      %v2847 = vadd.f32 0.0, %v2846
      %2848 = vmatmul.f32.gmra.mxu0 %v2737
      %v2849 = vpop.f32.mrf.mxu0
      %v2850 = vadd.f32 0.0, %v2849
      %2851 = vmatmul.f32.gmra.mxu0 %v2740
      %v2852 = vpop.f32.mrf.mxu0
      %v2853 = vadd.f32 0.0, %v2852
      %2854 = vmatmul.f32.gmra.mxu0 %v2743
      %v2855 = vpop.f32.mrf.mxu0
      %v2856 = vadd.f32 0.0, %v2855
      %2857 = vmatmul.f32.gmra.mxu0 %v2746
      %v2858 = vpop.f32.mrf.mxu0
      %v2859 = vadd.f32 0.0, %v2858
      %2860 = vmatmul.f32.gmra.mxu0 %v2749
      %v2861 = vpop.f32.mrf.mxu0
      %v2862 = vadd.f32 0.0, %v2861
      %2863 = vmatmul.f32.gmra.mxu0 %v2752
      %v2864 = vpop.f32.mrf.mxu0
      %v2865 = vadd.f32 0.0, %v2864
      %2866 = vmatmul.f32.gmra.mxu0 %v2755
      %v2867 = vpop.f32.mrf.mxu0
      %v2868 = vadd.f32 0.0, %v2867
      %2869 = vmatmul.f32.gmra.mxu0 %v2758
      %v2870 = vpop.f32.mrf.mxu0
      %v2871 = vadd.f32 0.0, %v2870
      %2872 = vdwg.mxu0
      %v2873 = vadd.f32 %v2598, %v2778
      %v2874 = vadd.f32 %v2599, %v2781
      %v2875 = vadd.f32 %v2600, %v2784
      %v2876 = vadd.f32 %v2601, %v2787
      %v2877 = vadd.f32 %v2602, %v2790
      %v2878 = vadd.f32 %v2603, %v2793
      %v2879 = vadd.f32 %v2604, %v2796
      %v2880 = vadd.f32 %v2605, %v2799
      %v2881 = vadd.f32 %v2606, %v2802
      %v2882 = vadd.f32 %v2607, %v2805
      %v2883 = vadd.f32 %v2608, %v2808
      %v2884 = vadd.f32 %v2609, %v2811
      %v2885 = vadd.f32 %v2610, %v2814
      %v2886 = vadd.f32 %v2611, %v2817
      %v2887 = vadd.f32 %v2612, %v2820
      %v2888 = vadd.f32 %v2613, %v2823
      %v2889 = vadd.f32 %v2614, %v2826
      %v2890 = vadd.f32 %v2615, %v2829
      %v2891 = vadd.f32 %v2616, %v2832
      %v2892 = vadd.f32 %v2617, %v2835
      %v2893 = vadd.f32 %v2618, %v2838
      %v2894 = vadd.f32 %v2619, %v2841
      %v2895 = vadd.f32 %v2620, %v2844
      %v2896 = vadd.f32 %v2621, %v2847
      %v2897 = vadd.f32 %v2622, %v2850
      %v2898 = vadd.f32 %v2623, %v2853
      %v2899 = vadd.f32 %v2624, %v2856
      %v2900 = vadd.f32 %v2625, %v2859
      %v2901 = vadd.f32 %v2626, %v2862
      %v2902 = vadd.f32 %v2627, %v2865
      %v2903 = vadd.f32 %v2628, %v2868
      %v2904 = vadd.f32 %v2629, %v2871
      %v2905 = vpack.c.bf16 %v2873, %v2873
      %v2906 = vpack.c.bf16 %v2874, %v2874
      %v2907 = vpack.c.bf16 %v2875, %v2875
      %v2908 = vpack.c.bf16 %v2876, %v2876
      %v2909 = vpack.c.bf16 %v2877, %v2877
      %v2910 = vpack.c.bf16 %v2878, %v2878
      %v2911 = vpack.c.bf16 %v2879, %v2879
      %v2912 = vpack.c.bf16 %v2880, %v2880
      %v2913 = vpack.c.bf16 %v2881, %v2881
      %v2914 = vpack.c.bf16 %v2882, %v2882
      %v2915 = vpack.c.bf16 %v2883, %v2883
      %v2916 = vpack.c.bf16 %v2884, %v2884
      %v2917 = vpack.c.bf16 %v2885, %v2885
      %v2918 = vpack.c.bf16 %v2886, %v2886
      %v2919 = vpack.c.bf16 %v2887, %v2887
      %v2920 = vpack.c.bf16 %v2888, %v2888
      %v2921 = vpack.c.bf16 %v2889, %v2889
      %v2922 = vpack.c.bf16 %v2890, %v2890
      %v2923 = vpack.c.bf16 %v2891, %v2891
      %v2924 = vpack.c.bf16 %v2892, %v2892
      %v2925 = vpack.c.bf16 %v2893, %v2893
      %v2926 = vpack.c.bf16 %v2894, %v2894
      %v2927 = vpack.c.bf16 %v2895, %v2895
      %v2928 = vpack.c.bf16 %v2896, %v2896
      %v2929 = vpack.c.bf16 %v2897, %v2897
      %v2930 = vpack.c.bf16 %v2898, %v2898
      %v2931 = vpack.c.bf16 %v2899, %v2899
      %v2932 = vpack.c.bf16 %v2900, %v2900
      %v2933 = vpack.c.bf16 %v2901, %v2901
      %v2934 = vpack.c.bf16 %v2902, %v2902
      %v2935 = vpack.c.bf16 %v2903, %v2903
      %v2936 = vpack.c.bf16 %v2904, %v2904
      %vm2937 = vcmask 60416
      %2938 = vst.msk [vmem:[%s231] sm:$0xf] %vm2937, %v2905
      %2939 = vst.msk [vmem:[%s231 + $0x4] sm:$0xf] %vm2937, %v2906
      %2940 = vst.msk [vmem:[%s231 + $0x8] sm:$0xf] %vm2937, %v2907
      %2941 = vst.msk [vmem:[%s231 + $0xc] sm:$0xf] %vm2937, %v2908
      %2942 = vst.msk [vmem:[%s231 + $0x10] sm:$0xf] %vm2937, %v2909
      %2943 = vst.msk [vmem:[%s231 + $0x14] sm:$0xf] %vm2937, %v2910
      %2944 = vst.msk [vmem:[%s231 + $0x18] sm:$0xf] %vm2937, %v2911
      %2945 = vst.msk [vmem:[%s231 + $0x1c] sm:$0xf] %vm2937, %v2912
      %2946 = vst.msk [vmem:[%s231 + $0x20] sm:$0xf] %vm2937, %v2913
      %2947 = vst.msk [vmem:[%s231 + $0x24] sm:$0xf] %vm2937, %v2914
      %2948 = vst.msk [vmem:[%s231 + $0x28] sm:$0xf] %vm2937, %v2915
      %2949 = vst.msk [vmem:[%s231 + $0x2c] sm:$0xf] %vm2937, %v2916
      %2950 = vst.msk [vmem:[%s231 + $0x30] sm:$0xf] %vm2937, %v2917
      %2951 = vst.msk [vmem:[%s231 + $0x34] sm:$0xf] %vm2937, %v2918
      %2952 = vst.msk [vmem:[%s231 + $0x38] sm:$0xf] %vm2937, %v2919
      %2953 = vst.msk [vmem:[%s231 + $0x3c] sm:$0xf] %vm2937, %v2920
      %2954 = vst.msk [vmem:[%s231 + $0x40] sm:$0xf] %vm2937, %v2921
      %2955 = vst.msk [vmem:[%s231 + $0x44] sm:$0xf] %vm2937, %v2922
      %2956 = vst.msk [vmem:[%s231 + $0x48] sm:$0xf] %vm2937, %v2923
      %2957 = vst.msk [vmem:[%s231 + $0x4c] sm:$0xf] %vm2937, %v2924
      %2958 = vst.msk [vmem:[%s231 + $0x50] sm:$0xf] %vm2937, %v2925
      %2959 = vst.msk [vmem:[%s231 + $0x54] sm:$0xf] %vm2937, %v2926
      %2960 = vst.msk [vmem:[%s231 + $0x58] sm:$0xf] %vm2937, %v2927
      %2961 = vst.msk [vmem:[%s231 + $0x5c] sm:$0xf] %vm2937, %v2928
      %2962 = vst.msk [vmem:[%s231 + $0x60] sm:$0xf] %vm2937, %v2929
      %2963 = vst.msk [vmem:[%s231 + $0x64] sm:$0xf] %vm2937, %v2930
      %2964 = vst.msk [vmem:[%s231 + $0x68] sm:$0xf] %vm2937, %v2931
      %2965 = vst.msk [vmem:[%s231 + $0x6c] sm:$0xf] %vm2937, %v2932
      %2966 = vst.msk [vmem:[%s231 + $0x70] sm:$0xf] %vm2937, %v2933
      %2967 = vst.msk [vmem:[%s231 + $0x74] sm:$0xf] %vm2937, %v2934
      %2968 = vst.msk [vmem:[%s231 + $0x78] sm:$0xf] %vm2937, %v2935
      %2969 = vst.msk [vmem:[%s231 + $0x7c] sm:$0xf] %vm2937, %v2936
      %v2970 = vsel %vm405, %v2873, 0.0
      %v2971 = vsel %vm405, %v2874, 0.0
      %v2972 = vadd.f32 %v2970, %v2971
      %v2973 = vsel %vm405, %v2875, 0.0
      %v2974 = vadd.f32 %v2972, %v2973
      %v2975 = vsel %vm405, %v2876, 0.0
      %v2976 = vadd.f32 %v2974, %v2975
      %v2977 = vsel %vm405, %v2877, 0.0
      %v2978 = vadd.f32 %v2976, %v2977
      %v2979 = vsel %vm405, %v2878, 0.0
      %v2980 = vadd.f32 %v2978, %v2979
      %v2981 = vsel %vm405, %v2879, 0.0
      %v2982 = vadd.f32 %v2980, %v2981
      %v2983 = vsel %vm405, %v2880, 0.0
      %v2984 = vadd.f32 %v2982, %v2983
      %v2985 = vsel %vm405, %v2881, 0.0
      %v2986 = vadd.f32 %v2984, %v2985
      %v2987 = vsel %vm405, %v2882, 0.0
      %v2988 = vadd.f32 %v2986, %v2987
      %v2989 = vsel %vm405, %v2883, 0.0
      %v2990 = vadd.f32 %v2988, %v2989
      %v2991 = vsel %vm405, %v2884, 0.0
      %v2992 = vadd.f32 %v2990, %v2991
      %v2993 = vsel %vm405, %v2885, 0.0
      %v2994 = vadd.f32 %v2992, %v2993
      %v2995 = vsel %vm405, %v2886, 0.0
      %v2996 = vadd.f32 %v2994, %v2995
      %v2997 = vsel %vm405, %v2887, 0.0
      %v2998 = vadd.f32 %v2996, %v2997
      %v2999 = vsel %vm405, %v2888, 0.0
      %v3000 = vadd.f32 %v2998, %v2999
      %v3001 = vsel %vm405, %v2889, 0.0
      %v3002 = vadd.f32 %v3000, %v3001
      %v3003 = vsel %vm405, %v2890, 0.0
      %v3004 = vadd.f32 %v3002, %v3003
      %v3005 = vsel %vm405, %v2891, 0.0
      %v3006 = vadd.f32 %v3004, %v3005
      %v3007 = vsel %vm405, %v2892, 0.0
      %v3008 = vadd.f32 %v3006, %v3007
      %v3009 = vsel %vm405, %v2893, 0.0
      %v3010 = vadd.f32 %v3008, %v3009
      %v3011 = vsel %vm405, %v2894, 0.0
      %v3012 = vadd.f32 %v3010, %v3011
      %v3013 = vsel %vm405, %v2895, 0.0
      %v3014 = vadd.f32 %v3012, %v3013
      %v3015 = vsel %vm405, %v2896, 0.0
      %v3016 = vadd.f32 %v3014, %v3015
      %v3017 = vsel %vm405, %v2897, 0.0
      %v3018 = vadd.f32 %v3016, %v3017
      %v3019 = vsel %vm405, %v2898, 0.0
      %v3020 = vadd.f32 %v3018, %v3019
      %v3021 = vsel %vm405, %v2899, 0.0
      %v3022 = vadd.f32 %v3020, %v3021
      %v3023 = vsel %vm405, %v2900, 0.0
      %v3024 = vadd.f32 %v3022, %v3023
      %v3025 = vsel %vm405, %v2901, 0.0
      %v3026 = vadd.f32 %v3024, %v3025
      %v3027 = vsel %vm405, %v2902, 0.0
      %v3028 = vadd.f32 %v3026, %v3027
      %v3029 = vsel %vm405, %v2903, 0.0
      %v3030 = vadd.f32 %v3028, %v3029
      %v3031 = vsel %vm405, %v2904, 0.0
      %v3032 = vadd.f32 %v3030, %v3031
      %v3033 = vrot.slane %v3032, 4
      %v3034 = vadd.f32 %v3032, %v3033
      %v3035 = vrot.slane %v3034, 2
      %v3036 = vadd.f32 %v3034, %v3035
      %v3037 = vrot.slane %v3036, 1
      %v3038 = vadd.f32 %v3036, %v3037
      %vm3039 = vcmask 57344
      %3040 = vst.msk [vmem:[%s236] sm:$0x1] %vm3039, %v3038
      %v3041 = vmul.f32 %v2873, %v2873
      %v3042 = vmul.f32 %v2874, %v2874
      %v3043 = vmul.f32 %v2875, %v2875
      %v3044 = vmul.f32 %v2876, %v2876
      %v3045 = vmul.f32 %v2877, %v2877
      %v3046 = vmul.f32 %v2878, %v2878
      %v3047 = vmul.f32 %v2879, %v2879
      %v3048 = vmul.f32 %v2880, %v2880
      %v3049 = vmul.f32 %v2881, %v2881
      %v3050 = vmul.f32 %v2882, %v2882
      %v3051 = vmul.f32 %v2883, %v2883
      %v3052 = vmul.f32 %v2884, %v2884
      %v3053 = vmul.f32 %v2885, %v2885
      %v3054 = vmul.f32 %v2886, %v2886
      %v3055 = vmul.f32 %v2887, %v2887
      %v3056 = vmul.f32 %v2888, %v2888
      %v3057 = vmul.f32 %v2889, %v2889
      %v3058 = vmul.f32 %v2890, %v2890
      %v3059 = vmul.f32 %v2891, %v2891
      %v3060 = vmul.f32 %v2892, %v2892
      %v3061 = vmul.f32 %v2893, %v2893
      %v3062 = vmul.f32 %v2894, %v2894
      %v3063 = vmul.f32 %v2895, %v2895
      %v3064 = vmul.f32 %v2896, %v2896
      %v3065 = vmul.f32 %v2897, %v2897
      %v3066 = vmul.f32 %v2898, %v2898
      %v3067 = vmul.f32 %v2899, %v2899
      %v3068 = vmul.f32 %v2900, %v2900
      %v3069 = vmul.f32 %v2901, %v2901
      %v3070 = vmul.f32 %v2902, %v2902
      %v3071 = vmul.f32 %v2903, %v2903
      %v3072 = vmul.f32 %v2904, %v2904
      %v3073 = vsel %vm405, %v3041, 0.0
      %v3074 = vsel %vm405, %v3042, 0.0
      %v3075 = vadd.f32 %v3073, %v3074
      %v3076 = vsel %vm405, %v3043, 0.0
      %v3077 = vadd.f32 %v3075, %v3076
      %v3078 = vsel %vm405, %v3044, 0.0
      %v3079 = vadd.f32 %v3077, %v3078
      %v3080 = vsel %vm405, %v3045, 0.0
      %v3081 = vadd.f32 %v3079, %v3080
      %v3082 = vsel %vm405, %v3046, 0.0
      %v3083 = vadd.f32 %v3081, %v3082
      %v3084 = vsel %vm405, %v3047, 0.0
      %v3085 = vadd.f32 %v3083, %v3084
      %v3086 = vsel %vm405, %v3048, 0.0
      %v3087 = vadd.f32 %v3085, %v3086
      %v3088 = vsel %vm405, %v3049, 0.0
      %v3089 = vadd.f32 %v3087, %v3088
      %v3090 = vsel %vm405, %v3050, 0.0
      %v3091 = vadd.f32 %v3089, %v3090
      %v3092 = vsel %vm405, %v3051, 0.0
      %v3093 = vadd.f32 %v3091, %v3092
      %v3094 = vsel %vm405, %v3052, 0.0
      %v3095 = vadd.f32 %v3093, %v3094
      %v3096 = vsel %vm405, %v3053, 0.0
      %v3097 = vadd.f32 %v3095, %v3096
      %v3098 = vsel %vm405, %v3054, 0.0
      %v3099 = vadd.f32 %v3097, %v3098
      %v3100 = vsel %vm405, %v3055, 0.0
      %v3101 = vadd.f32 %v3099, %v3100
      %v3102 = vsel %vm405, %v3056, 0.0
      %v3103 = vadd.f32 %v3101, %v3102
      %v3104 = vsel %vm405, %v3057, 0.0
      %v3105 = vadd.f32 %v3103, %v3104
      %v3106 = vsel %vm405, %v3058, 0.0
      %v3107 = vadd.f32 %v3105, %v3106
      %v3108 = vsel %vm405, %v3059, 0.0
      %v3109 = vadd.f32 %v3107, %v3108
      %v3110 = vsel %vm405, %v3060, 0.0
      %v3111 = vadd.f32 %v3109, %v3110
      %v3112 = vsel %vm405, %v3061, 0.0
      %v3113 = vadd.f32 %v3111, %v3112
      %v3114 = vsel %vm405, %v3062, 0.0
      %v3115 = vadd.f32 %v3113, %v3114
      %v3116 = vsel %vm405, %v3063, 0.0
      %v3117 = vadd.f32 %v3115, %v3116
      %v3118 = vsel %vm405, %v3064, 0.0
      %v3119 = vadd.f32 %v3117, %v3118
      %v3120 = vsel %vm405, %v3065, 0.0
      %v3121 = vadd.f32 %v3119, %v3120
      %v3122 = vsel %vm405, %v3066, 0.0
      %v3123 = vadd.f32 %v3121, %v3122
      %v3124 = vsel %vm405, %v3067, 0.0
      %v3125 = vadd.f32 %v3123, %v3124
      %v3126 = vsel %vm405, %v3068, 0.0
      %v3127 = vadd.f32 %v3125, %v3126
      %v3128 = vsel %vm405, %v3069, 0.0
      %v3129 = vadd.f32 %v3127, %v3128
      %v3130 = vsel %vm405, %v3070, 0.0
      %v3131 = vadd.f32 %v3129, %v3130
      %v3132 = vsel %vm405, %v3071, 0.0
      %v3133 = vadd.f32 %v3131, %v3132
      %v3134 = vsel %vm405, %v3072, 0.0
      %v3135 = vadd.f32 %v3133, %v3134
      %v3136 = vrot.slane %v3135, 4
      %v3137 = vadd.f32 %v3135, %v3136
      %v3138 = vrot.slane %v3137, 2
      %v3139 = vadd.f32 %v3137, %v3138
      %v3140 = vrot.slane %v3139, 1
      %v3141 = vadd.f32 %v3139, %v3140
      %3142 = vst.msk [vmem:[%s236 + $0x1] sm:$0x1] %vm3039, %v3141
      %s3143 = smul.u32 32, %s17
      %p3144 = scmp.lt.s32.totalorder %s3143, 63
      %s3145 = scalar_select %p3144, %s3143, 63
      %s3146 = smul.addr %s3145, 4
      %s3147 = scalar_lea.vmem %s4, %s3146
      %p3148 = scmp.lt.s32.totalorder %s17, 1
      %s3149 = scalar_select %p3148, %s17, 1
      %s3150 = smul.addr %s3149, 2
      %s3151 = scalar_lea.vmem %s5, %s3150
      // Predicated region
      $region37: #{inception_forward.9} parent=35 // pred_check
        %p3152 = pneg %p124
      $region38: #{inception_forward.9} parent=35 // pred_check_branch
        %3154 = sbr.rel (%p3152) target = $region40
      $region39: #{inception_forward.9} parent=35 // pred_region
        %s3155 = smul.u32 32, %s17
      $region40: #{inception_forward.9} parent=35 // pred_fallthru
        _
      // Predicated region
      $region41: #{inception_forward.9} parent=35 // pred_check
        %p3156 = pneg %p150
      $region42: #{inception_forward.9} parent=35 // pred_check_branch
        %3158 = sbr.rel (%p3156) target = $region44
      $region43: #{inception_forward.9} parent=35 // pred_region
        _
      $region44: #{inception_forward.9} parent=35 // pred_fallthru
        _
    $region36: #{inception_forward.9} parent=5 // pred_fallthru
      _
    %p3159 = scmp.le.s32.totalorder 2, %s12
    // Predicated region
    $region45: #{inception_forward.9} parent=5 // pred_check
      %p3160 = pneg %p3159
    $region46: #{inception_forward.9} parent=5 // pred_check_branch
      %3162 = sbr.rel (%p3160) target = $region48
    $region47: #{inception_forward.9} parent=5 // pred_region
      %s3163 = ssub.s32 %s12, 2
      // Predicated region
      $region49: #{inception_forward.9} parent=47 // pred_check
        %p3164 = pneg %p130
      $region50: #{inception_forward.9} parent=47 // pred_check_branch
        %3166 = sbr.rel (%p3164) target = $region52
      $region51: #{inception_forward.9} parent=47 // pred_region
        %s3167 = smul.u32 32, %s18
        %p3168 = scmp.lt.s32.totalorder %s3167, 63
        %s3169 = scalar_select %p3168, %s3167, 63
        %s3170 = smul.addr %s3169, 4
        %s3171 = scalar_lea.vmem %s4, %s3170
      $region52: #{inception_forward.9} parent=47 // pred_fallthru
        _
      // Predicated region
      $region53: #{inception_forward.9} parent=47 // pred_check
        %p3172 = pneg %p156
      $region54: #{inception_forward.9} parent=47 // pred_check_branch
        %3174 = sbr.rel (%p3172) target = $region56
      $region55: #{inception_forward.9} parent=47 // pred_region
        %p3175 = scmp.lt.s32.totalorder %s18, 1
        %s3176 = scalar_select %p3175, %s18, 1
        %s3177 = smul.addr %s3176, 2
        %s3178 = scalar_lea.vmem %s5, %s3177
      $region56: #{inception_forward.9} parent=47 // pred_fallthru
        _
    $region48: #{inception_forward.9} parent=5 // pred_fallthru
      _
  $region6: #{inception_forward.9} parent=0 // loop_footer
    %s16 = sadd.s32 1, %s12
  $region7: #{inception_forward.9} parent=0 // loop_footer_branch
    %11 = sbr.rel target = $region3
  $region8: #{inception_forward.9} parent=0 // loop_exit
    _

// kernel: inception_forward.11
$region0: #{inception_forward.11}
  #allocation0 [shape = 'u32[]', space=smem, size = 0x4, offset = 0x4, fixed_abs, tag = 'smem constant byte address 0x4 - core index']
  #allocation1 [shape = 'u32[72,128]{1,0:T(1,128)}', space=vmem, size = 0x9000, scoped, tag = 'internal scratch']
  %s0 = inlined_call_operand.vmem [shape: bf16[512,8], index: 0, kind: input, shape index: {}]
  %s1 = inlined_call_operand.vmem [shape: bf16[512,8], index: 1, kind: input, shape index: {}]
  %s2 = inlined_call_operand.vmem [shape: bf16[512,8], index: 2, kind: input, shape index: {}]
  %s3 = inlined_call_operand.vmem [shape: bf16[512,8], index: 3, kind: input, shape index: {}]
  %s4 = inlined_call_operand.vmem [shape: f32[1,32], index: 4, kind: input, shape index: {}]
  %s5 = inlined_call_operand.vmem [shape: f32[1,32], index: 5, kind: input, shape index: {}]
  %s6 = inlined_call_operand.hbm [shape: f32[512,32], index: 6, kind: output, shape index: {}]
  %s7 = sld [smem:[#allocation0]]
  $region57: #{inception_forward.11} parent=0
    _
  %s9 = ssub.s32 1, %s7
  %s10 = scalar_select 0, %s9, %s7
  $region1: #{inception_forward.11} parent=0
    #allocation2 [shape = 'u8[262144]{0}', space=vmem, size = 0x40000, scoped, tag = 'output window, operand 0']
    #allocation3 [shape = 's32[2]{0}', space=sflag, size = 0x8, scoped, tag = 'scoped memory for inception_forward.11']
    %11 = vsyncpa [#allocation3], 0
    %s12 = scalar_lea.sflag [#allocation3], 1
    %13 = vsyncpa %s12, 0
    loop: start=0, step=1, limit=4
    $region2: #{inception_forward.11} parent=1 // loop_pre_header
      _
    $region3: #{inception_forward.11} parent=1 // loop_header
      %s15 = sphi 0, %s19
      %p16 = scmp.ge.s32.totalorder %s15, 4
      %s25 = sphi 0, %s27
      %s28 = sphi 0, %s25
      %s29 = sphi 0, %s28
      %s45 = sphi 0, %s29
      %s51 = sphi 0, %s53
      %s54 = sphi 0, %s51
      %s55 = sphi 0, %s54
      %s71 = sphi 0, %s55
      %s77 = sphi 0, %s79
      %s80 = sphi 0, %s77
      %s81 = sphi 0, %s80
      %s97 = sphi 0, %s81
      %s103 = sphi 0, %s105
      %s106 = sphi 0, %s103
      %s107 = sphi 0, %s106
      %s123 = sphi 0, %s107
      %s127 = sphi 0, %s127
      %s129 = sphi 0, %s127
      %s130 = sphi 0, %s129
      %s144 = sphi 0, %s130
      %s148 = sphi 0, %s148
      %s150 = sphi 0, %s148
      %s151 = sphi 0, %s150
      %s165 = sphi 0, %s151
      %s171 = sphi 0, %s173
      %s174 = sphi 0, %s171
      %s175 = sphi 0, %s174
      %s191 = sphi 0, %s175
    $region4: #{inception_forward.11} parent=1 // loop_header_branch
      %18 = sbr.rel (%p16) target = $region8
    $region5: #{inception_forward.11} parent=1 // loop_body
      %s20 = ssub.s32 %s15, 1
      %s21 = ssub.s32 %s15, 2
      %s22 = sadd.s32 %s15, 1
      %s23 = ssub.s32 %s15, %s22
      %p24 = scmp.eq.s32.totalorder %s23, 0
      %s26 = sadd.s32 %s25, 1
      %s27 = scalar_select %p24, %s25, %s26
      %p30 = pneg %p24
      %p31 = scmp.eq.s32.totalorder %s15, 1
      %p32 = por %p30, %p31
      %p33 = scmp.ne.s32.totalorder %s25, %s28
      %p34 = scmp.eq.s32.totalorder %s15, 0
      %p35 = por %p33, %p34
      %p36 = scmp.ne.s32.totalorder %s25, %s28
      %p37 = scmp.eq.s32.totalorder %s20, 1
      %p38 = por %p36, %p37
      %p39 = scmp.ne.s32.totalorder %s28, %s29
      %p40 = scmp.eq.s32.totalorder %s20, 0
      %p41 = por %p39, %p40
      %p42 = scmp.ne.s32.totalorder %s28, %s29
      %p43 = scmp.eq.s32.totalorder %s21, 1
      %p44 = por %p42, %p43
      %p46 = scmp.ne.s32.totalorder %s29, %s45
      %p47 = scmp.eq.s32.totalorder %s21, 0
      %p48 = por %p46, %p47
      %s49 = ssub.s32 %s15, %s22
      %p50 = scmp.eq.s32.totalorder %s49, 0
      %s52 = sadd.s32 %s51, 1
      %s53 = scalar_select %p50, %s51, %s52
      %p56 = pneg %p50
      %p57 = scmp.eq.s32.totalorder %s15, 1
      %p58 = por %p56, %p57
      %p59 = scmp.ne.s32.totalorder %s51, %s54
      %p60 = scmp.eq.s32.totalorder %s15, 0
      %p61 = por %p59, %p60
      %p62 = scmp.ne.s32.totalorder %s51, %s54
      %p63 = scmp.eq.s32.totalorder %s20, 1
      %p64 = por %p62, %p63
      %p65 = scmp.ne.s32.totalorder %s54, %s55
      %p66 = scmp.eq.s32.totalorder %s20, 0
      %p67 = por %p65, %p66
      %p68 = scmp.ne.s32.totalorder %s54, %s55
      %p69 = scmp.eq.s32.totalorder %s21, 1
      %p70 = por %p68, %p69
      %p72 = scmp.ne.s32.totalorder %s55, %s71
      %p73 = scmp.eq.s32.totalorder %s21, 0
      %p74 = por %p72, %p73
      %s75 = ssub.s32 %s15, %s22
      %p76 = scmp.eq.s32.totalorder %s75, 0
      %s78 = sadd.s32 %s77, 1
      %s79 = scalar_select %p76, %s77, %s78
      %p82 = pneg %p76
      %p83 = scmp.eq.s32.totalorder %s15, 1
      %p84 = por %p82, %p83
      %p85 = scmp.ne.s32.totalorder %s77, %s80
      %p86 = scmp.eq.s32.totalorder %s15, 0
      %p87 = por %p85, %p86
      %p88 = scmp.ne.s32.totalorder %s77, %s80
      %p89 = scmp.eq.s32.totalorder %s20, 1
      %p90 = por %p88, %p89
      %p91 = scmp.ne.s32.totalorder %s80, %s81
      %p92 = scmp.eq.s32.totalorder %s20, 0
      %p93 = por %p91, %p92
      %p94 = scmp.ne.s32.totalorder %s80, %s81
      %p95 = scmp.eq.s32.totalorder %s21, 1
      %p96 = por %p94, %p95
      %p98 = scmp.ne.s32.totalorder %s81, %s97
      %p99 = scmp.eq.s32.totalorder %s21, 0
      %p100 = por %p98, %p99
      %s101 = ssub.s32 %s15, %s22
      %p102 = scmp.eq.s32.totalorder %s101, 0
      %s104 = sadd.s32 %s103, 1
      %s105 = scalar_select %p102, %s103, %s104
      %p108 = pneg %p102
      %p109 = scmp.eq.s32.totalorder %s15, 1
      %p110 = por %p108, %p109
      %p111 = scmp.ne.s32.totalorder %s103, %s106
      %p112 = scmp.eq.s32.totalorder %s15, 0
      %p113 = por %p111, %p112
      %p114 = scmp.ne.s32.totalorder %s103, %s106
      %p115 = scmp.eq.s32.totalorder %s20, 1
      %p116 = por %p114, %p115
      %p117 = scmp.ne.s32.totalorder %s106, %s107
      %p118 = scmp.eq.s32.totalorder %s20, 0
      %p119 = por %p117, %p118
      %p120 = scmp.ne.s32.totalorder %s106, %s107
      %p121 = scmp.eq.s32.totalorder %s21, 1
      %p122 = por %p120, %p121
      %p124 = scmp.ne.s32.totalorder %s107, %s123
      %p125 = scmp.eq.s32.totalorder %s21, 0
      %p126 = por %p124, %p125
      %s128 = sadd.s32 %s127, 1
      %p131 = scmp.eq.s32.totalorder %s15, 1
      %p132 = scmp.ne.s32.totalorder %s127, %s129
      %p133 = scmp.eq.s32.totalorder %s15, 0
      %p134 = por %p132, %p133
      %p135 = scmp.ne.s32.totalorder %s127, %s129
      %p136 = scmp.eq.s32.totalorder %s20, 1
      %p137 = por %p135, %p136
      %p138 = scmp.ne.s32.totalorder %s129, %s130
      %p139 = scmp.eq.s32.totalorder %s20, 0
      %p140 = por %p138, %p139
      %p141 = scmp.ne.s32.totalorder %s129, %s130
      %p142 = scmp.eq.s32.totalorder %s21, 1
      %p143 = por %p141, %p142
      %p145 = scmp.ne.s32.totalorder %s130, %s144
      %p146 = scmp.eq.s32.totalorder %s21, 0
      %p147 = por %p145, %p146
      %s149 = sadd.s32 %s148, 1
      %p152 = scmp.eq.s32.totalorder %s15, 1
      %p153 = scmp.ne.s32.totalorder %s148, %s150
      %p154 = scmp.eq.s32.totalorder %s15, 0
      %p155 = por %p153, %p154
      %p156 = scmp.ne.s32.totalorder %s148, %s150
      %p157 = scmp.eq.s32.totalorder %s20, 1
      %p158 = por %p156, %p157
      %p159 = scmp.ne.s32.totalorder %s150, %s151
      %p160 = scmp.eq.s32.totalorder %s20, 0
      %p161 = por %p159, %p160
      %p162 = scmp.ne.s32.totalorder %s150, %s151
      %p163 = scmp.eq.s32.totalorder %s21, 1
      %p164 = por %p162, %p163
      %p166 = scmp.ne.s32.totalorder %s151, %s165
      %p167 = scmp.eq.s32.totalorder %s21, 0
      %p168 = por %p166, %p167
      %s169 = ssub.s32 %s15, %s22
      %p170 = scmp.eq.s32.totalorder %s169, 0
      %s172 = sadd.s32 %s171, 1
      %s173 = scalar_select %p170, %s171, %s172
      %p176 = pneg %p170
      %p177 = scmp.eq.s32.totalorder %s15, 1
      %p178 = por %p176, %p177
      %p179 = scmp.ne.s32.totalorder %s171, %s174
      %p180 = scmp.eq.s32.totalorder %s15, 0
      %p181 = por %p179, %p180
      %p182 = scmp.ne.s32.totalorder %s171, %s174
      %p183 = scmp.eq.s32.totalorder %s20, 1
      %p184 = por %p182, %p183
      %p185 = scmp.ne.s32.totalorder %s174, %s175
      %p186 = scmp.eq.s32.totalorder %s20, 0
      %p187 = por %p185, %p186
      %p188 = scmp.ne.s32.totalorder %s174, %s175
      %p189 = scmp.eq.s32.totalorder %s21, 1
      %p190 = por %p188, %p189
      %p192 = scmp.ne.s32.totalorder %s175, %s191
      %p193 = scmp.eq.s32.totalorder %s21, 0
      %p194 = por %p192, %p193
      %p195 = scmp.le.s32.totalorder 1, %s15
      %p196 = scmp.lt.s32.totalorder %s15, 3
      %p197 = pnand %p195, %p196
      %p198 = pneg %p197
      // Predicated region
      $region9: #{inception_forward.11} parent=5 // pred_check
        _
      $region10: #{inception_forward.11} parent=5 // pred_check_branch
        %200 = sbr.rel (%p197) target = $region12
      $region11: #{inception_forward.11} parent=5 // pred_region
        %s201 = ssub.s32 %s15, 1
        // Predicated region
        $region13: #{inception_forward.11} parent=11 // pred_check
          %p202 = pneg %p140
        $region14: #{inception_forward.11} parent=11 // pred_check_branch
          %204 = sbr.rel (%p202) target = $region16
        $region15: #{inception_forward.11} parent=11 // pred_region
          _
        $region16: #{inception_forward.11} parent=11 // pred_fallthru
          _
        // Predicated region
        $region17: #{inception_forward.11} parent=11 // pred_check
          %p205 = pneg %p161
        $region18: #{inception_forward.11} parent=11 // pred_check_branch
          %207 = sbr.rel (%p205) target = $region20
        $region19: #{inception_forward.11} parent=11 // pred_region
          _
        $region20: #{inception_forward.11} parent=11 // pred_fallthru
          _
      $region12: #{inception_forward.11} parent=5 // pred_fallthru
        _
      %p208 = scmp.lt.s32.totalorder %s15, 2
      // Predicated region
      $region21: #{inception_forward.11} parent=5 // pred_check
        %p209 = pneg %p208
      $region22: #{inception_forward.11} parent=5 // pred_check_branch
        %211 = sbr.rel (%p209) target = $region24
      $region23: #{inception_forward.11} parent=5 // pred_region
        // Predicated region
        $region25: #{inception_forward.11} parent=23 // pred_check
          %p212 = pneg %p35
        $region26: #{inception_forward.11} parent=23 // pred_check_branch
          %214 = sbr.rel (%p212) target = $region28
        $region27: #{inception_forward.11} parent=23 // pred_region
          %s215 = smul.u32 32, %s15
          %p216 = scmp.lt.s32.totalorder %s215, 63
          %s217 = scalar_select %p216, %s215, 63
          %s218 = smul.addr %s217, 4
          %s219 = scalar_lea.vmem %s0, %s218
          %s220 = smul.u32 32, %s15
        $region28: #{inception_forward.11} parent=23 // pred_fallthru
          _
        // Predicated region
        $region29: #{inception_forward.11} parent=23 // pred_check
          %p221 = pneg %p61
        $region30: #{inception_forward.11} parent=23 // pred_check_branch
          %223 = sbr.rel (%p221) target = $region32
        $region31: #{inception_forward.11} parent=23 // pred_region
          %s224 = smul.u32 32, %s15
          %p225 = scmp.lt.s32.totalorder %s224, 63
          %s226 = scalar_select %p225, %s224, 63
          %s227 = smul.addr %s226, 4
          %s228 = scalar_lea.vmem %s1, %s227
          %s229 = smul.u32 32, %s15
        $region32: #{inception_forward.11} parent=23 // pred_fallthru
          _
        // Predicated region
        $region33: #{inception_forward.11} parent=23 // pred_check
          %p230 = pneg %p87
        $region34: #{inception_forward.11} parent=23 // pred_check_branch
          %232 = sbr.rel (%p230) target = $region36
        $region35: #{inception_forward.11} parent=23 // pred_region
          %s233 = smul.u32 32, %s15
          %p234 = scmp.lt.s32.totalorder %s233, 63
          %s235 = scalar_select %p234, %s233, 63
          %s236 = smul.addr %s235, 4
          %s237 = scalar_lea.vmem %s2, %s236
          %s238 = smul.u32 32, %s15
        $region36: #{inception_forward.11} parent=23 // pred_fallthru
          _
        // Predicated region
        $region37: #{inception_forward.11} parent=23 // pred_check
          %p239 = pneg %p113
        $region38: #{inception_forward.11} parent=23 // pred_check_branch
          %241 = sbr.rel (%p239) target = $region40
        $region39: #{inception_forward.11} parent=23 // pred_region
          %s242 = smul.u32 32, %s15
          %p243 = scmp.lt.s32.totalorder %s242, 63
          %s244 = scalar_select %p243, %s242, 63
          %s245 = smul.addr %s244, 4
          %s246 = scalar_lea.vmem %s3, %s245
          %s247 = smul.u32 32, %s15
        $region40: #{inception_forward.11} parent=23 // pred_fallthru
          _
      $region24: #{inception_forward.11} parent=5 // pred_fallthru
        _
      %p248 = scmp.le.s32.totalorder 1, %s15
      %p249 = scmp.lt.s32.totalorder %s15, 3
      %p250 = pnand %p248, %p249
      %p251 = pneg %p250
      // Predicated region
      $region41: #{inception_forward.11} parent=5 // pred_check
        _
      $region42: #{inception_forward.11} parent=5 // pred_check_branch
        %253 = sbr.rel (%p250) target = $region44
      $region43: #{inception_forward.11} parent=5 // pred_region
        %s254 = ssub.s32 %s15, 1
        %s255 = smul.u32 32, %s20
        %p256 = scmp.lt.s32.totalorder %s255, 63
        %s257 = scalar_select %p256, %s255, 63
        %s258 = smul.addr %s257, 4
        %s259 = scalar_lea.vmem %s0, %s258
        %p260 = pneg %p41
        %p261 = pneg %p38
        %s262 = smul.u32 32, %s20
        %p263 = scmp.lt.s32.totalorder %s262, 63
        %s264 = scalar_select %p263, %s262, 63
        %s265 = smul.addr %s264, 4
        %s266 = scalar_lea.vmem %s1, %s265
        %p267 = pneg %p67
        %p268 = pneg %p64
        %s269 = smul.u32 32, %s20
        %p270 = scmp.lt.s32.totalorder %s269, 63
        %s271 = scalar_select %p270, %s269, 63
        %s272 = smul.addr %s271, 4
        %s273 = scalar_lea.vmem %s2, %s272
        %p274 = pneg %p93
        %p275 = pneg %p90
        %s276 = smul.u32 32, %s20
        %p277 = scmp.lt.s32.totalorder %s276, 63
        %s278 = scalar_select %p277, %s276, 63
        %s279 = smul.addr %s278, 4
        %s280 = scalar_lea.vmem %s3, %s279
        %p281 = pneg %p119
        %p282 = pneg %p116
        %p283 = pneg %p140
        %p284 = pneg %p137
        %p285 = pneg %p161
        %p286 = pneg %p158
        %p287 = pneg %p187
        %p288 = pneg %p184
        %s289 = sand.u32 %s174, 1
        %s290 = scalar_lea.sflag [#allocation3], %s289
        %s291 = sand.u32 %s174, 1
        %s292 = smul.addr %s291, 256
        %s293 = scalar_lea.vmem [#allocation2], %s292
        %s294 = smul.u32 32, %s20
        %p295 = scmp.lt.s32.totalorder %s294, 63
        %s296 = scalar_select %p295, %s294, 63
        %s297 = smul.addr %s296, 4
        %s298 = scalar_lea.vmem %s0, %s297
        %s299 = smul.u32 32, %s20
        %s300 = smul.u32 32, %s20
        %p301 = scmp.lt.s32.totalorder %s300, 63
        %s302 = scalar_select %p301, %s300, 63
        %s303 = smul.addr %s302, 4
        %s304 = scalar_lea.vmem %s1, %s303
        %s305 = smul.u32 32, %s20
        %s306 = smul.u32 32, %s20
        %p307 = scmp.lt.s32.totalorder %s306, 63
        %s308 = scalar_select %p307, %s306, 63
        %s309 = smul.addr %s308, 4
        %s310 = scalar_lea.vmem %s2, %s309
        %s311 = smul.u32 32, %s20
        %s312 = smul.u32 32, %s20
        %p313 = scmp.lt.s32.totalorder %s312, 63
        %s314 = scalar_select %p313, %s312, 63
        %s315 = smul.addr %s314, 4
        %s316 = scalar_lea.vmem %s3, %s315
        %s317 = smul.u32 32, %s20
        %s318 = smul.u32 32, %s20
        %v319 = vld [vmem:[%s4] sm:$0x1]
        %v320 = vld [vmem:[%s5] sm:$0x1]
        %v321 = vld [vmem:[%s298] sm:$0xf]
        %v322 = vld [vmem:[%s298 + $0x4] sm:$0xf]
        %v323 = vld [vmem:[%s298 + $0x8] sm:$0xf]
        %v324 = vld [vmem:[%s298 + $0xc] sm:$0xf]
        %v325 = vld [vmem:[%s298 + $0x10] sm:$0xf]
        %v326 = vld [vmem:[%s298 + $0x14] sm:$0xf]
        %v327 = vld [vmem:[%s298 + $0x18] sm:$0xf]
        %v328 = vld [vmem:[%s298 + $0x1c] sm:$0xf]
        %v329 = vld [vmem:[%s298 + $0x20] sm:$0xf]
        %v330 = vld [vmem:[%s298 + $0x24] sm:$0xf]
        %v331 = vld [vmem:[%s298 + $0x28] sm:$0xf]
        %v332 = vld [vmem:[%s298 + $0x2c] sm:$0xf]
        %v333 = vld [vmem:[%s298 + $0x30] sm:$0xf]
        %v334 = vld [vmem:[%s298 + $0x34] sm:$0xf]
        %v335 = vld [vmem:[%s298 + $0x38] sm:$0xf]
        %v336 = vld [vmem:[%s298 + $0x3c] sm:$0xf]
        %v337 = vld [vmem:[%s298 + $0x40] sm:$0xf]
        %v338 = vld [vmem:[%s298 + $0x44] sm:$0xf]
        %v339 = vld [vmem:[%s298 + $0x48] sm:$0xf]
        %v340 = vld [vmem:[%s298 + $0x4c] sm:$0xf]
        %v341 = vld [vmem:[%s298 + $0x50] sm:$0xf]
        %v342 = vld [vmem:[%s298 + $0x54] sm:$0xf]
        %v343 = vld [vmem:[%s298 + $0x58] sm:$0xf]
        %v344 = vld [vmem:[%s298 + $0x5c] sm:$0xf]
        %v345 = vld [vmem:[%s298 + $0x60] sm:$0xf]
        %v346 = vld [vmem:[%s298 + $0x64] sm:$0xf]
        %v347 = vld [vmem:[%s298 + $0x68] sm:$0xf]
        %v348 = vld [vmem:[%s298 + $0x6c] sm:$0xf]
        %v349 = vld [vmem:[%s298 + $0x70] sm:$0xf]
        %v350 = vld [vmem:[%s298 + $0x74] sm:$0xf]
        %v351 = vld [vmem:[%s298 + $0x78] sm:$0xf]
        %v352 = vld [vmem:[%s298 + $0x7c] sm:$0xf]
        %v353 = vunpack.c.l.bf16 %v321
        %v354 = vunpack.c.l.bf16 %v322
        %v355 = vunpack.c.l.bf16 %v323
        %v356 = vunpack.c.l.bf16 %v324
        %v357 = vunpack.c.l.bf16 %v325
        %v358 = vunpack.c.l.bf16 %v326
        %v359 = vunpack.c.l.bf16 %v327
        %v360 = vunpack.c.l.bf16 %v328
        %v361 = vunpack.c.l.bf16 %v329
        %v362 = vunpack.c.l.bf16 %v330
        %v363 = vunpack.c.l.bf16 %v331
        %v364 = vunpack.c.l.bf16 %v332
        %v365 = vunpack.c.l.bf16 %v333
        %v366 = vunpack.c.l.bf16 %v334
        %v367 = vunpack.c.l.bf16 %v335
        %v368 = vunpack.c.l.bf16 %v336
        %v369 = vunpack.c.l.bf16 %v337
        %v370 = vunpack.c.l.bf16 %v338
        %v371 = vunpack.c.l.bf16 %v339
        %v372 = vunpack.c.l.bf16 %v340
        %v373 = vunpack.c.l.bf16 %v341
        %v374 = vunpack.c.l.bf16 %v342
        %v375 = vunpack.c.l.bf16 %v343
        %v376 = vunpack.c.l.bf16 %v344
        %v377 = vunpack.c.l.bf16 %v345
        %v378 = vunpack.c.l.bf16 %v346
        %v379 = vunpack.c.l.bf16 %v347
        %v380 = vunpack.c.l.bf16 %v348
        %v381 = vunpack.c.l.bf16 %v349
        %v382 = vunpack.c.l.bf16 %v350
        %v383 = vunpack.c.l.bf16 %v351
        %v384 = vunpack.c.l.bf16 %v352
        %v386 = vperm.slane %v319, 0
        %v388 = vmul.f32 %v353, %v386
        %v389 = vmul.f32 %v354, %v386
        %v390 = vmul.f32 %v355, %v386
        %v391 = vmul.f32 %v356, %v386
        %v392 = vmul.f32 %v357, %v386
        %v393 = vmul.f32 %v358, %v386
        %v394 = vmul.f32 %v359, %v386
        %v395 = vmul.f32 %v360, %v386
        %v396 = vmul.f32 %v361, %v386
        %v397 = vmul.f32 %v362, %v386
        %v398 = vmul.f32 %v363, %v386
        %v399 = vmul.f32 %v364, %v386
        %v400 = vmul.f32 %v365, %v386
        %v401 = vmul.f32 %v366, %v386
        %v402 = vmul.f32 %v367, %v386
        %v403 = vmul.f32 %v368, %v386
        %v404 = vmul.f32 %v369, %v386
        %v405 = vmul.f32 %v370, %v386
        %v406 = vmul.f32 %v371, %v386
        %v407 = vmul.f32 %v372, %v386
        %v408 = vmul.f32 %v373, %v386
        %v409 = vmul.f32 %v374, %v386
        %v410 = vmul.f32 %v375, %v386
        %v411 = vmul.f32 %v376, %v386
        %v412 = vmul.f32 %v377, %v386
        %v413 = vmul.f32 %v378, %v386
        %v414 = vmul.f32 %v379, %v386
        %v415 = vmul.f32 %v380, %v386
        %v416 = vmul.f32 %v381, %v386
        %v417 = vmul.f32 %v382, %v386
        %v418 = vmul.f32 %v383, %v386
        %v419 = vmul.f32 %v384, %v386
        %v421 = vperm.slane %v320, 0
        %v423 = vadd.f32 %v388, %v421
        %v424 = vadd.f32 %v389, %v421
        %v425 = vadd.f32 %v390, %v421
        %v426 = vadd.f32 %v391, %v421
        %v427 = vadd.f32 %v392, %v421
        %v428 = vadd.f32 %v393, %v421
        %v429 = vadd.f32 %v394, %v421
        %v430 = vadd.f32 %v395, %v421
        %v431 = vadd.f32 %v396, %v421
        %v432 = vadd.f32 %v397, %v421
        %v433 = vadd.f32 %v398, %v421
        %v434 = vadd.f32 %v399, %v421
        %v435 = vadd.f32 %v400, %v421
        %v436 = vadd.f32 %v401, %v421
        %v437 = vadd.f32 %v402, %v421
        %v438 = vadd.f32 %v403, %v421
        %v439 = vadd.f32 %v404, %v421
        %v440 = vadd.f32 %v405, %v421
        %v441 = vadd.f32 %v406, %v421
        %v442 = vadd.f32 %v407, %v421
        %v443 = vadd.f32 %v408, %v421
        %v444 = vadd.f32 %v409, %v421
        %v445 = vadd.f32 %v410, %v421
        %v446 = vadd.f32 %v411, %v421
        %v447 = vadd.f32 %v412, %v421
        %v448 = vadd.f32 %v413, %v421
        %v449 = vadd.f32 %v414, %v421
        %v450 = vadd.f32 %v415, %v421
        %v451 = vadd.f32 %v416, %v421
        %v452 = vadd.f32 %v417, %v421
        %v453 = vadd.f32 %v418, %v421
        %v454 = vadd.f32 %v419, %v421
        %v455 = vmax.f32 %v423, 0.0
        %v456 = vmax.f32 %v424, 0.0
        %v457 = vmax.f32 %v425, 0.0
        %v458 = vmax.f32 %v426, 0.0
        %v459 = vmax.f32 %v427, 0.0
        %v460 = vmax.f32 %v428, 0.0
        %v461 = vmax.f32 %v429, 0.0
        %v462 = vmax.f32 %v430, 0.0
        %v463 = vmax.f32 %v431, 0.0
        %v464 = vmax.f32 %v432, 0.0
        %v465 = vmax.f32 %v433, 0.0
        %v466 = vmax.f32 %v434, 0.0
        %v467 = vmax.f32 %v435, 0.0
        %v468 = vmax.f32 %v436, 0.0
        %v469 = vmax.f32 %v437, 0.0
        %v470 = vmax.f32 %v438, 0.0
        %v471 = vmax.f32 %v439, 0.0
        %v472 = vmax.f32 %v440, 0.0
        %v473 = vmax.f32 %v441, 0.0
        %v474 = vmax.f32 %v442, 0.0
        %v475 = vmax.f32 %v443, 0.0
        %v476 = vmax.f32 %v444, 0.0
        %v477 = vmax.f32 %v445, 0.0
        %v478 = vmax.f32 %v446, 0.0
        %v479 = vmax.f32 %v447, 0.0
        %v480 = vmax.f32 %v448, 0.0
        %v481 = vmax.f32 %v449, 0.0
        %v482 = vmax.f32 %v450, 0.0
        %v483 = vmax.f32 %v451, 0.0
        %v484 = vmax.f32 %v452, 0.0
        %v485 = vmax.f32 %v453, 0.0
        %v486 = vmax.f32 %v454, 0.0
        %vm487 = vcmask 64512
        %488 = vst.msk [vmem:[%s293] sm:$0xff] %vm487, %v455
        %489 = vst.msk [vmem:[%s293 + $0x8] sm:$0xff] %vm487, %v456
        %490 = vst.msk [vmem:[%s293 + $0x10] sm:$0xff] %vm487, %v457
        %491 = vst.msk [vmem:[%s293 + $0x18] sm:$0xff] %vm487, %v458
        %492 = vst.msk [vmem:[%s293 + $0x20] sm:$0xff] %vm487, %v459
        %493 = vst.msk [vmem:[%s293 + $0x28] sm:$0xff] %vm487, %v460
        %494 = vst.msk [vmem:[%s293 + $0x30] sm:$0xff] %vm487, %v461
        %495 = vst.msk [vmem:[%s293 + $0x38] sm:$0xff] %vm487, %v462
        %496 = vst.msk [vmem:[%s293 + $0x40] sm:$0xff] %vm487, %v463
        %497 = vst.msk [vmem:[%s293 + $0x48] sm:$0xff] %vm487, %v464
        %498 = vst.msk [vmem:[%s293 + $0x50] sm:$0xff] %vm487, %v465
        %499 = vst.msk [vmem:[%s293 + $0x58] sm:$0xff] %vm487, %v466
        %500 = vst.msk [vmem:[%s293 + $0x60] sm:$0xff] %vm487, %v467
        %501 = vst.msk [vmem:[%s293 + $0x68] sm:$0xff] %vm487, %v468
        %502 = vst.msk [vmem:[%s293 + $0x70] sm:$0xff] %vm487, %v469
        %503 = vst.msk [vmem:[%s293 + $0x78] sm:$0xff] %vm487, %v470
        %504 = vst.msk [vmem:[%s293 + $0x80] sm:$0xff] %vm487, %v471
        %505 = vst.msk [vmem:[%s293 + $0x88] sm:$0xff] %vm487, %v472
        %506 = vst.msk [vmem:[%s293 + $0x90] sm:$0xff] %vm487, %v473
        %507 = vst.msk [vmem:[%s293 + $0x98] sm:$0xff] %vm487, %v474
        %508 = vst.msk [vmem:[%s293 + $0xa0] sm:$0xff] %vm487, %v475
        %509 = vst.msk [vmem:[%s293 + $0xa8] sm:$0xff] %vm487, %v476
        %510 = vst.msk [vmem:[%s293 + $0xb0] sm:$0xff] %vm487, %v477
        %511 = vst.msk [vmem:[%s293 + $0xb8] sm:$0xff] %vm487, %v478
        %512 = vst.msk [vmem:[%s293 + $0xc0] sm:$0xff] %vm487, %v479
        %513 = vst.msk [vmem:[%s293 + $0xc8] sm:$0xff] %vm487, %v480
        %514 = vst.msk [vmem:[%s293 + $0xd0] sm:$0xff] %vm487, %v481
        %515 = vst.msk [vmem:[%s293 + $0xd8] sm:$0xff] %vm487, %v482
        %516 = vst.msk [vmem:[%s293 + $0xe0] sm:$0xff] %vm487, %v483
        %517 = vst.msk [vmem:[%s293 + $0xe8] sm:$0xff] %vm487, %v484
        %518 = vst.msk [vmem:[%s293 + $0xf0] sm:$0xff] %vm487, %v485
        %519 = vst.msk [vmem:[%s293 + $0xf8] sm:$0xff] %vm487, %v486
        %v520 = vld [vmem:[%s4] sm:$0x1]
        %v521 = vld [vmem:[%s5] sm:$0x1]
        %v522 = vld [vmem:[%s304] sm:$0xf]
        %v523 = vld [vmem:[%s304 + $0x4] sm:$0xf]
        %v524 = vld [vmem:[%s304 + $0x8] sm:$0xf]
        %v525 = vld [vmem:[%s304 + $0xc] sm:$0xf]
        %v526 = vld [vmem:[%s304 + $0x10] sm:$0xf]
        %v527 = vld [vmem:[%s304 + $0x14] sm:$0xf]
        %v528 = vld [vmem:[%s304 + $0x18] sm:$0xf]
        %v529 = vld [vmem:[%s304 + $0x1c] sm:$0xf]
        %v530 = vld [vmem:[%s304 + $0x20] sm:$0xf]
        %v531 = vld [vmem:[%s304 + $0x24] sm:$0xf]
        %v532 = vld [vmem:[%s304 + $0x28] sm:$0xf]
        %v533 = vld [vmem:[%s304 + $0x2c] sm:$0xf]
        %v534 = vld [vmem:[%s304 + $0x30] sm:$0xf]
        %v535 = vld [vmem:[%s304 + $0x34] sm:$0xf]
        %v536 = vld [vmem:[%s304 + $0x38] sm:$0xf]
        %v537 = vld [vmem:[%s304 + $0x3c] sm:$0xf]
        %v538 = vld [vmem:[%s304 + $0x40] sm:$0xf]
        %v539 = vld [vmem:[%s304 + $0x44] sm:$0xf]
        %v540 = vld [vmem:[%s304 + $0x48] sm:$0xf]
        %v541 = vld [vmem:[%s304 + $0x4c] sm:$0xf]
        %v542 = vld [vmem:[%s304 + $0x50] sm:$0xf]
        %v543 = vld [vmem:[%s304 + $0x54] sm:$0xf]
        %v544 = vld [vmem:[%s304 + $0x58] sm:$0xf]
        %v545 = vld [vmem:[%s304 + $0x5c] sm:$0xf]
        %v546 = vld [vmem:[%s304 + $0x60] sm:$0xf]
        %v547 = vld [vmem:[%s304 + $0x64] sm:$0xf]
        %v548 = vld [vmem:[%s304 + $0x68] sm:$0xf]
        %v549 = vld [vmem:[%s304 + $0x6c] sm:$0xf]
        %v550 = vld [vmem:[%s304 + $0x70] sm:$0xf]
        %v551 = vld [vmem:[%s304 + $0x74] sm:$0xf]
        %v552 = vld [vmem:[%s304 + $0x78] sm:$0xf]
        %v553 = vld [vmem:[%s304 + $0x7c] sm:$0xf]
        %v554 = vunpack.c.l.bf16 %v522
        %v555 = vunpack.c.l.bf16 %v523
        %v556 = vunpack.c.l.bf16 %v524
        %v557 = vunpack.c.l.bf16 %v525
        %v558 = vunpack.c.l.bf16 %v526
        %v559 = vunpack.c.l.bf16 %v527
        %v560 = vunpack.c.l.bf16 %v528
        %v561 = vunpack.c.l.bf16 %v529
        %v562 = vunpack.c.l.bf16 %v530
        %v563 = vunpack.c.l.bf16 %v531
        %v564 = vunpack.c.l.bf16 %v532
        %v565 = vunpack.c.l.bf16 %v533
        %v566 = vunpack.c.l.bf16 %v534
        %v567 = vunpack.c.l.bf16 %v535
        %v568 = vunpack.c.l.bf16 %v536
        %v569 = vunpack.c.l.bf16 %v537
        %v570 = vunpack.c.l.bf16 %v538
        %v571 = vunpack.c.l.bf16 %v539
        %v572 = vunpack.c.l.bf16 %v540
        %v573 = vunpack.c.l.bf16 %v541
        %v574 = vunpack.c.l.bf16 %v542
        %v575 = vunpack.c.l.bf16 %v543
        %v576 = vunpack.c.l.bf16 %v544
        %v577 = vunpack.c.l.bf16 %v545
        %v578 = vunpack.c.l.bf16 %v546
        %v579 = vunpack.c.l.bf16 %v547
        %v580 = vunpack.c.l.bf16 %v548
        %v581 = vunpack.c.l.bf16 %v549
        %v582 = vunpack.c.l.bf16 %v550
        %v583 = vunpack.c.l.bf16 %v551
        %v584 = vunpack.c.l.bf16 %v552
        %v585 = vunpack.c.l.bf16 %v553
        %v587 = vperm.slane %v520, 0
        %588 = vrot.lane.b32.xlu0 %v587, 120
        %v589 = vpop.permute.xlu0 %588
        %v591 = vmul.f32 %v554, %v589
        %v592 = vmul.f32 %v555, %v589
        %v593 = vmul.f32 %v556, %v589
        %v594 = vmul.f32 %v557, %v589
        %v595 = vmul.f32 %v558, %v589
        %v596 = vmul.f32 %v559, %v589
        %v597 = vmul.f32 %v560, %v589
        %v598 = vmul.f32 %v561, %v589
        %v599 = vmul.f32 %v562, %v589
        %v600 = vmul.f32 %v563, %v589
        %v601 = vmul.f32 %v564, %v589
        %v602 = vmul.f32 %v565, %v589
        %v603 = vmul.f32 %v566, %v589
        %v604 = vmul.f32 %v567, %v589
        %v605 = vmul.f32 %v568, %v589
        %v606 = vmul.f32 %v569, %v589
        %v607 = vmul.f32 %v570, %v589
        %v608 = vmul.f32 %v571, %v589
        %v609 = vmul.f32 %v572, %v589
        %v610 = vmul.f32 %v573, %v589
        %v611 = vmul.f32 %v574, %v589
        %v612 = vmul.f32 %v575, %v589
        %v613 = vmul.f32 %v576, %v589
        %v614 = vmul.f32 %v577, %v589
        %v615 = vmul.f32 %v578, %v589
        %v616 = vmul.f32 %v579, %v589
        %v617 = vmul.f32 %v580, %v589
        %v618 = vmul.f32 %v581, %v589
        %v619 = vmul.f32 %v582, %v589
        %v620 = vmul.f32 %v583, %v589
        %v621 = vmul.f32 %v584, %v589
        %v622 = vmul.f32 %v585, %v589
        %v624 = vperm.slane %v521, 0
        %625 = vrot.lane.b32.xlu0 %v624, 120
        %v626 = vpop.permute.xlu0 %625
        %v628 = vadd.f32 %v591, %v626
        %v629 = vadd.f32 %v592, %v626
        %v630 = vadd.f32 %v593, %v626
        %v631 = vadd.f32 %v594, %v626
        %v632 = vadd.f32 %v595, %v626
        %v633 = vadd.f32 %v596, %v626
        %v634 = vadd.f32 %v597, %v626
        %v635 = vadd.f32 %v598, %v626
        %v636 = vadd.f32 %v599, %v626
        %v637 = vadd.f32 %v600, %v626
        %v638 = vadd.f32 %v601, %v626
        %v639 = vadd.f32 %v602, %v626
        %v640 = vadd.f32 %v603, %v626
        %v641 = vadd.f32 %v604, %v626
        %v642 = vadd.f32 %v605, %v626
        %v643 = vadd.f32 %v606, %v626
        %v644 = vadd.f32 %v607, %v626
        %v645 = vadd.f32 %v608, %v626
        %v646 = vadd.f32 %v609, %v626
        %v647 = vadd.f32 %v610, %v626
        %v648 = vadd.f32 %v611, %v626
        %v649 = vadd.f32 %v612, %v626
        %v650 = vadd.f32 %v613, %v626
        %v651 = vadd.f32 %v614, %v626
        %v652 = vadd.f32 %v615, %v626
        %v653 = vadd.f32 %v616, %v626
        %v654 = vadd.f32 %v617, %v626
        %v655 = vadd.f32 %v618, %v626
        %v656 = vadd.f32 %v619, %v626
        %v657 = vadd.f32 %v620, %v626
        %v658 = vadd.f32 %v621, %v626
        %v659 = vadd.f32 %v622, %v626
        %v660 = vmax.f32 %v628, 0.0
        %v661 = vmax.f32 %v629, 0.0
        %v662 = vmax.f32 %v630, 0.0
        %v663 = vmax.f32 %v631, 0.0
        %v664 = vmax.f32 %v632, 0.0
        %v665 = vmax.f32 %v633, 0.0
        %v666 = vmax.f32 %v634, 0.0
        %v667 = vmax.f32 %v635, 0.0
        %v668 = vmax.f32 %v636, 0.0
        %v669 = vmax.f32 %v637, 0.0
        %v670 = vmax.f32 %v638, 0.0
        %v671 = vmax.f32 %v639, 0.0
        %v672 = vmax.f32 %v640, 0.0
        %v673 = vmax.f32 %v641, 0.0
        %v674 = vmax.f32 %v642, 0.0
        %v675 = vmax.f32 %v643, 0.0
        %v676 = vmax.f32 %v644, 0.0
        %v677 = vmax.f32 %v645, 0.0
        %v678 = vmax.f32 %v646, 0.0
        %v679 = vmax.f32 %v647, 0.0
        %v680 = vmax.f32 %v648, 0.0
        %v681 = vmax.f32 %v649, 0.0
        %v682 = vmax.f32 %v650, 0.0
        %v683 = vmax.f32 %v651, 0.0
        %v684 = vmax.f32 %v652, 0.0
        %v685 = vmax.f32 %v653, 0.0
        %v686 = vmax.f32 %v654, 0.0
        %v687 = vmax.f32 %v655, 0.0
        %v688 = vmax.f32 %v656, 0.0
        %v689 = vmax.f32 %v657, 0.0
        %v690 = vmax.f32 %v658, 0.0
        %v691 = vmax.f32 %v659, 0.0
        %724 = vrot.lane.b32.xlu0 %v660, 8
        %v725 = vpop.permute.xlu0 %724
        %726 = vrot.lane.b32.xlu0 %v661, 8
        %v727 = vpop.permute.xlu0 %726
        %728 = vrot.lane.b32.xlu0 %v662, 8
        %v729 = vpop.permute.xlu0 %728
        %730 = vrot.lane.b32.xlu0 %v663, 8
        %v731 = vpop.permute.xlu0 %730
        %732 = vrot.lane.b32.xlu0 %v664, 8
        %v733 = vpop.permute.xlu0 %732
        %734 = vrot.lane.b32.xlu0 %v665, 8
        %v735 = vpop.permute.xlu0 %734
        %736 = vrot.lane.b32.xlu0 %v666, 8
        %v737 = vpop.permute.xlu0 %736
        %738 = vrot.lane.b32.xlu0 %v667, 8
        %v739 = vpop.permute.xlu0 %738
        %740 = vrot.lane.b32.xlu0 %v668, 8
        %v741 = vpop.permute.xlu0 %740
        %742 = vrot.lane.b32.xlu0 %v669, 8
        %v743 = vpop.permute.xlu0 %742
        %744 = vrot.lane.b32.xlu0 %v670, 8
        %v745 = vpop.permute.xlu0 %744
        %746 = vrot.lane.b32.xlu0 %v671, 8
        %v747 = vpop.permute.xlu0 %746
        %748 = vrot.lane.b32.xlu0 %v672, 8
        %v749 = vpop.permute.xlu0 %748
        %750 = vrot.lane.b32.xlu0 %v673, 8
        %v751 = vpop.permute.xlu0 %750
        %752 = vrot.lane.b32.xlu0 %v674, 8
        %v753 = vpop.permute.xlu0 %752
        %754 = vrot.lane.b32.xlu0 %v675, 8
        %v755 = vpop.permute.xlu0 %754
        %756 = vrot.lane.b32.xlu0 %v676, 8
        %v757 = vpop.permute.xlu0 %756
        %758 = vrot.lane.b32.xlu0 %v677, 8
        %v759 = vpop.permute.xlu0 %758
        %760 = vrot.lane.b32.xlu0 %v678, 8
        %v761 = vpop.permute.xlu0 %760
        %762 = vrot.lane.b32.xlu0 %v679, 8
        %v763 = vpop.permute.xlu0 %762
        %764 = vrot.lane.b32.xlu0 %v680, 8
        %v765 = vpop.permute.xlu0 %764
        %766 = vrot.lane.b32.xlu0 %v681, 8
        %v767 = vpop.permute.xlu0 %766
        %768 = vrot.lane.b32.xlu0 %v682, 8
        %v769 = vpop.permute.xlu0 %768
        %770 = vrot.lane.b32.xlu0 %v683, 8
        %v771 = vpop.permute.xlu0 %770
        %772 = vrot.lane.b32.xlu0 %v684, 8
        %v773 = vpop.permute.xlu0 %772
        %774 = vrot.lane.b32.xlu0 %v685, 8
        %v775 = vpop.permute.xlu0 %774
        %776 = vrot.lane.b32.xlu0 %v686, 8
        %v777 = vpop.permute.xlu0 %776
        %778 = vrot.lane.b32.xlu0 %v687, 8
        %v779 = vpop.permute.xlu0 %778
        %780 = vrot.lane.b32.xlu0 %v688, 8
        %v781 = vpop.permute.xlu0 %780
        %782 = vrot.lane.b32.xlu0 %v689, 8
        %v783 = vpop.permute.xlu0 %782
        %784 = vrot.lane.b32.xlu0 %v690, 8
        %v785 = vpop.permute.xlu0 %784
        %786 = vrot.lane.b32.xlu0 %v691, 8
        %v787 = vpop.permute.xlu0 %786
        %vm820 = vcmask 130112
        %821 = vst.msk [vmem:[%s293] sm:$0xff] %vm820, %v725
        %822 = vst.msk [vmem:[%s293 + $0x8] sm:$0xff] %vm820, %v727
        %823 = vst.msk [vmem:[%s293 + $0x10] sm:$0xff] %vm820, %v729
        %824 = vst.msk [vmem:[%s293 + $0x18] sm:$0xff] %vm820, %v731
        %825 = vst.msk [vmem:[%s293 + $0x20] sm:$0xff] %vm820, %v733
        %826 = vst.msk [vmem:[%s293 + $0x28] sm:$0xff] %vm820, %v735
        %827 = vst.msk [vmem:[%s293 + $0x30] sm:$0xff] %vm820, %v737
        %828 = vst.msk [vmem:[%s293 + $0x38] sm:$0xff] %vm820, %v739
        %829 = vst.msk [vmem:[%s293 + $0x40] sm:$0xff] %vm820, %v741
        %830 = vst.msk [vmem:[%s293 + $0x48] sm:$0xff] %vm820, %v743
        %831 = vst.msk [vmem:[%s293 + $0x50] sm:$0xff] %vm820, %v745
        %832 = vst.msk [vmem:[%s293 + $0x58] sm:$0xff] %vm820, %v747
        %833 = vst.msk [vmem:[%s293 + $0x60] sm:$0xff] %vm820, %v749
        %834 = vst.msk [vmem:[%s293 + $0x68] sm:$0xff] %vm820, %v751
        %835 = vst.msk [vmem:[%s293 + $0x70] sm:$0xff] %vm820, %v753
        %836 = vst.msk [vmem:[%s293 + $0x78] sm:$0xff] %vm820, %v755
        %837 = vst.msk [vmem:[%s293 + $0x80] sm:$0xff] %vm820, %v757
        %838 = vst.msk [vmem:[%s293 + $0x88] sm:$0xff] %vm820, %v759
        %839 = vst.msk [vmem:[%s293 + $0x90] sm:$0xff] %vm820, %v761
        %840 = vst.msk [vmem:[%s293 + $0x98] sm:$0xff] %vm820, %v763
        %841 = vst.msk [vmem:[%s293 + $0xa0] sm:$0xff] %vm820, %v765
        %842 = vst.msk [vmem:[%s293 + $0xa8] sm:$0xff] %vm820, %v767
        %843 = vst.msk [vmem:[%s293 + $0xb0] sm:$0xff] %vm820, %v769
        %844 = vst.msk [vmem:[%s293 + $0xb8] sm:$0xff] %vm820, %v771
        %845 = vst.msk [vmem:[%s293 + $0xc0] sm:$0xff] %vm820, %v773
        %846 = vst.msk [vmem:[%s293 + $0xc8] sm:$0xff] %vm820, %v775
        %847 = vst.msk [vmem:[%s293 + $0xd0] sm:$0xff] %vm820, %v777
        %848 = vst.msk [vmem:[%s293 + $0xd8] sm:$0xff] %vm820, %v779
        %849 = vst.msk [vmem:[%s293 + $0xe0] sm:$0xff] %vm820, %v781
        %850 = vst.msk [vmem:[%s293 + $0xe8] sm:$0xff] %vm820, %v783
        %851 = vst.msk [vmem:[%s293 + $0xf0] sm:$0xff] %vm820, %v785
        %852 = vst.msk [vmem:[%s293 + $0xf8] sm:$0xff] %vm820, %v787
        %v853 = vld [vmem:[%s4] sm:$0x1]
        %v854 = vld [vmem:[%s5] sm:$0x1]
        %v855 = vld [vmem:[%s310] sm:$0xf]
        %v856 = vld [vmem:[%s310 + $0x4] sm:$0xf]
        %v857 = vld [vmem:[%s310 + $0x8] sm:$0xf]
        %v858 = vld [vmem:[%s310 + $0xc] sm:$0xf]
        %v859 = vld [vmem:[%s310 + $0x10] sm:$0xf]
        %v860 = vld [vmem:[%s310 + $0x14] sm:$0xf]
        %v861 = vld [vmem:[%s310 + $0x18] sm:$0xf]
        %v862 = vld [vmem:[%s310 + $0x1c] sm:$0xf]
        %v863 = vld [vmem:[%s310 + $0x20] sm:$0xf]
        %v864 = vld [vmem:[%s310 + $0x24] sm:$0xf]
        %v865 = vld [vmem:[%s310 + $0x28] sm:$0xf]
        %v866 = vld [vmem:[%s310 + $0x2c] sm:$0xf]
        %v867 = vld [vmem:[%s310 + $0x30] sm:$0xf]
        %v868 = vld [vmem:[%s310 + $0x34] sm:$0xf]
        %v869 = vld [vmem:[%s310 + $0x38] sm:$0xf]
        %v870 = vld [vmem:[%s310 + $0x3c] sm:$0xf]
        %v871 = vld [vmem:[%s310 + $0x40] sm:$0xf]
        %v872 = vld [vmem:[%s310 + $0x44] sm:$0xf]
        %v873 = vld [vmem:[%s310 + $0x48] sm:$0xf]
        %v874 = vld [vmem:[%s310 + $0x4c] sm:$0xf]
        %v875 = vld [vmem:[%s310 + $0x50] sm:$0xf]
        %v876 = vld [vmem:[%s310 + $0x54] sm:$0xf]
        %v877 = vld [vmem:[%s310 + $0x58] sm:$0xf]
        %v878 = vld [vmem:[%s310 + $0x5c] sm:$0xf]
        %v879 = vld [vmem:[%s310 + $0x60] sm:$0xf]
        %v880 = vld [vmem:[%s310 + $0x64] sm:$0xf]
        %v881 = vld [vmem:[%s310 + $0x68] sm:$0xf]
        %v882 = vld [vmem:[%s310 + $0x6c] sm:$0xf]
        %v883 = vld [vmem:[%s310 + $0x70] sm:$0xf]
        %v884 = vld [vmem:[%s310 + $0x74] sm:$0xf]
        %v885 = vld [vmem:[%s310 + $0x78] sm:$0xf]
        %v886 = vld [vmem:[%s310 + $0x7c] sm:$0xf]
        %v887 = vunpack.c.l.bf16 %v855
        %v888 = vunpack.c.l.bf16 %v856
        %v889 = vunpack.c.l.bf16 %v857
        %v890 = vunpack.c.l.bf16 %v858
        %v891 = vunpack.c.l.bf16 %v859
        %v892 = vunpack.c.l.bf16 %v860
        %v893 = vunpack.c.l.bf16 %v861
        %v894 = vunpack.c.l.bf16 %v862
        %v895 = vunpack.c.l.bf16 %v863
        %v896 = vunpack.c.l.bf16 %v864
        %v897 = vunpack.c.l.bf16 %v865
        %v898 = vunpack.c.l.bf16 %v866
        %v899 = vunpack.c.l.bf16 %v867
        %v900 = vunpack.c.l.bf16 %v868
        %v901 = vunpack.c.l.bf16 %v869
        %v902 = vunpack.c.l.bf16 %v870
        %v903 = vunpack.c.l.bf16 %v871
        %v904 = vunpack.c.l.bf16 %v872
        %v905 = vunpack.c.l.bf16 %v873
        %v906 = vunpack.c.l.bf16 %v874
        %v907 = vunpack.c.l.bf16 %v875
        %v908 = vunpack.c.l.bf16 %v876
        %v909 = vunpack.c.l.bf16 %v877
        %v910 = vunpack.c.l.bf16 %v878
        %v911 = vunpack.c.l.bf16 %v879
        %v912 = vunpack.c.l.bf16 %v880
        %v913 = vunpack.c.l.bf16 %v881
        %v914 = vunpack.c.l.bf16 %v882
        %v915 = vunpack.c.l.bf16 %v883
        %v916 = vunpack.c.l.bf16 %v884
        %v917 = vunpack.c.l.bf16 %v885
        %v918 = vunpack.c.l.bf16 %v886
        %v920 = vperm.slane %v853, 0
        %921 = vrot.lane.b32.xlu0 %v920, 112
        %v922 = vpop.permute.xlu0 %921
        %v924 = vmul.f32 %v887, %v922
        %v925 = vmul.f32 %v888, %v922
        %v926 = vmul.f32 %v889, %v922
        %v927 = vmul.f32 %v890, %v922
        %v928 = vmul.f32 %v891, %v922
        %v929 = vmul.f32 %v892, %v922
        %v930 = vmul.f32 %v893, %v922
        %v931 = vmul.f32 %v894, %v922
        %v932 = vmul.f32 %v895, %v922
        %v933 = vmul.f32 %v896, %v922
        %v934 = vmul.f32 %v897, %v922
        %v935 = vmul.f32 %v898, %v922
        %v936 = vmul.f32 %v899, %v922
        %v937 = vmul.f32 %v900, %v922
        %v938 = vmul.f32 %v901, %v922
        %v939 = vmul.f32 %v902, %v922
        %v940 = vmul.f32 %v903, %v922
        %v941 = vmul.f32 %v904, %v922
        %v942 = vmul.f32 %v905, %v922
        %v943 = vmul.f32 %v906, %v922
        %v944 = vmul.f32 %v907, %v922
        %v945 = vmul.f32 %v908, %v922
        %v946 = vmul.f32 %v909, %v922
        %v947 = vmul.f32 %v910, %v922
        %v948 = vmul.f32 %v911, %v922
        %v949 = vmul.f32 %v912, %v922
        %v950 = vmul.f32 %v913, %v922
        %v951 = vmul.f32 %v914, %v922
        %v952 = vmul.f32 %v915, %v922
        %v953 = vmul.f32 %v916, %v922
        %v954 = vmul.f32 %v917, %v922
        %v955 = vmul.f32 %v918, %v922
        %v957 = vperm.slane %v854, 0
        %958 = vrot.lane.b32.xlu0 %v957, 112
        %v959 = vpop.permute.xlu0 %958
        %v961 = vadd.f32 %v924, %v959
        %v962 = vadd.f32 %v925, %v959
        %v963 = vadd.f32 %v926, %v959
        %v964 = vadd.f32 %v927, %v959
        %v965 = vadd.f32 %v928, %v959
        %v966 = vadd.f32 %v929, %v959
        %v967 = vadd.f32 %v930, %v959
        %v968 = vadd.f32 %v931, %v959
        %v969 = vadd.f32 %v932, %v959
        %v970 = vadd.f32 %v933, %v959
        %v971 = vadd.f32 %v934, %v959
        %v972 = vadd.f32 %v935, %v959
        %v973 = vadd.f32 %v936, %v959
        %v974 = vadd.f32 %v937, %v959
        %v975 = vadd.f32 %v938, %v959
        %v976 = vadd.f32 %v939, %v959
        %v977 = vadd.f32 %v940, %v959
        %v978 = vadd.f32 %v941, %v959
        %v979 = vadd.f32 %v942, %v959
        %v980 = vadd.f32 %v943, %v959
        %v981 = vadd.f32 %v944, %v959
        %v982 = vadd.f32 %v945, %v959
        %v983 = vadd.f32 %v946, %v959
        %v984 = vadd.f32 %v947, %v959
        %v985 = vadd.f32 %v948, %v959
        %v986 = vadd.f32 %v949, %v959
        %v987 = vadd.f32 %v950, %v959
        %v988 = vadd.f32 %v951, %v959
        %v989 = vadd.f32 %v952, %v959
        %v990 = vadd.f32 %v953, %v959
        %v991 = vadd.f32 %v954, %v959
        %v992 = vadd.f32 %v955, %v959
        %v993 = vmax.f32 %v961, 0.0
        %v994 = vmax.f32 %v962, 0.0
        %v995 = vmax.f32 %v963, 0.0
        %v996 = vmax.f32 %v964, 0.0
        %v997 = vmax.f32 %v965, 0.0
        %v998 = vmax.f32 %v966, 0.0
        %v999 = vmax.f32 %v967, 0.0
        %v1000 = vmax.f32 %v968, 0.0
        %v1001 = vmax.f32 %v969, 0.0
        %v1002 = vmax.f32 %v970, 0.0
        %v1003 = vmax.f32 %v971, 0.0
        %v1004 = vmax.f32 %v972, 0.0
        %v1005 = vmax.f32 %v973, 0.0
        %v1006 = vmax.f32 %v974, 0.0
        %v1007 = vmax.f32 %v975, 0.0
        %v1008 = vmax.f32 %v976, 0.0
        %v1009 = vmax.f32 %v977, 0.0
        %v1010 = vmax.f32 %v978, 0.0
        %v1011 = vmax.f32 %v979, 0.0
        %v1012 = vmax.f32 %v980, 0.0
        %v1013 = vmax.f32 %v981, 0.0
        %v1014 = vmax.f32 %v982, 0.0
        %v1015 = vmax.f32 %v983, 0.0
        %v1016 = vmax.f32 %v984, 0.0
        %v1017 = vmax.f32 %v985, 0.0
        %v1018 = vmax.f32 %v986, 0.0
        %v1019 = vmax.f32 %v987, 0.0
        %v1020 = vmax.f32 %v988, 0.0
        %v1021 = vmax.f32 %v989, 0.0
        %v1022 = vmax.f32 %v990, 0.0
        %v1023 = vmax.f32 %v991, 0.0
        %v1024 = vmax.f32 %v992, 0.0
        %1057 = vrot.lane.b32.xlu0 %v993, 16
        %v1058 = vpop.permute.xlu0 %1057
        %1059 = vrot.lane.b32.xlu0 %v994, 16
        %v1060 = vpop.permute.xlu0 %1059
        %1061 = vrot.lane.b32.xlu0 %v995, 16
        %v1062 = vpop.permute.xlu0 %1061
        %1063 = vrot.lane.b32.xlu0 %v996, 16
        %v1064 = vpop.permute.xlu0 %1063
        %1065 = vrot.lane.b32.xlu0 %v997, 16
        %v1066 = vpop.permute.xlu0 %1065
        %1067 = vrot.lane.b32.xlu0 %v998, 16
        %v1068 = vpop.permute.xlu0 %1067
        %1069 = vrot.lane.b32.xlu0 %v999, 16
        %v1070 = vpop.permute.xlu0 %1069
        %1071 = vrot.lane.b32.xlu0 %v1000, 16
        %v1072 = vpop.permute.xlu0 %1071
        %1073 = vrot.lane.b32.xlu0 %v1001, 16
        %v1074 = vpop.permute.xlu0 %1073
        %1075 = vrot.lane.b32.xlu0 %v1002, 16
        %v1076 = vpop.permute.xlu0 %1075
        %1077 = vrot.lane.b32.xlu0 %v1003, 16
        %v1078 = vpop.permute.xlu0 %1077
        %1079 = vrot.lane.b32.xlu0 %v1004, 16
        %v1080 = vpop.permute.xlu0 %1079
        %1081 = vrot.lane.b32.xlu0 %v1005, 16
        %v1082 = vpop.permute.xlu0 %1081
        %1083 = vrot.lane.b32.xlu0 %v1006, 16
        %v1084 = vpop.permute.xlu0 %1083
        %1085 = vrot.lane.b32.xlu0 %v1007, 16
        %v1086 = vpop.permute.xlu0 %1085
        %1087 = vrot.lane.b32.xlu0 %v1008, 16
        %v1088 = vpop.permute.xlu0 %1087
        %1089 = vrot.lane.b32.xlu0 %v1009, 16
        %v1090 = vpop.permute.xlu0 %1089
        %1091 = vrot.lane.b32.xlu0 %v1010, 16
        %v1092 = vpop.permute.xlu0 %1091
        %1093 = vrot.lane.b32.xlu0 %v1011, 16
        %v1094 = vpop.permute.xlu0 %1093
        %1095 = vrot.lane.b32.xlu0 %v1012, 16
        %v1096 = vpop.permute.xlu0 %1095
        %1097 = vrot.lane.b32.xlu0 %v1013, 16
        %v1098 = vpop.permute.xlu0 %1097
        %1099 = vrot.lane.b32.xlu0 %v1014, 16
        %v1100 = vpop.permute.xlu0 %1099
        %1101 = vrot.lane.b32.xlu0 %v1015, 16
        %v1102 = vpop.permute.xlu0 %1101
        %1103 = vrot.lane.b32.xlu0 %v1016, 16
        %v1104 = vpop.permute.xlu0 %1103
        %1105 = vrot.lane.b32.xlu0 %v1017, 16
        %v1106 = vpop.permute.xlu0 %1105
        %1107 = vrot.lane.b32.xlu0 %v1018, 16
        %v1108 = vpop.permute.xlu0 %1107
        %1109 = vrot.lane.b32.xlu0 %v1019, 16
        %v1110 = vpop.permute.xlu0 %1109
        %1111 = vrot.lane.b32.xlu0 %v1020, 16
        %v1112 = vpop.permute.xlu0 %1111
        %1113 = vrot.lane.b32.xlu0 %v1021, 16
        %v1114 = vpop.permute.xlu0 %1113
        %1115 = vrot.lane.b32.xlu0 %v1022, 16
        %v1116 = vpop.permute.xlu0 %1115
        %1117 = vrot.lane.b32.xlu0 %v1023, 16
        %v1118 = vpop.permute.xlu0 %1117
        %1119 = vrot.lane.b32.xlu0 %v1024, 16
        %v1120 = vpop.permute.xlu0 %1119
        %vm1153 = vcmask 195712
        %1154 = vst.msk [vmem:[%s293] sm:$0xff] %vm1153, %v1058
        %1155 = vst.msk [vmem:[%s293 + $0x8] sm:$0xff] %vm1153, %v1060
        %1156 = vst.msk [vmem:[%s293 + $0x10] sm:$0xff] %vm1153, %v1062
        %1157 = vst.msk [vmem:[%s293 + $0x18] sm:$0xff] %vm1153, %v1064
        %1158 = vst.msk [vmem:[%s293 + $0x20] sm:$0xff] %vm1153, %v1066
        %1159 = vst.msk [vmem:[%s293 + $0x28] sm:$0xff] %vm1153, %v1068
        %1160 = vst.msk [vmem:[%s293 + $0x30] sm:$0xff] %vm1153, %v1070
        %1161 = vst.msk [vmem:[%s293 + $0x38] sm:$0xff] %vm1153, %v1072
        %1162 = vst.msk [vmem:[%s293 + $0x40] sm:$0xff] %vm1153, %v1074
        %1163 = vst.msk [vmem:[%s293 + $0x48] sm:$0xff] %vm1153, %v1076
        %1164 = vst.msk [vmem:[%s293 + $0x50] sm:$0xff] %vm1153, %v1078
        %1165 = vst.msk [vmem:[%s293 + $0x58] sm:$0xff] %vm1153, %v1080
        %1166 = vst.msk [vmem:[%s293 + $0x60] sm:$0xff] %vm1153, %v1082
        %1167 = vst.msk [vmem:[%s293 + $0x68] sm:$0xff] %vm1153, %v1084
        %1168 = vst.msk [vmem:[%s293 + $0x70] sm:$0xff] %vm1153, %v1086
        %1169 = vst.msk [vmem:[%s293 + $0x78] sm:$0xff] %vm1153, %v1088
        %1170 = vst.msk [vmem:[%s293 + $0x80] sm:$0xff] %vm1153, %v1090
        %1171 = vst.msk [vmem:[%s293 + $0x88] sm:$0xff] %vm1153, %v1092
        %1172 = vst.msk [vmem:[%s293 + $0x90] sm:$0xff] %vm1153, %v1094
        %1173 = vst.msk [vmem:[%s293 + $0x98] sm:$0xff] %vm1153, %v1096
        %1174 = vst.msk [vmem:[%s293 + $0xa0] sm:$0xff] %vm1153, %v1098
        %1175 = vst.msk [vmem:[%s293 + $0xa8] sm:$0xff] %vm1153, %v1100
        %1176 = vst.msk [vmem:[%s293 + $0xb0] sm:$0xff] %vm1153, %v1102
        %1177 = vst.msk [vmem:[%s293 + $0xb8] sm:$0xff] %vm1153, %v1104
        %1178 = vst.msk [vmem:[%s293 + $0xc0] sm:$0xff] %vm1153, %v1106
        %1179 = vst.msk [vmem:[%s293 + $0xc8] sm:$0xff] %vm1153, %v1108
        %1180 = vst.msk [vmem:[%s293 + $0xd0] sm:$0xff] %vm1153, %v1110
        %1181 = vst.msk [vmem:[%s293 + $0xd8] sm:$0xff] %vm1153, %v1112
        %1182 = vst.msk [vmem:[%s293 + $0xe0] sm:$0xff] %vm1153, %v1114
        %1183 = vst.msk [vmem:[%s293 + $0xe8] sm:$0xff] %vm1153, %v1116
        %1184 = vst.msk [vmem:[%s293 + $0xf0] sm:$0xff] %vm1153, %v1118
        %1185 = vst.msk [vmem:[%s293 + $0xf8] sm:$0xff] %vm1153, %v1120
        %v1186 = vld [vmem:[%s4] sm:$0x1]
        %v1187 = vld [vmem:[%s5] sm:$0x1]
        %v1188 = vld [vmem:[%s316] sm:$0xf]
        %v1189 = vld [vmem:[%s316 + $0x4] sm:$0xf]
        %v1190 = vld [vmem:[%s316 + $0x8] sm:$0xf]
        %v1191 = vld [vmem:[%s316 + $0xc] sm:$0xf]
        %v1192 = vld [vmem:[%s316 + $0x10] sm:$0xf]
        %v1193 = vld [vmem:[%s316 + $0x14] sm:$0xf]
        %v1194 = vld [vmem:[%s316 + $0x18] sm:$0xf]
        %v1195 = vld [vmem:[%s316 + $0x1c] sm:$0xf]
        %v1196 = vld [vmem:[%s316 + $0x20] sm:$0xf]
        %v1197 = vld [vmem:[%s316 + $0x24] sm:$0xf]
        %v1198 = vld [vmem:[%s316 + $0x28] sm:$0xf]
        %v1199 = vld [vmem:[%s316 + $0x2c] sm:$0xf]
        %v1200 = vld [vmem:[%s316 + $0x30] sm:$0xf]
        %v1201 = vld [vmem:[%s316 + $0x34] sm:$0xf]
        %v1202 = vld [vmem:[%s316 + $0x38] sm:$0xf]
        %v1203 = vld [vmem:[%s316 + $0x3c] sm:$0xf]
        %v1204 = vld [vmem:[%s316 + $0x40] sm:$0xf]
        %v1205 = vld [vmem:[%s316 + $0x44] sm:$0xf]
        %v1206 = vld [vmem:[%s316 + $0x48] sm:$0xf]
        %v1207 = vld [vmem:[%s316 + $0x4c] sm:$0xf]
        %v1208 = vld [vmem:[%s316 + $0x50] sm:$0xf]
        %v1209 = vld [vmem:[%s316 + $0x54] sm:$0xf]
        %v1210 = vld [vmem:[%s316 + $0x58] sm:$0xf]
        %v1211 = vld [vmem:[%s316 + $0x5c] sm:$0xf]
        %v1212 = vld [vmem:[%s316 + $0x60] sm:$0xf]
        %v1213 = vld [vmem:[%s316 + $0x64] sm:$0xf]
        %v1214 = vld [vmem:[%s316 + $0x68] sm:$0xf]
        %v1215 = vld [vmem:[%s316 + $0x6c] sm:$0xf]
        %v1216 = vld [vmem:[%s316 + $0x70] sm:$0xf]
        %v1217 = vld [vmem:[%s316 + $0x74] sm:$0xf]
        %v1218 = vld [vmem:[%s316 + $0x78] sm:$0xf]
        %v1219 = vld [vmem:[%s316 + $0x7c] sm:$0xf]
        %v1220 = vunpack.c.l.bf16 %v1188
        %v1221 = vunpack.c.l.bf16 %v1189
        %v1222 = vunpack.c.l.bf16 %v1190
        %v1223 = vunpack.c.l.bf16 %v1191
        %v1224 = vunpack.c.l.bf16 %v1192
        %v1225 = vunpack.c.l.bf16 %v1193
        %v1226 = vunpack.c.l.bf16 %v1194
        %v1227 = vunpack.c.l.bf16 %v1195
        %v1228 = vunpack.c.l.bf16 %v1196
        %v1229 = vunpack.c.l.bf16 %v1197
        %v1230 = vunpack.c.l.bf16 %v1198
        %v1231 = vunpack.c.l.bf16 %v1199
        %v1232 = vunpack.c.l.bf16 %v1200
        %v1233 = vunpack.c.l.bf16 %v1201
        %v1234 = vunpack.c.l.bf16 %v1202
        %v1235 = vunpack.c.l.bf16 %v1203
        %v1236 = vunpack.c.l.bf16 %v1204
        %v1237 = vunpack.c.l.bf16 %v1205
        %v1238 = vunpack.c.l.bf16 %v1206
        %v1239 = vunpack.c.l.bf16 %v1207
        %v1240 = vunpack.c.l.bf16 %v1208
        %v1241 = vunpack.c.l.bf16 %v1209
        %v1242 = vunpack.c.l.bf16 %v1210
        %v1243 = vunpack.c.l.bf16 %v1211
        %v1244 = vunpack.c.l.bf16 %v1212
        %v1245 = vunpack.c.l.bf16 %v1213
        %v1246 = vunpack.c.l.bf16 %v1214
        %v1247 = vunpack.c.l.bf16 %v1215
        %v1248 = vunpack.c.l.bf16 %v1216
        %v1249 = vunpack.c.l.bf16 %v1217
        %v1250 = vunpack.c.l.bf16 %v1218
        %v1251 = vunpack.c.l.bf16 %v1219
        %v1253 = vperm.slane %v1186, 0
        %1254 = vrot.lane.b32.xlu0 %v1253, 104
        %v1255 = vpop.permute.xlu0 %1254
        %v1257 = vmul.f32 %v1220, %v1255
        %v1258 = vmul.f32 %v1221, %v1255
        %v1259 = vmul.f32 %v1222, %v1255
        %v1260 = vmul.f32 %v1223, %v1255
        %v1261 = vmul.f32 %v1224, %v1255
        %v1262 = vmul.f32 %v1225, %v1255
        %v1263 = vmul.f32 %v1226, %v1255
        %v1264 = vmul.f32 %v1227, %v1255
        %v1265 = vmul.f32 %v1228, %v1255
        %v1266 = vmul.f32 %v1229, %v1255
        %v1267 = vmul.f32 %v1230, %v1255
        %v1268 = vmul.f32 %v1231, %v1255
        %v1269 = vmul.f32 %v1232, %v1255
        %v1270 = vmul.f32 %v1233, %v1255
        %v1271 = vmul.f32 %v1234, %v1255
        %v1272 = vmul.f32 %v1235, %v1255
        %v1273 = vmul.f32 %v1236, %v1255
        %v1274 = vmul.f32 %v1237, %v1255
        %v1275 = vmul.f32 %v1238, %v1255
        %v1276 = vmul.f32 %v1239, %v1255
        %v1277 = vmul.f32 %v1240, %v1255
        %v1278 = vmul.f32 %v1241, %v1255
        %v1279 = vmul.f32 %v1242, %v1255
        %v1280 = vmul.f32 %v1243, %v1255
        %v1281 = vmul.f32 %v1244, %v1255
        %v1282 = vmul.f32 %v1245, %v1255
        %v1283 = vmul.f32 %v1246, %v1255
        %v1284 = vmul.f32 %v1247, %v1255
        %v1285 = vmul.f32 %v1248, %v1255
        %v1286 = vmul.f32 %v1249, %v1255
        %v1287 = vmul.f32 %v1250, %v1255
        %v1288 = vmul.f32 %v1251, %v1255
        %v1290 = vperm.slane %v1187, 0
        %1291 = vrot.lane.b32.xlu0 %v1290, 104
        %v1292 = vpop.permute.xlu0 %1291
        %v1294 = vadd.f32 %v1257, %v1292
        %v1295 = vadd.f32 %v1258, %v1292
        %v1296 = vadd.f32 %v1259, %v1292
        %v1297 = vadd.f32 %v1260, %v1292
        %v1298 = vadd.f32 %v1261, %v1292
        %v1299 = vadd.f32 %v1262, %v1292
        %v1300 = vadd.f32 %v1263, %v1292
        %v1301 = vadd.f32 %v1264, %v1292
        %v1302 = vadd.f32 %v1265, %v1292
        %v1303 = vadd.f32 %v1266, %v1292
        %v1304 = vadd.f32 %v1267, %v1292
        %v1305 = vadd.f32 %v1268, %v1292
        %v1306 = vadd.f32 %v1269, %v1292
        %v1307 = vadd.f32 %v1270, %v1292
        %v1308 = vadd.f32 %v1271, %v1292
        %v1309 = vadd.f32 %v1272, %v1292
        %v1310 = vadd.f32 %v1273, %v1292
        %v1311 = vadd.f32 %v1274, %v1292
        %v1312 = vadd.f32 %v1275, %v1292
        %v1313 = vadd.f32 %v1276, %v1292
        %v1314 = vadd.f32 %v1277, %v1292
        %v1315 = vadd.f32 %v1278, %v1292
        %v1316 = vadd.f32 %v1279, %v1292
        %v1317 = vadd.f32 %v1280, %v1292
        %v1318 = vadd.f32 %v1281, %v1292
        %v1319 = vadd.f32 %v1282, %v1292
        %v1320 = vadd.f32 %v1283, %v1292
        %v1321 = vadd.f32 %v1284, %v1292
        %v1322 = vadd.f32 %v1285, %v1292
        %v1323 = vadd.f32 %v1286, %v1292
        %v1324 = vadd.f32 %v1287, %v1292
        %v1325 = vadd.f32 %v1288, %v1292
        %v1326 = vmax.f32 %v1294, 0.0
        %v1327 = vmax.f32 %v1295, 0.0
        %v1328 = vmax.f32 %v1296, 0.0
        %v1329 = vmax.f32 %v1297, 0.0
        %v1330 = vmax.f32 %v1298, 0.0
        %v1331 = vmax.f32 %v1299, 0.0
        %v1332 = vmax.f32 %v1300, 0.0
        %v1333 = vmax.f32 %v1301, 0.0
        %v1334 = vmax.f32 %v1302, 0.0
        %v1335 = vmax.f32 %v1303, 0.0
        %v1336 = vmax.f32 %v1304, 0.0
        %v1337 = vmax.f32 %v1305, 0.0
        %v1338 = vmax.f32 %v1306, 0.0
        %v1339 = vmax.f32 %v1307, 0.0
        %v1340 = vmax.f32 %v1308, 0.0
        %v1341 = vmax.f32 %v1309, 0.0
        %v1342 = vmax.f32 %v1310, 0.0
        %v1343 = vmax.f32 %v1311, 0.0
        %v1344 = vmax.f32 %v1312, 0.0
        %v1345 = vmax.f32 %v1313, 0.0
        %v1346 = vmax.f32 %v1314, 0.0
        %v1347 = vmax.f32 %v1315, 0.0
        %v1348 = vmax.f32 %v1316, 0.0
        %v1349 = vmax.f32 %v1317, 0.0
        %v1350 = vmax.f32 %v1318, 0.0
        %v1351 = vmax.f32 %v1319, 0.0
        %v1352 = vmax.f32 %v1320, 0.0
        %v1353 = vmax.f32 %v1321, 0.0
        %v1354 = vmax.f32 %v1322, 0.0
        %v1355 = vmax.f32 %v1323, 0.0
        %v1356 = vmax.f32 %v1324, 0.0
        %v1357 = vmax.f32 %v1325, 0.0
        %1390 = vrot.lane.b32.xlu0 %v1326, 24
        %v1391 = vpop.permute.xlu0 %1390
        %1392 = vrot.lane.b32.xlu0 %v1327, 24
        %v1393 = vpop.permute.xlu0 %1392
        %1394 = vrot.lane.b32.xlu0 %v1328, 24
        %v1395 = vpop.permute.xlu0 %1394
        %1396 = vrot.lane.b32.xlu0 %v1329, 24
        %v1397 = vpop.permute.xlu0 %1396
        %1398 = vrot.lane.b32.xlu0 %v1330, 24
        %v1399 = vpop.permute.xlu0 %1398
        %1400 = vrot.lane.b32.xlu0 %v1331, 24
        %v1401 = vpop.permute.xlu0 %1400
        %1402 = vrot.lane.b32.xlu0 %v1332, 24
        %v1403 = vpop.permute.xlu0 %1402
        %1404 = vrot.lane.b32.xlu0 %v1333, 24
        %v1405 = vpop.permute.xlu0 %1404
        %1406 = vrot.lane.b32.xlu0 %v1334, 24
        %v1407 = vpop.permute.xlu0 %1406
        %1408 = vrot.lane.b32.xlu0 %v1335, 24
        %v1409 = vpop.permute.xlu0 %1408
        %1410 = vrot.lane.b32.xlu0 %v1336, 24
        %v1411 = vpop.permute.xlu0 %1410
        %1412 = vrot.lane.b32.xlu0 %v1337, 24
        %v1413 = vpop.permute.xlu0 %1412
        %1414 = vrot.lane.b32.xlu0 %v1338, 24
        %v1415 = vpop.permute.xlu0 %1414
        %1416 = vrot.lane.b32.xlu0 %v1339, 24
        %v1417 = vpop.permute.xlu0 %1416
        %1418 = vrot.lane.b32.xlu0 %v1340, 24
        %v1419 = vpop.permute.xlu0 %1418
        %1420 = vrot.lane.b32.xlu0 %v1341, 24
        %v1421 = vpop.permute.xlu0 %1420
        %1422 = vrot.lane.b32.xlu0 %v1342, 24
        %v1423 = vpop.permute.xlu0 %1422
        %1424 = vrot.lane.b32.xlu0 %v1343, 24
        %v1425 = vpop.permute.xlu0 %1424
        %1426 = vrot.lane.b32.xlu0 %v1344, 24
        %v1427 = vpop.permute.xlu0 %1426
        %1428 = vrot.lane.b32.xlu0 %v1345, 24
        %v1429 = vpop.permute.xlu0 %1428
        %1430 = vrot.lane.b32.xlu0 %v1346, 24
        %v1431 = vpop.permute.xlu0 %1430
        %1432 = vrot.lane.b32.xlu0 %v1347, 24
        %v1433 = vpop.permute.xlu0 %1432
        %1434 = vrot.lane.b32.xlu0 %v1348, 24
        %v1435 = vpop.permute.xlu0 %1434
        %1436 = vrot.lane.b32.xlu0 %v1349, 24
        %v1437 = vpop.permute.xlu0 %1436
        %1438 = vrot.lane.b32.xlu0 %v1350, 24
        %v1439 = vpop.permute.xlu0 %1438
        %1440 = vrot.lane.b32.xlu0 %v1351, 24
        %v1441 = vpop.permute.xlu0 %1440
        %1442 = vrot.lane.b32.xlu0 %v1352, 24
        %v1443 = vpop.permute.xlu0 %1442
        %1444 = vrot.lane.b32.xlu0 %v1353, 24
        %v1445 = vpop.permute.xlu0 %1444
        %1446 = vrot.lane.b32.xlu0 %v1354, 24
        %v1447 = vpop.permute.xlu0 %1446
        %1448 = vrot.lane.b32.xlu0 %v1355, 24
        %v1449 = vpop.permute.xlu0 %1448
        %1450 = vrot.lane.b32.xlu0 %v1356, 24
        %v1451 = vpop.permute.xlu0 %1450
        %1452 = vrot.lane.b32.xlu0 %v1357, 24
        %v1453 = vpop.permute.xlu0 %1452
        %vm1486 = vcmask 261312
        %1487 = vst.msk [vmem:[%s293] sm:$0xff] %vm1486, %v1391
        %1488 = vst.msk [vmem:[%s293 + $0x8] sm:$0xff] %vm1486, %v1393
        %1489 = vst.msk [vmem:[%s293 + $0x10] sm:$0xff] %vm1486, %v1395
        %1490 = vst.msk [vmem:[%s293 + $0x18] sm:$0xff] %vm1486, %v1397
        %1491 = vst.msk [vmem:[%s293 + $0x20] sm:$0xff] %vm1486, %v1399
        %1492 = vst.msk [vmem:[%s293 + $0x28] sm:$0xff] %vm1486, %v1401
        %1493 = vst.msk [vmem:[%s293 + $0x30] sm:$0xff] %vm1486, %v1403
        %1494 = vst.msk [vmem:[%s293 + $0x38] sm:$0xff] %vm1486, %v1405
        %1495 = vst.msk [vmem:[%s293 + $0x40] sm:$0xff] %vm1486, %v1407
        %1496 = vst.msk [vmem:[%s293 + $0x48] sm:$0xff] %vm1486, %v1409
        %1497 = vst.msk [vmem:[%s293 + $0x50] sm:$0xff] %vm1486, %v1411
        %1498 = vst.msk [vmem:[%s293 + $0x58] sm:$0xff] %vm1486, %v1413
        %1499 = vst.msk [vmem:[%s293 + $0x60] sm:$0xff] %vm1486, %v1415
        %1500 = vst.msk [vmem:[%s293 + $0x68] sm:$0xff] %vm1486, %v1417
        %1501 = vst.msk [vmem:[%s293 + $0x70] sm:$0xff] %vm1486, %v1419
        %1502 = vst.msk [vmem:[%s293 + $0x78] sm:$0xff] %vm1486, %v1421
        %1503 = vst.msk [vmem:[%s293 + $0x80] sm:$0xff] %vm1486, %v1423
        %1504 = vst.msk [vmem:[%s293 + $0x88] sm:$0xff] %vm1486, %v1425
        %1505 = vst.msk [vmem:[%s293 + $0x90] sm:$0xff] %vm1486, %v1427
        %1506 = vst.msk [vmem:[%s293 + $0x98] sm:$0xff] %vm1486, %v1429
        %1507 = vst.msk [vmem:[%s293 + $0xa0] sm:$0xff] %vm1486, %v1431
        %1508 = vst.msk [vmem:[%s293 + $0xa8] sm:$0xff] %vm1486, %v1433
        %1509 = vst.msk [vmem:[%s293 + $0xb0] sm:$0xff] %vm1486, %v1435
        %1510 = vst.msk [vmem:[%s293 + $0xb8] sm:$0xff] %vm1486, %v1437
        %1511 = vst.msk [vmem:[%s293 + $0xc0] sm:$0xff] %vm1486, %v1439
        %1512 = vst.msk [vmem:[%s293 + $0xc8] sm:$0xff] %vm1486, %v1441
        %1513 = vst.msk [vmem:[%s293 + $0xd0] sm:$0xff] %vm1486, %v1443
        %1514 = vst.msk [vmem:[%s293 + $0xd8] sm:$0xff] %vm1486, %v1445
        %1515 = vst.msk [vmem:[%s293 + $0xe0] sm:$0xff] %vm1486, %v1447
        %1516 = vst.msk [vmem:[%s293 + $0xe8] sm:$0xff] %vm1486, %v1449
        %1517 = vst.msk [vmem:[%s293 + $0xf0] sm:$0xff] %vm1486, %v1451
        %1518 = vst.msk [vmem:[%s293 + $0xf8] sm:$0xff] %vm1486, %v1453
        %s1519 = sand.u32 %s174, 1
        %s1520 = scalar_lea.sflag [#allocation3], %s1519
        %s1521 = sand.u32 %s174, 1
        %s1522 = smul.addr %s1521, 256
        %s1523 = scalar_lea.vmem [#allocation2], %s1522
        // Predicated region
        $region45: #{inception_forward.11} parent=43 // pred_check
          %p1524 = pneg %p184
        $region46: #{inception_forward.11} parent=43 // pred_check_branch
          %1526 = sbr.rel (%p1524) target = $region48
        $region47: #{inception_forward.11} parent=43 // pred_region
          %s1527 = smul.u32 32, %s20
          %1529 = vsyncadd %s1520, 0
          %s1530 = smul.addr %s1527, 8
          %s1531 = scalar_lea.hbm %s6, %s1530
          %s1532 = sshll.u32 %s1523, 4
          %s1533 = int_to_ptr.vmem [resolvable:$true] %s1532
          %s1534 = sshll.u32 %s1531, 4
          %s1535 = int_to_ptr.hbm [resolvable:$true] %s1534
          %1540 = dma.vmem_to_hbm [thread:$0]  %s1533, 4096, %s1535, %s1520, 128, 128, 8
        $region48: #{inception_forward.11} parent=43 // pred_fallthru
          _
      $region44: #{inception_forward.11} parent=5 // pred_fallthru
        _
      %p1541 = scmp.le.s32.totalorder 2, %s15
      // Predicated region
      $region49: #{inception_forward.11} parent=5 // pred_check
        %p1542 = pneg %p1541
      $region50: #{inception_forward.11} parent=5 // pred_check_branch
        %1544 = sbr.rel (%p1542) target = $region52
      $region51: #{inception_forward.11} parent=5 // pred_region
        %s1545 = ssub.s32 %s15, 2
        // Predicated region
        $region53: #{inception_forward.11} parent=51 // pred_check
          %p1546 = pneg %p190
        $region54: #{inception_forward.11} parent=51 // pred_check_branch
          %1548 = sbr.rel (%p1546) target = $region56
        $region55: #{inception_forward.11} parent=51 // pred_region
          %s1549 = sand.u32 %s175, 1
          %s1550 = scalar_lea.sflag [#allocation3], %s1549
          %s1551 = sand.u32 %s175, 1
          %s1552 = smul.addr %s1551, 256
          %s1553 = scalar_lea.vmem [#allocation2], %s1552
          %1555 = dma.done %s1550, 4096
        $region56: #{inception_forward.11} parent=51 // pred_fallthru
          _
      $region52: #{inception_forward.11} parent=5 // pred_fallthru
        _
    $region6: #{inception_forward.11} parent=1 // loop_footer
      %s19 = sadd.s32 1, %s15
    $region7: #{inception_forward.11} parent=1 // loop_footer_branch
      %14 = sbr.rel target = $region3
    $region8: #{inception_forward.11} parent=1 // loop_exit
      _
    %1556 = vsyncpa [#allocation3], 1
    %s1557 = scalar_lea.sflag [#allocation3], 1
    %1558 = vsyncpa %s1557, 1

</llo_original>
